<compile_context>
chip_gen: v7x
topology: tpu7x:2x2x1
jax: 0.10.0
libtpu: 0.0.40
codegen_flags: <defaults>
</compile_context>

<pallas_src>
import functools

import jax
import jax.numpy as jnp
import numpy as np
from jax.experimental import pallas as pl
from jax.experimental.pallas import tpu as pltpu

STACK_SIZE = 1
BN_EPS = 1e-5


def conv_out(size, k, s):
    return (size - (k - 1) - 1) // s + 1


# ----------------------------------------------------------------------------
# Fused forward kernel.
#
# Row orderings:
#   * conv1 patch tensor xp: (t2, r) with t2 = i2*4 + j2 (conv2 tap, 4x4) and
#     r = (oh2*W2 + ow2)*B + b running over the *unique* conv2 output pixels.
#     The conv1 position feeding (t2, oh2, ow2) is (2*oh2 + i2, 2*ow2 + j2).
#   * conv2 output o2: rows (oh2, ow2, b)  -> each conv2 tap is one matmul.
#   * conv3 tap (i3, j3): its input rows, ordered (oh3, ow3, b), are h3
#     contiguous slabs o2[((oh3+i3)*W2 + j3)*B : + W3*B], assembled in-kernel.
#   * conv3 output o3: rows (p, b) with p = oh3*W3 + ow3, so linear position p
#     consumes the contiguous slice o3[p*B:(p+1)*B].
# Every layer is therefore a sum of dense MXU matmuls over statically-sliced
# row ranges -- no gathers, reshapes or transposes in-kernel.
# ----------------------------------------------------------------------------
def _dqn_fused_kernel(xp_ref, w1_ref, b1_ref, w2_ref, b2_ref, w3_ref, b3_ref,
                      wl_ref, bl_ref, wh_ref, bh_ref, out_ref,
                      *, batch, h2, w2, h3, w3):
    f32, bf16 = jnp.float32, jnp.bfloat16
    r2 = h2 * w2 * batch          # unique conv2 output rows
    r3 = h3 * w3 * batch          # conv3 output rows
    s3 = h3 * w3

    w1 = w1_ref[...]
    b1 = b1_ref[...]

    # conv1 (+bn1, relu) fused with conv2's 16-tap accumulation.  Each conv2
    # tap's conv1 patch block is a leading-dim index of xp (no row slicing).
    o2_acc = jnp.zeros((r2, 64), f32)
    for t2 in range(16):
        a1 = jnp.dot(xp_ref[t2], w1, preferred_element_type=f32) + b1   # (r2, 32)
        a1 = jnp.maximum(a1, 0.0).astype(bf16)
        o2_acc = o2_acc + jnp.dot(a1, w2_ref[t2], preferred_element_type=f32)
    o2 = jnp.maximum(o2_acc + b2_ref[...], 0.0).astype(bf16)            # (r2, 64)

    # conv3 (+relu): per tap, assemble the (r3, 64) input from h3 contiguous
    # row slabs of o2 (cheap XLU sublane work), then one MXU matmul per tap.
    o3_acc = jnp.zeros((r3, 64), f32)
    for i3 in range(3):
        for j3 in range(3):
            slabs = [o2[((oh3 + i3) * w2 + j3) * batch:
                        ((oh3 + i3) * w2 + j3) * batch + w3 * batch, :]
                     for oh3 in range(h3)]
            tap_in = jnp.concatenate(slabs, axis=0)                      # (r3, 64)
            o3_acc = o3_acc + jnp.dot(tap_in, w3_ref[i3 * 3 + j3],
                                      preferred_element_type=f32)
    o3 = jnp.maximum(o3_acc + b3_ref[...], 0.0).astype(bf16)            # (r3, 64)

    # linear (+relu): PyTorch's NCHW flatten is pre-folded into wl's
    # (spatial, channel, out) layout, so this is a sum over spatial positions.
    lin_acc = jnp.zeros((batch, 512), f32)
    for p in range(s3):
        lin_acc = lin_acc + jnp.dot(o3[p * batch:(p + 1) * batch, :], wl_ref[p],
                                    preferred_element_type=f32)
    lin = jnp.maximum(lin_acc + bl_ref[...], 0.0).astype(bf16)          # (B, 512)

    # head (output lane-padded to a multiple of 128; sliced outside the kernel).
    out_ref[...] = (jnp.dot(lin, wh_ref[...], preferred_element_type=f32)
                    + bh_ref[...]).astype(out_ref.dtype)


def _fused_forward_call(xp, bk, *, batch, h2, w2, h3, w3):
    r2 = h2 * w2 * batch
    r3 = h3 * w3 * batch
    s3 = h3 * w3
    r1 = 16 * r2
    assert xp.shape == (16, r2, 64), xp.shape
    assert bk["wl"].shape[0] == s3, (bk["wl"].shape, s3)
    n_head = bk["wh"].shape[1]

    kernel = functools.partial(_dqn_fused_kernel, batch=batch,
                               h2=h2, w2=w2, h3=h3, w3=w3)

    flops = 2 * (r1 * 64 * 32 + r1 * 32 * 64 + 9 * r3 * 64 * 64
                 + s3 * batch * 64 * 512 + batch * 512 * n_head)
    bytes_accessed = (
        2 * (xp.size + bk["w1"].size + bk["w2"].size + bk["w3"].size
             + bk["wl"].size + bk["wh"].size)
        + 4 * (bk["b1"].size + bk["b2"].size + bk["b3"].size
               + bk["bl"].size + bk["bh"].size)
        + 4 * batch * n_head)

    return pl.pallas_call(
        kernel,
        out_shape=jax.ShapeDtypeStruct((batch, n_head), jnp.float32),
        grid=(1,),
        in_specs=[
            pl.BlockSpec((16, r2, 64), lambda i: (0, 0, 0)),     # conv1 patches
            pl.BlockSpec(bk["w1"].shape, lambda i: (0, 0)),
            pl.BlockSpec(bk["b1"].shape, lambda i: (0, 0)),
            pl.BlockSpec(bk["w2"].shape, lambda i: (0, 0, 0)),
            pl.BlockSpec(bk["b2"].shape, lambda i: (0, 0)),
            pl.BlockSpec(bk["w3"].shape, lambda i: (0, 0, 0)),
            pl.BlockSpec(bk["b3"].shape, lambda i: (0, 0)),
            pl.BlockSpec(bk["wl"].shape, lambda i: (0, 0, 0)),
            pl.BlockSpec(bk["bl"].shape, lambda i: (0, 0)),
            pl.BlockSpec(bk["wh"].shape, lambda i: (0, 0)),
            pl.BlockSpec(bk["bh"].shape, lambda i: (0, 0)),
        ],
        out_specs=pl.BlockSpec((batch, n_head), lambda i: (0, 0)),
        compiler_params=pltpu.CompilerParams(dimension_semantics=("arbitrary",)),
        cost_estimate=pl.CostEstimate(flops=flops, transcendentals=0,
                                      bytes_accessed=bytes_accessed),
    )(xp, bk["w1"], bk["b1"], bk["w2"], bk["b2"], bk["w3"], bk["b3"],
      bk["wl"], bk["bl"], bk["wh"], bk["bh"])


# ----------------------------------------------------------------------------
# Wrapper-side glue: conv1 patch construction for the unique conv2 positions.
# (Trace-time numpy index; one strided-slice stack + one small row gather.)
# ----------------------------------------------------------------------------
def _dup_row_index(batch, h2, w2, hc, wc):
    i2, j2, oh, ow, b = np.meshgrid(
        np.arange(4), np.arange(4), np.arange(h2), np.arange(w2),
        np.arange(batch), indexing="ij")
    h1 = 2 * oh + i2
    w1 = 2 * ow + j2
    idx = b * (hc * wc) + h1 * wc + w1
    return jnp.asarray(idx.reshape(16, h2 * w2 * batch).astype(np.int32))


def dqn_forward(baked, x, *, num_outputs):
    B, C, H, W = x.shape
    assert C == STACK_SIZE == 1  # TODO(synk): generalize patch builder for STACK_SIZE > 1
    h1n, w1n = conv_out(H, 8, 4), conv_out(W, 8, 4)
    h2n, w2n = conv_out(h1n, 4, 2), conv_out(w1n, 4, 2)
    h3n, w3n = conv_out(h2n, 3, 1), conv_out(w2n, 3, 1)
    hc, wc = 2 * h2n + 2, 2 * w2n + 2      # conv1 output grid actually consumed
    assert hc <= h1n and wc <= w1n

    # conv1 im2col over the consumed hc x wc grid, channels-last, tap order (kh, kw).
    img = x[:, 0]
    cols = [img[:, ki:ki + 4 * hc:4, kj:kj + 4 * wc:4]
            for ki in range(8) for kj in range(8)]
    base = jnp.stack(cols, axis=-1).reshape(B * hc * wc, 64).astype(jnp.bfloat16)
    xp = jnp.take(base, _dup_row_index(B, h2n, w2n, hc, wc), axis=0)  # (16, R2, 64)

    out = _fused_forward_call(xp, baked, batch=B, h2=h2n, w2=w2n, h3=h3n, w3=w3n)
    return out[:, :num_outputs]


# ----------------------------------------------------------------------------
# One-time parameter baking: BN folding, per-tap weight splitting, NCHW-flatten
# permutation of the linear weight, head lane-padding, bf16 casts.
# ----------------------------------------------------------------------------
def bake_params(p):
    f32, bf16 = jnp.float32, jnp.bfloat16
    s3 = p["wl"].shape[1] // 64

    # conv1 + bn1 (eval fold): (32,1,8,8) -> (64, 32) with columns = out channels.
    s1 = p["g1"] / jnp.sqrt(p["v1"] + BN_EPS)
    w1 = (p["w1"].reshape(32, 64).T * s1[None, :]).astype(bf16)
    b1 = ((p["b1"] - p["m1"]) * s1 + p["beta1"]).reshape(1, 32).astype(f32)

    # conv2 + bn2 -> 16 per-tap (32, 64) weights, taps (i2, j2) row-major.
    s2 = p["g2"] / jnp.sqrt(p["v2"] + BN_EPS)
    w2 = jnp.transpose(p["w2"] * s2[:, None, None, None], (2, 3, 1, 0))
    w2 = w2.reshape(16, 32, 64).astype(bf16)
    b2 = ((p["b2"] - p["m2"]) * s2 + p["beta2"]).reshape(1, 64).astype(f32)

    # conv3 -> 9 per-tap (64, 64) weights, taps (i3, j3) row-major.
    w3 = jnp.transpose(p["w3"], (2, 3, 1, 0)).reshape(9, 64, 64).astype(bf16)
    b3 = p["b3"].reshape(1, 64).astype(f32)

    # linear: fold PyTorch NCHW flatten (index = c*S3 + p) -> (S3, 64, 512).
    wl = jnp.transpose(p["wl"].reshape(512, 64, s3), (2, 1, 0)).astype(bf16)
    bl = p["bl"].reshape(1, 512).astype(f32)

    # head: transpose and zero-pad outputs to a lane-dense multiple of 128.
    nout = p["wh"].shape[0]
    npad = ((nout + 127) // 128) * 128
    wh = jnp.pad(p["wh"].T, ((0, 0), (0, npad - nout))).astype(bf16)
    bh = jnp.pad(p["bh"], (0, npad - nout)).reshape(1, npad).astype(f32)

    return dict(w1=w1, b1=b1, w2=w2, b2=b2, w3=w3, b3=b3,
                wl=wl, bl=bl, wh=wh, bh=bh)


# ----------------------------------------------------------------------------
# Parameters (deterministic, PyTorch-shaped).
# ----------------------------------------------------------------------------
def init_params(key, h, w, outputs):
    convw = conv_out(conv_out(conv_out(w, 8, 4), 4, 2), 3, 1)
    convh = conv_out(conv_out(conv_out(h, 8, 4), 4, 2), 3, 1)
    lin_in = convw * convh * 64
    ks = jax.random.split(key, 20)

    def u(k, shape, fan_in):
        bound = 1.0 / jnp.sqrt(float(fan_in))
        return jax.random.uniform(k, shape, jnp.float32, -bound, bound)

    return {
        "w1": u(ks[0], (32, STACK_SIZE, 8, 8), STACK_SIZE * 8 * 8),
        "b1": u(ks[1], (32,), STACK_SIZE * 8 * 8),
        "g1": 1.0 + 0.1 * jax.random.normal(ks[2], (32,), jnp.float32),
        "beta1": 0.1 * jax.random.normal(ks[3], (32,), jnp.float32),
        "m1": 0.05 * jax.random.normal(ks[4], (32,), jnp.float32),
        "v1": 1.0 + 0.1 * jax.random.uniform(ks[5], (32,), jnp.float32),
        "w2": u(ks[6], (64, 32, 4, 4), 32 * 4 * 4),
        "b2": u(ks[7], (64,), 32 * 4 * 4),
        "g2": 1.0 + 0.1 * jax.random.normal(ks[8], (64,), jnp.float32),
        "beta2": 0.1 * jax.random.normal(ks[9], (64,), jnp.float32),
        "m2": 0.05 * jax.random.normal(ks[10], (64,), jnp.float32),
        "v2": 1.0 + 0.1 * jax.random.uniform(ks[11], (64,), jnp.float32),
        "w3": u(ks[12], (64, 64, 3, 3), 64 * 3 * 3),
        "b3": u(ks[13], (64,), 64 * 3 * 3),
        "wl": u(ks[14], (512, lin_in), lin_in),
        "bl": u(ks[15], (512,), lin_in),
        "wh": u(ks[16], (outputs, 512), 512),
        "bh": u(ks[17], (outputs,), 512),
    }


# Pure-JAX f32 reference for the numerical sanity check.
def dqn_reference(params, x):
    def conv(x, w, b, stride):
        y = jax.lax.conv_general_dilated(
            x, w, (stride, stride), "VALID",
            dimension_numbers=("NCHW", "OIHW", "NCHW"))
        return y + b[None, :, None, None]

    def bn(x, g, bt, m, v):
        return ((x - m[None, :, None, None])
                / jnp.sqrt(v + BN_EPS)[None, :, None, None]
                * g[None, :, None, None] + bt[None, :, None, None])

    y = jax.nn.relu(bn(conv(x, params["w1"], params["b1"], 4),
                       params["g1"], params["beta1"], params["m1"], params["v1"]))
    y = jax.nn.relu(bn(conv(y, params["w2"], params["b2"], 2),
                       params["g2"], params["beta2"], params["m2"], params["v2"]))
    y = jax.nn.relu(conv(y, params["w3"], params["b3"], 1))
    y = y.reshape(y.shape[0], -1)
    y = jax.nn.relu(y @ params["wl"].T + params["bl"])
    return y @ params["wh"].T + params["bh"]


if __name__ == "__main__":
    B, H, W, OUTPUTS = 2, 64, 64, 7
    key = jax.random.PRNGKey(0)
    k_params, k_x = jax.random.split(key)
    params = init_params(k_params, H, W, OUTPUTS)
    baked = bake_params(params)          # hoisted weight prep: done once at init
    x = jax.random.normal(k_x, (B, STACK_SIZE, H, W), jnp.float32)

    fwd = jax.jit(functools.partial(dqn_forward, num_outputs=OUTPUTS))
    out = jax.block_until_ready(fwd(baked, x))
    assert out.shape == (B, OUTPUTS), out.shape

    ref = jax.block_until_ready(jax.jit(dqn_reference)(params, x))
    # bf16 MXU inputs with f32 accumulation -> a few-percent tolerance is expected.
    assert jnp.allclose(out, ref, rtol=2e-2, atol=2e-2), \
        f"max abs diff {jnp.max(jnp.abs(out - ref))}"

    print("KERNEL_OK")
</pallas_src>

<mosaic_0001>
module attributes {stable_mosaic.version = 11 : i64} {
  func.func @_dqn_fused_kernel(%arg0: i32, %arg1: memref<16x72x64xbf16, #tpu.memory_space<vmem>>, %arg2: memref<64x32xbf16, #tpu.memory_space<vmem>>, %arg3: memref<1x32xf32, #tpu.memory_space<vmem>>, %arg4: memref<16x32x64xbf16, #tpu.memory_space<vmem>>, %arg5: memref<1x64xf32, #tpu.memory_space<vmem>>, %arg6: memref<9x64x64xbf16, #tpu.memory_space<vmem>>, %arg7: memref<1x64xf32, #tpu.memory_space<vmem>>, %arg8: memref<16x64x512xbf16, #tpu.memory_space<vmem>>, %arg9: memref<1x512xf32, #tpu.memory_space<vmem>>, %arg10: memref<512x128xbf16, #tpu.memory_space<vmem>>, %arg11: memref<1x128xf32, #tpu.memory_space<vmem>>, %arg12: memref<2x128xf32, #tpu.memory_space<vmem>>) attributes {dimension_semantics = [#tpu.dimension_semantics<arbitrary>], iteration_bounds = array<i64: 1>, scalar_prefetch = 0 : i64, scratch_operands = 0 : i64, tpu.core_type = #tpu.core_type<tc>, window_params = [{pipeline_mode = #tpu.pipeline_mode<synchronous>, transform_indices = @transform_0, window_bounds = array<i64: 16, 72, 64>}, {pipeline_mode = #tpu.pipeline_mode<synchronous>, transform_indices = @transform_1, window_bounds = array<i64: 64, 32>}, {pipeline_mode = #tpu.pipeline_mode<synchronous>, transform_indices = @transform_2, window_bounds = array<i64: 1, 32>}, {pipeline_mode = #tpu.pipeline_mode<synchronous>, transform_indices = @transform_3, window_bounds = array<i64: 16, 32, 64>}, {pipeline_mode = #tpu.pipeline_mode<synchronous>, transform_indices = @transform_4, window_bounds = array<i64: 1, 64>}, {pipeline_mode = #tpu.pipeline_mode<synchronous>, transform_indices = @transform_5, window_bounds = array<i64: 9, 64, 64>}, {pipeline_mode = #tpu.pipeline_mode<synchronous>, transform_indices = @transform_6, window_bounds = array<i64: 1, 64>}, {pipeline_mode = #tpu.pipeline_mode<synchronous>, transform_indices = @transform_7, window_bounds = array<i64: 16, 64, 512>}, {pipeline_mode = #tpu.pipeline_mode<synchronous>, transform_indices = @transform_8, window_bounds = array<i64: 1, 512>}, {pipeline_mode = #tpu.pipeline_mode<synchronous>, transform_indices = @transform_9, window_bounds = array<i64: 512, 128>}, {pipeline_mode = #tpu.pipeline_mode<synchronous>, transform_indices = @transform_10, window_bounds = array<i64: 1, 128>}, {pipeline_mode = #tpu.pipeline_mode<synchronous>, transform_indices = @transform_11, window_bounds = array<i64: 2, 128>}]} {
    %c0 = arith.constant 0 : index
    %c0_0 = arith.constant 0 : index
    %0 = vector.load %arg2[%c0, %c0_0] : memref<64x32xbf16, #tpu.memory_space<vmem>>, vector<64x32xbf16>
    %c0_1 = arith.constant 0 : index
    %c0_2 = arith.constant 0 : index
    %1 = vector.load %arg3[%c0_1, %c0_2] : memref<1x32xf32, #tpu.memory_space<vmem>>, vector<1x32xf32>
    %cst = arith.constant 0.000000e+00 : f32
    %2 = vector.broadcast %cst : f32 to vector<72x64xf32>
    %c0_3 = arith.constant 0 : index
    %c0_4 = arith.constant 0 : index
    %c0_5 = arith.constant 0 : index
    %3 = vector.load %arg1[%c0_3, %c0_4, %c0_5] : memref<16x72x64xbf16, #tpu.memory_space<vmem>>, vector<1x72x64xbf16>
    %4 = vector.shape_cast %3 : vector<1x72x64xbf16> to vector<72x64xbf16>
    %cst_6 = arith.constant dense<0.000000e+00> : vector<72x32xf32>
    %5 = tpu.matmul %4, %0, %cst_6 {dimension_numbers = #tpu.dot_dimension_numbers<[1], [0], [0], [1], [0, 0, 1, 1], [], []>} : vector<72x64xbf16>, vector<64x32xbf16>, vector<72x32xf32> -> vector<72x32xf32>
    %6 = vector.broadcast %1 : vector<1x32xf32> to vector<72x32xf32>
    %7 = arith.addf %5, %6 : vector<72x32xf32>
    %cst_7 = arith.constant 0.000000e+00 : f32
    %8 = vector.broadcast %cst_7 : f32 to vector<72x32xf32>
    %9 = arith.maximumf %7, %8 : vector<72x32xf32>
    %10 = arith.truncf %9 : vector<72x32xf32> to vector<72x32xbf16>
    %c0_8 = arith.constant 0 : index
    %c0_9 = arith.constant 0 : index
    %c0_10 = arith.constant 0 : index
    %11 = vector.load %arg4[%c0_8, %c0_9, %c0_10] : memref<16x32x64xbf16, #tpu.memory_space<vmem>>, vector<1x32x64xbf16>
    %12 = vector.shape_cast %11 : vector<1x32x64xbf16> to vector<32x64xbf16>
    %cst_11 = arith.constant dense<0.000000e+00> : vector<72x64xf32>
    %13 = tpu.matmul %10, %12, %cst_11 {dimension_numbers = #tpu.dot_dimension_numbers<[1], [0], [0], [1], [0, 0, 1, 1], [], []>} : vector<72x32xbf16>, vector<32x64xbf16>, vector<72x64xf32> -> vector<72x64xf32>
    %14 = arith.addf %2, %13 : vector<72x64xf32>
    %c1 = arith.constant 1 : index
    %c0_12 = arith.constant 0 : index
    %c0_13 = arith.constant 0 : index
    %15 = vector.load %arg1[%c1, %c0_12, %c0_13] : memref<16x72x64xbf16, #tpu.memory_space<vmem>>, vector<1x72x64xbf16>
    %16 = vector.shape_cast %15 : vector<1x72x64xbf16> to vector<72x64xbf16>
    %cst_14 = arith.constant dense<0.000000e+00> : vector<72x32xf32>
    %17 = tpu.matmul %16, %0, %cst_14 {dimension_numbers = #tpu.dot_dimension_numbers<[1], [0], [0], [1], [0, 0, 1, 1], [], []>} : vector<72x64xbf16>, vector<64x32xbf16>, vector<72x32xf32> -> vector<72x32xf32>
    %18 = vector.broadcast %1 : vector<1x32xf32> to vector<72x32xf32>
    %19 = arith.addf %17, %18 : vector<72x32xf32>
    %cst_15 = arith.constant 0.000000e+00 : f32
    %20 = vector.broadcast %cst_15 : f32 to vector<72x32xf32>
    %21 = arith.maximumf %19, %20 : vector<72x32xf32>
    %22 = arith.truncf %21 : vector<72x32xf32> to vector<72x32xbf16>
    %c1_16 = arith.constant 1 : index
    %c0_17 = arith.constant 0 : index
    %c0_18 = arith.constant 0 : index
    %23 = vector.load %arg4[%c1_16, %c0_17, %c0_18] : memref<16x32x64xbf16, #tpu.memory_space<vmem>>, vector<1x32x64xbf16>
    %24 = vector.shape_cast %23 : vector<1x32x64xbf16> to vector<32x64xbf16>
    %cst_19 = arith.constant dense<0.000000e+00> : vector<72x64xf32>
    %25 = tpu.matmul %22, %24, %cst_19 {dimension_numbers = #tpu.dot_dimension_numbers<[1], [0], [0], [1], [0, 0, 1, 1], [], []>} : vector<72x32xbf16>, vector<32x64xbf16>, vector<72x64xf32> -> vector<72x64xf32>
    %26 = arith.addf %14, %25 : vector<72x64xf32>
    %c2 = arith.constant 2 : index
    %c0_20 = arith.constant 0 : index
    %c0_21 = arith.constant 0 : index
    %27 = vector.load %arg1[%c2, %c0_20, %c0_21] : memref<16x72x64xbf16, #tpu.memory_space<vmem>>, vector<1x72x64xbf16>
    %28 = vector.shape_cast %27 : vector<1x72x64xbf16> to vector<72x64xbf16>
    %cst_22 = arith.constant dense<0.000000e+00> : vector<72x32xf32>
    %29 = tpu.matmul %28, %0, %cst_22 {dimension_numbers = #tpu.dot_dimension_numbers<[1], [0], [0], [1], [0, 0, 1, 1], [], []>} : vector<72x64xbf16>, vector<64x32xbf16>, vector<72x32xf32> -> vector<72x32xf32>
    %30 = vector.broadcast %1 : vector<1x32xf32> to vector<72x32xf32>
    %31 = arith.addf %29, %30 : vector<72x32xf32>
    %cst_23 = arith.constant 0.000000e+00 : f32
    %32 = vector.broadcast %cst_23 : f32 to vector<72x32xf32>
    %33 = arith.maximumf %31, %32 : vector<72x32xf32>
    %34 = arith.truncf %33 : vector<72x32xf32> to vector<72x32xbf16>
    %c2_24 = arith.constant 2 : index
    %c0_25 = arith.constant 0 : index
    %c0_26 = arith.constant 0 : index
    %35 = vector.load %arg4[%c2_24, %c0_25, %c0_26] : memref<16x32x64xbf16, #tpu.memory_space<vmem>>, vector<1x32x64xbf16>
    %36 = vector.shape_cast %35 : vector<1x32x64xbf16> to vector<32x64xbf16>
    %cst_27 = arith.constant dense<0.000000e+00> : vector<72x64xf32>
    %37 = tpu.matmul %34, %36, %cst_27 {dimension_numbers = #tpu.dot_dimension_numbers<[1], [0], [0], [1], [0, 0, 1, 1], [], []>} : vector<72x32xbf16>, vector<32x64xbf16>, vector<72x64xf32> -> vector<72x64xf32>
    %38 = arith.addf %26, %37 : vector<72x64xf32>
    %c3 = arith.constant 3 : index
    %c0_28 = arith.constant 0 : index
    %c0_29 = arith.constant 0 : index
    %39 = vector.load %arg1[%c3, %c0_28, %c0_29] : memref<16x72x64xbf16, #tpu.memory_space<vmem>>, vector<1x72x64xbf16>
    %40 = vector.shape_cast %39 : vector<1x72x64xbf16> to vector<72x64xbf16>
    %cst_30 = arith.constant dense<0.000000e+00> : vector<72x32xf32>
    %41 = tpu.matmul %40, %0, %cst_30 {dimension_numbers = #tpu.dot_dimension_numbers<[1], [0], [0], [1], [0, 0, 1, 1], [], []>} : vector<72x64xbf16>, vector<64x32xbf16>, vector<72x32xf32> -> vector<72x32xf32>
    %42 = vector.broadcast %1 : vector<1x32xf32> to vector<72x32xf32>
    %43 = arith.addf %41, %42 : vector<72x32xf32>
    %cst_31 = arith.constant 0.000000e+00 : f32
    %44 = vector.broadcast %cst_31 : f32 to vector<72x32xf32>
    %45 = arith.maximumf %43, %44 : vector<72x32xf32>
    %46 = arith.truncf %45 : vector<72x32xf32> to vector<72x32xbf16>
    %c3_32 = arith.constant 3 : index
    %c0_33 = arith.constant 0 : index
    %c0_34 = arith.constant 0 : index
    %47 = vector.load %arg4[%c3_32, %c0_33, %c0_34] : memref<16x32x64xbf16, #tpu.memory_space<vmem>>, vector<1x32x64xbf16>
    %48 = vector.shape_cast %47 : vector<1x32x64xbf16> to vector<32x64xbf16>
    %cst_35 = arith.constant dense<0.000000e+00> : vector<72x64xf32>
    %49 = tpu.matmul %46, %48, %cst_35 {dimension_numbers = #tpu.dot_dimension_numbers<[1], [0], [0], [1], [0, 0, 1, 1], [], []>} : vector<72x32xbf16>, vector<32x64xbf16>, vector<72x64xf32> -> vector<72x64xf32>
    %50 = arith.addf %38, %49 : vector<72x64xf32>
    %c4 = arith.constant 4 : index
    %c0_36 = arith.constant 0 : index
    %c0_37 = arith.constant 0 : index
    %51 = vector.load %arg1[%c4, %c0_36, %c0_37] : memref<16x72x64xbf16, #tpu.memory_space<vmem>>, vector<1x72x64xbf16>
    %52 = vector.shape_cast %51 : vector<1x72x64xbf16> to vector<72x64xbf16>
    %cst_38 = arith.constant dense<0.000000e+00> : vector<72x32xf32>
    %53 = tpu.matmul %52, %0, %cst_38 {dimension_numbers = #tpu.dot_dimension_numbers<[1], [0], [0], [1], [0, 0, 1, 1], [], []>} : vector<72x64xbf16>, vector<64x32xbf16>, vector<72x32xf32> -> vector<72x32xf32>
    %54 = vector.broadcast %1 : vector<1x32xf32> to vector<72x32xf32>
    %55 = arith.addf %53, %54 : vector<72x32xf32>
    %cst_39 = arith.constant 0.000000e+00 : f32
    %56 = vector.broadcast %cst_39 : f32 to vector<72x32xf32>
    %57 = arith.maximumf %55, %56 : vector<72x32xf32>
    %58 = arith.truncf %57 : vector<72x32xf32> to vector<72x32xbf16>
    %c4_40 = arith.constant 4 : index
    %c0_41 = arith.constant 0 : index
    %c0_42 = arith.constant 0 : index
    %59 = vector.load %arg4[%c4_40, %c0_41, %c0_42] : memref<16x32x64xbf16, #tpu.memory_space<vmem>>, vector<1x32x64xbf16>
    %60 = vector.shape_cast %59 : vector<1x32x64xbf16> to vector<32x64xbf16>
    %cst_43 = arith.constant dense<0.000000e+00> : vector<72x64xf32>
    %61 = tpu.matmul %58, %60, %cst_43 {dimension_numbers = #tpu.dot_dimension_numbers<[1], [0], [0], [1], [0, 0, 1, 1], [], []>} : vector<72x32xbf16>, vector<32x64xbf16>, vector<72x64xf32> -> vector<72x64xf32>
    %62 = arith.addf %50, %61 : vector<72x64xf32>
    %c5 = arith.constant 5 : index
    %c0_44 = arith.constant 0 : index
    %c0_45 = arith.constant 0 : index
    %63 = vector.load %arg1[%c5, %c0_44, %c0_45] : memref<16x72x64xbf16, #tpu.memory_space<vmem>>, vector<1x72x64xbf16>
    %64 = vector.shape_cast %63 : vector<1x72x64xbf16> to vector<72x64xbf16>
    %cst_46 = arith.constant dense<0.000000e+00> : vector<72x32xf32>
    %65 = tpu.matmul %64, %0, %cst_46 {dimension_numbers = #tpu.dot_dimension_numbers<[1], [0], [0], [1], [0, 0, 1, 1], [], []>} : vector<72x64xbf16>, vector<64x32xbf16>, vector<72x32xf32> -> vector<72x32xf32>
    %66 = vector.broadcast %1 : vector<1x32xf32> to vector<72x32xf32>
    %67 = arith.addf %65, %66 : vector<72x32xf32>
    %cst_47 = arith.constant 0.000000e+00 : f32
    %68 = vector.broadcast %cst_47 : f32 to vector<72x32xf32>
    %69 = arith.maximumf %67, %68 : vector<72x32xf32>
    %70 = arith.truncf %69 : vector<72x32xf32> to vector<72x32xbf16>
    %c5_48 = arith.constant 5 : index
    %c0_49 = arith.constant 0 : index
    %c0_50 = arith.constant 0 : index
    %71 = vector.load %arg4[%c5_48, %c0_49, %c0_50] : memref<16x32x64xbf16, #tpu.memory_space<vmem>>, vector<1x32x64xbf16>
    %72 = vector.shape_cast %71 : vector<1x32x64xbf16> to vector<32x64xbf16>
    %cst_51 = arith.constant dense<0.000000e+00> : vector<72x64xf32>
    %73 = tpu.matmul %70, %72, %cst_51 {dimension_numbers = #tpu.dot_dimension_numbers<[1], [0], [0], [1], [0, 0, 1, 1], [], []>} : vector<72x32xbf16>, vector<32x64xbf16>, vector<72x64xf32> -> vector<72x64xf32>
    %74 = arith.addf %62, %73 : vector<72x64xf32>
    %c6 = arith.constant 6 : index
    %c0_52 = arith.constant 0 : index
    %c0_53 = arith.constant 0 : index
    %75 = vector.load %arg1[%c6, %c0_52, %c0_53] : memref<16x72x64xbf16, #tpu.memory_space<vmem>>, vector<1x72x64xbf16>
    %76 = vector.shape_cast %75 : vector<1x72x64xbf16> to vector<72x64xbf16>
    %cst_54 = arith.constant dense<0.000000e+00> : vector<72x32xf32>
    %77 = tpu.matmul %76, %0, %cst_54 {dimension_numbers = #tpu.dot_dimension_numbers<[1], [0], [0], [1], [0, 0, 1, 1], [], []>} : vector<72x64xbf16>, vector<64x32xbf16>, vector<72x32xf32> -> vector<72x32xf32>
    %78 = vector.broadcast %1 : vector<1x32xf32> to vector<72x32xf32>
    %79 = arith.addf %77, %78 : vector<72x32xf32>
    %cst_55 = arith.constant 0.000000e+00 : f32
    %80 = vector.broadcast %cst_55 : f32 to vector<72x32xf32>
    %81 = arith.maximumf %79, %80 : vector<72x32xf32>
    %82 = arith.truncf %81 : vector<72x32xf32> to vector<72x32xbf16>
    %c6_56 = arith.constant 6 : index
    %c0_57 = arith.constant 0 : index
    %c0_58 = arith.constant 0 : index
    %83 = vector.load %arg4[%c6_56, %c0_57, %c0_58] : memref<16x32x64xbf16, #tpu.memory_space<vmem>>, vector<1x32x64xbf16>
    %84 = vector.shape_cast %83 : vector<1x32x64xbf16> to vector<32x64xbf16>
    %cst_59 = arith.constant dense<0.000000e+00> : vector<72x64xf32>
    %85 = tpu.matmul %82, %84, %cst_59 {dimension_numbers = #tpu.dot_dimension_numbers<[1], [0], [0], [1], [0, 0, 1, 1], [], []>} : vector<72x32xbf16>, vector<32x64xbf16>, vector<72x64xf32> -> vector<72x64xf32>
    %86 = arith.addf %74, %85 : vector<72x64xf32>
    %c7 = arith.constant 7 : index
    %c0_60 = arith.constant 0 : index
    %c0_61 = arith.constant 0 : index
    %87 = vector.load %arg1[%c7, %c0_60, %c0_61] : memref<16x72x64xbf16, #tpu.memory_space<vmem>>, vector<1x72x64xbf16>
    %88 = vector.shape_cast %87 : vector<1x72x64xbf16> to vector<72x64xbf16>
    %cst_62 = arith.constant dense<0.000000e+00> : vector<72x32xf32>
    %89 = tpu.matmul %88, %0, %cst_62 {dimension_numbers = #tpu.dot_dimension_numbers<[1], [0], [0], [1], [0, 0, 1, 1], [], []>} : vector<72x64xbf16>, vector<64x32xbf16>, vector<72x32xf32> -> vector<72x32xf32>
    %90 = vector.broadcast %1 : vector<1x32xf32> to vector<72x32xf32>
    %91 = arith.addf %89, %90 : vector<72x32xf32>
    %cst_63 = arith.constant 0.000000e+00 : f32
    %92 = vector.broadcast %cst_63 : f32 to vector<72x32xf32>
    %93 = arith.maximumf %91, %92 : vector<72x32xf32>
    %94 = arith.truncf %93 : vector<72x32xf32> to vector<72x32xbf16>
    %c7_64 = arith.constant 7 : index
    %c0_65 = arith.constant 0 : index
    %c0_66 = arith.constant 0 : index
    %95 = vector.load %arg4[%c7_64, %c0_65, %c0_66] : memref<16x32x64xbf16, #tpu.memory_space<vmem>>, vector<1x32x64xbf16>
    %96 = vector.shape_cast %95 : vector<1x32x64xbf16> to vector<32x64xbf16>
    %cst_67 = arith.constant dense<0.000000e+00> : vector<72x64xf32>
    %97 = tpu.matmul %94, %96, %cst_67 {dimension_numbers = #tpu.dot_dimension_numbers<[1], [0], [0], [1], [0, 0, 1, 1], [], []>} : vector<72x32xbf16>, vector<32x64xbf16>, vector<72x64xf32> -> vector<72x64xf32>
    %98 = arith.addf %86, %97 : vector<72x64xf32>
    %c8 = arith.constant 8 : index
    %c0_68 = arith.constant 0 : index
    %c0_69 = arith.constant 0 : index
    %99 = vector.load %arg1[%c8, %c0_68, %c0_69] : memref<16x72x64xbf16, #tpu.memory_space<vmem>>, vector<1x72x64xbf16>
    %100 = vector.shape_cast %99 : vector<1x72x64xbf16> to vector<72x64xbf16>
    %cst_70 = arith.constant dense<0.000000e+00> : vector<72x32xf32>
    %101 = tpu.matmul %100, %0, %cst_70 {dimension_numbers = #tpu.dot_dimension_numbers<[1], [0], [0], [1], [0, 0, 1, 1], [], []>} : vector<72x64xbf16>, vector<64x32xbf16>, vector<72x32xf32> -> vector<72x32xf32>
    %102 = vector.broadcast %1 : vector<1x32xf32> to vector<72x32xf32>
    %103 = arith.addf %101, %102 : vector<72x32xf32>
    %cst_71 = arith.constant 0.000000e+00 : f32
    %104 = vector.broadcast %cst_71 : f32 to vector<72x32xf32>
    %105 = arith.maximumf %103, %104 : vector<72x32xf32>
    %106 = arith.truncf %105 : vector<72x32xf32> to vector<72x32xbf16>
    %c8_72 = arith.constant 8 : index
    %c0_73 = arith.constant 0 : index
    %c0_74 = arith.constant 0 : index
    %107 = vector.load %arg4[%c8_72, %c0_73, %c0_74] : memref<16x32x64xbf16, #tpu.memory_space<vmem>>, vector<1x32x64xbf16>
    %108 = vector.shape_cast %107 : vector<1x32x64xbf16> to vector<32x64xbf16>
    %cst_75 = arith.constant dense<0.000000e+00> : vector<72x64xf32>
    %109 = tpu.matmul %106, %108, %cst_75 {dimension_numbers = #tpu.dot_dimension_numbers<[1], [0], [0], [1], [0, 0, 1, 1], [], []>} : vector<72x32xbf16>, vector<32x64xbf16>, vector<72x64xf32> -> vector<72x64xf32>
    %110 = arith.addf %98, %109 : vector<72x64xf32>
    %c9 = arith.constant 9 : index
    %c0_76 = arith.constant 0 : index
    %c0_77 = arith.constant 0 : index
    %111 = vector.load %arg1[%c9, %c0_76, %c0_77] : memref<16x72x64xbf16, #tpu.memory_space<vmem>>, vector<1x72x64xbf16>
    %112 = vector.shape_cast %111 : vector<1x72x64xbf16> to vector<72x64xbf16>
    %cst_78 = arith.constant dense<0.000000e+00> : vector<72x32xf32>
    %113 = tpu.matmul %112, %0, %cst_78 {dimension_numbers = #tpu.dot_dimension_numbers<[1], [0], [0], [1], [0, 0, 1, 1], [], []>} : vector<72x64xbf16>, vector<64x32xbf16>, vector<72x32xf32> -> vector<72x32xf32>
    %114 = vector.broadcast %1 : vector<1x32xf32> to vector<72x32xf32>
    %115 = arith.addf %113, %114 : vector<72x32xf32>
    %cst_79 = arith.constant 0.000000e+00 : f32
    %116 = vector.broadcast %cst_79 : f32 to vector<72x32xf32>
    %117 = arith.maximumf %115, %116 : vector<72x32xf32>
    %118 = arith.truncf %117 : vector<72x32xf32> to vector<72x32xbf16>
    %c9_80 = arith.constant 9 : index
    %c0_81 = arith.constant 0 : index
    %c0_82 = arith.constant 0 : index
    %119 = vector.load %arg4[%c9_80, %c0_81, %c0_82] : memref<16x32x64xbf16, #tpu.memory_space<vmem>>, vector<1x32x64xbf16>
    %120 = vector.shape_cast %119 : vector<1x32x64xbf16> to vector<32x64xbf16>
    %cst_83 = arith.constant dense<0.000000e+00> : vector<72x64xf32>
    %121 = tpu.matmul %118, %120, %cst_83 {dimension_numbers = #tpu.dot_dimension_numbers<[1], [0], [0], [1], [0, 0, 1, 1], [], []>} : vector<72x32xbf16>, vector<32x64xbf16>, vector<72x64xf32> -> vector<72x64xf32>
    %122 = arith.addf %110, %121 : vector<72x64xf32>
    %c10 = arith.constant 10 : index
    %c0_84 = arith.constant 0 : index
    %c0_85 = arith.constant 0 : index
    %123 = vector.load %arg1[%c10, %c0_84, %c0_85] : memref<16x72x64xbf16, #tpu.memory_space<vmem>>, vector<1x72x64xbf16>
    %124 = vector.shape_cast %123 : vector<1x72x64xbf16> to vector<72x64xbf16>
    %cst_86 = arith.constant dense<0.000000e+00> : vector<72x32xf32>
    %125 = tpu.matmul %124, %0, %cst_86 {dimension_numbers = #tpu.dot_dimension_numbers<[1], [0], [0], [1], [0, 0, 1, 1], [], []>} : vector<72x64xbf16>, vector<64x32xbf16>, vector<72x32xf32> -> vector<72x32xf32>
    %126 = vector.broadcast %1 : vector<1x32xf32> to vector<72x32xf32>
    %127 = arith.addf %125, %126 : vector<72x32xf32>
    %cst_87 = arith.constant 0.000000e+00 : f32
    %128 = vector.broadcast %cst_87 : f32 to vector<72x32xf32>
    %129 = arith.maximumf %127, %128 : vector<72x32xf32>
    %130 = arith.truncf %129 : vector<72x32xf32> to vector<72x32xbf16>
    %c10_88 = arith.constant 10 : index
    %c0_89 = arith.constant 0 : index
    %c0_90 = arith.constant 0 : index
    %131 = vector.load %arg4[%c10_88, %c0_89, %c0_90] : memref<16x32x64xbf16, #tpu.memory_space<vmem>>, vector<1x32x64xbf16>
    %132 = vector.shape_cast %131 : vector<1x32x64xbf16> to vector<32x64xbf16>
    %cst_91 = arith.constant dense<0.000000e+00> : vector<72x64xf32>
    %133 = tpu.matmul %130, %132, %cst_91 {dimension_numbers = #tpu.dot_dimension_numbers<[1], [0], [0], [1], [0, 0, 1, 1], [], []>} : vector<72x32xbf16>, vector<32x64xbf16>, vector<72x64xf32> -> vector<72x64xf32>
    %134 = arith.addf %122, %133 : vector<72x64xf32>
    %c11 = arith.constant 11 : index
    %c0_92 = arith.constant 0 : index
    %c0_93 = arith.constant 0 : index
    %135 = vector.load %arg1[%c11, %c0_92, %c0_93] : memref<16x72x64xbf16, #tpu.memory_space<vmem>>, vector<1x72x64xbf16>
    %136 = vector.shape_cast %135 : vector<1x72x64xbf16> to vector<72x64xbf16>
    %cst_94 = arith.constant dense<0.000000e+00> : vector<72x32xf32>
    %137 = tpu.matmul %136, %0, %cst_94 {dimension_numbers = #tpu.dot_dimension_numbers<[1], [0], [0], [1], [0, 0, 1, 1], [], []>} : vector<72x64xbf16>, vector<64x32xbf16>, vector<72x32xf32> -> vector<72x32xf32>
    %138 = vector.broadcast %1 : vector<1x32xf32> to vector<72x32xf32>
    %139 = arith.addf %137, %138 : vector<72x32xf32>
    %cst_95 = arith.constant 0.000000e+00 : f32
    %140 = vector.broadcast %cst_95 : f32 to vector<72x32xf32>
    %141 = arith.maximumf %139, %140 : vector<72x32xf32>
    %142 = arith.truncf %141 : vector<72x32xf32> to vector<72x32xbf16>
    %c11_96 = arith.constant 11 : index
    %c0_97 = arith.constant 0 : index
    %c0_98 = arith.constant 0 : index
    %143 = vector.load %arg4[%c11_96, %c0_97, %c0_98] : memref<16x32x64xbf16, #tpu.memory_space<vmem>>, vector<1x32x64xbf16>
    %144 = vector.shape_cast %143 : vector<1x32x64xbf16> to vector<32x64xbf16>
    %cst_99 = arith.constant dense<0.000000e+00> : vector<72x64xf32>
    %145 = tpu.matmul %142, %144, %cst_99 {dimension_numbers = #tpu.dot_dimension_numbers<[1], [0], [0], [1], [0, 0, 1, 1], [], []>} : vector<72x32xbf16>, vector<32x64xbf16>, vector<72x64xf32> -> vector<72x64xf32>
    %146 = arith.addf %134, %145 : vector<72x64xf32>
    %c12 = arith.constant 12 : index
    %c0_100 = arith.constant 0 : index
    %c0_101 = arith.constant 0 : index
    %147 = vector.load %arg1[%c12, %c0_100, %c0_101] : memref<16x72x64xbf16, #tpu.memory_space<vmem>>, vector<1x72x64xbf16>
    %148 = vector.shape_cast %147 : vector<1x72x64xbf16> to vector<72x64xbf16>
    %cst_102 = arith.constant dense<0.000000e+00> : vector<72x32xf32>
    %149 = tpu.matmul %148, %0, %cst_102 {dimension_numbers = #tpu.dot_dimension_numbers<[1], [0], [0], [1], [0, 0, 1, 1], [], []>} : vector<72x64xbf16>, vector<64x32xbf16>, vector<72x32xf32> -> vector<72x32xf32>
    %150 = vector.broadcast %1 : vector<1x32xf32> to vector<72x32xf32>
    %151 = arith.addf %149, %150 : vector<72x32xf32>
    %cst_103 = arith.constant 0.000000e+00 : f32
    %152 = vector.broadcast %cst_103 : f32 to vector<72x32xf32>
    %153 = arith.maximumf %151, %152 : vector<72x32xf32>
    %154 = arith.truncf %153 : vector<72x32xf32> to vector<72x32xbf16>
    %c12_104 = arith.constant 12 : index
    %c0_105 = arith.constant 0 : index
    %c0_106 = arith.constant 0 : index
    %155 = vector.load %arg4[%c12_104, %c0_105, %c0_106] : memref<16x32x64xbf16, #tpu.memory_space<vmem>>, vector<1x32x64xbf16>
    %156 = vector.shape_cast %155 : vector<1x32x64xbf16> to vector<32x64xbf16>
    %cst_107 = arith.constant dense<0.000000e+00> : vector<72x64xf32>
    %157 = tpu.matmul %154, %156, %cst_107 {dimension_numbers = #tpu.dot_dimension_numbers<[1], [0], [0], [1], [0, 0, 1, 1], [], []>} : vector<72x32xbf16>, vector<32x64xbf16>, vector<72x64xf32> -> vector<72x64xf32>
    %158 = arith.addf %146, %157 : vector<72x64xf32>
    %c13 = arith.constant 13 : index
    %c0_108 = arith.constant 0 : index
    %c0_109 = arith.constant 0 : index
    %159 = vector.load %arg1[%c13, %c0_108, %c0_109] : memref<16x72x64xbf16, #tpu.memory_space<vmem>>, vector<1x72x64xbf16>
    %160 = vector.shape_cast %159 : vector<1x72x64xbf16> to vector<72x64xbf16>
    %cst_110 = arith.constant dense<0.000000e+00> : vector<72x32xf32>
    %161 = tpu.matmul %160, %0, %cst_110 {dimension_numbers = #tpu.dot_dimension_numbers<[1], [0], [0], [1], [0, 0, 1, 1], [], []>} : vector<72x64xbf16>, vector<64x32xbf16>, vector<72x32xf32> -> vector<72x32xf32>
    %162 = vector.broadcast %1 : vector<1x32xf32> to vector<72x32xf32>
    %163 = arith.addf %161, %162 : vector<72x32xf32>
    %cst_111 = arith.constant 0.000000e+00 : f32
    %164 = vector.broadcast %cst_111 : f32 to vector<72x32xf32>
    %165 = arith.maximumf %163, %164 : vector<72x32xf32>
    %166 = arith.truncf %165 : vector<72x32xf32> to vector<72x32xbf16>
    %c13_112 = arith.constant 13 : index
    %c0_113 = arith.constant 0 : index
    %c0_114 = arith.constant 0 : index
    %167 = vector.load %arg4[%c13_112, %c0_113, %c0_114] : memref<16x32x64xbf16, #tpu.memory_space<vmem>>, vector<1x32x64xbf16>
    %168 = vector.shape_cast %167 : vector<1x32x64xbf16> to vector<32x64xbf16>
    %cst_115 = arith.constant dense<0.000000e+00> : vector<72x64xf32>
    %169 = tpu.matmul %166, %168, %cst_115 {dimension_numbers = #tpu.dot_dimension_numbers<[1], [0], [0], [1], [0, 0, 1, 1], [], []>} : vector<72x32xbf16>, vector<32x64xbf16>, vector<72x64xf32> -> vector<72x64xf32>
    %170 = arith.addf %158, %169 : vector<72x64xf32>
    %c14 = arith.constant 14 : index
    %c0_116 = arith.constant 0 : index
    %c0_117 = arith.constant 0 : index
    %171 = vector.load %arg1[%c14, %c0_116, %c0_117] : memref<16x72x64xbf16, #tpu.memory_space<vmem>>, vector<1x72x64xbf16>
    %172 = vector.shape_cast %171 : vector<1x72x64xbf16> to vector<72x64xbf16>
    %cst_118 = arith.constant dense<0.000000e+00> : vector<72x32xf32>
    %173 = tpu.matmul %172, %0, %cst_118 {dimension_numbers = #tpu.dot_dimension_numbers<[1], [0], [0], [1], [0, 0, 1, 1], [], []>} : vector<72x64xbf16>, vector<64x32xbf16>, vector<72x32xf32> -> vector<72x32xf32>
    %174 = vector.broadcast %1 : vector<1x32xf32> to vector<72x32xf32>
    %175 = arith.addf %173, %174 : vector<72x32xf32>
    %cst_119 = arith.constant 0.000000e+00 : f32
    %176 = vector.broadcast %cst_119 : f32 to vector<72x32xf32>
    %177 = arith.maximumf %175, %176 : vector<72x32xf32>
    %178 = arith.truncf %177 : vector<72x32xf32> to vector<72x32xbf16>
    %c14_120 = arith.constant 14 : index
    %c0_121 = arith.constant 0 : index
    %c0_122 = arith.constant 0 : index
    %179 = vector.load %arg4[%c14_120, %c0_121, %c0_122] : memref<16x32x64xbf16, #tpu.memory_space<vmem>>, vector<1x32x64xbf16>
    %180 = vector.shape_cast %179 : vector<1x32x64xbf16> to vector<32x64xbf16>
    %cst_123 = arith.constant dense<0.000000e+00> : vector<72x64xf32>
    %181 = tpu.matmul %178, %180, %cst_123 {dimension_numbers = #tpu.dot_dimension_numbers<[1], [0], [0], [1], [0, 0, 1, 1], [], []>} : vector<72x32xbf16>, vector<32x64xbf16>, vector<72x64xf32> -> vector<72x64xf32>
    %182 = arith.addf %170, %181 : vector<72x64xf32>
    %c15 = arith.constant 15 : index
    %c0_124 = arith.constant 0 : index
    %c0_125 = arith.constant 0 : index
    %183 = vector.load %arg1[%c15, %c0_124, %c0_125] : memref<16x72x64xbf16, #tpu.memory_space<vmem>>, vector<1x72x64xbf16>
    %184 = vector.shape_cast %183 : vector<1x72x64xbf16> to vector<72x64xbf16>
    %cst_126 = arith.constant dense<0.000000e+00> : vector<72x32xf32>
    %185 = tpu.matmul %184, %0, %cst_126 {dimension_numbers = #tpu.dot_dimension_numbers<[1], [0], [0], [1], [0, 0, 1, 1], [], []>} : vector<72x64xbf16>, vector<64x32xbf16>, vector<72x32xf32> -> vector<72x32xf32>
    %186 = vector.broadcast %1 : vector<1x32xf32> to vector<72x32xf32>
    %187 = arith.addf %185, %186 : vector<72x32xf32>
    %cst_127 = arith.constant 0.000000e+00 : f32
    %188 = vector.broadcast %cst_127 : f32 to vector<72x32xf32>
    %189 = arith.maximumf %187, %188 : vector<72x32xf32>
    %190 = arith.truncf %189 : vector<72x32xf32> to vector<72x32xbf16>
    %c15_128 = arith.constant 15 : index
    %c0_129 = arith.constant 0 : index
    %c0_130 = arith.constant 0 : index
    %191 = vector.load %arg4[%c15_128, %c0_129, %c0_130] : memref<16x32x64xbf16, #tpu.memory_space<vmem>>, vector<1x32x64xbf16>
    %192 = vector.shape_cast %191 : vector<1x32x64xbf16> to vector<32x64xbf16>
    %cst_131 = arith.constant dense<0.000000e+00> : vector<72x64xf32>
    %193 = tpu.matmul %190, %192, %cst_131 {dimension_numbers = #tpu.dot_dimension_numbers<[1], [0], [0], [1], [0, 0, 1, 1], [], []>} : vector<72x32xbf16>, vector<32x64xbf16>, vector<72x64xf32> -> vector<72x64xf32>
    %194 = arith.addf %182, %193 : vector<72x64xf32>
    %c0_132 = arith.constant 0 : index
    %c0_133 = arith.constant 0 : index
    %195 = vector.load %arg5[%c0_132, %c0_133] : memref<1x64xf32, #tpu.memory_space<vmem>>, vector<1x64xf32>
    %196 = vector.broadcast %195 : vector<1x64xf32> to vector<72x64xf32>
    %197 = arith.addf %194, %196 : vector<72x64xf32>
    %cst_134 = arith.constant 0.000000e+00 : f32
    %198 = vector.broadcast %cst_134 : f32 to vector<72x64xf32>
    %199 = arith.maximumf %197, %198 : vector<72x64xf32>
    %200 = arith.truncf %199 : vector<72x64xf32> to vector<72x64xbf16>
    %cst_135 = arith.constant 0.000000e+00 : f32
    %201 = vector.broadcast %cst_135 : f32 to vector<32x64xf32>
    %202 = vector.extract_strided_slice %200 {offsets = [0, 0], sizes = [8, 64], strides = [1, 1]} : vector<72x64xbf16> to vector<8x64xbf16>
    %203 = vector.extract_strided_slice %200 {offsets = [12, 0], sizes = [8, 64], strides = [1, 1]} : vector<72x64xbf16> to vector<8x64xbf16>
    %204 = vector.extract_strided_slice %200 {offsets = [24, 0], sizes = [8, 64], strides = [1, 1]} : vector<72x64xbf16> to vector<8x64xbf16>
    %205 = vector.extract_strided_slice %200 {offsets = [36, 0], sizes = [8, 64], strides = [1, 1]} : vector<72x64xbf16> to vector<8x64xbf16>
    %206 = tpu.concatenate %202, %203, %204, %205 in 0 : vector<8x64xbf16>, vector<8x64xbf16>, vector<8x64xbf16>, vector<8x64xbf16> -> vector<32x64xbf16>
    %c0_136 = arith.constant 0 : index
    %c0_137 = arith.constant 0 : index
    %c0_138 = arith.constant 0 : index
    %207 = vector.load %arg6[%c0_136, %c0_137, %c0_138] : memref<9x64x64xbf16, #tpu.memory_space<vmem>>, vector<1x64x64xbf16>
    %208 = vector.shape_cast %207 : vector<1x64x64xbf16> to vector<64x64xbf16>
    %cst_139 = arith.constant dense<0.000000e+00> : vector<32x64xf32>
    %209 = tpu.matmul %206, %208, %cst_139 {dimension_numbers = #tpu.dot_dimension_numbers<[1], [0], [0], [1], [0, 0, 1, 1], [], []>} : vector<32x64xbf16>, vector<64x64xbf16>, vector<32x64xf32> -> vector<32x64xf32>
    %210 = arith.addf %201, %209 : vector<32x64xf32>
    %211 = vector.extract_strided_slice %200 {offsets = [2, 0], sizes = [8, 64], strides = [1, 1]} : vector<72x64xbf16> to vector<8x64xbf16>
    %212 = vector.extract_strided_slice %200 {offsets = [14, 0], sizes = [8, 64], strides = [1, 1]} : vector<72x64xbf16> to vector<8x64xbf16>
    %213 = vector.extract_strided_slice %200 {offsets = [26, 0], sizes = [8, 64], strides = [1, 1]} : vector<72x64xbf16> to vector<8x64xbf16>
    %214 = vector.extract_strided_slice %200 {offsets = [38, 0], sizes = [8, 64], strides = [1, 1]} : vector<72x64xbf16> to vector<8x64xbf16>
    %215 = tpu.concatenate %211, %212, %213, %214 in 0 : vector<8x64xbf16>, vector<8x64xbf16>, vector<8x64xbf16>, vector<8x64xbf16> -> vector<32x64xbf16>
    %c1_140 = arith.constant 1 : index
    %c0_141 = arith.constant 0 : index
    %c0_142 = arith.constant 0 : index
    %216 = vector.load %arg6[%c1_140, %c0_141, %c0_142] : memref<9x64x64xbf16, #tpu.memory_space<vmem>>, vector<1x64x64xbf16>
    %217 = vector.shape_cast %216 : vector<1x64x64xbf16> to vector<64x64xbf16>
    %cst_143 = arith.constant dense<0.000000e+00> : vector<32x64xf32>
    %218 = tpu.matmul %215, %217, %cst_143 {dimension_numbers = #tpu.dot_dimension_numbers<[1], [0], [0], [1], [0, 0, 1, 1], [], []>} : vector<32x64xbf16>, vector<64x64xbf16>, vector<32x64xf32> -> vector<32x64xf32>
    %219 = arith.addf %210, %218 : vector<32x64xf32>
    %220 = vector.extract_strided_slice %200 {offsets = [4, 0], sizes = [8, 64], strides = [1, 1]} : vector<72x64xbf16> to vector<8x64xbf16>
    %221 = vector.extract_strided_slice %200 {offsets = [16, 0], sizes = [8, 64], strides = [1, 1]} : vector<72x64xbf16> to vector<8x64xbf16>
    %222 = vector.extract_strided_slice %200 {offsets = [28, 0], sizes = [8, 64], strides = [1, 1]} : vector<72x64xbf16> to vector<8x64xbf16>
    %223 = vector.extract_strided_slice %200 {offsets = [40, 0], sizes = [8, 64], strides = [1, 1]} : vector<72x64xbf16> to vector<8x64xbf16>
    %224 = tpu.concatenate %220, %221, %222, %223 in 0 : vector<8x64xbf16>, vector<8x64xbf16>, vector<8x64xbf16>, vector<8x64xbf16> -> vector<32x64xbf16>
    %c2_144 = arith.constant 2 : index
    %c0_145 = arith.constant 0 : index
    %c0_146 = arith.constant 0 : index
    %225 = vector.load %arg6[%c2_144, %c0_145, %c0_146] : memref<9x64x64xbf16, #tpu.memory_space<vmem>>, vector<1x64x64xbf16>
    %226 = vector.shape_cast %225 : vector<1x64x64xbf16> to vector<64x64xbf16>
    %cst_147 = arith.constant dense<0.000000e+00> : vector<32x64xf32>
    %227 = tpu.matmul %224, %226, %cst_147 {dimension_numbers = #tpu.dot_dimension_numbers<[1], [0], [0], [1], [0, 0, 1, 1], [], []>} : vector<32x64xbf16>, vector<64x64xbf16>, vector<32x64xf32> -> vector<32x64xf32>
    %228 = arith.addf %219, %227 : vector<32x64xf32>
    %229 = vector.extract_strided_slice %200 {offsets = [12, 0], sizes = [8, 64], strides = [1, 1]} : vector<72x64xbf16> to vector<8x64xbf16>
    %230 = vector.extract_strided_slice %200 {offsets = [24, 0], sizes = [8, 64], strides = [1, 1]} : vector<72x64xbf16> to vector<8x64xbf16>
    %231 = vector.extract_strided_slice %200 {offsets = [36, 0], sizes = [8, 64], strides = [1, 1]} : vector<72x64xbf16> to vector<8x64xbf16>
    %232 = vector.extract_strided_slice %200 {offsets = [48, 0], sizes = [8, 64], strides = [1, 1]} : vector<72x64xbf16> to vector<8x64xbf16>
    %233 = tpu.concatenate %229, %230, %231, %232 in 0 : vector<8x64xbf16>, vector<8x64xbf16>, vector<8x64xbf16>, vector<8x64xbf16> -> vector<32x64xbf16>
    %c3_148 = arith.constant 3 : index
    %c0_149 = arith.constant 0 : index
    %c0_150 = arith.constant 0 : index
    %234 = vector.load %arg6[%c3_148, %c0_149, %c0_150] : memref<9x64x64xbf16, #tpu.memory_space<vmem>>, vector<1x64x64xbf16>
    %235 = vector.shape_cast %234 : vector<1x64x64xbf16> to vector<64x64xbf16>
    %cst_151 = arith.constant dense<0.000000e+00> : vector<32x64xf32>
    %236 = tpu.matmul %233, %235, %cst_151 {dimension_numbers = #tpu.dot_dimension_numbers<[1], [0], [0], [1], [0, 0, 1, 1], [], []>} : vector<32x64xbf16>, vector<64x64xbf16>, vector<32x64xf32> -> vector<32x64xf32>
    %237 = arith.addf %228, %236 : vector<32x64xf32>
    %238 = vector.extract_strided_slice %200 {offsets = [14, 0], sizes = [8, 64], strides = [1, 1]} : vector<72x64xbf16> to vector<8x64xbf16>
    %239 = vector.extract_strided_slice %200 {offsets = [26, 0], sizes = [8, 64], strides = [1, 1]} : vector<72x64xbf16> to vector<8x64xbf16>
    %240 = vector.extract_strided_slice %200 {offsets = [38, 0], sizes = [8, 64], strides = [1, 1]} : vector<72x64xbf16> to vector<8x64xbf16>
    %241 = vector.extract_strided_slice %200 {offsets = [50, 0], sizes = [8, 64], strides = [1, 1]} : vector<72x64xbf16> to vector<8x64xbf16>
    %242 = tpu.concatenate %238, %239, %240, %241 in 0 : vector<8x64xbf16>, vector<8x64xbf16>, vector<8x64xbf16>, vector<8x64xbf16> -> vector<32x64xbf16>
    %c4_152 = arith.constant 4 : index
    %c0_153 = arith.constant 0 : index
    %c0_154 = arith.constant 0 : index
    %243 = vector.load %arg6[%c4_152, %c0_153, %c0_154] : memref<9x64x64xbf16, #tpu.memory_space<vmem>>, vector<1x64x64xbf16>
    %244 = vector.shape_cast %243 : vector<1x64x64xbf16> to vector<64x64xbf16>
    %cst_155 = arith.constant dense<0.000000e+00> : vector<32x64xf32>
    %245 = tpu.matmul %242, %244, %cst_155 {dimension_numbers = #tpu.dot_dimension_numbers<[1], [0], [0], [1], [0, 0, 1, 1], [], []>} : vector<32x64xbf16>, vector<64x64xbf16>, vector<32x64xf32> -> vector<32x64xf32>
    %246 = arith.addf %237, %245 : vector<32x64xf32>
    %247 = vector.extract_strided_slice %200 {offsets = [16, 0], sizes = [8, 64], strides = [1, 1]} : vector<72x64xbf16> to vector<8x64xbf16>
    %248 = vector.extract_strided_slice %200 {offsets = [28, 0], sizes = [8, 64], strides = [1, 1]} : vector<72x64xbf16> to vector<8x64xbf16>
    %249 = vector.extract_strided_slice %200 {offsets = [40, 0], sizes = [8, 64], strides = [1, 1]} : vector<72x64xbf16> to vector<8x64xbf16>
    %250 = vector.extract_strided_slice %200 {offsets = [52, 0], sizes = [8, 64], strides = [1, 1]} : vector<72x64xbf16> to vector<8x64xbf16>
    %251 = tpu.concatenate %247, %248, %249, %250 in 0 : vector<8x64xbf16>, vector<8x64xbf16>, vector<8x64xbf16>, vector<8x64xbf16> -> vector<32x64xbf16>
    %c5_156 = arith.constant 5 : index
    %c0_157 = arith.constant 0 : index
    %c0_158 = arith.constant 0 : index
    %252 = vector.load %arg6[%c5_156, %c0_157, %c0_158] : memref<9x64x64xbf16, #tpu.memory_space<vmem>>, vector<1x64x64xbf16>
    %253 = vector.shape_cast %252 : vector<1x64x64xbf16> to vector<64x64xbf16>
    %cst_159 = arith.constant dense<0.000000e+00> : vector<32x64xf32>
    %254 = tpu.matmul %251, %253, %cst_159 {dimension_numbers = #tpu.dot_dimension_numbers<[1], [0], [0], [1], [0, 0, 1, 1], [], []>} : vector<32x64xbf16>, vector<64x64xbf16>, vector<32x64xf32> -> vector<32x64xf32>
    %255 = arith.addf %246, %254 : vector<32x64xf32>
    %256 = vector.extract_strided_slice %200 {offsets = [24, 0], sizes = [8, 64], strides = [1, 1]} : vector<72x64xbf16> to vector<8x64xbf16>
    %257 = vector.extract_strided_slice %200 {offsets = [36, 0], sizes = [8, 64], strides = [1, 1]} : vector<72x64xbf16> to vector<8x64xbf16>
    %258 = vector.extract_strided_slice %200 {offsets = [48, 0], sizes = [8, 64], strides = [1, 1]} : vector<72x64xbf16> to vector<8x64xbf16>
    %259 = vector.extract_strided_slice %200 {offsets = [60, 0], sizes = [8, 64], strides = [1, 1]} : vector<72x64xbf16> to vector<8x64xbf16>
    %260 = tpu.concatenate %256, %257, %258, %259 in 0 : vector<8x64xbf16>, vector<8x64xbf16>, vector<8x64xbf16>, vector<8x64xbf16> -> vector<32x64xbf16>
    %c6_160 = arith.constant 6 : index
    %c0_161 = arith.constant 0 : index
    %c0_162 = arith.constant 0 : index
    %261 = vector.load %arg6[%c6_160, %c0_161, %c0_162] : memref<9x64x64xbf16, #tpu.memory_space<vmem>>, vector<1x64x64xbf16>
    %262 = vector.shape_cast %261 : vector<1x64x64xbf16> to vector<64x64xbf16>
    %cst_163 = arith.constant dense<0.000000e+00> : vector<32x64xf32>
    %263 = tpu.matmul %260, %262, %cst_163 {dimension_numbers = #tpu.dot_dimension_numbers<[1], [0], [0], [1], [0, 0, 1, 1], [], []>} : vector<32x64xbf16>, vector<64x64xbf16>, vector<32x64xf32> -> vector<32x64xf32>
    %264 = arith.addf %255, %263 : vector<32x64xf32>
    %265 = vector.extract_strided_slice %200 {offsets = [26, 0], sizes = [8, 64], strides = [1, 1]} : vector<72x64xbf16> to vector<8x64xbf16>
    %266 = vector.extract_strided_slice %200 {offsets = [38, 0], sizes = [8, 64], strides = [1, 1]} : vector<72x64xbf16> to vector<8x64xbf16>
    %267 = vector.extract_strided_slice %200 {offsets = [50, 0], sizes = [8, 64], strides = [1, 1]} : vector<72x64xbf16> to vector<8x64xbf16>
    %268 = vector.extract_strided_slice %200 {offsets = [62, 0], sizes = [8, 64], strides = [1, 1]} : vector<72x64xbf16> to vector<8x64xbf16>
    %269 = tpu.concatenate %265, %266, %267, %268 in 0 : vector<8x64xbf16>, vector<8x64xbf16>, vector<8x64xbf16>, vector<8x64xbf16> -> vector<32x64xbf16>
    %c7_164 = arith.constant 7 : index
    %c0_165 = arith.constant 0 : index
    %c0_166 = arith.constant 0 : index
    %270 = vector.load %arg6[%c7_164, %c0_165, %c0_166] : memref<9x64x64xbf16, #tpu.memory_space<vmem>>, vector<1x64x64xbf16>
    %271 = vector.shape_cast %270 : vector<1x64x64xbf16> to vector<64x64xbf16>
    %cst_167 = arith.constant dense<0.000000e+00> : vector<32x64xf32>
    %272 = tpu.matmul %269, %271, %cst_167 {dimension_numbers = #tpu.dot_dimension_numbers<[1], [0], [0], [1], [0, 0, 1, 1], [], []>} : vector<32x64xbf16>, vector<64x64xbf16>, vector<32x64xf32> -> vector<32x64xf32>
    %273 = arith.addf %264, %272 : vector<32x64xf32>
    %274 = vector.extract_strided_slice %200 {offsets = [28, 0], sizes = [8, 64], strides = [1, 1]} : vector<72x64xbf16> to vector<8x64xbf16>
    %275 = vector.extract_strided_slice %200 {offsets = [40, 0], sizes = [8, 64], strides = [1, 1]} : vector<72x64xbf16> to vector<8x64xbf16>
    %276 = vector.extract_strided_slice %200 {offsets = [52, 0], sizes = [8, 64], strides = [1, 1]} : vector<72x64xbf16> to vector<8x64xbf16>
    %277 = vector.extract_strided_slice %200 {offsets = [64, 0], sizes = [8, 64], strides = [1, 1]} : vector<72x64xbf16> to vector<8x64xbf16>
    %278 = tpu.concatenate %274, %275, %276, %277 in 0 : vector<8x64xbf16>, vector<8x64xbf16>, vector<8x64xbf16>, vector<8x64xbf16> -> vector<32x64xbf16>
    %c8_168 = arith.constant 8 : index
    %c0_169 = arith.constant 0 : index
    %c0_170 = arith.constant 0 : index
    %279 = vector.load %arg6[%c8_168, %c0_169, %c0_170] : memref<9x64x64xbf16, #tpu.memory_space<vmem>>, vector<1x64x64xbf16>
    %280 = vector.shape_cast %279 : vector<1x64x64xbf16> to vector<64x64xbf16>
    %cst_171 = arith.constant dense<0.000000e+00> : vector<32x64xf32>
    %281 = tpu.matmul %278, %280, %cst_171 {dimension_numbers = #tpu.dot_dimension_numbers<[1], [0], [0], [1], [0, 0, 1, 1], [], []>} : vector<32x64xbf16>, vector<64x64xbf16>, vector<32x64xf32> -> vector<32x64xf32>
    %282 = arith.addf %273, %281 : vector<32x64xf32>
    %c0_172 = arith.constant 0 : index
    %c0_173 = arith.constant 0 : index
    %283 = vector.load %arg7[%c0_172, %c0_173] : memref<1x64xf32, #tpu.memory_space<vmem>>, vector<1x64xf32>
    %284 = vector.broadcast %283 : vector<1x64xf32> to vector<32x64xf32>
    %285 = arith.addf %282, %284 : vector<32x64xf32>
    %cst_174 = arith.constant 0.000000e+00 : f32
    %286 = vector.broadcast %cst_174 : f32 to vector<32x64xf32>
    %287 = arith.maximumf %285, %286 : vector<32x64xf32>
    %288 = arith.truncf %287 : vector<32x64xf32> to vector<32x64xbf16>
    %cst_175 = arith.constant 0.000000e+00 : f32
    %289 = vector.broadcast %cst_175 : f32 to vector<2x512xf32>
    %290 = vector.extract_strided_slice %288 {offsets = [0, 0], sizes = [2, 64], strides = [1, 1]} : vector<32x64xbf16> to vector<2x64xbf16>
    %c0_176 = arith.constant 0 : index
    %c0_177 = arith.constant 0 : index
    %c0_178 = arith.constant 0 : index
    %291 = vector.load %arg8[%c0_176, %c0_177, %c0_178] : memref<16x64x512xbf16, #tpu.memory_space<vmem>>, vector<1x64x512xbf16>
    %292 = vector.shape_cast %291 : vector<1x64x512xbf16> to vector<64x512xbf16>
    %cst_179 = arith.constant dense<0.000000e+00> : vector<2x512xf32>
    %293 = tpu.matmul %290, %292, %cst_179 {dimension_numbers = #tpu.dot_dimension_numbers<[1], [0], [0], [1], [0, 0, 1, 1], [], []>} : vector<2x64xbf16>, vector<64x512xbf16>, vector<2x512xf32> -> vector<2x512xf32>
    %294 = arith.addf %289, %293 : vector<2x512xf32>
    %295 = vector.extract_strided_slice %288 {offsets = [2, 0], sizes = [2, 64], strides = [1, 1]} : vector<32x64xbf16> to vector<2x64xbf16>
    %c1_180 = arith.constant 1 : index
    %c0_181 = arith.constant 0 : index
    %c0_182 = arith.constant 0 : index
    %296 = vector.load %arg8[%c1_180, %c0_181, %c0_182] : memref<16x64x512xbf16, #tpu.memory_space<vmem>>, vector<1x64x512xbf16>
    %297 = vector.shape_cast %296 : vector<1x64x512xbf16> to vector<64x512xbf16>
    %cst_183 = arith.constant dense<0.000000e+00> : vector<2x512xf32>
    %298 = tpu.matmul %295, %297, %cst_183 {dimension_numbers = #tpu.dot_dimension_numbers<[1], [0], [0], [1], [0, 0, 1, 1], [], []>} : vector<2x64xbf16>, vector<64x512xbf16>, vector<2x512xf32> -> vector<2x512xf32>
    %299 = arith.addf %294, %298 : vector<2x512xf32>
    %300 = vector.extract_strided_slice %288 {offsets = [4, 0], sizes = [2, 64], strides = [1, 1]} : vector<32x64xbf16> to vector<2x64xbf16>
    %c2_184 = arith.constant 2 : index
    %c0_185 = arith.constant 0 : index
    %c0_186 = arith.constant 0 : index
    %301 = vector.load %arg8[%c2_184, %c0_185, %c0_186] : memref<16x64x512xbf16, #tpu.memory_space<vmem>>, vector<1x64x512xbf16>
    %302 = vector.shape_cast %301 : vector<1x64x512xbf16> to vector<64x512xbf16>
    %cst_187 = arith.constant dense<0.000000e+00> : vector<2x512xf32>
    %303 = tpu.matmul %300, %302, %cst_187 {dimension_numbers = #tpu.dot_dimension_numbers<[1], [0], [0], [1], [0, 0, 1, 1], [], []>} : vector<2x64xbf16>, vector<64x512xbf16>, vector<2x512xf32> -> vector<2x512xf32>
    %304 = arith.addf %299, %303 : vector<2x512xf32>
    %305 = vector.extract_strided_slice %288 {offsets = [6, 0], sizes = [2, 64], strides = [1, 1]} : vector<32x64xbf16> to vector<2x64xbf16>
    %c3_188 = arith.constant 3 : index
    %c0_189 = arith.constant 0 : index
    %c0_190 = arith.constant 0 : index
    %306 = vector.load %arg8[%c3_188, %c0_189, %c0_190] : memref<16x64x512xbf16, #tpu.memory_space<vmem>>, vector<1x64x512xbf16>
    %307 = vector.shape_cast %306 : vector<1x64x512xbf16> to vector<64x512xbf16>
    %cst_191 = arith.constant dense<0.000000e+00> : vector<2x512xf32>
    %308 = tpu.matmul %305, %307, %cst_191 {dimension_numbers = #tpu.dot_dimension_numbers<[1], [0], [0], [1], [0, 0, 1, 1], [], []>} : vector<2x64xbf16>, vector<64x512xbf16>, vector<2x512xf32> -> vector<2x512xf32>
    %309 = arith.addf %304, %308 : vector<2x512xf32>
    %310 = vector.extract_strided_slice %288 {offsets = [8, 0], sizes = [2, 64], strides = [1, 1]} : vector<32x64xbf16> to vector<2x64xbf16>
    %c4_192 = arith.constant 4 : index
    %c0_193 = arith.constant 0 : index
    %c0_194 = arith.constant 0 : index
    %311 = vector.load %arg8[%c4_192, %c0_193, %c0_194] : memref<16x64x512xbf16, #tpu.memory_space<vmem>>, vector<1x64x512xbf16>
    %312 = vector.shape_cast %311 : vector<1x64x512xbf16> to vector<64x512xbf16>
    %cst_195 = arith.constant dense<0.000000e+00> : vector<2x512xf32>
    %313 = tpu.matmul %310, %312, %cst_195 {dimension_numbers = #tpu.dot_dimension_numbers<[1], [0], [0], [1], [0, 0, 1, 1], [], []>} : vector<2x64xbf16>, vector<64x512xbf16>, vector<2x512xf32> -> vector<2x512xf32>
    %314 = arith.addf %309, %313 : vector<2x512xf32>
    %315 = vector.extract_strided_slice %288 {offsets = [10, 0], sizes = [2, 64], strides = [1, 1]} : vector<32x64xbf16> to vector<2x64xbf16>
    %c5_196 = arith.constant 5 : index
    %c0_197 = arith.constant 0 : index
    %c0_198 = arith.constant 0 : index
    %316 = vector.load %arg8[%c5_196, %c0_197, %c0_198] : memref<16x64x512xbf16, #tpu.memory_space<vmem>>, vector<1x64x512xbf16>
    %317 = vector.shape_cast %316 : vector<1x64x512xbf16> to vector<64x512xbf16>
    %cst_199 = arith.constant dense<0.000000e+00> : vector<2x512xf32>
    %318 = tpu.matmul %315, %317, %cst_199 {dimension_numbers = #tpu.dot_dimension_numbers<[1], [0], [0], [1], [0, 0, 1, 1], [], []>} : vector<2x64xbf16>, vector<64x512xbf16>, vector<2x512xf32> -> vector<2x512xf32>
    %319 = arith.addf %314, %318 : vector<2x512xf32>
    %320 = vector.extract_strided_slice %288 {offsets = [12, 0], sizes = [2, 64], strides = [1, 1]} : vector<32x64xbf16> to vector<2x64xbf16>
    %c6_200 = arith.constant 6 : index
    %c0_201 = arith.constant 0 : index
    %c0_202 = arith.constant 0 : index
    %321 = vector.load %arg8[%c6_200, %c0_201, %c0_202] : memref<16x64x512xbf16, #tpu.memory_space<vmem>>, vector<1x64x512xbf16>
    %322 = vector.shape_cast %321 : vector<1x64x512xbf16> to vector<64x512xbf16>
    %cst_203 = arith.constant dense<0.000000e+00> : vector<2x512xf32>
    %323 = tpu.matmul %320, %322, %cst_203 {dimension_numbers = #tpu.dot_dimension_numbers<[1], [0], [0], [1], [0, 0, 1, 1], [], []>} : vector<2x64xbf16>, vector<64x512xbf16>, vector<2x512xf32> -> vector<2x512xf32>
    %324 = arith.addf %319, %323 : vector<2x512xf32>
    %325 = vector.extract_strided_slice %288 {offsets = [14, 0], sizes = [2, 64], strides = [1, 1]} : vector<32x64xbf16> to vector<2x64xbf16>
    %c7_204 = arith.constant 7 : index
    %c0_205 = arith.constant 0 : index
    %c0_206 = arith.constant 0 : index
    %326 = vector.load %arg8[%c7_204, %c0_205, %c0_206] : memref<16x64x512xbf16, #tpu.memory_space<vmem>>, vector<1x64x512xbf16>
    %327 = vector.shape_cast %326 : vector<1x64x512xbf16> to vector<64x512xbf16>
    %cst_207 = arith.constant dense<0.000000e+00> : vector<2x512xf32>
    %328 = tpu.matmul %325, %327, %cst_207 {dimension_numbers = #tpu.dot_dimension_numbers<[1], [0], [0], [1], [0, 0, 1, 1], [], []>} : vector<2x64xbf16>, vector<64x512xbf16>, vector<2x512xf32> -> vector<2x512xf32>
    %329 = arith.addf %324, %328 : vector<2x512xf32>
    %330 = vector.extract_strided_slice %288 {offsets = [16, 0], sizes = [2, 64], strides = [1, 1]} : vector<32x64xbf16> to vector<2x64xbf16>
    %c8_208 = arith.constant 8 : index
    %c0_209 = arith.constant 0 : index
    %c0_210 = arith.constant 0 : index
    %331 = vector.load %arg8[%c8_208, %c0_209, %c0_210] : memref<16x64x512xbf16, #tpu.memory_space<vmem>>, vector<1x64x512xbf16>
    %332 = vector.shape_cast %331 : vector<1x64x512xbf16> to vector<64x512xbf16>
    %cst_211 = arith.constant dense<0.000000e+00> : vector<2x512xf32>
    %333 = tpu.matmul %330, %332, %cst_211 {dimension_numbers = #tpu.dot_dimension_numbers<[1], [0], [0], [1], [0, 0, 1, 1], [], []>} : vector<2x64xbf16>, vector<64x512xbf16>, vector<2x512xf32> -> vector<2x512xf32>
    %334 = arith.addf %329, %333 : vector<2x512xf32>
    %335 = vector.extract_strided_slice %288 {offsets = [18, 0], sizes = [2, 64], strides = [1, 1]} : vector<32x64xbf16> to vector<2x64xbf16>
    %c9_212 = arith.constant 9 : index
    %c0_213 = arith.constant 0 : index
    %c0_214 = arith.constant 0 : index
    %336 = vector.load %arg8[%c9_212, %c0_213, %c0_214] : memref<16x64x512xbf16, #tpu.memory_space<vmem>>, vector<1x64x512xbf16>
    %337 = vector.shape_cast %336 : vector<1x64x512xbf16> to vector<64x512xbf16>
    %cst_215 = arith.constant dense<0.000000e+00> : vector<2x512xf32>
    %338 = tpu.matmul %335, %337, %cst_215 {dimension_numbers = #tpu.dot_dimension_numbers<[1], [0], [0], [1], [0, 0, 1, 1], [], []>} : vector<2x64xbf16>, vector<64x512xbf16>, vector<2x512xf32> -> vector<2x512xf32>
    %339 = arith.addf %334, %338 : vector<2x512xf32>
    %340 = vector.extract_strided_slice %288 {offsets = [20, 0], sizes = [2, 64], strides = [1, 1]} : vector<32x64xbf16> to vector<2x64xbf16>
    %c10_216 = arith.constant 10 : index
    %c0_217 = arith.constant 0 : index
    %c0_218 = arith.constant 0 : index
    %341 = vector.load %arg8[%c10_216, %c0_217, %c0_218] : memref<16x64x512xbf16, #tpu.memory_space<vmem>>, vector<1x64x512xbf16>
    %342 = vector.shape_cast %341 : vector<1x64x512xbf16> to vector<64x512xbf16>
    %cst_219 = arith.constant dense<0.000000e+00> : vector<2x512xf32>
    %343 = tpu.matmul %340, %342, %cst_219 {dimension_numbers = #tpu.dot_dimension_numbers<[1], [0], [0], [1], [0, 0, 1, 1], [], []>} : vector<2x64xbf16>, vector<64x512xbf16>, vector<2x512xf32> -> vector<2x512xf32>
    %344 = arith.addf %339, %343 : vector<2x512xf32>
    %345 = vector.extract_strided_slice %288 {offsets = [22, 0], sizes = [2, 64], strides = [1, 1]} : vector<32x64xbf16> to vector<2x64xbf16>
    %c11_220 = arith.constant 11 : index
    %c0_221 = arith.constant 0 : index
    %c0_222 = arith.constant 0 : index
    %346 = vector.load %arg8[%c11_220, %c0_221, %c0_222] : memref<16x64x512xbf16, #tpu.memory_space<vmem>>, vector<1x64x512xbf16>
    %347 = vector.shape_cast %346 : vector<1x64x512xbf16> to vector<64x512xbf16>
    %cst_223 = arith.constant dense<0.000000e+00> : vector<2x512xf32>
    %348 = tpu.matmul %345, %347, %cst_223 {dimension_numbers = #tpu.dot_dimension_numbers<[1], [0], [0], [1], [0, 0, 1, 1], [], []>} : vector<2x64xbf16>, vector<64x512xbf16>, vector<2x512xf32> -> vector<2x512xf32>
    %349 = arith.addf %344, %348 : vector<2x512xf32>
    %350 = vector.extract_strided_slice %288 {offsets = [24, 0], sizes = [2, 64], strides = [1, 1]} : vector<32x64xbf16> to vector<2x64xbf16>
    %c12_224 = arith.constant 12 : index
    %c0_225 = arith.constant 0 : index
    %c0_226 = arith.constant 0 : index
    %351 = vector.load %arg8[%c12_224, %c0_225, %c0_226] : memref<16x64x512xbf16, #tpu.memory_space<vmem>>, vector<1x64x512xbf16>
    %352 = vector.shape_cast %351 : vector<1x64x512xbf16> to vector<64x512xbf16>
    %cst_227 = arith.constant dense<0.000000e+00> : vector<2x512xf32>
    %353 = tpu.matmul %350, %352, %cst_227 {dimension_numbers = #tpu.dot_dimension_numbers<[1], [0], [0], [1], [0, 0, 1, 1], [], []>} : vector<2x64xbf16>, vector<64x512xbf16>, vector<2x512xf32> -> vector<2x512xf32>
    %354 = arith.addf %349, %353 : vector<2x512xf32>
    %355 = vector.extract_strided_slice %288 {offsets = [26, 0], sizes = [2, 64], strides = [1, 1]} : vector<32x64xbf16> to vector<2x64xbf16>
    %c13_228 = arith.constant 13 : index
    %c0_229 = arith.constant 0 : index
    %c0_230 = arith.constant 0 : index
    %356 = vector.load %arg8[%c13_228, %c0_229, %c0_230] : memref<16x64x512xbf16, #tpu.memory_space<vmem>>, vector<1x64x512xbf16>
    %357 = vector.shape_cast %356 : vector<1x64x512xbf16> to vector<64x512xbf16>
    %cst_231 = arith.constant dense<0.000000e+00> : vector<2x512xf32>
    %358 = tpu.matmul %355, %357, %cst_231 {dimension_numbers = #tpu.dot_dimension_numbers<[1], [0], [0], [1], [0, 0, 1, 1], [], []>} : vector<2x64xbf16>, vector<64x512xbf16>, vector<2x512xf32> -> vector<2x512xf32>
    %359 = arith.addf %354, %358 : vector<2x512xf32>
    %360 = vector.extract_strided_slice %288 {offsets = [28, 0], sizes = [2, 64], strides = [1, 1]} : vector<32x64xbf16> to vector<2x64xbf16>
    %c14_232 = arith.constant 14 : index
    %c0_233 = arith.constant 0 : index
    %c0_234 = arith.constant 0 : index
    %361 = vector.load %arg8[%c14_232, %c0_233, %c0_234] : memref<16x64x512xbf16, #tpu.memory_space<vmem>>, vector<1x64x512xbf16>
    %362 = vector.shape_cast %361 : vector<1x64x512xbf16> to vector<64x512xbf16>
    %cst_235 = arith.constant dense<0.000000e+00> : vector<2x512xf32>
    %363 = tpu.matmul %360, %362, %cst_235 {dimension_numbers = #tpu.dot_dimension_numbers<[1], [0], [0], [1], [0, 0, 1, 1], [], []>} : vector<2x64xbf16>, vector<64x512xbf16>, vector<2x512xf32> -> vector<2x512xf32>
    %364 = arith.addf %359, %363 : vector<2x512xf32>
    %365 = vector.extract_strided_slice %288 {offsets = [30, 0], sizes = [2, 64], strides = [1, 1]} : vector<32x64xbf16> to vector<2x64xbf16>
    %c15_236 = arith.constant 15 : index
    %c0_237 = arith.constant 0 : index
    %c0_238 = arith.constant 0 : index
    %366 = vector.load %arg8[%c15_236, %c0_237, %c0_238] : memref<16x64x512xbf16, #tpu.memory_space<vmem>>, vector<1x64x512xbf16>
    %367 = vector.shape_cast %366 : vector<1x64x512xbf16> to vector<64x512xbf16>
    %cst_239 = arith.constant dense<0.000000e+00> : vector<2x512xf32>
    %368 = tpu.matmul %365, %367, %cst_239 {dimension_numbers = #tpu.dot_dimension_numbers<[1], [0], [0], [1], [0, 0, 1, 1], [], []>} : vector<2x64xbf16>, vector<64x512xbf16>, vector<2x512xf32> -> vector<2x512xf32>
    %369 = arith.addf %364, %368 : vector<2x512xf32>
    %c0_240 = arith.constant 0 : index
    %c0_241 = arith.constant 0 : index
    %370 = vector.load %arg9[%c0_240, %c0_241] : memref<1x512xf32, #tpu.memory_space<vmem>>, vector<1x512xf32>
    %371 = vector.broadcast %370 : vector<1x512xf32> to vector<2x512xf32>
    %372 = arith.addf %369, %371 : vector<2x512xf32>
    %cst_242 = arith.constant 0.000000e+00 : f32
    %373 = vector.broadcast %cst_242 : f32 to vector<2x512xf32>
    %374 = arith.maximumf %372, %373 : vector<2x512xf32>
    %375 = arith.truncf %374 : vector<2x512xf32> to vector<2x512xbf16>
    %c0_243 = arith.constant 0 : index
    %c0_244 = arith.constant 0 : index
    %376 = vector.load %arg10[%c0_243, %c0_244] : memref<512x128xbf16, #tpu.memory_space<vmem>>, vector<512x128xbf16>
    %cst_245 = arith.constant dense<0.000000e+00> : vector<2x128xf32>
    %377 = tpu.matmul %375, %376, %cst_245 {dimension_numbers = #tpu.dot_dimension_numbers<[1], [0], [0], [1], [0, 0, 1, 1], [], []>} : vector<2x512xbf16>, vector<512x128xbf16>, vector<2x128xf32> -> vector<2x128xf32>
    %c0_246 = arith.constant 0 : index
    %c0_247 = arith.constant 0 : index
    %378 = vector.load %arg11[%c0_246, %c0_247] : memref<1x128xf32, #tpu.memory_space<vmem>>, vector<1x128xf32>
    %379 = vector.broadcast %378 : vector<1x128xf32> to vector<2x128xf32>
    %380 = arith.addf %377, %379 : vector<2x128xf32>
    %c0_248 = arith.constant 0 : index
    %c0_249 = arith.constant 0 : index
    %381 = vector.load %arg12[%c0_248, %c0_249] : memref<2x128xf32, #tpu.memory_space<vmem>>, vector<2x128xf32>
    tpu.vector_store %arg12[%c0_248, %c0_249], %380 {strides = array<i32>} : memref<2x128xf32, #tpu.memory_space<vmem>>, vector<2x128xf32>,
    return
  }
  func.func @transform_0(%arg0: i32) -> (i32, i32, i32) {
    %c0_i32 = arith.constant 0 : i32
    %c0_i32_0 = arith.constant 0 : i32
    %c0_i32_1 = arith.constant 0 : i32
    %c0_i32_2 = arith.constant 0 : i32
    return %c0_i32, %c0_i32_0, %c0_i32_1 : i32, i32, i32
  }
  func.func @transform_1(%arg0: i32) -> (i32, i32) {
    %c0_i32 = arith.constant 0 : i32
    %c0_i32_0 = arith.constant 0 : i32
    %c0_i32_1 = arith.constant 0 : i32
    return %c0_i32, %c0_i32_0 : i32, i32
  }
  func.func @transform_2(%arg0: i32) -> (i32, i32) {
    %c0_i32 = arith.constant 0 : i32
    %c0_i32_0 = arith.constant 0 : i32
    %c0_i32_1 = arith.constant 0 : i32
    return %c0_i32, %c0_i32_0 : i32, i32
  }
  func.func @transform_3(%arg0: i32) -> (i32, i32, i32) {
    %c0_i32 = arith.constant 0 : i32
    %c0_i32_0 = arith.constant 0 : i32
    %c0_i32_1 = arith.constant 0 : i32
    %c0_i32_2 = arith.constant 0 : i32
    return %c0_i32, %c0_i32_0, %c0_i32_1 : i32, i32, i32
  }
  func.func @transform_4(%arg0: i32) -> (i32, i32) {
    %c0_i32 = arith.constant 0 : i32
    %c0_i32_0 = arith.constant 0 : i32
    %c0_i32_1 = arith.constant 0 : i32
    return %c0_i32, %c0_i32_0 : i32, i32
  }
  func.func @transform_5(%arg0: i32) -> (i32, i32, i32) {
    %c0_i32 = arith.constant 0 : i32
    %c0_i32_0 = arith.constant 0 : i32
    %c0_i32_1 = arith.constant 0 : i32
    %c0_i32_2 = arith.constant 0 : i32
    return %c0_i32, %c0_i32_0, %c0_i32_1 : i32, i32, i32
  }
  func.func @transform_6(%arg0: i32) -> (i32, i32) {
    %c0_i32 = arith.constant 0 : i32
    %c0_i32_0 = arith.constant 0 : i32
    %c0_i32_1 = arith.constant 0 : i32
    return %c0_i32, %c0_i32_0 : i32, i32
  }
  func.func @transform_7(%arg0: i32) -> (i32, i32, i32) {
    %c0_i32 = arith.constant 0 : i32
    %c0_i32_0 = arith.constant 0 : i32
    %c0_i32_1 = arith.constant 0 : i32
    %c0_i32_2 = arith.constant 0 : i32
    return %c0_i32, %c0_i32_0, %c0_i32_1 : i32, i32, i32
  }
  func.func @transform_8(%arg0: i32) -> (i32, i32) {
    %c0_i32 = arith.constant 0 : i32
    %c0_i32_0 = arith.constant 0 : i32
    %c0_i32_1 = arith.constant 0 : i32
    return %c0_i32, %c0_i32_0 : i32, i32
  }
  func.func @transform_9(%arg0: i32) -> (i32, i32) {
    %c0_i32 = arith.constant 0 : i32
    %c0_i32_0 = arith.constant 0 : i32
    %c0_i32_1 = arith.constant 0 : i32
    return %c0_i32, %c0_i32_0 : i32, i32
  }
  func.func @transform_10(%arg0: i32) -> (i32, i32) {
    %c0_i32 = arith.constant 0 : i32
    %c0_i32_0 = arith.constant 0 : i32
    %c0_i32_1 = arith.constant 0 : i32
    return %c0_i32, %c0_i32_0 : i32, i32
  }
  func.func @transform_11(%arg0: i32) -> (i32, i32) {
    %c0_i32 = arith.constant 0 : i32
    %c0_i32_0 = arith.constant 0 : i32
    %c0_i32_1 = arith.constant 0 : i32
    return %c0_i32, %c0_i32_0 : i32, i32
  }
}

</mosaic_0001>

<llo_original>
// kernel: dqn_forward.1
$region0: #{dqn_forward.1}
  #allocation0 [shape = 'u32[]', space=smem, size = 0x4, offset = 0x4, fixed_abs, tag = 'smem constant byte address 0x4 - core index']
  #allocation1 [shape = 'u32[144,128]{1,0:T(1,128)}', space=vmem, size = 0x12000, scoped, tag = 'internal scratch']
  %s0 = inlined_call_operand.vmem [shape: bf16[16,72,64], index: 0, kind: input, shape index: {}]
  %s1 = inlined_call_operand.vmem [shape: bf16[64,32], index: 1, kind: input, shape index: {}]
  %s2 = inlined_call_operand.vmem [shape: f32[1,32], index: 2, kind: input, shape index: {}]
  %s3 = inlined_call_operand.vmem [shape: bf16[16,32,64], index: 3, kind: input, shape index: {}]
  %s4 = inlined_call_operand.vmem [shape: f32[1,64], index: 4, kind: input, shape index: {}]
  %s5 = inlined_call_operand.vmem [shape: bf16[9,64,64], index: 5, kind: input, shape index: {}]
  %s6 = inlined_call_operand.vmem [shape: f32[1,64], index: 6, kind: input, shape index: {}]
  %s7 = inlined_call_operand.vmem [shape: bf16[16,64,512], index: 7, kind: input, shape index: {}]
  %s8 = inlined_call_operand.vmem [shape: f32[1,512], index: 8, kind: input, shape index: {}]
  %s9 = inlined_call_operand.vmem [shape: bf16[512,128], index: 9, kind: input, shape index: {}]
  %s10 = inlined_call_operand.vmem [shape: f32[1,128], index: 10, kind: input, shape index: {}]
  %s11 = inlined_call_operand.hbm [shape: f32[2,128], index: 11, kind: output, shape index: {}]
  %s12 = sld [smem:[#allocation0]]
  $region54: #{dqn_forward.1} parent=0
    _
  %s14 = ssub.s32 1, %s12
  %s15 = scalar_select 0, %s14, %s12
  $region1: #{dqn_forward.1} parent=0
    #allocation2 [shape = 'u8[1024]{0}', space=vmem, size = 0x400, scoped, tag = 'output window, operand 0, single buffered']
    #allocation3 [shape = 's32[1]{0}', space=sflag, size = 0x4, scoped, tag = 'scoped memory for dqn_forward.1']
    %16 = vsyncpa [#allocation3], 0
    // Predicated region
    $region2: #{dqn_forward.1} parent=1 // pred_check
      _
    $region3: #{dqn_forward.1} parent=1 // pred_check_branch
      %18 = sbr.rel (0) target = $region5
    $region4: #{dqn_forward.1} parent=1 // pred_region
      _
    $region5: #{dqn_forward.1} parent=1 // pred_fallthru
      _
    // Predicated region
    $region6: #{dqn_forward.1} parent=1 // pred_check
      _
    $region7: #{dqn_forward.1} parent=1 // pred_check_branch
      %20 = sbr.rel (0) target = $region9
    $region8: #{dqn_forward.1} parent=1 // pred_region
      _
    $region9: #{dqn_forward.1} parent=1 // pred_fallthru
      _
    // Predicated region
    $region10: #{dqn_forward.1} parent=1 // pred_check
      _
    $region11: #{dqn_forward.1} parent=1 // pred_check_branch
      %22 = sbr.rel (0) target = $region13
    $region12: #{dqn_forward.1} parent=1 // pred_region
      _
    $region13: #{dqn_forward.1} parent=1 // pred_fallthru
      _
    // Predicated region
    $region14: #{dqn_forward.1} parent=1 // pred_check
      _
    $region15: #{dqn_forward.1} parent=1 // pred_check_branch
      %24 = sbr.rel (0) target = $region17
    $region16: #{dqn_forward.1} parent=1 // pred_region
      _
    $region17: #{dqn_forward.1} parent=1 // pred_fallthru
      _
    // Predicated region
    $region18: #{dqn_forward.1} parent=1 // pred_check
      _
    $region19: #{dqn_forward.1} parent=1 // pred_check_branch
      %26 = sbr.rel (0) target = $region21
    $region20: #{dqn_forward.1} parent=1 // pred_region
      _
    $region21: #{dqn_forward.1} parent=1 // pred_fallthru
      _
    // Predicated region
    $region22: #{dqn_forward.1} parent=1 // pred_check
      _
    $region23: #{dqn_forward.1} parent=1 // pred_check_branch
      %28 = sbr.rel (0) target = $region25
    $region24: #{dqn_forward.1} parent=1 // pred_region
      _
    $region25: #{dqn_forward.1} parent=1 // pred_fallthru
      _
    // Predicated region
    $region26: #{dqn_forward.1} parent=1 // pred_check
      _
    $region27: #{dqn_forward.1} parent=1 // pred_check_branch
      %30 = sbr.rel (0) target = $region29
    $region28: #{dqn_forward.1} parent=1 // pred_region
      _
    $region29: #{dqn_forward.1} parent=1 // pred_fallthru
      _
    // Predicated region
    $region30: #{dqn_forward.1} parent=1 // pred_check
      _
    $region31: #{dqn_forward.1} parent=1 // pred_check_branch
      %32 = sbr.rel (0) target = $region33
    $region32: #{dqn_forward.1} parent=1 // pred_region
      _
    $region33: #{dqn_forward.1} parent=1 // pred_fallthru
      _
    // Predicated region
    $region34: #{dqn_forward.1} parent=1 // pred_check
      _
    $region35: #{dqn_forward.1} parent=1 // pred_check_branch
      %34 = sbr.rel (0) target = $region37
    $region36: #{dqn_forward.1} parent=1 // pred_region
      _
    $region37: #{dqn_forward.1} parent=1 // pred_fallthru
      _
    // Predicated region
    $region38: #{dqn_forward.1} parent=1 // pred_check
      _
    $region39: #{dqn_forward.1} parent=1 // pred_check_branch
      %36 = sbr.rel (0) target = $region41
    $region40: #{dqn_forward.1} parent=1 // pred_region
      _
    $region41: #{dqn_forward.1} parent=1 // pred_fallthru
      _
    // Predicated region
    $region42: #{dqn_forward.1} parent=1 // pred_check
      _
    $region43: #{dqn_forward.1} parent=1 // pred_check_branch
      %38 = sbr.rel (0) target = $region45
    $region44: #{dqn_forward.1} parent=1 // pred_region
      _
    $region45: #{dqn_forward.1} parent=1 // pred_fallthru
      _
    %v40 = vld [vmem:[%s1] sm:$0xf]
    %v41 = vld [vmem:[%s1 + $0x4] sm:$0xf]
    %v42 = vld [vmem:[%s1 + $0x8] sm:$0xf]
    %v43 = vld [vmem:[%s1 + $0xc] sm:$0xf]
    %v44 = vld [vmem:[%s1 + $0x10] sm:$0xf]
    %v45 = vld [vmem:[%s1 + $0x14] sm:$0xf]
    %v46 = vld [vmem:[%s1 + $0x18] sm:$0xf]
    %v47 = vld [vmem:[%s1 + $0x1c] sm:$0xf]
    %v48 = vld [vmem:[%s2] sm:$0x1]
    %v49 = vld [vmem:[%s0] sm:$0xf]
    %v50 = vld [vmem:[%s0 + $0x4] sm:$0xf]
    %v51 = vld [vmem:[%s0 + $0x8] sm:$0xf]
    %v52 = vld [vmem:[%s0 + $0xc] sm:$0xf]
    %v53 = vld [vmem:[%s0 + $0x10] sm:$0xf]
    %v54 = vld [vmem:[%s0 + $0x14] sm:$0xf]
    %v55 = vld [vmem:[%s0 + $0x18] sm:$0xf]
    %v56 = vld [vmem:[%s0 + $0x1c] sm:$0xf]
    %v57 = vld [vmem:[%s0 + $0x20] sm:$0xf]
    %v59 = vlaneseq
    %v60 = vshrl.u32 %v59, 7
    %v61 = vsub.s32 0, %v60
    %v62 = vrot.slane %v48, %v61
    %v73 = vunpack.c.l.b16 %v49
    %v74 = vunpack.c.l.b16 %v50
    %v75 = vunpack.c.l.b16 %v51
    %v76 = vunpack.c.l.b16 %v52
    %v77 = vunpack.c.l.b16 %v53
    %v78 = vunpack.c.l.b16 %v54
    %v79 = vunpack.c.l.b16 %v55
    %v80 = vunpack.c.l.b16 %v56
    %v81 = vunpack.c.l.b16 %v57
    %v82 = vpack.c.b16 %v74, %v73
    %v83 = vpack.c.b16 %v76, %v75
    %v84 = vpack.c.b16 %v78, %v77
    %v85 = vpack.c.b16 %v80, %v79
    %v86 = vpack.c.b16 %v81, %v81
    %v95 = vunpack.c.l.b16 %v40
    %v96 = vunpack.c.l.b16 %v41
    %v97 = vunpack.c.l.b16 %v42
    %v98 = vunpack.c.l.b16 %v43
    %v99 = vunpack.c.l.b16 %v44
    %v100 = vunpack.c.l.b16 %v45
    %v101 = vunpack.c.l.b16 %v46
    %v102 = vunpack.c.l.b16 %v47
    %v103 = vpack.c.b16 %v96, %v95
    %v104 = vpack.c.b16 %v98, %v97
    %v105 = vpack.c.b16 %v100, %v99
    %v106 = vpack.c.b16 %v102, %v101
    %vm111 = vcmask 523264
    %v113 = vsel %vm111, %v82, 0
    %v116 = vsel %vm111, %v83, 0
    %v119 = vsel %vm111, %v84, 0
    %v122 = vsel %vm111, %v85, 0
    %v125 = vsel %vm111, %v86, 0
    %127 = vmatprep.subr.bf16.mxu0 0
    %128 = vmatpush1.bf16.msra.mxu0 %v103
    %129 = vmatprep.subr.bf16.mxu0 0
    %130 = vmatpush1.bf16.msra.mxu0 %v104
    %131 = vmatprep.subr.bf16.mxu0 0
    %132 = vmatpush1.bf16.msra.mxu0 %v105
    %133 = vmatprep.subr.bf16.mxu0 0
    %134 = vmatpush1.bf16.msra.mxu0 %v106
    %135 = vmatprep.subr.bf16.mxu0 0
    %136 = vmatpush1.bf16.msra.mxu0 0
    %137 = vmatprep.subr.bf16.mxu0 0
    %138 = vmatpush1.bf16.msra.mxu0 0
    %139 = vmatprep.subr.bf16.mxu0 0
    %140 = vmatpush1.bf16.msra.mxu0 0
    %141 = vmatprep.subr.bf16.mxu0 0
    %142 = vmatpush1.bf16.msra.mxu0 0
    %143 = vmatprep.subr.bf16.mxu0 0
    %144 = vmatpush1.bf16.msra.mxu0 0
    %145 = vmatprep.subr.bf16.mxu0 0
    %146 = vmatpush1.bf16.msra.mxu0 0
    %147 = vmatprep.subr.bf16.mxu0 0
    %148 = vmatpush1.bf16.msra.mxu0 0
    %149 = vmatprep.subr.bf16.mxu0 0
    %150 = vmatpush1.bf16.msra.mxu0 0
    %151 = vmatprep.subr.bf16.mxu0 0
    %152 = vmatpush1.bf16.msra.mxu0 0
    %153 = vmatprep.subr.bf16.mxu0 0
    %154 = vmatpush1.bf16.msra.mxu0 0
    %155 = vmatprep.subr.bf16.mxu0 0
    %156 = vmatpush1.bf16.msra.mxu0 0
    %157 = vmatprep.subr.bf16.mxu0 0
    %158 = vmatpush1.bf16.msra.mxu0 0
    %159 = vmatprep.mubr.bf16.mxu0 0
    %160 = vmatmul.mubr.bf16.gmra.mrb[0].mxu0 %v113
    %v161 = vpop.f32.mrb[0].mxu0
    %v162 = vadd.f32 %v62, %v161
    %v163 = vpop.f32.mrb[0].mxu0
    %v164 = vpop.f32.mrb[0].mxu0
    %v165 = vadd.f32 %v62, %v164
    %v166 = vpop.f32.mrb[0].mxu0
    %167 = vmatprep.mubr.bf16.mxu0 0
    %168 = vmatmul.mubr.bf16.gmra.mrb[0].mxu0 %v116
    %v169 = vpop.f32.mrb[0].mxu0
    %v170 = vadd.f32 %v62, %v169
    %v171 = vpop.f32.mrb[0].mxu0
    %v172 = vpop.f32.mrb[0].mxu0
    %v173 = vadd.f32 %v62, %v172
    %v174 = vpop.f32.mrb[0].mxu0
    %175 = vmatprep.mubr.bf16.mxu0 0
    %176 = vmatmul.mubr.bf16.gmra.mrb[0].mxu0 %v119
    %v177 = vpop.f32.mrb[0].mxu0
    %v178 = vadd.f32 %v62, %v177
    %v179 = vpop.f32.mrb[0].mxu0
    %v180 = vpop.f32.mrb[0].mxu0
    %v181 = vadd.f32 %v62, %v180
    %v182 = vpop.f32.mrb[0].mxu0
    %183 = vmatprep.mubr.bf16.mxu0 0
    %184 = vmatmul.mubr.bf16.gmra.mrb[0].mxu0 %v122
    %v185 = vpop.f32.mrb[0].mxu0
    %v186 = vadd.f32 %v62, %v185
    %v187 = vpop.f32.mrb[0].mxu0
    %v188 = vpop.f32.mrb[0].mxu0
    %v189 = vadd.f32 %v62, %v188
    %v190 = vpop.f32.mrb[0].mxu0
    %191 = vmatprep.mubr.bf16.mxu0 0
    %192 = vmatmul.mubr.bf16.gmra.mrb[0].mxu0 %v125
    %v193 = vpop.f32.mrb[0].mxu0
    %v194 = vadd.f32 %v62, %v193
    %v195 = vpop.f32.mrb[0].mxu0
    %v196 = vpop.f32.mrb[0].mxu0
    %v197 = vpop.f32.mrb[0].mxu0
    %198 = vdwg.mxu0
    %v199 = vmax.f32 %v162, 0.0
    %v200 = vmax.f32 %v165, 0.0
    %v201 = vmax.f32 %v170, 0.0
    %v202 = vmax.f32 %v173, 0.0
    %v203 = vmax.f32 %v178, 0.0
    %v204 = vmax.f32 %v181, 0.0
    %v205 = vmax.f32 %v186, 0.0
    %v206 = vmax.f32 %v189, 0.0
    %v207 = vmax.f32 %v194, 0.0
    %v208 = vpack.c.bf16 %v200, %v199
    %v209 = vpack.c.bf16 %v202, %v201
    %v210 = vpack.c.bf16 %v204, %v203
    %v211 = vpack.c.bf16 %v206, %v205
    %v212 = vpack.c.bf16 %v207, %v207
    %v213 = vld [vmem:[%s3] sm:$0xf]
    %v214 = vld [vmem:[%s3 + $0x4] sm:$0xf]
    %v215 = vld [vmem:[%s3 + $0x8] sm:$0xf]
    %v216 = vld [vmem:[%s3 + $0xc] sm:$0xf]
    %s217 = scalar_lea.vmem %s0, 36
    %v218 = vld [vmem:[%s217] sm:$0xf]
    %v219 = vld [vmem:[%s217 + $0x4] sm:$0xf]
    %v220 = vld [vmem:[%s217 + $0x8] sm:$0xf]
    %v221 = vld [vmem:[%s217 + $0xc] sm:$0xf]
    %v222 = vld [vmem:[%s217 + $0x10] sm:$0xf]
    %v223 = vld [vmem:[%s217 + $0x14] sm:$0xf]
    %v224 = vld [vmem:[%s217 + $0x18] sm:$0xf]
    %v225 = vld [vmem:[%s217 + $0x1c] sm:$0xf]
    %v226 = vld [vmem:[%s217 + $0x20] sm:$0xf]
    %v236 = vunpack.c.l.b16 %v218
    %v237 = vunpack.c.l.b16 %v219
    %v238 = vunpack.c.l.b16 %v220
    %v239 = vunpack.c.l.b16 %v221
    %v240 = vunpack.c.l.b16 %v222
    %v241 = vunpack.c.l.b16 %v223
    %v242 = vunpack.c.l.b16 %v224
    %v243 = vunpack.c.l.b16 %v225
    %v244 = vunpack.c.l.b16 %v226
    %v245 = vpack.c.b16 %v237, %v236
    %v246 = vpack.c.b16 %v239, %v238
    %v247 = vpack.c.b16 %v241, %v240
    %v248 = vpack.c.b16 %v243, %v242
    %v249 = vpack.c.b16 %v244, %v244
    %v251 = vsel %vm111, %v245, 0
    %v254 = vsel %vm111, %v246, 0
    %v257 = vsel %vm111, %v247, 0
    %v260 = vsel %vm111, %v248, 0
    %v263 = vsel %vm111, %v249, 0
    %265 = vmatprep.subr.bf16.mxu0 0
    %266 = vmatpush1.bf16.msra.mxu0 %v103
    %267 = vmatprep.subr.bf16.mxu0 0
    %268 = vmatpush1.bf16.msra.mxu0 %v104
    %269 = vmatprep.subr.bf16.mxu0 0
    %270 = vmatpush1.bf16.msra.mxu0 %v105
    %271 = vmatprep.subr.bf16.mxu0 0
    %272 = vmatpush1.bf16.msra.mxu0 %v106
    %273 = vmatprep.subr.bf16.mxu0 0
    %274 = vmatpush1.bf16.msra.mxu0 0
    %275 = vmatprep.subr.bf16.mxu0 0
    %276 = vmatpush1.bf16.msra.mxu0 0
    %277 = vmatprep.subr.bf16.mxu0 0
    %278 = vmatpush1.bf16.msra.mxu0 0
    %279 = vmatprep.subr.bf16.mxu0 0
    %280 = vmatpush1.bf16.msra.mxu0 0
    %281 = vmatprep.subr.bf16.mxu0 0
    %282 = vmatpush1.bf16.msra.mxu0 0
    %283 = vmatprep.subr.bf16.mxu0 0
    %284 = vmatpush1.bf16.msra.mxu0 0
    %285 = vmatprep.subr.bf16.mxu0 0
    %286 = vmatpush1.bf16.msra.mxu0 0
    %287 = vmatprep.subr.bf16.mxu0 0
    %288 = vmatpush1.bf16.msra.mxu0 0
    %289 = vmatprep.subr.bf16.mxu0 0
    %290 = vmatpush1.bf16.msra.mxu0 0
    %291 = vmatprep.subr.bf16.mxu0 0
    %292 = vmatpush1.bf16.msra.mxu0 0
    %293 = vmatprep.subr.bf16.mxu0 0
    %294 = vmatpush1.bf16.msra.mxu0 0
    %295 = vmatprep.subr.bf16.mxu0 0
    %296 = vmatpush1.bf16.msra.mxu0 0
    %297 = vmatprep.mubr.bf16.mxu0 0
    %298 = vmatmul.mubr.bf16.gmra.mrb[0].mxu0 %v251
    %v299 = vpop.f32.mrb[0].mxu0
    %v300 = vadd.f32 %v62, %v299
    %v301 = vpop.f32.mrb[0].mxu0
    %v302 = vpop.f32.mrb[0].mxu0
    %v303 = vadd.f32 %v62, %v302
    %v304 = vpop.f32.mrb[0].mxu0
    %305 = vmatprep.mubr.bf16.mxu0 0
    %306 = vmatmul.mubr.bf16.gmra.mrb[0].mxu0 %v254
    %v307 = vpop.f32.mrb[0].mxu0
    %v308 = vadd.f32 %v62, %v307
    %v309 = vpop.f32.mrb[0].mxu0
    %v310 = vpop.f32.mrb[0].mxu0
    %v311 = vadd.f32 %v62, %v310
    %v312 = vpop.f32.mrb[0].mxu0
    %313 = vmatprep.mubr.bf16.mxu0 0
    %314 = vmatmul.mubr.bf16.gmra.mrb[0].mxu0 %v257
    %v315 = vpop.f32.mrb[0].mxu0
    %v316 = vadd.f32 %v62, %v315
    %v317 = vpop.f32.mrb[0].mxu0
    %v318 = vpop.f32.mrb[0].mxu0
    %v319 = vadd.f32 %v62, %v318
    %v320 = vpop.f32.mrb[0].mxu0
    %321 = vmatprep.mubr.bf16.mxu0 0
    %322 = vmatmul.mubr.bf16.gmra.mrb[0].mxu0 %v260
    %v323 = vpop.f32.mrb[0].mxu0
    %v324 = vadd.f32 %v62, %v323
    %v325 = vpop.f32.mrb[0].mxu0
    %v326 = vpop.f32.mrb[0].mxu0
    %v327 = vadd.f32 %v62, %v326
    %v328 = vpop.f32.mrb[0].mxu0
    %329 = vmatprep.mubr.bf16.mxu0 0
    %330 = vmatmul.mubr.bf16.gmra.mrb[0].mxu0 %v263
    %v331 = vpop.f32.mrb[0].mxu0
    %v332 = vadd.f32 %v62, %v331
    %v333 = vpop.f32.mrb[0].mxu0
    %v334 = vpop.f32.mrb[0].mxu0
    %v335 = vpop.f32.mrb[0].mxu0
    %336 = vdwg.mxu0
    %v337 = vmax.f32 %v300, 0.0
    %v338 = vmax.f32 %v303, 0.0
    %v339 = vmax.f32 %v308, 0.0
    %v340 = vmax.f32 %v311, 0.0
    %v341 = vmax.f32 %v316, 0.0
    %v342 = vmax.f32 %v319, 0.0
    %v343 = vmax.f32 %v324, 0.0
    %v344 = vmax.f32 %v327, 0.0
    %v345 = vmax.f32 %v332, 0.0
    %v346 = vpack.c.bf16 %v338, %v337
    %v347 = vpack.c.bf16 %v340, %v339
    %v348 = vpack.c.bf16 %v342, %v341
    %v349 = vpack.c.bf16 %v344, %v343
    %v350 = vpack.c.bf16 %v345, %v345
    %s351 = scalar_lea.vmem %s3, 16
    %v352 = vld [vmem:[%s351] sm:$0xf]
    %v353 = vld [vmem:[%s351 + $0x4] sm:$0xf]
    %v354 = vld [vmem:[%s351 + $0x8] sm:$0xf]
    %v355 = vld [vmem:[%s351 + $0xc] sm:$0xf]
    %v360 = vunpack.c.l.b16 %v352
    %v361 = vunpack.c.l.b16 %v353
    %v362 = vunpack.c.l.b16 %v354
    %v363 = vunpack.c.l.b16 %v355
    %v364 = vpack.c.b16 %v361, %v360
    %v365 = vpack.c.b16 %v363, %v362
    %vm368 = vcmask 261120
    %v370 = vsel %vm368, %v346, 0
    %v373 = vsel %vm368, %v347, 0
    %v376 = vsel %vm368, %v348, 0
    %v379 = vsel %vm368, %v349, 0
    %v382 = vsel %vm368, %v350, 0
    %384 = vmatprep.subr.bf16.mxu0 0
    %385 = vmatpush1.bf16.msra.mxu0 %v364
    %386 = vmatprep.subr.bf16.mxu0 0
    %387 = vmatpush1.bf16.msra.mxu0 %v365
    %388 = vmatprep.subr.bf16.mxu0 0
    %389 = vmatpush1.bf16.msra.mxu0 0
    %390 = vmatprep.subr.bf16.mxu0 0
    %391 = vmatpush1.bf16.msra.mxu0 0
    %392 = vmatprep.subr.bf16.mxu0 0
    %393 = vmatpush1.bf16.msra.mxu0 0
    %394 = vmatprep.subr.bf16.mxu0 0
    %395 = vmatpush1.bf16.msra.mxu0 0
    %396 = vmatprep.subr.bf16.mxu0 0
    %397 = vmatpush1.bf16.msra.mxu0 0
    %398 = vmatprep.subr.bf16.mxu0 0
    %399 = vmatpush1.bf16.msra.mxu0 0
    %400 = vmatprep.subr.bf16.mxu0 0
    %401 = vmatpush1.bf16.msra.mxu0 0
    %402 = vmatprep.subr.bf16.mxu0 0
    %403 = vmatpush1.bf16.msra.mxu0 0
    %404 = vmatprep.subr.bf16.mxu0 0
    %405 = vmatpush1.bf16.msra.mxu0 0
    %406 = vmatprep.subr.bf16.mxu0 0
    %407 = vmatpush1.bf16.msra.mxu0 0
    %408 = vmatprep.subr.bf16.mxu0 0
    %409 = vmatpush1.bf16.msra.mxu0 0
    %410 = vmatprep.subr.bf16.mxu0 0
    %411 = vmatpush1.bf16.msra.mxu0 0
    %412 = vmatprep.subr.bf16.mxu0 0
    %413 = vmatpush1.bf16.msra.mxu0 0
    %414 = vmatprep.subr.bf16.mxu0 0
    %415 = vmatpush1.bf16.msra.mxu0 0
    %416 = vmatprep.mubr.bf16.mxu0 0
    %417 = vmatmul.mubr.bf16.gmra.mrb[0].mxu0 %v370
    %v418 = vpop.f32.mrb[0].mxu0
    %v419 = vadd.f32 0.0, %v418
    %v420 = vpop.f32.mrb[0].mxu0
    %v421 = vpop.f32.mrb[0].mxu0
    %v422 = vadd.f32 0.0, %v421
    %v423 = vpop.f32.mrb[0].mxu0
    %424 = vmatprep.mubr.bf16.mxu0 0
    %425 = vmatmul.mubr.bf16.gmra.mrb[0].mxu0 %v373
    %v426 = vpop.f32.mrb[0].mxu0
    %v427 = vadd.f32 0.0, %v426
    %v428 = vpop.f32.mrb[0].mxu0
    %v429 = vpop.f32.mrb[0].mxu0
    %v430 = vadd.f32 0.0, %v429
    %v431 = vpop.f32.mrb[0].mxu0
    %432 = vmatprep.mubr.bf16.mxu0 0
    %433 = vmatmul.mubr.bf16.gmra.mrb[0].mxu0 %v376
    %v434 = vpop.f32.mrb[0].mxu0
    %v435 = vadd.f32 0.0, %v434
    %v436 = vpop.f32.mrb[0].mxu0
    %v437 = vpop.f32.mrb[0].mxu0
    %v438 = vadd.f32 0.0, %v437
    %v439 = vpop.f32.mrb[0].mxu0
    %440 = vmatprep.mubr.bf16.mxu0 0
    %441 = vmatmul.mubr.bf16.gmra.mrb[0].mxu0 %v379
    %v442 = vpop.f32.mrb[0].mxu0
    %v443 = vadd.f32 0.0, %v442
    %v444 = vpop.f32.mrb[0].mxu0
    %v445 = vpop.f32.mrb[0].mxu0
    %v446 = vadd.f32 0.0, %v445
    %v447 = vpop.f32.mrb[0].mxu0
    %448 = vmatprep.mubr.bf16.mxu0 0
    %449 = vmatmul.mubr.bf16.gmra.mrb[0].mxu0 %v382
    %v450 = vpop.f32.mrb[0].mxu0
    %v451 = vadd.f32 0.0, %v450
    %v452 = vpop.f32.mrb[0].mxu0
    %v453 = vpop.f32.mrb[0].mxu0
    %v454 = vpop.f32.mrb[0].mxu0
    %455 = vdwg.mxu0
    %v460 = vunpack.c.l.b16 %v213
    %v461 = vunpack.c.l.b16 %v214
    %v462 = vunpack.c.l.b16 %v215
    %v463 = vunpack.c.l.b16 %v216
    %v464 = vpack.c.b16 %v461, %v460
    %v465 = vpack.c.b16 %v463, %v462
    %v469 = vsel %vm368, %v208, 0
    %v472 = vsel %vm368, %v209, 0
    %v475 = vsel %vm368, %v210, 0
    %v478 = vsel %vm368, %v211, 0
    %v481 = vsel %vm368, %v212, 0
    %483 = vmatprep.subr.bf16.mxu0 0
    %484 = vmatpush1.bf16.msra.mxu0 %v464
    %485 = vmatprep.subr.bf16.mxu0 0
    %486 = vmatpush1.bf16.msra.mxu0 %v465
    %487 = vmatprep.subr.bf16.mxu0 0
    %488 = vmatpush1.bf16.msra.mxu0 0
    %489 = vmatprep.subr.bf16.mxu0 0
    %490 = vmatpush1.bf16.msra.mxu0 0
    %491 = vmatprep.subr.bf16.mxu0 0
    %492 = vmatpush1.bf16.msra.mxu0 0
    %493 = vmatprep.subr.bf16.mxu0 0
    %494 = vmatpush1.bf16.msra.mxu0 0
    %495 = vmatprep.subr.bf16.mxu0 0
    %496 = vmatpush1.bf16.msra.mxu0 0
    %497 = vmatprep.subr.bf16.mxu0 0
    %498 = vmatpush1.bf16.msra.mxu0 0
    %499 = vmatprep.subr.bf16.mxu0 0
    %500 = vmatpush1.bf16.msra.mxu0 0
    %501 = vmatprep.subr.bf16.mxu0 0
    %502 = vmatpush1.bf16.msra.mxu0 0
    %503 = vmatprep.subr.bf16.mxu0 0
    %504 = vmatpush1.bf16.msra.mxu0 0
    %505 = vmatprep.subr.bf16.mxu0 0
    %506 = vmatpush1.bf16.msra.mxu0 0
    %507 = vmatprep.subr.bf16.mxu0 0
    %508 = vmatpush1.bf16.msra.mxu0 0
    %509 = vmatprep.subr.bf16.mxu0 0
    %510 = vmatpush1.bf16.msra.mxu0 0
    %511 = vmatprep.subr.bf16.mxu0 0
    %512 = vmatpush1.bf16.msra.mxu0 0
    %513 = vmatprep.subr.bf16.mxu0 0
    %514 = vmatpush1.bf16.msra.mxu0 0
    %515 = vmatprep.mubr.bf16.mxu0 0
    %516 = vmatmul.mubr.bf16.gmra.mrb[0].mxu0 %v469
    %v517 = vpop.f32.mrb[0].mxu0
    %v518 = vadd.f32 %v419, %v517
    %v519 = vpop.f32.mrb[0].mxu0
    %v520 = vpop.f32.mrb[0].mxu0
    %v521 = vadd.f32 %v422, %v520
    %v522 = vpop.f32.mrb[0].mxu0
    %523 = vmatprep.mubr.bf16.mxu0 0
    %524 = vmatmul.mubr.bf16.gmra.mrb[0].mxu0 %v472
    %v525 = vpop.f32.mrb[0].mxu0
    %v526 = vadd.f32 %v427, %v525
    %v527 = vpop.f32.mrb[0].mxu0
    %v528 = vpop.f32.mrb[0].mxu0
    %v529 = vadd.f32 %v430, %v528
    %v530 = vpop.f32.mrb[0].mxu0
    %531 = vmatprep.mubr.bf16.mxu0 0
    %532 = vmatmul.mubr.bf16.gmra.mrb[0].mxu0 %v475
    %v533 = vpop.f32.mrb[0].mxu0
    %v534 = vadd.f32 %v435, %v533
    %v535 = vpop.f32.mrb[0].mxu0
    %v536 = vpop.f32.mrb[0].mxu0
    %v537 = vadd.f32 %v438, %v536
    %v538 = vpop.f32.mrb[0].mxu0
    %539 = vmatprep.mubr.bf16.mxu0 0
    %540 = vmatmul.mubr.bf16.gmra.mrb[0].mxu0 %v478
    %v541 = vpop.f32.mrb[0].mxu0
    %v542 = vadd.f32 %v443, %v541
    %v543 = vpop.f32.mrb[0].mxu0
    %v544 = vpop.f32.mrb[0].mxu0
    %v545 = vadd.f32 %v446, %v544
    %v546 = vpop.f32.mrb[0].mxu0
    %547 = vmatprep.mubr.bf16.mxu0 0
    %548 = vmatmul.mubr.bf16.gmra.mrb[0].mxu0 %v481
    %v549 = vpop.f32.mrb[0].mxu0
    %v550 = vadd.f32 %v451, %v549
    %v551 = vpop.f32.mrb[0].mxu0
    %v552 = vpop.f32.mrb[0].mxu0
    %v553 = vpop.f32.mrb[0].mxu0
    %554 = vdwg.mxu0
    %s555 = scalar_lea.vmem %s0, 72
    %v556 = vld [vmem:[%s555] sm:$0xf]
    %v557 = vld [vmem:[%s555 + $0x4] sm:$0xf]
    %v558 = vld [vmem:[%s555 + $0x8] sm:$0xf]
    %v559 = vld [vmem:[%s555 + $0xc] sm:$0xf]
    %v560 = vld [vmem:[%s555 + $0x10] sm:$0xf]
    %v561 = vld [vmem:[%s555 + $0x14] sm:$0xf]
    %v562 = vld [vmem:[%s555 + $0x18] sm:$0xf]
    %v563 = vld [vmem:[%s555 + $0x1c] sm:$0xf]
    %v564 = vld [vmem:[%s555 + $0x20] sm:$0xf]
    %v574 = vunpack.c.l.b16 %v556
    %v575 = vunpack.c.l.b16 %v557
    %v576 = vunpack.c.l.b16 %v558
    %v577 = vunpack.c.l.b16 %v559
    %v578 = vunpack.c.l.b16 %v560
    %v579 = vunpack.c.l.b16 %v561
    %v580 = vunpack.c.l.b16 %v562
    %v581 = vunpack.c.l.b16 %v563
    %v582 = vunpack.c.l.b16 %v564
    %v583 = vpack.c.b16 %v575, %v574
    %v584 = vpack.c.b16 %v577, %v576
    %v585 = vpack.c.b16 %v579, %v578
    %v586 = vpack.c.b16 %v581, %v580
    %v587 = vpack.c.b16 %v582, %v582
    %v589 = vsel %vm111, %v583, 0
    %v592 = vsel %vm111, %v584, 0
    %v595 = vsel %vm111, %v585, 0
    %v598 = vsel %vm111, %v586, 0
    %v601 = vsel %vm111, %v587, 0
    %603 = vmatprep.subr.bf16.mxu0 0
    %604 = vmatpush1.bf16.msra.mxu0 %v103
    %605 = vmatprep.subr.bf16.mxu0 0
    %606 = vmatpush1.bf16.msra.mxu0 %v104
    %607 = vmatprep.subr.bf16.mxu0 0
    %608 = vmatpush1.bf16.msra.mxu0 %v105
    %609 = vmatprep.subr.bf16.mxu0 0
    %610 = vmatpush1.bf16.msra.mxu0 %v106
    %611 = vmatprep.subr.bf16.mxu0 0
    %612 = vmatpush1.bf16.msra.mxu0 0
    %613 = vmatprep.subr.bf16.mxu0 0
    %614 = vmatpush1.bf16.msra.mxu0 0
    %615 = vmatprep.subr.bf16.mxu0 0
    %616 = vmatpush1.bf16.msra.mxu0 0
    %617 = vmatprep.subr.bf16.mxu0 0
    %618 = vmatpush1.bf16.msra.mxu0 0
    %619 = vmatprep.subr.bf16.mxu0 0
    %620 = vmatpush1.bf16.msra.mxu0 0
    %621 = vmatprep.subr.bf16.mxu0 0
    %622 = vmatpush1.bf16.msra.mxu0 0
    %623 = vmatprep.subr.bf16.mxu0 0
    %624 = vmatpush1.bf16.msra.mxu0 0
    %625 = vmatprep.subr.bf16.mxu0 0
    %626 = vmatpush1.bf16.msra.mxu0 0
    %627 = vmatprep.subr.bf16.mxu0 0
    %628 = vmatpush1.bf16.msra.mxu0 0
    %629 = vmatprep.subr.bf16.mxu0 0
    %630 = vmatpush1.bf16.msra.mxu0 0
    %631 = vmatprep.subr.bf16.mxu0 0
    %632 = vmatpush1.bf16.msra.mxu0 0
    %633 = vmatprep.subr.bf16.mxu0 0
    %634 = vmatpush1.bf16.msra.mxu0 0
    %635 = vmatprep.mubr.bf16.mxu0 0
    %636 = vmatmul.mubr.bf16.gmra.mrb[0].mxu0 %v589
    %v637 = vpop.f32.mrb[0].mxu0
    %v638 = vadd.f32 %v62, %v637
    %v639 = vpop.f32.mrb[0].mxu0
    %v640 = vpop.f32.mrb[0].mxu0
    %v641 = vadd.f32 %v62, %v640
    %v642 = vpop.f32.mrb[0].mxu0
    %643 = vmatprep.mubr.bf16.mxu0 0
    %644 = vmatmul.mubr.bf16.gmra.mrb[0].mxu0 %v592
    %v645 = vpop.f32.mrb[0].mxu0
    %v646 = vadd.f32 %v62, %v645
    %v647 = vpop.f32.mrb[0].mxu0
    %v648 = vpop.f32.mrb[0].mxu0
    %v649 = vadd.f32 %v62, %v648
    %v650 = vpop.f32.mrb[0].mxu0
    %651 = vmatprep.mubr.bf16.mxu0 0
    %652 = vmatmul.mubr.bf16.gmra.mrb[0].mxu0 %v595
    %v653 = vpop.f32.mrb[0].mxu0
    %v654 = vadd.f32 %v62, %v653
    %v655 = vpop.f32.mrb[0].mxu0
    %v656 = vpop.f32.mrb[0].mxu0
    %v657 = vadd.f32 %v62, %v656
    %v658 = vpop.f32.mrb[0].mxu0
    %659 = vmatprep.mubr.bf16.mxu0 0
    %660 = vmatmul.mubr.bf16.gmra.mrb[0].mxu0 %v598
    %v661 = vpop.f32.mrb[0].mxu0
    %v662 = vadd.f32 %v62, %v661
    %v663 = vpop.f32.mrb[0].mxu0
    %v664 = vpop.f32.mrb[0].mxu0
    %v665 = vadd.f32 %v62, %v664
    %v666 = vpop.f32.mrb[0].mxu0
    %667 = vmatprep.mubr.bf16.mxu0 0
    %668 = vmatmul.mubr.bf16.gmra.mrb[0].mxu0 %v601
    %v669 = vpop.f32.mrb[0].mxu0
    %v670 = vadd.f32 %v62, %v669
    %v671 = vpop.f32.mrb[0].mxu0
    %v672 = vpop.f32.mrb[0].mxu0
    %v673 = vpop.f32.mrb[0].mxu0
    %674 = vdwg.mxu0
    %v675 = vmax.f32 %v638, 0.0
    %v676 = vmax.f32 %v641, 0.0
    %v677 = vmax.f32 %v646, 0.0
    %v678 = vmax.f32 %v649, 0.0
    %v679 = vmax.f32 %v654, 0.0
    %v680 = vmax.f32 %v657, 0.0
    %v681 = vmax.f32 %v662, 0.0
    %v682 = vmax.f32 %v665, 0.0
    %v683 = vmax.f32 %v670, 0.0
    %v684 = vpack.c.bf16 %v676, %v675
    %v685 = vpack.c.bf16 %v678, %v677
    %v686 = vpack.c.bf16 %v680, %v679
    %v687 = vpack.c.bf16 %v682, %v681
    %v688 = vpack.c.bf16 %v683, %v683
    %s689 = scalar_lea.vmem %s3, 32
    %v690 = vld [vmem:[%s689] sm:$0xf]
    %v691 = vld [vmem:[%s689 + $0x4] sm:$0xf]
    %v692 = vld [vmem:[%s689 + $0x8] sm:$0xf]
    %v693 = vld [vmem:[%s689 + $0xc] sm:$0xf]
    %v698 = vunpack.c.l.b16 %v690
    %v699 = vunpack.c.l.b16 %v691
    %v700 = vunpack.c.l.b16 %v692
    %v701 = vunpack.c.l.b16 %v693
    %v702 = vpack.c.b16 %v699, %v698
    %v703 = vpack.c.b16 %v701, %v700
    %v707 = vsel %vm368, %v684, 0
    %v710 = vsel %vm368, %v685, 0
    %v713 = vsel %vm368, %v686, 0
    %v716 = vsel %vm368, %v687, 0
    %v719 = vsel %vm368, %v688, 0
    %721 = vmatprep.subr.bf16.mxu0 0
    %722 = vmatpush1.bf16.msra.mxu0 %v702
    %723 = vmatprep.subr.bf16.mxu0 0
    %724 = vmatpush1.bf16.msra.mxu0 %v703
    %725 = vmatprep.subr.bf16.mxu0 0
    %726 = vmatpush1.bf16.msra.mxu0 0
    %727 = vmatprep.subr.bf16.mxu0 0
    %728 = vmatpush1.bf16.msra.mxu0 0
    %729 = vmatprep.subr.bf16.mxu0 0
    %730 = vmatpush1.bf16.msra.mxu0 0
    %731 = vmatprep.subr.bf16.mxu0 0
    %732 = vmatpush1.bf16.msra.mxu0 0
    %733 = vmatprep.subr.bf16.mxu0 0
    %734 = vmatpush1.bf16.msra.mxu0 0
    %735 = vmatprep.subr.bf16.mxu0 0
    %736 = vmatpush1.bf16.msra.mxu0 0
    %737 = vmatprep.subr.bf16.mxu0 0
    %738 = vmatpush1.bf16.msra.mxu0 0
    %739 = vmatprep.subr.bf16.mxu0 0
    %740 = vmatpush1.bf16.msra.mxu0 0
    %741 = vmatprep.subr.bf16.mxu0 0
    %742 = vmatpush1.bf16.msra.mxu0 0
    %743 = vmatprep.subr.bf16.mxu0 0
    %744 = vmatpush1.bf16.msra.mxu0 0
    %745 = vmatprep.subr.bf16.mxu0 0
    %746 = vmatpush1.bf16.msra.mxu0 0
    %747 = vmatprep.subr.bf16.mxu0 0
    %748 = vmatpush1.bf16.msra.mxu0 0
    %749 = vmatprep.subr.bf16.mxu0 0
    %750 = vmatpush1.bf16.msra.mxu0 0
    %751 = vmatprep.subr.bf16.mxu0 0
    %752 = vmatpush1.bf16.msra.mxu0 0
    %753 = vmatprep.mubr.bf16.mxu0 0
    %754 = vmatmul.mubr.bf16.gmra.mrb[0].mxu0 %v707
    %v755 = vpop.f32.mrb[0].mxu0
    %v756 = vadd.f32 0.0, %v755
    %v757 = vpop.f32.mrb[0].mxu0
    %v758 = vpop.f32.mrb[0].mxu0
    %v759 = vadd.f32 0.0, %v758
    %v760 = vpop.f32.mrb[0].mxu0
    %761 = vmatprep.mubr.bf16.mxu0 0
    %762 = vmatmul.mubr.bf16.gmra.mrb[0].mxu0 %v710
    %v763 = vpop.f32.mrb[0].mxu0
    %v764 = vadd.f32 0.0, %v763
    %v765 = vpop.f32.mrb[0].mxu0
    %v766 = vpop.f32.mrb[0].mxu0
    %v767 = vadd.f32 0.0, %v766
    %v768 = vpop.f32.mrb[0].mxu0
    %769 = vmatprep.mubr.bf16.mxu0 0
    %770 = vmatmul.mubr.bf16.gmra.mrb[0].mxu0 %v713
    %v771 = vpop.f32.mrb[0].mxu0
    %v772 = vadd.f32 0.0, %v771
    %v773 = vpop.f32.mrb[0].mxu0
    %v774 = vpop.f32.mrb[0].mxu0
    %v775 = vadd.f32 0.0, %v774
    %v776 = vpop.f32.mrb[0].mxu0
    %777 = vmatprep.mubr.bf16.mxu0 0
    %778 = vmatmul.mubr.bf16.gmra.mrb[0].mxu0 %v716
    %v779 = vpop.f32.mrb[0].mxu0
    %v780 = vadd.f32 0.0, %v779
    %v781 = vpop.f32.mrb[0].mxu0
    %v782 = vpop.f32.mrb[0].mxu0
    %v783 = vadd.f32 0.0, %v782
    %v784 = vpop.f32.mrb[0].mxu0
    %785 = vmatprep.mubr.bf16.mxu0 0
    %786 = vmatmul.mubr.bf16.gmra.mrb[0].mxu0 %v719
    %v787 = vpop.f32.mrb[0].mxu0
    %v788 = vadd.f32 0.0, %v787
    %v789 = vpop.f32.mrb[0].mxu0
    %v790 = vpop.f32.mrb[0].mxu0
    %v791 = vpop.f32.mrb[0].mxu0
    %792 = vdwg.mxu0
    %v793 = vadd.f32 %v518, %v756
    %v794 = vadd.f32 %v521, %v759
    %v795 = vadd.f32 %v526, %v764
    %v796 = vadd.f32 %v529, %v767
    %v797 = vadd.f32 %v534, %v772
    %v798 = vadd.f32 %v537, %v775
    %v799 = vadd.f32 %v542, %v780
    %v800 = vadd.f32 %v545, %v783
    %v801 = vadd.f32 %v550, %v788
    %s802 = scalar_lea.vmem %s0, 108
    %v803 = vld [vmem:[%s802] sm:$0xf]
    %v804 = vld [vmem:[%s802 + $0x4] sm:$0xf]
    %v805 = vld [vmem:[%s802 + $0x8] sm:$0xf]
    %v806 = vld [vmem:[%s802 + $0xc] sm:$0xf]
    %v807 = vld [vmem:[%s802 + $0x10] sm:$0xf]
    %v808 = vld [vmem:[%s802 + $0x14] sm:$0xf]
    %v809 = vld [vmem:[%s802 + $0x18] sm:$0xf]
    %v810 = vld [vmem:[%s802 + $0x1c] sm:$0xf]
    %v811 = vld [vmem:[%s802 + $0x20] sm:$0xf]
    %v821 = vunpack.c.l.b16 %v803
    %v822 = vunpack.c.l.b16 %v804
    %v823 = vunpack.c.l.b16 %v805
    %v824 = vunpack.c.l.b16 %v806
    %v825 = vunpack.c.l.b16 %v807
    %v826 = vunpack.c.l.b16 %v808
    %v827 = vunpack.c.l.b16 %v809
    %v828 = vunpack.c.l.b16 %v810
    %v829 = vunpack.c.l.b16 %v811
    %v830 = vpack.c.b16 %v822, %v821
    %v831 = vpack.c.b16 %v824, %v823
    %v832 = vpack.c.b16 %v826, %v825
    %v833 = vpack.c.b16 %v828, %v827
    %v834 = vpack.c.b16 %v829, %v829
    %v836 = vsel %vm111, %v830, 0
    %v839 = vsel %vm111, %v831, 0
    %v842 = vsel %vm111, %v832, 0
    %v845 = vsel %vm111, %v833, 0
    %v848 = vsel %vm111, %v834, 0
    %850 = vmatprep.subr.bf16.mxu0 0
    %851 = vmatpush1.bf16.msra.mxu0 %v103
    %852 = vmatprep.subr.bf16.mxu0 0
    %853 = vmatpush1.bf16.msra.mxu0 %v104
    %854 = vmatprep.subr.bf16.mxu0 0
    %855 = vmatpush1.bf16.msra.mxu0 %v105
    %856 = vmatprep.subr.bf16.mxu0 0
    %857 = vmatpush1.bf16.msra.mxu0 %v106
    %858 = vmatprep.subr.bf16.mxu0 0
    %859 = vmatpush1.bf16.msra.mxu0 0
    %860 = vmatprep.subr.bf16.mxu0 0
    %861 = vmatpush1.bf16.msra.mxu0 0
    %862 = vmatprep.subr.bf16.mxu0 0
    %863 = vmatpush1.bf16.msra.mxu0 0
    %864 = vmatprep.subr.bf16.mxu0 0
    %865 = vmatpush1.bf16.msra.mxu0 0
    %866 = vmatprep.subr.bf16.mxu0 0
    %867 = vmatpush1.bf16.msra.mxu0 0
    %868 = vmatprep.subr.bf16.mxu0 0
    %869 = vmatpush1.bf16.msra.mxu0 0
    %870 = vmatprep.subr.bf16.mxu0 0
    %871 = vmatpush1.bf16.msra.mxu0 0
    %872 = vmatprep.subr.bf16.mxu0 0
    %873 = vmatpush1.bf16.msra.mxu0 0
    %874 = vmatprep.subr.bf16.mxu0 0
    %875 = vmatpush1.bf16.msra.mxu0 0
    %876 = vmatprep.subr.bf16.mxu0 0
    %877 = vmatpush1.bf16.msra.mxu0 0
    %878 = vmatprep.subr.bf16.mxu0 0
    %879 = vmatpush1.bf16.msra.mxu0 0
    %880 = vmatprep.subr.bf16.mxu0 0
    %881 = vmatpush1.bf16.msra.mxu0 0
    %882 = vmatprep.mubr.bf16.mxu0 0
    %883 = vmatmul.mubr.bf16.gmra.mrb[0].mxu0 %v836
    %v884 = vpop.f32.mrb[0].mxu0
    %v885 = vadd.f32 %v62, %v884
    %v886 = vpop.f32.mrb[0].mxu0
    %v887 = vpop.f32.mrb[0].mxu0
    %v888 = vadd.f32 %v62, %v887
    %v889 = vpop.f32.mrb[0].mxu0
    %890 = vmatprep.mubr.bf16.mxu0 0
    %891 = vmatmul.mubr.bf16.gmra.mrb[0].mxu0 %v839
    %v892 = vpop.f32.mrb[0].mxu0
    %v893 = vadd.f32 %v62, %v892
    %v894 = vpop.f32.mrb[0].mxu0
    %v895 = vpop.f32.mrb[0].mxu0
    %v896 = vadd.f32 %v62, %v895
    %v897 = vpop.f32.mrb[0].mxu0
    %898 = vmatprep.mubr.bf16.mxu0 0
    %899 = vmatmul.mubr.bf16.gmra.mrb[0].mxu0 %v842
    %v900 = vpop.f32.mrb[0].mxu0
    %v901 = vadd.f32 %v62, %v900
    %v902 = vpop.f32.mrb[0].mxu0
    %v903 = vpop.f32.mrb[0].mxu0
    %v904 = vadd.f32 %v62, %v903
    %v905 = vpop.f32.mrb[0].mxu0
    %906 = vmatprep.mubr.bf16.mxu0 0
    %907 = vmatmul.mubr.bf16.gmra.mrb[0].mxu0 %v845
    %v908 = vpop.f32.mrb[0].mxu0
    %v909 = vadd.f32 %v62, %v908
    %v910 = vpop.f32.mrb[0].mxu0
    %v911 = vpop.f32.mrb[0].mxu0
    %v912 = vadd.f32 %v62, %v911
    %v913 = vpop.f32.mrb[0].mxu0
    %914 = vmatprep.mubr.bf16.mxu0 0
    %915 = vmatmul.mubr.bf16.gmra.mrb[0].mxu0 %v848
    %v916 = vpop.f32.mrb[0].mxu0
    %v917 = vadd.f32 %v62, %v916
    %v918 = vpop.f32.mrb[0].mxu0
    %v919 = vpop.f32.mrb[0].mxu0
    %v920 = vpop.f32.mrb[0].mxu0
    %921 = vdwg.mxu0
    %v922 = vmax.f32 %v885, 0.0
    %v923 = vmax.f32 %v888, 0.0
    %v924 = vmax.f32 %v893, 0.0
    %v925 = vmax.f32 %v896, 0.0
    %v926 = vmax.f32 %v901, 0.0
    %v927 = vmax.f32 %v904, 0.0
    %v928 = vmax.f32 %v909, 0.0
    %v929 = vmax.f32 %v912, 0.0
    %v930 = vmax.f32 %v917, 0.0
    %v931 = vpack.c.bf16 %v923, %v922
    %v932 = vpack.c.bf16 %v925, %v924
    %v933 = vpack.c.bf16 %v927, %v926
    %v934 = vpack.c.bf16 %v929, %v928
    %v935 = vpack.c.bf16 %v930, %v930
    %s936 = scalar_lea.vmem %s3, 48
    %v937 = vld [vmem:[%s936] sm:$0xf]
    %v938 = vld [vmem:[%s936 + $0x4] sm:$0xf]
    %v939 = vld [vmem:[%s936 + $0x8] sm:$0xf]
    %v940 = vld [vmem:[%s936 + $0xc] sm:$0xf]
    %v945 = vunpack.c.l.b16 %v937
    %v946 = vunpack.c.l.b16 %v938
    %v947 = vunpack.c.l.b16 %v939
    %v948 = vunpack.c.l.b16 %v940
    %v949 = vpack.c.b16 %v946, %v945
    %v950 = vpack.c.b16 %v948, %v947
    %v954 = vsel %vm368, %v931, 0
    %v957 = vsel %vm368, %v932, 0
    %v960 = vsel %vm368, %v933, 0
    %v963 = vsel %vm368, %v934, 0
    %v966 = vsel %vm368, %v935, 0
    %968 = vmatprep.subr.bf16.mxu0 0
    %969 = vmatpush1.bf16.msra.mxu0 %v949
    %970 = vmatprep.subr.bf16.mxu0 0
    %971 = vmatpush1.bf16.msra.mxu0 %v950
    %972 = vmatprep.subr.bf16.mxu0 0
    %973 = vmatpush1.bf16.msra.mxu0 0
    %974 = vmatprep.subr.bf16.mxu0 0
    %975 = vmatpush1.bf16.msra.mxu0 0
    %976 = vmatprep.subr.bf16.mxu0 0
    %977 = vmatpush1.bf16.msra.mxu0 0
    %978 = vmatprep.subr.bf16.mxu0 0
    %979 = vmatpush1.bf16.msra.mxu0 0
    %980 = vmatprep.subr.bf16.mxu0 0
    %981 = vmatpush1.bf16.msra.mxu0 0
    %982 = vmatprep.subr.bf16.mxu0 0
    %983 = vmatpush1.bf16.msra.mxu0 0
    %984 = vmatprep.subr.bf16.mxu0 0
    %985 = vmatpush1.bf16.msra.mxu0 0
    %986 = vmatprep.subr.bf16.mxu0 0
    %987 = vmatpush1.bf16.msra.mxu0 0
    %988 = vmatprep.subr.bf16.mxu0 0
    %989 = vmatpush1.bf16.msra.mxu0 0
    %990 = vmatprep.subr.bf16.mxu0 0
    %991 = vmatpush1.bf16.msra.mxu0 0
    %992 = vmatprep.subr.bf16.mxu0 0
    %993 = vmatpush1.bf16.msra.mxu0 0
    %994 = vmatprep.subr.bf16.mxu0 0
    %995 = vmatpush1.bf16.msra.mxu0 0
    %996 = vmatprep.subr.bf16.mxu0 0
    %997 = vmatpush1.bf16.msra.mxu0 0
    %998 = vmatprep.subr.bf16.mxu0 0
    %999 = vmatpush1.bf16.msra.mxu0 0
    %1000 = vmatprep.mubr.bf16.mxu0 0
    %1001 = vmatmul.mubr.bf16.gmra.mrb[0].mxu0 %v954
    %v1002 = vpop.f32.mrb[0].mxu0
    %v1003 = vadd.f32 0.0, %v1002
    %v1004 = vpop.f32.mrb[0].mxu0
    %v1005 = vpop.f32.mrb[0].mxu0
    %v1006 = vadd.f32 0.0, %v1005
    %v1007 = vpop.f32.mrb[0].mxu0
    %1008 = vmatprep.mubr.bf16.mxu0 0
    %1009 = vmatmul.mubr.bf16.gmra.mrb[0].mxu0 %v957
    %v1010 = vpop.f32.mrb[0].mxu0
    %v1011 = vadd.f32 0.0, %v1010
    %v1012 = vpop.f32.mrb[0].mxu0
    %v1013 = vpop.f32.mrb[0].mxu0
    %v1014 = vadd.f32 0.0, %v1013
    %v1015 = vpop.f32.mrb[0].mxu0
    %1016 = vmatprep.mubr.bf16.mxu0 0
    %1017 = vmatmul.mubr.bf16.gmra.mrb[0].mxu0 %v960
    %v1018 = vpop.f32.mrb[0].mxu0
    %v1019 = vadd.f32 0.0, %v1018
    %v1020 = vpop.f32.mrb[0].mxu0
    %v1021 = vpop.f32.mrb[0].mxu0
    %v1022 = vadd.f32 0.0, %v1021
    %v1023 = vpop.f32.mrb[0].mxu0
    %1024 = vmatprep.mubr.bf16.mxu0 0
    %1025 = vmatmul.mubr.bf16.gmra.mrb[0].mxu0 %v963
    %v1026 = vpop.f32.mrb[0].mxu0
    %v1027 = vadd.f32 0.0, %v1026
    %v1028 = vpop.f32.mrb[0].mxu0
    %v1029 = vpop.f32.mrb[0].mxu0
    %v1030 = vadd.f32 0.0, %v1029
    %v1031 = vpop.f32.mrb[0].mxu0
    %1032 = vmatprep.mubr.bf16.mxu0 0
    %1033 = vmatmul.mubr.bf16.gmra.mrb[0].mxu0 %v966
    %v1034 = vpop.f32.mrb[0].mxu0
    %v1035 = vadd.f32 0.0, %v1034
    %v1036 = vpop.f32.mrb[0].mxu0
    %v1037 = vpop.f32.mrb[0].mxu0
    %v1038 = vpop.f32.mrb[0].mxu0
    %1039 = vdwg.mxu0
    %v1040 = vadd.f32 %v793, %v1003
    %v1041 = vadd.f32 %v794, %v1006
    %v1042 = vadd.f32 %v795, %v1011
    %v1043 = vadd.f32 %v796, %v1014
    %v1044 = vadd.f32 %v797, %v1019
    %v1045 = vadd.f32 %v798, %v1022
    %v1046 = vadd.f32 %v799, %v1027
    %v1047 = vadd.f32 %v800, %v1030
    %v1048 = vadd.f32 %v801, %v1035
    %s1049 = scalar_lea.vmem %s0, 144
    %v1050 = vld [vmem:[%s1049] sm:$0xf]
    %v1051 = vld [vmem:[%s1049 + $0x4] sm:$0xf]
    %v1052 = vld [vmem:[%s1049 + $0x8] sm:$0xf]
    %v1053 = vld [vmem:[%s1049 + $0xc] sm:$0xf]
    %v1054 = vld [vmem:[%s1049 + $0x10] sm:$0xf]
    %v1055 = vld [vmem:[%s1049 + $0x14] sm:$0xf]
    %v1056 = vld [vmem:[%s1049 + $0x18] sm:$0xf]
    %v1057 = vld [vmem:[%s1049 + $0x1c] sm:$0xf]
    %v1058 = vld [vmem:[%s1049 + $0x20] sm:$0xf]
    %v1068 = vunpack.c.l.b16 %v1050
    %v1069 = vunpack.c.l.b16 %v1051
    %v1070 = vunpack.c.l.b16 %v1052
    %v1071 = vunpack.c.l.b16 %v1053
    %v1072 = vunpack.c.l.b16 %v1054
    %v1073 = vunpack.c.l.b16 %v1055
    %v1074 = vunpack.c.l.b16 %v1056
    %v1075 = vunpack.c.l.b16 %v1057
    %v1076 = vunpack.c.l.b16 %v1058
    %v1077 = vpack.c.b16 %v1069, %v1068
    %v1078 = vpack.c.b16 %v1071, %v1070
    %v1079 = vpack.c.b16 %v1073, %v1072
    %v1080 = vpack.c.b16 %v1075, %v1074
    %v1081 = vpack.c.b16 %v1076, %v1076
    %v1083 = vsel %vm111, %v1077, 0
    %v1086 = vsel %vm111, %v1078, 0
    %v1089 = vsel %vm111, %v1079, 0
    %v1092 = vsel %vm111, %v1080, 0
    %v1095 = vsel %vm111, %v1081, 0
    %1097 = vmatprep.subr.bf16.mxu0 0
    %1098 = vmatpush1.bf16.msra.mxu0 %v103
    %1099 = vmatprep.subr.bf16.mxu0 0
    %1100 = vmatpush1.bf16.msra.mxu0 %v104
    %1101 = vmatprep.subr.bf16.mxu0 0
    %1102 = vmatpush1.bf16.msra.mxu0 %v105
    %1103 = vmatprep.subr.bf16.mxu0 0
    %1104 = vmatpush1.bf16.msra.mxu0 %v106
    %1105 = vmatprep.subr.bf16.mxu0 0
    %1106 = vmatpush1.bf16.msra.mxu0 0
    %1107 = vmatprep.subr.bf16.mxu0 0
    %1108 = vmatpush1.bf16.msra.mxu0 0
    %1109 = vmatprep.subr.bf16.mxu0 0
    %1110 = vmatpush1.bf16.msra.mxu0 0
    %1111 = vmatprep.subr.bf16.mxu0 0
    %1112 = vmatpush1.bf16.msra.mxu0 0
    %1113 = vmatprep.subr.bf16.mxu0 0
    %1114 = vmatpush1.bf16.msra.mxu0 0
    %1115 = vmatprep.subr.bf16.mxu0 0
    %1116 = vmatpush1.bf16.msra.mxu0 0
    %1117 = vmatprep.subr.bf16.mxu0 0
    %1118 = vmatpush1.bf16.msra.mxu0 0
    %1119 = vmatprep.subr.bf16.mxu0 0
    %1120 = vmatpush1.bf16.msra.mxu0 0
    %1121 = vmatprep.subr.bf16.mxu0 0
    %1122 = vmatpush1.bf16.msra.mxu0 0
    %1123 = vmatprep.subr.bf16.mxu0 0
    %1124 = vmatpush1.bf16.msra.mxu0 0
    %1125 = vmatprep.subr.bf16.mxu0 0
    %1126 = vmatpush1.bf16.msra.mxu0 0
    %1127 = vmatprep.subr.bf16.mxu0 0
    %1128 = vmatpush1.bf16.msra.mxu0 0
    %1129 = vmatprep.mubr.bf16.mxu0 0
    %1130 = vmatmul.mubr.bf16.gmra.mrb[0].mxu0 %v1083
    %v1131 = vpop.f32.mrb[0].mxu0
    %v1132 = vadd.f32 %v62, %v1131
    %v1133 = vpop.f32.mrb[0].mxu0
    %v1134 = vpop.f32.mrb[0].mxu0
    %v1135 = vadd.f32 %v62, %v1134
    %v1136 = vpop.f32.mrb[0].mxu0
    %1137 = vmatprep.mubr.bf16.mxu0 0
    %1138 = vmatmul.mubr.bf16.gmra.mrb[0].mxu0 %v1086
    %v1139 = vpop.f32.mrb[0].mxu0
    %v1140 = vadd.f32 %v62, %v1139
    %v1141 = vpop.f32.mrb[0].mxu0
    %v1142 = vpop.f32.mrb[0].mxu0
    %v1143 = vadd.f32 %v62, %v1142
    %v1144 = vpop.f32.mrb[0].mxu0
    %1145 = vmatprep.mubr.bf16.mxu0 0
    %1146 = vmatmul.mubr.bf16.gmra.mrb[0].mxu0 %v1089
    %v1147 = vpop.f32.mrb[0].mxu0
    %v1148 = vadd.f32 %v62, %v1147
    %v1149 = vpop.f32.mrb[0].mxu0
    %v1150 = vpop.f32.mrb[0].mxu0
    %v1151 = vadd.f32 %v62, %v1150
    %v1152 = vpop.f32.mrb[0].mxu0
    %1153 = vmatprep.mubr.bf16.mxu0 0
    %1154 = vmatmul.mubr.bf16.gmra.mrb[0].mxu0 %v1092
    %v1155 = vpop.f32.mrb[0].mxu0
    %v1156 = vadd.f32 %v62, %v1155
    %v1157 = vpop.f32.mrb[0].mxu0
    %v1158 = vpop.f32.mrb[0].mxu0
    %v1159 = vadd.f32 %v62, %v1158
    %v1160 = vpop.f32.mrb[0].mxu0
    %1161 = vmatprep.mubr.bf16.mxu0 0
    %1162 = vmatmul.mubr.bf16.gmra.mrb[0].mxu0 %v1095
    %v1163 = vpop.f32.mrb[0].mxu0
    %v1164 = vadd.f32 %v62, %v1163
    %v1165 = vpop.f32.mrb[0].mxu0
    %v1166 = vpop.f32.mrb[0].mxu0
    %v1167 = vpop.f32.mrb[0].mxu0
    %1168 = vdwg.mxu0
    %v1169 = vmax.f32 %v1132, 0.0
    %v1170 = vmax.f32 %v1135, 0.0
    %v1171 = vmax.f32 %v1140, 0.0
    %v1172 = vmax.f32 %v1143, 0.0
    %v1173 = vmax.f32 %v1148, 0.0
    %v1174 = vmax.f32 %v1151, 0.0
    %v1175 = vmax.f32 %v1156, 0.0
    %v1176 = vmax.f32 %v1159, 0.0
    %v1177 = vmax.f32 %v1164, 0.0
    %v1178 = vpack.c.bf16 %v1170, %v1169
    %v1179 = vpack.c.bf16 %v1172, %v1171
    %v1180 = vpack.c.bf16 %v1174, %v1173
    %v1181 = vpack.c.bf16 %v1176, %v1175
    %v1182 = vpack.c.bf16 %v1177, %v1177
    %s1183 = scalar_lea.vmem %s3, 64
    %v1184 = vld [vmem:[%s1183] sm:$0xf]
    %v1185 = vld [vmem:[%s1183 + $0x4] sm:$0xf]
    %v1186 = vld [vmem:[%s1183 + $0x8] sm:$0xf]
    %v1187 = vld [vmem:[%s1183 + $0xc] sm:$0xf]
    %v1192 = vunpack.c.l.b16 %v1184
    %v1193 = vunpack.c.l.b16 %v1185
    %v1194 = vunpack.c.l.b16 %v1186
    %v1195 = vunpack.c.l.b16 %v1187
    %v1196 = vpack.c.b16 %v1193, %v1192
    %v1197 = vpack.c.b16 %v1195, %v1194
    %v1201 = vsel %vm368, %v1178, 0
    %v1204 = vsel %vm368, %v1179, 0
    %v1207 = vsel %vm368, %v1180, 0
    %v1210 = vsel %vm368, %v1181, 0
    %v1213 = vsel %vm368, %v1182, 0
    %1215 = vmatprep.subr.bf16.mxu0 0
    %1216 = vmatpush1.bf16.msra.mxu0 %v1196
    %1217 = vmatprep.subr.bf16.mxu0 0
    %1218 = vmatpush1.bf16.msra.mxu0 %v1197
    %1219 = vmatprep.subr.bf16.mxu0 0
    %1220 = vmatpush1.bf16.msra.mxu0 0
    %1221 = vmatprep.subr.bf16.mxu0 0
    %1222 = vmatpush1.bf16.msra.mxu0 0
    %1223 = vmatprep.subr.bf16.mxu0 0
    %1224 = vmatpush1.bf16.msra.mxu0 0
    %1225 = vmatprep.subr.bf16.mxu0 0
    %1226 = vmatpush1.bf16.msra.mxu0 0
    %1227 = vmatprep.subr.bf16.mxu0 0
    %1228 = vmatpush1.bf16.msra.mxu0 0
    %1229 = vmatprep.subr.bf16.mxu0 0
    %1230 = vmatpush1.bf16.msra.mxu0 0
    %1231 = vmatprep.subr.bf16.mxu0 0
    %1232 = vmatpush1.bf16.msra.mxu0 0
    %1233 = vmatprep.subr.bf16.mxu0 0
    %1234 = vmatpush1.bf16.msra.mxu0 0
    %1235 = vmatprep.subr.bf16.mxu0 0
    %1236 = vmatpush1.bf16.msra.mxu0 0
    %1237 = vmatprep.subr.bf16.mxu0 0
    %1238 = vmatpush1.bf16.msra.mxu0 0
    %1239 = vmatprep.subr.bf16.mxu0 0
    %1240 = vmatpush1.bf16.msra.mxu0 0
    %1241 = vmatprep.subr.bf16.mxu0 0
    %1242 = vmatpush1.bf16.msra.mxu0 0
    %1243 = vmatprep.subr.bf16.mxu0 0
    %1244 = vmatpush1.bf16.msra.mxu0 0
    %1245 = vmatprep.subr.bf16.mxu0 0
    %1246 = vmatpush1.bf16.msra.mxu0 0
    %1247 = vmatprep.mubr.bf16.mxu0 0
    %1248 = vmatmul.mubr.bf16.gmra.mrb[0].mxu0 %v1201
    %v1249 = vpop.f32.mrb[0].mxu0
    %v1250 = vadd.f32 0.0, %v1249
    %v1251 = vpop.f32.mrb[0].mxu0
    %v1252 = vpop.f32.mrb[0].mxu0
    %v1253 = vadd.f32 0.0, %v1252
    %v1254 = vpop.f32.mrb[0].mxu0
    %1255 = vmatprep.mubr.bf16.mxu0 0
    %1256 = vmatmul.mubr.bf16.gmra.mrb[0].mxu0 %v1204
    %v1257 = vpop.f32.mrb[0].mxu0
    %v1258 = vadd.f32 0.0, %v1257
    %v1259 = vpop.f32.mrb[0].mxu0
    %v1260 = vpop.f32.mrb[0].mxu0
    %v1261 = vadd.f32 0.0, %v1260
    %v1262 = vpop.f32.mrb[0].mxu0
    %1263 = vmatprep.mubr.bf16.mxu0 0
    %1264 = vmatmul.mubr.bf16.gmra.mrb[0].mxu0 %v1207
    %v1265 = vpop.f32.mrb[0].mxu0
    %v1266 = vadd.f32 0.0, %v1265
    %v1267 = vpop.f32.mrb[0].mxu0
    %v1268 = vpop.f32.mrb[0].mxu0
    %v1269 = vadd.f32 0.0, %v1268
    %v1270 = vpop.f32.mrb[0].mxu0
    %1271 = vmatprep.mubr.bf16.mxu0 0
    %1272 = vmatmul.mubr.bf16.gmra.mrb[0].mxu0 %v1210
    %v1273 = vpop.f32.mrb[0].mxu0
    %v1274 = vadd.f32 0.0, %v1273
    %v1275 = vpop.f32.mrb[0].mxu0
    %v1276 = vpop.f32.mrb[0].mxu0
    %v1277 = vadd.f32 0.0, %v1276
    %v1278 = vpop.f32.mrb[0].mxu0
    %1279 = vmatprep.mubr.bf16.mxu0 0
    %1280 = vmatmul.mubr.bf16.gmra.mrb[0].mxu0 %v1213
    %v1281 = vpop.f32.mrb[0].mxu0
    %v1282 = vadd.f32 0.0, %v1281
    %v1283 = vpop.f32.mrb[0].mxu0
    %v1284 = vpop.f32.mrb[0].mxu0
    %v1285 = vpop.f32.mrb[0].mxu0
    %1286 = vdwg.mxu0
    %v1287 = vadd.f32 %v1040, %v1250
    %v1288 = vadd.f32 %v1041, %v1253
    %v1289 = vadd.f32 %v1042, %v1258
    %v1290 = vadd.f32 %v1043, %v1261
    %v1291 = vadd.f32 %v1044, %v1266
    %v1292 = vadd.f32 %v1045, %v1269
    %v1293 = vadd.f32 %v1046, %v1274
    %v1294 = vadd.f32 %v1047, %v1277
    %v1295 = vadd.f32 %v1048, %v1282
    %s1296 = scalar_lea.vmem %s0, 180
    %v1297 = vld [vmem:[%s1296] sm:$0xf]
    %v1298 = vld [vmem:[%s1296 + $0x4] sm:$0xf]
    %v1299 = vld [vmem:[%s1296 + $0x8] sm:$0xf]
    %v1300 = vld [vmem:[%s1296 + $0xc] sm:$0xf]
    %v1301 = vld [vmem:[%s1296 + $0x10] sm:$0xf]
    %v1302 = vld [vmem:[%s1296 + $0x14] sm:$0xf]
    %v1303 = vld [vmem:[%s1296 + $0x18] sm:$0xf]
    %v1304 = vld [vmem:[%s1296 + $0x1c] sm:$0xf]
    %v1305 = vld [vmem:[%s1296 + $0x20] sm:$0xf]
    %v1315 = vunpack.c.l.b16 %v1297
    %v1316 = vunpack.c.l.b16 %v1298
    %v1317 = vunpack.c.l.b16 %v1299
    %v1318 = vunpack.c.l.b16 %v1300
    %v1319 = vunpack.c.l.b16 %v1301
    %v1320 = vunpack.c.l.b16 %v1302
    %v1321 = vunpack.c.l.b16 %v1303
    %v1322 = vunpack.c.l.b16 %v1304
    %v1323 = vunpack.c.l.b16 %v1305
    %v1324 = vpack.c.b16 %v1316, %v1315
    %v1325 = vpack.c.b16 %v1318, %v1317
    %v1326 = vpack.c.b16 %v1320, %v1319
    %v1327 = vpack.c.b16 %v1322, %v1321
    %v1328 = vpack.c.b16 %v1323, %v1323
    %v1330 = vsel %vm111, %v1324, 0
    %v1333 = vsel %vm111, %v1325, 0
    %v1336 = vsel %vm111, %v1326, 0
    %v1339 = vsel %vm111, %v1327, 0
    %v1342 = vsel %vm111, %v1328, 0
    %1344 = vmatprep.subr.bf16.mxu0 0
    %1345 = vmatpush1.bf16.msra.mxu0 %v103
    %1346 = vmatprep.subr.bf16.mxu0 0
    %1347 = vmatpush1.bf16.msra.mxu0 %v104
    %1348 = vmatprep.subr.bf16.mxu0 0
    %1349 = vmatpush1.bf16.msra.mxu0 %v105
    %1350 = vmatprep.subr.bf16.mxu0 0
    %1351 = vmatpush1.bf16.msra.mxu0 %v106
    %1352 = vmatprep.subr.bf16.mxu0 0
    %1353 = vmatpush1.bf16.msra.mxu0 0
    %1354 = vmatprep.subr.bf16.mxu0 0
    %1355 = vmatpush1.bf16.msra.mxu0 0
    %1356 = vmatprep.subr.bf16.mxu0 0
    %1357 = vmatpush1.bf16.msra.mxu0 0
    %1358 = vmatprep.subr.bf16.mxu0 0
    %1359 = vmatpush1.bf16.msra.mxu0 0
    %1360 = vmatprep.subr.bf16.mxu0 0
    %1361 = vmatpush1.bf16.msra.mxu0 0
    %1362 = vmatprep.subr.bf16.mxu0 0
    %1363 = vmatpush1.bf16.msra.mxu0 0
    %1364 = vmatprep.subr.bf16.mxu0 0
    %1365 = vmatpush1.bf16.msra.mxu0 0
    %1366 = vmatprep.subr.bf16.mxu0 0
    %1367 = vmatpush1.bf16.msra.mxu0 0
    %1368 = vmatprep.subr.bf16.mxu0 0
    %1369 = vmatpush1.bf16.msra.mxu0 0
    %1370 = vmatprep.subr.bf16.mxu0 0
    %1371 = vmatpush1.bf16.msra.mxu0 0
    %1372 = vmatprep.subr.bf16.mxu0 0
    %1373 = vmatpush1.bf16.msra.mxu0 0
    %1374 = vmatprep.subr.bf16.mxu0 0
    %1375 = vmatpush1.bf16.msra.mxu0 0
    %1376 = vmatprep.mubr.bf16.mxu0 0
    %1377 = vmatmul.mubr.bf16.gmra.mrb[0].mxu0 %v1330
    %v1378 = vpop.f32.mrb[0].mxu0
    %v1379 = vadd.f32 %v62, %v1378
    %v1380 = vpop.f32.mrb[0].mxu0
    %v1381 = vpop.f32.mrb[0].mxu0
    %v1382 = vadd.f32 %v62, %v1381
    %v1383 = vpop.f32.mrb[0].mxu0
    %1384 = vmatprep.mubr.bf16.mxu0 0
    %1385 = vmatmul.mubr.bf16.gmra.mrb[0].mxu0 %v1333
    %v1386 = vpop.f32.mrb[0].mxu0
    %v1387 = vadd.f32 %v62, %v1386
    %v1388 = vpop.f32.mrb[0].mxu0
    %v1389 = vpop.f32.mrb[0].mxu0
    %v1390 = vadd.f32 %v62, %v1389
    %v1391 = vpop.f32.mrb[0].mxu0
    %1392 = vmatprep.mubr.bf16.mxu0 0
    %1393 = vmatmul.mubr.bf16.gmra.mrb[0].mxu0 %v1336
    %v1394 = vpop.f32.mrb[0].mxu0
    %v1395 = vadd.f32 %v62, %v1394
    %v1396 = vpop.f32.mrb[0].mxu0
    %v1397 = vpop.f32.mrb[0].mxu0
    %v1398 = vadd.f32 %v62, %v1397
    %v1399 = vpop.f32.mrb[0].mxu0
    %1400 = vmatprep.mubr.bf16.mxu0 0
    %1401 = vmatmul.mubr.bf16.gmra.mrb[0].mxu0 %v1339
    %v1402 = vpop.f32.mrb[0].mxu0
    %v1403 = vadd.f32 %v62, %v1402
    %v1404 = vpop.f32.mrb[0].mxu0
    %v1405 = vpop.f32.mrb[0].mxu0
    %v1406 = vadd.f32 %v62, %v1405
    %v1407 = vpop.f32.mrb[0].mxu0
    %1408 = vmatprep.mubr.bf16.mxu0 0
    %1409 = vmatmul.mubr.bf16.gmra.mrb[0].mxu0 %v1342
    %v1410 = vpop.f32.mrb[0].mxu0
    %v1411 = vadd.f32 %v62, %v1410
    %v1412 = vpop.f32.mrb[0].mxu0
    %v1413 = vpop.f32.mrb[0].mxu0
    %v1414 = vpop.f32.mrb[0].mxu0
    %1415 = vdwg.mxu0
    %v1416 = vmax.f32 %v1379, 0.0
    %v1417 = vmax.f32 %v1382, 0.0
    %v1418 = vmax.f32 %v1387, 0.0
    %v1419 = vmax.f32 %v1390, 0.0
    %v1420 = vmax.f32 %v1395, 0.0
    %v1421 = vmax.f32 %v1398, 0.0
    %v1422 = vmax.f32 %v1403, 0.0
    %v1423 = vmax.f32 %v1406, 0.0
    %v1424 = vmax.f32 %v1411, 0.0
    %v1425 = vpack.c.bf16 %v1417, %v1416
    %v1426 = vpack.c.bf16 %v1419, %v1418
    %v1427 = vpack.c.bf16 %v1421, %v1420
    %v1428 = vpack.c.bf16 %v1423, %v1422
    %v1429 = vpack.c.bf16 %v1424, %v1424
    %s1430 = scalar_lea.vmem %s3, 80
    %v1431 = vld [vmem:[%s1430] sm:$0xf]
    %v1432 = vld [vmem:[%s1430 + $0x4] sm:$0xf]
    %v1433 = vld [vmem:[%s1430 + $0x8] sm:$0xf]
    %v1434 = vld [vmem:[%s1430 + $0xc] sm:$0xf]
    %v1439 = vunpack.c.l.b16 %v1431
    %v1440 = vunpack.c.l.b16 %v1432
    %v1441 = vunpack.c.l.b16 %v1433
    %v1442 = vunpack.c.l.b16 %v1434
    %v1443 = vpack.c.b16 %v1440, %v1439
    %v1444 = vpack.c.b16 %v1442, %v1441
    %v1448 = vsel %vm368, %v1425, 0
    %v1451 = vsel %vm368, %v1426, 0
    %v1454 = vsel %vm368, %v1427, 0
    %v1457 = vsel %vm368, %v1428, 0
    %v1460 = vsel %vm368, %v1429, 0
    %1462 = vmatprep.subr.bf16.mxu0 0
    %1463 = vmatpush1.bf16.msra.mxu0 %v1443
    %1464 = vmatprep.subr.bf16.mxu0 0
    %1465 = vmatpush1.bf16.msra.mxu0 %v1444
    %1466 = vmatprep.subr.bf16.mxu0 0
    %1467 = vmatpush1.bf16.msra.mxu0 0
    %1468 = vmatprep.subr.bf16.mxu0 0
    %1469 = vmatpush1.bf16.msra.mxu0 0
    %1470 = vmatprep.subr.bf16.mxu0 0
    %1471 = vmatpush1.bf16.msra.mxu0 0
    %1472 = vmatprep.subr.bf16.mxu0 0
    %1473 = vmatpush1.bf16.msra.mxu0 0
    %1474 = vmatprep.subr.bf16.mxu0 0
    %1475 = vmatpush1.bf16.msra.mxu0 0
    %1476 = vmatprep.subr.bf16.mxu0 0
    %1477 = vmatpush1.bf16.msra.mxu0 0
    %1478 = vmatprep.subr.bf16.mxu0 0
    %1479 = vmatpush1.bf16.msra.mxu0 0
    %1480 = vmatprep.subr.bf16.mxu0 0
    %1481 = vmatpush1.bf16.msra.mxu0 0
    %1482 = vmatprep.subr.bf16.mxu0 0
    %1483 = vmatpush1.bf16.msra.mxu0 0
    %1484 = vmatprep.subr.bf16.mxu0 0
    %1485 = vmatpush1.bf16.msra.mxu0 0
    %1486 = vmatprep.subr.bf16.mxu0 0
    %1487 = vmatpush1.bf16.msra.mxu0 0
    %1488 = vmatprep.subr.bf16.mxu0 0
    %1489 = vmatpush1.bf16.msra.mxu0 0
    %1490 = vmatprep.subr.bf16.mxu0 0
    %1491 = vmatpush1.bf16.msra.mxu0 0
    %1492 = vmatprep.subr.bf16.mxu0 0
    %1493 = vmatpush1.bf16.msra.mxu0 0
    %1494 = vmatprep.mubr.bf16.mxu0 0
    %1495 = vmatmul.mubr.bf16.gmra.mrb[0].mxu0 %v1448
    %v1496 = vpop.f32.mrb[0].mxu0
    %v1497 = vadd.f32 0.0, %v1496
    %v1498 = vpop.f32.mrb[0].mxu0
    %v1499 = vpop.f32.mrb[0].mxu0
    %v1500 = vadd.f32 0.0, %v1499
    %v1501 = vpop.f32.mrb[0].mxu0
    %1502 = vmatprep.mubr.bf16.mxu0 0
    %1503 = vmatmul.mubr.bf16.gmra.mrb[0].mxu0 %v1451
    %v1504 = vpop.f32.mrb[0].mxu0
    %v1505 = vadd.f32 0.0, %v1504
    %v1506 = vpop.f32.mrb[0].mxu0
    %v1507 = vpop.f32.mrb[0].mxu0
    %v1508 = vadd.f32 0.0, %v1507
    %v1509 = vpop.f32.mrb[0].mxu0
    %1510 = vmatprep.mubr.bf16.mxu0 0
    %1511 = vmatmul.mubr.bf16.gmra.mrb[0].mxu0 %v1454
    %v1512 = vpop.f32.mrb[0].mxu0
    %v1513 = vadd.f32 0.0, %v1512
    %v1514 = vpop.f32.mrb[0].mxu0
    %v1515 = vpop.f32.mrb[0].mxu0
    %v1516 = vadd.f32 0.0, %v1515
    %v1517 = vpop.f32.mrb[0].mxu0
    %1518 = vmatprep.mubr.bf16.mxu0 0
    %1519 = vmatmul.mubr.bf16.gmra.mrb[0].mxu0 %v1457
    %v1520 = vpop.f32.mrb[0].mxu0
    %v1521 = vadd.f32 0.0, %v1520
    %v1522 = vpop.f32.mrb[0].mxu0
    %v1523 = vpop.f32.mrb[0].mxu0
    %v1524 = vadd.f32 0.0, %v1523
    %v1525 = vpop.f32.mrb[0].mxu0
    %1526 = vmatprep.mubr.bf16.mxu0 0
    %1527 = vmatmul.mubr.bf16.gmra.mrb[0].mxu0 %v1460
    %v1528 = vpop.f32.mrb[0].mxu0
    %v1529 = vadd.f32 0.0, %v1528
    %v1530 = vpop.f32.mrb[0].mxu0
    %v1531 = vpop.f32.mrb[0].mxu0
    %v1532 = vpop.f32.mrb[0].mxu0
    %1533 = vdwg.mxu0
    %v1534 = vadd.f32 %v1287, %v1497
    %v1535 = vadd.f32 %v1288, %v1500
    %v1536 = vadd.f32 %v1289, %v1505
    %v1537 = vadd.f32 %v1290, %v1508
    %v1538 = vadd.f32 %v1291, %v1513
    %v1539 = vadd.f32 %v1292, %v1516
    %v1540 = vadd.f32 %v1293, %v1521
    %v1541 = vadd.f32 %v1294, %v1524
    %v1542 = vadd.f32 %v1295, %v1529
    %s1543 = scalar_lea.vmem %s0, 216
    %v1544 = vld [vmem:[%s1543] sm:$0xf]
    %v1545 = vld [vmem:[%s1543 + $0x4] sm:$0xf]
    %v1546 = vld [vmem:[%s1543 + $0x8] sm:$0xf]
    %v1547 = vld [vmem:[%s1543 + $0xc] sm:$0xf]
    %v1548 = vld [vmem:[%s1543 + $0x10] sm:$0xf]
    %v1549 = vld [vmem:[%s1543 + $0x14] sm:$0xf]
    %v1550 = vld [vmem:[%s1543 + $0x18] sm:$0xf]
    %v1551 = vld [vmem:[%s1543 + $0x1c] sm:$0xf]
    %v1552 = vld [vmem:[%s1543 + $0x20] sm:$0xf]
    %v1562 = vunpack.c.l.b16 %v1544
    %v1563 = vunpack.c.l.b16 %v1545
    %v1564 = vunpack.c.l.b16 %v1546
    %v1565 = vunpack.c.l.b16 %v1547
    %v1566 = vunpack.c.l.b16 %v1548
    %v1567 = vunpack.c.l.b16 %v1549
    %v1568 = vunpack.c.l.b16 %v1550
    %v1569 = vunpack.c.l.b16 %v1551
    %v1570 = vunpack.c.l.b16 %v1552
    %v1571 = vpack.c.b16 %v1563, %v1562
    %v1572 = vpack.c.b16 %v1565, %v1564
    %v1573 = vpack.c.b16 %v1567, %v1566
    %v1574 = vpack.c.b16 %v1569, %v1568
    %v1575 = vpack.c.b16 %v1570, %v1570
    %v1577 = vsel %vm111, %v1571, 0
    %v1580 = vsel %vm111, %v1572, 0
    %v1583 = vsel %vm111, %v1573, 0
    %v1586 = vsel %vm111, %v1574, 0
    %v1589 = vsel %vm111, %v1575, 0
    %1591 = vmatprep.subr.bf16.mxu0 0
    %1592 = vmatpush1.bf16.msra.mxu0 %v103
    %1593 = vmatprep.subr.bf16.mxu0 0
    %1594 = vmatpush1.bf16.msra.mxu0 %v104
    %1595 = vmatprep.subr.bf16.mxu0 0
    %1596 = vmatpush1.bf16.msra.mxu0 %v105
    %1597 = vmatprep.subr.bf16.mxu0 0
    %1598 = vmatpush1.bf16.msra.mxu0 %v106
    %1599 = vmatprep.subr.bf16.mxu0 0
    %1600 = vmatpush1.bf16.msra.mxu0 0
    %1601 = vmatprep.subr.bf16.mxu0 0
    %1602 = vmatpush1.bf16.msra.mxu0 0
    %1603 = vmatprep.subr.bf16.mxu0 0
    %1604 = vmatpush1.bf16.msra.mxu0 0
    %1605 = vmatprep.subr.bf16.mxu0 0
    %1606 = vmatpush1.bf16.msra.mxu0 0
    %1607 = vmatprep.subr.bf16.mxu0 0
    %1608 = vmatpush1.bf16.msra.mxu0 0
    %1609 = vmatprep.subr.bf16.mxu0 0
    %1610 = vmatpush1.bf16.msra.mxu0 0
    %1611 = vmatprep.subr.bf16.mxu0 0
    %1612 = vmatpush1.bf16.msra.mxu0 0
    %1613 = vmatprep.subr.bf16.mxu0 0
    %1614 = vmatpush1.bf16.msra.mxu0 0
    %1615 = vmatprep.subr.bf16.mxu0 0
    %1616 = vmatpush1.bf16.msra.mxu0 0
    %1617 = vmatprep.subr.bf16.mxu0 0
    %1618 = vmatpush1.bf16.msra.mxu0 0
    %1619 = vmatprep.subr.bf16.mxu0 0
    %1620 = vmatpush1.bf16.msra.mxu0 0
    %1621 = vmatprep.subr.bf16.mxu0 0
    %1622 = vmatpush1.bf16.msra.mxu0 0
    %1623 = vmatprep.mubr.bf16.mxu0 0
    %1624 = vmatmul.mubr.bf16.gmra.mrb[0].mxu0 %v1577
    %v1625 = vpop.f32.mrb[0].mxu0
    %v1626 = vadd.f32 %v62, %v1625
    %v1627 = vpop.f32.mrb[0].mxu0
    %v1628 = vpop.f32.mrb[0].mxu0
    %v1629 = vadd.f32 %v62, %v1628
    %v1630 = vpop.f32.mrb[0].mxu0
    %1631 = vmatprep.mubr.bf16.mxu0 0
    %1632 = vmatmul.mubr.bf16.gmra.mrb[0].mxu0 %v1580
    %v1633 = vpop.f32.mrb[0].mxu0
    %v1634 = vadd.f32 %v62, %v1633
    %v1635 = vpop.f32.mrb[0].mxu0
    %v1636 = vpop.f32.mrb[0].mxu0
    %v1637 = vadd.f32 %v62, %v1636
    %v1638 = vpop.f32.mrb[0].mxu0
    %1639 = vmatprep.mubr.bf16.mxu0 0
    %1640 = vmatmul.mubr.bf16.gmra.mrb[0].mxu0 %v1583
    %v1641 = vpop.f32.mrb[0].mxu0
    %v1642 = vadd.f32 %v62, %v1641
    %v1643 = vpop.f32.mrb[0].mxu0
    %v1644 = vpop.f32.mrb[0].mxu0
    %v1645 = vadd.f32 %v62, %v1644
    %v1646 = vpop.f32.mrb[0].mxu0
    %1647 = vmatprep.mubr.bf16.mxu0 0
    %1648 = vmatmul.mubr.bf16.gmra.mrb[0].mxu0 %v1586
    %v1649 = vpop.f32.mrb[0].mxu0
    %v1650 = vadd.f32 %v62, %v1649
    %v1651 = vpop.f32.mrb[0].mxu0
    %v1652 = vpop.f32.mrb[0].mxu0
    %v1653 = vadd.f32 %v62, %v1652
    %v1654 = vpop.f32.mrb[0].mxu0
    %1655 = vmatprep.mubr.bf16.mxu0 0
    %1656 = vmatmul.mubr.bf16.gmra.mrb[0].mxu0 %v1589
    %v1657 = vpop.f32.mrb[0].mxu0
    %v1658 = vadd.f32 %v62, %v1657
    %v1659 = vpop.f32.mrb[0].mxu0
    %v1660 = vpop.f32.mrb[0].mxu0
    %v1661 = vpop.f32.mrb[0].mxu0
    %1662 = vdwg.mxu0
    %v1663 = vmax.f32 %v1626, 0.0
    %v1664 = vmax.f32 %v1629, 0.0
    %v1665 = vmax.f32 %v1634, 0.0
    %v1666 = vmax.f32 %v1637, 0.0
    %v1667 = vmax.f32 %v1642, 0.0
    %v1668 = vmax.f32 %v1645, 0.0
    %v1669 = vmax.f32 %v1650, 0.0
    %v1670 = vmax.f32 %v1653, 0.0
    %v1671 = vmax.f32 %v1658, 0.0
    %v1672 = vpack.c.bf16 %v1664, %v1663
    %v1673 = vpack.c.bf16 %v1666, %v1665
    %v1674 = vpack.c.bf16 %v1668, %v1667
    %v1675 = vpack.c.bf16 %v1670, %v1669
    %v1676 = vpack.c.bf16 %v1671, %v1671
    %s1677 = scalar_lea.vmem %s3, 96
    %v1678 = vld [vmem:[%s1677] sm:$0xf]
    %v1679 = vld [vmem:[%s1677 + $0x4] sm:$0xf]
    %v1680 = vld [vmem:[%s1677 + $0x8] sm:$0xf]
    %v1681 = vld [vmem:[%s1677 + $0xc] sm:$0xf]
    %v1686 = vunpack.c.l.b16 %v1678
    %v1687 = vunpack.c.l.b16 %v1679
    %v1688 = vunpack.c.l.b16 %v1680
    %v1689 = vunpack.c.l.b16 %v1681
    %v1690 = vpack.c.b16 %v1687, %v1686
    %v1691 = vpack.c.b16 %v1689, %v1688
    %v1695 = vsel %vm368, %v1672, 0
    %v1698 = vsel %vm368, %v1673, 0
    %v1701 = vsel %vm368, %v1674, 0
    %v1704 = vsel %vm368, %v1675, 0
    %v1707 = vsel %vm368, %v1676, 0
    %1709 = vmatprep.subr.bf16.mxu0 0
    %1710 = vmatpush1.bf16.msra.mxu0 %v1690
    %1711 = vmatprep.subr.bf16.mxu0 0
    %1712 = vmatpush1.bf16.msra.mxu0 %v1691
    %1713 = vmatprep.subr.bf16.mxu0 0
    %1714 = vmatpush1.bf16.msra.mxu0 0
    %1715 = vmatprep.subr.bf16.mxu0 0
    %1716 = vmatpush1.bf16.msra.mxu0 0
    %1717 = vmatprep.subr.bf16.mxu0 0
    %1718 = vmatpush1.bf16.msra.mxu0 0
    %1719 = vmatprep.subr.bf16.mxu0 0
    %1720 = vmatpush1.bf16.msra.mxu0 0
    %1721 = vmatprep.subr.bf16.mxu0 0
    %1722 = vmatpush1.bf16.msra.mxu0 0
    %1723 = vmatprep.subr.bf16.mxu0 0
    %1724 = vmatpush1.bf16.msra.mxu0 0
    %1725 = vmatprep.subr.bf16.mxu0 0
    %1726 = vmatpush1.bf16.msra.mxu0 0
    %1727 = vmatprep.subr.bf16.mxu0 0
    %1728 = vmatpush1.bf16.msra.mxu0 0
    %1729 = vmatprep.subr.bf16.mxu0 0
    %1730 = vmatpush1.bf16.msra.mxu0 0
    %1731 = vmatprep.subr.bf16.mxu0 0
    %1732 = vmatpush1.bf16.msra.mxu0 0
    %1733 = vmatprep.subr.bf16.mxu0 0
    %1734 = vmatpush1.bf16.msra.mxu0 0
    %1735 = vmatprep.subr.bf16.mxu0 0
    %1736 = vmatpush1.bf16.msra.mxu0 0
    %1737 = vmatprep.subr.bf16.mxu0 0
    %1738 = vmatpush1.bf16.msra.mxu0 0
    %1739 = vmatprep.subr.bf16.mxu0 0
    %1740 = vmatpush1.bf16.msra.mxu0 0
    %1741 = vmatprep.mubr.bf16.mxu0 0
    %1742 = vmatmul.mubr.bf16.gmra.mrb[0].mxu0 %v1695
    %v1743 = vpop.f32.mrb[0].mxu0
    %v1744 = vadd.f32 0.0, %v1743
    %v1745 = vpop.f32.mrb[0].mxu0
    %v1746 = vpop.f32.mrb[0].mxu0
    %v1747 = vadd.f32 0.0, %v1746
    %v1748 = vpop.f32.mrb[0].mxu0
    %1749 = vmatprep.mubr.bf16.mxu0 0
    %1750 = vmatmul.mubr.bf16.gmra.mrb[0].mxu0 %v1698
    %v1751 = vpop.f32.mrb[0].mxu0
    %v1752 = vadd.f32 0.0, %v1751
    %v1753 = vpop.f32.mrb[0].mxu0
    %v1754 = vpop.f32.mrb[0].mxu0
    %v1755 = vadd.f32 0.0, %v1754
    %v1756 = vpop.f32.mrb[0].mxu0
    %1757 = vmatprep.mubr.bf16.mxu0 0
    %1758 = vmatmul.mubr.bf16.gmra.mrb[0].mxu0 %v1701
    %v1759 = vpop.f32.mrb[0].mxu0
    %v1760 = vadd.f32 0.0, %v1759
    %v1761 = vpop.f32.mrb[0].mxu0
    %v1762 = vpop.f32.mrb[0].mxu0
    %v1763 = vadd.f32 0.0, %v1762
    %v1764 = vpop.f32.mrb[0].mxu0
    %1765 = vmatprep.mubr.bf16.mxu0 0
    %1766 = vmatmul.mubr.bf16.gmra.mrb[0].mxu0 %v1704
    %v1767 = vpop.f32.mrb[0].mxu0
    %v1768 = vadd.f32 0.0, %v1767
    %v1769 = vpop.f32.mrb[0].mxu0
    %v1770 = vpop.f32.mrb[0].mxu0
    %v1771 = vadd.f32 0.0, %v1770
    %v1772 = vpop.f32.mrb[0].mxu0
    %1773 = vmatprep.mubr.bf16.mxu0 0
    %1774 = vmatmul.mubr.bf16.gmra.mrb[0].mxu0 %v1707
    %v1775 = vpop.f32.mrb[0].mxu0
    %v1776 = vadd.f32 0.0, %v1775
    %v1777 = vpop.f32.mrb[0].mxu0
    %v1778 = vpop.f32.mrb[0].mxu0
    %v1779 = vpop.f32.mrb[0].mxu0
    %1780 = vdwg.mxu0
    %v1781 = vadd.f32 %v1534, %v1744
    %v1782 = vadd.f32 %v1535, %v1747
    %v1783 = vadd.f32 %v1536, %v1752
    %v1784 = vadd.f32 %v1537, %v1755
    %v1785 = vadd.f32 %v1538, %v1760
    %v1786 = vadd.f32 %v1539, %v1763
    %v1787 = vadd.f32 %v1540, %v1768
    %v1788 = vadd.f32 %v1541, %v1771
    %v1789 = vadd.f32 %v1542, %v1776
    %s1790 = scalar_lea.vmem %s0, 252
    %v1791 = vld [vmem:[%s1790] sm:$0xf]
    %v1792 = vld [vmem:[%s1790 + $0x4] sm:$0xf]
    %v1793 = vld [vmem:[%s1790 + $0x8] sm:$0xf]
    %v1794 = vld [vmem:[%s1790 + $0xc] sm:$0xf]
    %v1795 = vld [vmem:[%s1790 + $0x10] sm:$0xf]
    %v1796 = vld [vmem:[%s1790 + $0x14] sm:$0xf]
    %v1797 = vld [vmem:[%s1790 + $0x18] sm:$0xf]
    %v1798 = vld [vmem:[%s1790 + $0x1c] sm:$0xf]
    %v1799 = vld [vmem:[%s1790 + $0x20] sm:$0xf]
    %v1809 = vunpack.c.l.b16 %v1791
    %v1810 = vunpack.c.l.b16 %v1792
    %v1811 = vunpack.c.l.b16 %v1793
    %v1812 = vunpack.c.l.b16 %v1794
    %v1813 = vunpack.c.l.b16 %v1795
    %v1814 = vunpack.c.l.b16 %v1796
    %v1815 = vunpack.c.l.b16 %v1797
    %v1816 = vunpack.c.l.b16 %v1798
    %v1817 = vunpack.c.l.b16 %v1799
    %v1818 = vpack.c.b16 %v1810, %v1809
    %v1819 = vpack.c.b16 %v1812, %v1811
    %v1820 = vpack.c.b16 %v1814, %v1813
    %v1821 = vpack.c.b16 %v1816, %v1815
    %v1822 = vpack.c.b16 %v1817, %v1817
    %v1824 = vsel %vm111, %v1818, 0
    %v1827 = vsel %vm111, %v1819, 0
    %v1830 = vsel %vm111, %v1820, 0
    %v1833 = vsel %vm111, %v1821, 0
    %v1836 = vsel %vm111, %v1822, 0
    %1838 = vmatprep.subr.bf16.mxu0 0
    %1839 = vmatpush1.bf16.msra.mxu0 %v103
    %1840 = vmatprep.subr.bf16.mxu0 0
    %1841 = vmatpush1.bf16.msra.mxu0 %v104
    %1842 = vmatprep.subr.bf16.mxu0 0
    %1843 = vmatpush1.bf16.msra.mxu0 %v105
    %1844 = vmatprep.subr.bf16.mxu0 0
    %1845 = vmatpush1.bf16.msra.mxu0 %v106
    %1846 = vmatprep.subr.bf16.mxu0 0
    %1847 = vmatpush1.bf16.msra.mxu0 0
    %1848 = vmatprep.subr.bf16.mxu0 0
    %1849 = vmatpush1.bf16.msra.mxu0 0
    %1850 = vmatprep.subr.bf16.mxu0 0
    %1851 = vmatpush1.bf16.msra.mxu0 0
    %1852 = vmatprep.subr.bf16.mxu0 0
    %1853 = vmatpush1.bf16.msra.mxu0 0
    %1854 = vmatprep.subr.bf16.mxu0 0
    %1855 = vmatpush1.bf16.msra.mxu0 0
    %1856 = vmatprep.subr.bf16.mxu0 0
    %1857 = vmatpush1.bf16.msra.mxu0 0
    %1858 = vmatprep.subr.bf16.mxu0 0
    %1859 = vmatpush1.bf16.msra.mxu0 0
    %1860 = vmatprep.subr.bf16.mxu0 0
    %1861 = vmatpush1.bf16.msra.mxu0 0
    %1862 = vmatprep.subr.bf16.mxu0 0
    %1863 = vmatpush1.bf16.msra.mxu0 0
    %1864 = vmatprep.subr.bf16.mxu0 0
    %1865 = vmatpush1.bf16.msra.mxu0 0
    %1866 = vmatprep.subr.bf16.mxu0 0
    %1867 = vmatpush1.bf16.msra.mxu0 0
    %1868 = vmatprep.subr.bf16.mxu0 0
    %1869 = vmatpush1.bf16.msra.mxu0 0
    %1870 = vmatprep.mubr.bf16.mxu0 0
    %1871 = vmatmul.mubr.bf16.gmra.mrb[0].mxu0 %v1824
    %v1872 = vpop.f32.mrb[0].mxu0
    %v1873 = vadd.f32 %v62, %v1872
    %v1874 = vpop.f32.mrb[0].mxu0
    %v1875 = vpop.f32.mrb[0].mxu0
    %v1876 = vadd.f32 %v62, %v1875
    %v1877 = vpop.f32.mrb[0].mxu0
    %1878 = vmatprep.mubr.bf16.mxu0 0
    %1879 = vmatmul.mubr.bf16.gmra.mrb[0].mxu0 %v1827
    %v1880 = vpop.f32.mrb[0].mxu0
    %v1881 = vadd.f32 %v62, %v1880
    %v1882 = vpop.f32.mrb[0].mxu0
    %v1883 = vpop.f32.mrb[0].mxu0
    %v1884 = vadd.f32 %v62, %v1883
    %v1885 = vpop.f32.mrb[0].mxu0
    %1886 = vmatprep.mubr.bf16.mxu0 0
    %1887 = vmatmul.mubr.bf16.gmra.mrb[0].mxu0 %v1830
    %v1888 = vpop.f32.mrb[0].mxu0
    %v1889 = vadd.f32 %v62, %v1888
    %v1890 = vpop.f32.mrb[0].mxu0
    %v1891 = vpop.f32.mrb[0].mxu0
    %v1892 = vadd.f32 %v62, %v1891
    %v1893 = vpop.f32.mrb[0].mxu0
    %1894 = vmatprep.mubr.bf16.mxu0 0
    %1895 = vmatmul.mubr.bf16.gmra.mrb[0].mxu0 %v1833
    %v1896 = vpop.f32.mrb[0].mxu0
    %v1897 = vadd.f32 %v62, %v1896
    %v1898 = vpop.f32.mrb[0].mxu0
    %v1899 = vpop.f32.mrb[0].mxu0
    %v1900 = vadd.f32 %v62, %v1899
    %v1901 = vpop.f32.mrb[0].mxu0
    %1902 = vmatprep.mubr.bf16.mxu0 0
    %1903 = vmatmul.mubr.bf16.gmra.mrb[0].mxu0 %v1836
    %v1904 = vpop.f32.mrb[0].mxu0
    %v1905 = vadd.f32 %v62, %v1904
    %v1906 = vpop.f32.mrb[0].mxu0
    %v1907 = vpop.f32.mrb[0].mxu0
    %v1908 = vpop.f32.mrb[0].mxu0
    %1909 = vdwg.mxu0
    %v1910 = vmax.f32 %v1873, 0.0
    %v1911 = vmax.f32 %v1876, 0.0
    %v1912 = vmax.f32 %v1881, 0.0
    %v1913 = vmax.f32 %v1884, 0.0
    %v1914 = vmax.f32 %v1889, 0.0
    %v1915 = vmax.f32 %v1892, 0.0
    %v1916 = vmax.f32 %v1897, 0.0
    %v1917 = vmax.f32 %v1900, 0.0
    %v1918 = vmax.f32 %v1905, 0.0
    %v1919 = vpack.c.bf16 %v1911, %v1910
    %v1920 = vpack.c.bf16 %v1913, %v1912
    %v1921 = vpack.c.bf16 %v1915, %v1914
    %v1922 = vpack.c.bf16 %v1917, %v1916
    %v1923 = vpack.c.bf16 %v1918, %v1918
    %s1924 = scalar_lea.vmem %s3, 112
    %v1925 = vld [vmem:[%s1924] sm:$0xf]
    %v1926 = vld [vmem:[%s1924 + $0x4] sm:$0xf]
    %v1927 = vld [vmem:[%s1924 + $0x8] sm:$0xf]
    %v1928 = vld [vmem:[%s1924 + $0xc] sm:$0xf]
    %v1933 = vunpack.c.l.b16 %v1925
    %v1934 = vunpack.c.l.b16 %v1926
    %v1935 = vunpack.c.l.b16 %v1927
    %v1936 = vunpack.c.l.b16 %v1928
    %v1937 = vpack.c.b16 %v1934, %v1933
    %v1938 = vpack.c.b16 %v1936, %v1935
    %v1942 = vsel %vm368, %v1919, 0
    %v1945 = vsel %vm368, %v1920, 0
    %v1948 = vsel %vm368, %v1921, 0
    %v1951 = vsel %vm368, %v1922, 0
    %v1954 = vsel %vm368, %v1923, 0
    %1956 = vmatprep.subr.bf16.mxu0 0
    %1957 = vmatpush1.bf16.msra.mxu0 %v1937
    %1958 = vmatprep.subr.bf16.mxu0 0
    %1959 = vmatpush1.bf16.msra.mxu0 %v1938
    %1960 = vmatprep.subr.bf16.mxu0 0
    %1961 = vmatpush1.bf16.msra.mxu0 0
    %1962 = vmatprep.subr.bf16.mxu0 0
    %1963 = vmatpush1.bf16.msra.mxu0 0
    %1964 = vmatprep.subr.bf16.mxu0 0
    %1965 = vmatpush1.bf16.msra.mxu0 0
    %1966 = vmatprep.subr.bf16.mxu0 0
    %1967 = vmatpush1.bf16.msra.mxu0 0
    %1968 = vmatprep.subr.bf16.mxu0 0
    %1969 = vmatpush1.bf16.msra.mxu0 0
    %1970 = vmatprep.subr.bf16.mxu0 0
    %1971 = vmatpush1.bf16.msra.mxu0 0
    %1972 = vmatprep.subr.bf16.mxu0 0
    %1973 = vmatpush1.bf16.msra.mxu0 0
    %1974 = vmatprep.subr.bf16.mxu0 0
    %1975 = vmatpush1.bf16.msra.mxu0 0
    %1976 = vmatprep.subr.bf16.mxu0 0
    %1977 = vmatpush1.bf16.msra.mxu0 0
    %1978 = vmatprep.subr.bf16.mxu0 0
    %1979 = vmatpush1.bf16.msra.mxu0 0
    %1980 = vmatprep.subr.bf16.mxu0 0
    %1981 = vmatpush1.bf16.msra.mxu0 0
    %1982 = vmatprep.subr.bf16.mxu0 0
    %1983 = vmatpush1.bf16.msra.mxu0 0
    %1984 = vmatprep.subr.bf16.mxu0 0
    %1985 = vmatpush1.bf16.msra.mxu0 0
    %1986 = vmatprep.subr.bf16.mxu0 0
    %1987 = vmatpush1.bf16.msra.mxu0 0
    %1988 = vmatprep.mubr.bf16.mxu0 0
    %1989 = vmatmul.mubr.bf16.gmra.mrb[0].mxu0 %v1942
    %v1990 = vpop.f32.mrb[0].mxu0
    %v1991 = vadd.f32 0.0, %v1990
    %v1992 = vpop.f32.mrb[0].mxu0
    %v1993 = vpop.f32.mrb[0].mxu0
    %v1994 = vadd.f32 0.0, %v1993
    %v1995 = vpop.f32.mrb[0].mxu0
    %1996 = vmatprep.mubr.bf16.mxu0 0
    %1997 = vmatmul.mubr.bf16.gmra.mrb[0].mxu0 %v1945
    %v1998 = vpop.f32.mrb[0].mxu0
    %v1999 = vadd.f32 0.0, %v1998
    %v2000 = vpop.f32.mrb[0].mxu0
    %v2001 = vpop.f32.mrb[0].mxu0
    %v2002 = vadd.f32 0.0, %v2001
    %v2003 = vpop.f32.mrb[0].mxu0
    %2004 = vmatprep.mubr.bf16.mxu0 0
    %2005 = vmatmul.mubr.bf16.gmra.mrb[0].mxu0 %v1948
    %v2006 = vpop.f32.mrb[0].mxu0
    %v2007 = vadd.f32 0.0, %v2006
    %v2008 = vpop.f32.mrb[0].mxu0
    %v2009 = vpop.f32.mrb[0].mxu0
    %v2010 = vadd.f32 0.0, %v2009
    %v2011 = vpop.f32.mrb[0].mxu0
    %2012 = vmatprep.mubr.bf16.mxu0 0
    %2013 = vmatmul.mubr.bf16.gmra.mrb[0].mxu0 %v1951
    %v2014 = vpop.f32.mrb[0].mxu0
    %v2015 = vadd.f32 0.0, %v2014
    %v2016 = vpop.f32.mrb[0].mxu0
    %v2017 = vpop.f32.mrb[0].mxu0
    %v2018 = vadd.f32 0.0, %v2017
    %v2019 = vpop.f32.mrb[0].mxu0
    %2020 = vmatprep.mubr.bf16.mxu0 0
    %2021 = vmatmul.mubr.bf16.gmra.mrb[0].mxu0 %v1954
    %v2022 = vpop.f32.mrb[0].mxu0
    %v2023 = vadd.f32 0.0, %v2022
    %v2024 = vpop.f32.mrb[0].mxu0
    %v2025 = vpop.f32.mrb[0].mxu0
    %v2026 = vpop.f32.mrb[0].mxu0
    %2027 = vdwg.mxu0
    %v2028 = vadd.f32 %v1781, %v1991
    %v2029 = vadd.f32 %v1782, %v1994
    %v2030 = vadd.f32 %v1783, %v1999
    %v2031 = vadd.f32 %v1784, %v2002
    %v2032 = vadd.f32 %v1785, %v2007
    %v2033 = vadd.f32 %v1786, %v2010
    %v2034 = vadd.f32 %v1787, %v2015
    %v2035 = vadd.f32 %v1788, %v2018
    %v2036 = vadd.f32 %v1789, %v2023
    %s2037 = scalar_lea.vmem %s0, 288
    %v2038 = vld [vmem:[%s2037] sm:$0xf]
    %v2039 = vld [vmem:[%s2037 + $0x4] sm:$0xf]
    %v2040 = vld [vmem:[%s2037 + $0x8] sm:$0xf]
    %v2041 = vld [vmem:[%s2037 + $0xc] sm:$0xf]
    %v2042 = vld [vmem:[%s2037 + $0x10] sm:$0xf]
    %v2043 = vld [vmem:[%s2037 + $0x14] sm:$0xf]
    %v2044 = vld [vmem:[%s2037 + $0x18] sm:$0xf]
    %v2045 = vld [vmem:[%s2037 + $0x1c] sm:$0xf]
    %v2046 = vld [vmem:[%s2037 + $0x20] sm:$0xf]
    %v2056 = vunpack.c.l.b16 %v2038
    %v2057 = vunpack.c.l.b16 %v2039
    %v2058 = vunpack.c.l.b16 %v2040
    %v2059 = vunpack.c.l.b16 %v2041
    %v2060 = vunpack.c.l.b16 %v2042
    %v2061 = vunpack.c.l.b16 %v2043
    %v2062 = vunpack.c.l.b16 %v2044
    %v2063 = vunpack.c.l.b16 %v2045
    %v2064 = vunpack.c.l.b16 %v2046
    %v2065 = vpack.c.b16 %v2057, %v2056
    %v2066 = vpack.c.b16 %v2059, %v2058
    %v2067 = vpack.c.b16 %v2061, %v2060
    %v2068 = vpack.c.b16 %v2063, %v2062
    %v2069 = vpack.c.b16 %v2064, %v2064
    %v2071 = vsel %vm111, %v2065, 0
    %v2074 = vsel %vm111, %v2066, 0
    %v2077 = vsel %vm111, %v2067, 0
    %v2080 = vsel %vm111, %v2068, 0
    %v2083 = vsel %vm111, %v2069, 0
    %2085 = vmatprep.subr.bf16.mxu0 0
    %2086 = vmatpush1.bf16.msra.mxu0 %v103
    %2087 = vmatprep.subr.bf16.mxu0 0
    %2088 = vmatpush1.bf16.msra.mxu0 %v104
    %2089 = vmatprep.subr.bf16.mxu0 0
    %2090 = vmatpush1.bf16.msra.mxu0 %v105
    %2091 = vmatprep.subr.bf16.mxu0 0
    %2092 = vmatpush1.bf16.msra.mxu0 %v106
    %2093 = vmatprep.subr.bf16.mxu0 0
    %2094 = vmatpush1.bf16.msra.mxu0 0
    %2095 = vmatprep.subr.bf16.mxu0 0
    %2096 = vmatpush1.bf16.msra.mxu0 0
    %2097 = vmatprep.subr.bf16.mxu0 0
    %2098 = vmatpush1.bf16.msra.mxu0 0
    %2099 = vmatprep.subr.bf16.mxu0 0
    %2100 = vmatpush1.bf16.msra.mxu0 0
    %2101 = vmatprep.subr.bf16.mxu0 0
    %2102 = vmatpush1.bf16.msra.mxu0 0
    %2103 = vmatprep.subr.bf16.mxu0 0
    %2104 = vmatpush1.bf16.msra.mxu0 0
    %2105 = vmatprep.subr.bf16.mxu0 0
    %2106 = vmatpush1.bf16.msra.mxu0 0
    %2107 = vmatprep.subr.bf16.mxu0 0
    %2108 = vmatpush1.bf16.msra.mxu0 0
    %2109 = vmatprep.subr.bf16.mxu0 0
    %2110 = vmatpush1.bf16.msra.mxu0 0
    %2111 = vmatprep.subr.bf16.mxu0 0
    %2112 = vmatpush1.bf16.msra.mxu0 0
    %2113 = vmatprep.subr.bf16.mxu0 0
    %2114 = vmatpush1.bf16.msra.mxu0 0
    %2115 = vmatprep.subr.bf16.mxu0 0
    %2116 = vmatpush1.bf16.msra.mxu0 0
    %2117 = vmatprep.mubr.bf16.mxu0 0
    %2118 = vmatmul.mubr.bf16.gmra.mrb[0].mxu0 %v2071
    %v2119 = vpop.f32.mrb[0].mxu0
    %v2120 = vadd.f32 %v62, %v2119
    %v2121 = vpop.f32.mrb[0].mxu0
    %v2122 = vpop.f32.mrb[0].mxu0
    %v2123 = vadd.f32 %v62, %v2122
    %v2124 = vpop.f32.mrb[0].mxu0
    %2125 = vmatprep.mubr.bf16.mxu0 0
    %2126 = vmatmul.mubr.bf16.gmra.mrb[0].mxu0 %v2074
    %v2127 = vpop.f32.mrb[0].mxu0
    %v2128 = vadd.f32 %v62, %v2127
    %v2129 = vpop.f32.mrb[0].mxu0
    %v2130 = vpop.f32.mrb[0].mxu0
    %v2131 = vadd.f32 %v62, %v2130
    %v2132 = vpop.f32.mrb[0].mxu0
    %2133 = vmatprep.mubr.bf16.mxu0 0
    %2134 = vmatmul.mubr.bf16.gmra.mrb[0].mxu0 %v2077
    %v2135 = vpop.f32.mrb[0].mxu0
    %v2136 = vadd.f32 %v62, %v2135
    %v2137 = vpop.f32.mrb[0].mxu0
    %v2138 = vpop.f32.mrb[0].mxu0
    %v2139 = vadd.f32 %v62, %v2138
    %v2140 = vpop.f32.mrb[0].mxu0
    %2141 = vmatprep.mubr.bf16.mxu0 0
    %2142 = vmatmul.mubr.bf16.gmra.mrb[0].mxu0 %v2080
    %v2143 = vpop.f32.mrb[0].mxu0
    %v2144 = vadd.f32 %v62, %v2143
    %v2145 = vpop.f32.mrb[0].mxu0
    %v2146 = vpop.f32.mrb[0].mxu0
    %v2147 = vadd.f32 %v62, %v2146
    %v2148 = vpop.f32.mrb[0].mxu0
    %2149 = vmatprep.mubr.bf16.mxu0 0
    %2150 = vmatmul.mubr.bf16.gmra.mrb[0].mxu0 %v2083
    %v2151 = vpop.f32.mrb[0].mxu0
    %v2152 = vadd.f32 %v62, %v2151
    %v2153 = vpop.f32.mrb[0].mxu0
    %v2154 = vpop.f32.mrb[0].mxu0
    %v2155 = vpop.f32.mrb[0].mxu0
    %2156 = vdwg.mxu0
    %v2157 = vmax.f32 %v2120, 0.0
    %v2158 = vmax.f32 %v2123, 0.0
    %v2159 = vmax.f32 %v2128, 0.0
    %v2160 = vmax.f32 %v2131, 0.0
    %v2161 = vmax.f32 %v2136, 0.0
    %v2162 = vmax.f32 %v2139, 0.0
    %v2163 = vmax.f32 %v2144, 0.0
    %v2164 = vmax.f32 %v2147, 0.0
    %v2165 = vmax.f32 %v2152, 0.0
    %v2166 = vpack.c.bf16 %v2158, %v2157
    %v2167 = vpack.c.bf16 %v2160, %v2159
    %v2168 = vpack.c.bf16 %v2162, %v2161
    %v2169 = vpack.c.bf16 %v2164, %v2163
    %v2170 = vpack.c.bf16 %v2165, %v2165
    %s2171 = scalar_lea.vmem %s3, 128
    %v2172 = vld [vmem:[%s2171] sm:$0xf]
    %v2173 = vld [vmem:[%s2171 + $0x4] sm:$0xf]
    %v2174 = vld [vmem:[%s2171 + $0x8] sm:$0xf]
    %v2175 = vld [vmem:[%s2171 + $0xc] sm:$0xf]
    %v2180 = vunpack.c.l.b16 %v2172
    %v2181 = vunpack.c.l.b16 %v2173
    %v2182 = vunpack.c.l.b16 %v2174
    %v2183 = vunpack.c.l.b16 %v2175
    %v2184 = vpack.c.b16 %v2181, %v2180
    %v2185 = vpack.c.b16 %v2183, %v2182
    %v2189 = vsel %vm368, %v2166, 0
    %v2192 = vsel %vm368, %v2167, 0
    %v2195 = vsel %vm368, %v2168, 0
    %v2198 = vsel %vm368, %v2169, 0
    %v2201 = vsel %vm368, %v2170, 0
    %2203 = vmatprep.subr.bf16.mxu0 0
    %2204 = vmatpush1.bf16.msra.mxu0 %v2184
    %2205 = vmatprep.subr.bf16.mxu0 0
    %2206 = vmatpush1.bf16.msra.mxu0 %v2185
    %2207 = vmatprep.subr.bf16.mxu0 0
    %2208 = vmatpush1.bf16.msra.mxu0 0
    %2209 = vmatprep.subr.bf16.mxu0 0
    %2210 = vmatpush1.bf16.msra.mxu0 0
    %2211 = vmatprep.subr.bf16.mxu0 0
    %2212 = vmatpush1.bf16.msra.mxu0 0
    %2213 = vmatprep.subr.bf16.mxu0 0
    %2214 = vmatpush1.bf16.msra.mxu0 0
    %2215 = vmatprep.subr.bf16.mxu0 0
    %2216 = vmatpush1.bf16.msra.mxu0 0
    %2217 = vmatprep.subr.bf16.mxu0 0
    %2218 = vmatpush1.bf16.msra.mxu0 0
    %2219 = vmatprep.subr.bf16.mxu0 0
    %2220 = vmatpush1.bf16.msra.mxu0 0
    %2221 = vmatprep.subr.bf16.mxu0 0
    %2222 = vmatpush1.bf16.msra.mxu0 0
    %2223 = vmatprep.subr.bf16.mxu0 0
    %2224 = vmatpush1.bf16.msra.mxu0 0
    %2225 = vmatprep.subr.bf16.mxu0 0
    %2226 = vmatpush1.bf16.msra.mxu0 0
    %2227 = vmatprep.subr.bf16.mxu0 0
    %2228 = vmatpush1.bf16.msra.mxu0 0
    %2229 = vmatprep.subr.bf16.mxu0 0
    %2230 = vmatpush1.bf16.msra.mxu0 0
    %2231 = vmatprep.subr.bf16.mxu0 0
    %2232 = vmatpush1.bf16.msra.mxu0 0
    %2233 = vmatprep.subr.bf16.mxu0 0
    %2234 = vmatpush1.bf16.msra.mxu0 0
    %2235 = vmatprep.mubr.bf16.mxu0 0
    %2236 = vmatmul.mubr.bf16.gmra.mrb[0].mxu0 %v2189
    %v2237 = vpop.f32.mrb[0].mxu0
    %v2238 = vadd.f32 0.0, %v2237
    %v2239 = vpop.f32.mrb[0].mxu0
    %v2240 = vpop.f32.mrb[0].mxu0
    %v2241 = vadd.f32 0.0, %v2240
    %v2242 = vpop.f32.mrb[0].mxu0
    %2243 = vmatprep.mubr.bf16.mxu0 0
    %2244 = vmatmul.mubr.bf16.gmra.mrb[0].mxu0 %v2192
    %v2245 = vpop.f32.mrb[0].mxu0
    %v2246 = vadd.f32 0.0, %v2245
    %v2247 = vpop.f32.mrb[0].mxu0
    %v2248 = vpop.f32.mrb[0].mxu0
    %v2249 = vadd.f32 0.0, %v2248
    %v2250 = vpop.f32.mrb[0].mxu0
    %2251 = vmatprep.mubr.bf16.mxu0 0
    %2252 = vmatmul.mubr.bf16.gmra.mrb[0].mxu0 %v2195
    %v2253 = vpop.f32.mrb[0].mxu0
    %v2254 = vadd.f32 0.0, %v2253
    %v2255 = vpop.f32.mrb[0].mxu0
    %v2256 = vpop.f32.mrb[0].mxu0
    %v2257 = vadd.f32 0.0, %v2256
    %v2258 = vpop.f32.mrb[0].mxu0
    %2259 = vmatprep.mubr.bf16.mxu0 0
    %2260 = vmatmul.mubr.bf16.gmra.mrb[0].mxu0 %v2198
    %v2261 = vpop.f32.mrb[0].mxu0
    %v2262 = vadd.f32 0.0, %v2261
    %v2263 = vpop.f32.mrb[0].mxu0
    %v2264 = vpop.f32.mrb[0].mxu0
    %v2265 = vadd.f32 0.0, %v2264
    %v2266 = vpop.f32.mrb[0].mxu0
    %2267 = vmatprep.mubr.bf16.mxu0 0
    %2268 = vmatmul.mubr.bf16.gmra.mrb[0].mxu0 %v2201
    %v2269 = vpop.f32.mrb[0].mxu0
    %v2270 = vadd.f32 0.0, %v2269
    %v2271 = vpop.f32.mrb[0].mxu0
    %v2272 = vpop.f32.mrb[0].mxu0
    %v2273 = vpop.f32.mrb[0].mxu0
    %2274 = vdwg.mxu0
    %v2275 = vadd.f32 %v2028, %v2238
    %v2276 = vadd.f32 %v2029, %v2241
    %v2277 = vadd.f32 %v2030, %v2246
    %v2278 = vadd.f32 %v2031, %v2249
    %v2279 = vadd.f32 %v2032, %v2254
    %v2280 = vadd.f32 %v2033, %v2257
    %v2281 = vadd.f32 %v2034, %v2262
    %v2282 = vadd.f32 %v2035, %v2265
    %v2283 = vadd.f32 %v2036, %v2270
    %s2284 = scalar_lea.vmem %s0, 324
    %v2285 = vld [vmem:[%s2284] sm:$0xf]
    %v2286 = vld [vmem:[%s2284 + $0x4] sm:$0xf]
    %v2287 = vld [vmem:[%s2284 + $0x8] sm:$0xf]
    %v2288 = vld [vmem:[%s2284 + $0xc] sm:$0xf]
    %v2289 = vld [vmem:[%s2284 + $0x10] sm:$0xf]
    %v2290 = vld [vmem:[%s2284 + $0x14] sm:$0xf]
    %v2291 = vld [vmem:[%s2284 + $0x18] sm:$0xf]
    %v2292 = vld [vmem:[%s2284 + $0x1c] sm:$0xf]
    %v2293 = vld [vmem:[%s2284 + $0x20] sm:$0xf]
    %v2303 = vunpack.c.l.b16 %v2285
    %v2304 = vunpack.c.l.b16 %v2286
    %v2305 = vunpack.c.l.b16 %v2287
    %v2306 = vunpack.c.l.b16 %v2288
    %v2307 = vunpack.c.l.b16 %v2289
    %v2308 = vunpack.c.l.b16 %v2290
    %v2309 = vunpack.c.l.b16 %v2291
    %v2310 = vunpack.c.l.b16 %v2292
    %v2311 = vunpack.c.l.b16 %v2293
    %v2312 = vpack.c.b16 %v2304, %v2303
    %v2313 = vpack.c.b16 %v2306, %v2305
    %v2314 = vpack.c.b16 %v2308, %v2307
    %v2315 = vpack.c.b16 %v2310, %v2309
    %v2316 = vpack.c.b16 %v2311, %v2311
    %v2318 = vsel %vm111, %v2312, 0
    %v2321 = vsel %vm111, %v2313, 0
    %v2324 = vsel %vm111, %v2314, 0
    %v2327 = vsel %vm111, %v2315, 0
    %v2330 = vsel %vm111, %v2316, 0
    %2332 = vmatprep.subr.bf16.mxu0 0
    %2333 = vmatpush1.bf16.msra.mxu0 %v103
    %2334 = vmatprep.subr.bf16.mxu0 0
    %2335 = vmatpush1.bf16.msra.mxu0 %v104
    %2336 = vmatprep.subr.bf16.mxu0 0
    %2337 = vmatpush1.bf16.msra.mxu0 %v105
    %2338 = vmatprep.subr.bf16.mxu0 0
    %2339 = vmatpush1.bf16.msra.mxu0 %v106
    %2340 = vmatprep.subr.bf16.mxu0 0
    %2341 = vmatpush1.bf16.msra.mxu0 0
    %2342 = vmatprep.subr.bf16.mxu0 0
    %2343 = vmatpush1.bf16.msra.mxu0 0
    %2344 = vmatprep.subr.bf16.mxu0 0
    %2345 = vmatpush1.bf16.msra.mxu0 0
    %2346 = vmatprep.subr.bf16.mxu0 0
    %2347 = vmatpush1.bf16.msra.mxu0 0
    %2348 = vmatprep.subr.bf16.mxu0 0
    %2349 = vmatpush1.bf16.msra.mxu0 0
    %2350 = vmatprep.subr.bf16.mxu0 0
    %2351 = vmatpush1.bf16.msra.mxu0 0
    %2352 = vmatprep.subr.bf16.mxu0 0
    %2353 = vmatpush1.bf16.msra.mxu0 0
    %2354 = vmatprep.subr.bf16.mxu0 0
    %2355 = vmatpush1.bf16.msra.mxu0 0
    %2356 = vmatprep.subr.bf16.mxu0 0
    %2357 = vmatpush1.bf16.msra.mxu0 0
    %2358 = vmatprep.subr.bf16.mxu0 0
    %2359 = vmatpush1.bf16.msra.mxu0 0
    %2360 = vmatprep.subr.bf16.mxu0 0
    %2361 = vmatpush1.bf16.msra.mxu0 0
    %2362 = vmatprep.subr.bf16.mxu0 0
    %2363 = vmatpush1.bf16.msra.mxu0 0
    %2364 = vmatprep.mubr.bf16.mxu0 0
    %2365 = vmatmul.mubr.bf16.gmra.mrb[0].mxu0 %v2318
    %v2366 = vpop.f32.mrb[0].mxu0
    %v2367 = vadd.f32 %v62, %v2366
    %v2368 = vpop.f32.mrb[0].mxu0
    %v2369 = vpop.f32.mrb[0].mxu0
    %v2370 = vadd.f32 %v62, %v2369
    %v2371 = vpop.f32.mrb[0].mxu0
    %2372 = vmatprep.mubr.bf16.mxu0 0
    %2373 = vmatmul.mubr.bf16.gmra.mrb[0].mxu0 %v2321
    %v2374 = vpop.f32.mrb[0].mxu0
    %v2375 = vadd.f32 %v62, %v2374
    %v2376 = vpop.f32.mrb[0].mxu0
    %v2377 = vpop.f32.mrb[0].mxu0
    %v2378 = vadd.f32 %v62, %v2377
    %v2379 = vpop.f32.mrb[0].mxu0
    %2380 = vmatprep.mubr.bf16.mxu0 0
    %2381 = vmatmul.mubr.bf16.gmra.mrb[0].mxu0 %v2324
    %v2382 = vpop.f32.mrb[0].mxu0
    %v2383 = vadd.f32 %v62, %v2382
    %v2384 = vpop.f32.mrb[0].mxu0
    %v2385 = vpop.f32.mrb[0].mxu0
    %v2386 = vadd.f32 %v62, %v2385
    %v2387 = vpop.f32.mrb[0].mxu0
    %2388 = vmatprep.mubr.bf16.mxu0 0
    %2389 = vmatmul.mubr.bf16.gmra.mrb[0].mxu0 %v2327
    %v2390 = vpop.f32.mrb[0].mxu0
    %v2391 = vadd.f32 %v62, %v2390
    %v2392 = vpop.f32.mrb[0].mxu0
    %v2393 = vpop.f32.mrb[0].mxu0
    %v2394 = vadd.f32 %v62, %v2393
    %v2395 = vpop.f32.mrb[0].mxu0
    %2396 = vmatprep.mubr.bf16.mxu0 0
    %2397 = vmatmul.mubr.bf16.gmra.mrb[0].mxu0 %v2330
    %v2398 = vpop.f32.mrb[0].mxu0
    %v2399 = vadd.f32 %v62, %v2398
    %v2400 = vpop.f32.mrb[0].mxu0
    %v2401 = vpop.f32.mrb[0].mxu0
    %v2402 = vpop.f32.mrb[0].mxu0
    %2403 = vdwg.mxu0
    %v2404 = vmax.f32 %v2367, 0.0
    %v2405 = vmax.f32 %v2370, 0.0
    %v2406 = vmax.f32 %v2375, 0.0
    %v2407 = vmax.f32 %v2378, 0.0
    %v2408 = vmax.f32 %v2383, 0.0
    %v2409 = vmax.f32 %v2386, 0.0
    %v2410 = vmax.f32 %v2391, 0.0
    %v2411 = vmax.f32 %v2394, 0.0
    %v2412 = vmax.f32 %v2399, 0.0
    %v2413 = vpack.c.bf16 %v2405, %v2404
    %v2414 = vpack.c.bf16 %v2407, %v2406
    %v2415 = vpack.c.bf16 %v2409, %v2408
    %v2416 = vpack.c.bf16 %v2411, %v2410
    %v2417 = vpack.c.bf16 %v2412, %v2412
    %s2418 = scalar_lea.vmem %s3, 144
    %v2419 = vld [vmem:[%s2418] sm:$0xf]
    %v2420 = vld [vmem:[%s2418 + $0x4] sm:$0xf]
    %v2421 = vld [vmem:[%s2418 + $0x8] sm:$0xf]
    %v2422 = vld [vmem:[%s2418 + $0xc] sm:$0xf]
    %v2427 = vunpack.c.l.b16 %v2419
    %v2428 = vunpack.c.l.b16 %v2420
    %v2429 = vunpack.c.l.b16 %v2421
    %v2430 = vunpack.c.l.b16 %v2422
    %v2431 = vpack.c.b16 %v2428, %v2427
    %v2432 = vpack.c.b16 %v2430, %v2429
    %v2436 = vsel %vm368, %v2413, 0
    %v2439 = vsel %vm368, %v2414, 0
    %v2442 = vsel %vm368, %v2415, 0
    %v2445 = vsel %vm368, %v2416, 0
    %v2448 = vsel %vm368, %v2417, 0
    %2450 = vmatprep.subr.bf16.mxu0 0
    %2451 = vmatpush1.bf16.msra.mxu0 %v2431
    %2452 = vmatprep.subr.bf16.mxu0 0
    %2453 = vmatpush1.bf16.msra.mxu0 %v2432
    %2454 = vmatprep.subr.bf16.mxu0 0
    %2455 = vmatpush1.bf16.msra.mxu0 0
    %2456 = vmatprep.subr.bf16.mxu0 0
    %2457 = vmatpush1.bf16.msra.mxu0 0
    %2458 = vmatprep.subr.bf16.mxu0 0
    %2459 = vmatpush1.bf16.msra.mxu0 0
    %2460 = vmatprep.subr.bf16.mxu0 0
    %2461 = vmatpush1.bf16.msra.mxu0 0
    %2462 = vmatprep.subr.bf16.mxu0 0
    %2463 = vmatpush1.bf16.msra.mxu0 0
    %2464 = vmatprep.subr.bf16.mxu0 0
    %2465 = vmatpush1.bf16.msra.mxu0 0
    %2466 = vmatprep.subr.bf16.mxu0 0
    %2467 = vmatpush1.bf16.msra.mxu0 0
    %2468 = vmatprep.subr.bf16.mxu0 0
    %2469 = vmatpush1.bf16.msra.mxu0 0
    %2470 = vmatprep.subr.bf16.mxu0 0
    %2471 = vmatpush1.bf16.msra.mxu0 0
    %2472 = vmatprep.subr.bf16.mxu0 0
    %2473 = vmatpush1.bf16.msra.mxu0 0
    %2474 = vmatprep.subr.bf16.mxu0 0
    %2475 = vmatpush1.bf16.msra.mxu0 0
    %2476 = vmatprep.subr.bf16.mxu0 0
    %2477 = vmatpush1.bf16.msra.mxu0 0
    %2478 = vmatprep.subr.bf16.mxu0 0
    %2479 = vmatpush1.bf16.msra.mxu0 0
    %2480 = vmatprep.subr.bf16.mxu0 0
    %2481 = vmatpush1.bf16.msra.mxu0 0
    %2482 = vmatprep.mubr.bf16.mxu0 0
    %2483 = vmatmul.mubr.bf16.gmra.mrb[0].mxu0 %v2436
    %v2484 = vpop.f32.mrb[0].mxu0
    %v2485 = vadd.f32 0.0, %v2484
    %v2486 = vpop.f32.mrb[0].mxu0
    %v2487 = vpop.f32.mrb[0].mxu0
    %v2488 = vadd.f32 0.0, %v2487
    %v2489 = vpop.f32.mrb[0].mxu0
    %2490 = vmatprep.mubr.bf16.mxu0 0
    %2491 = vmatmul.mubr.bf16.gmra.mrb[0].mxu0 %v2439
    %v2492 = vpop.f32.mrb[0].mxu0
    %v2493 = vadd.f32 0.0, %v2492
    %v2494 = vpop.f32.mrb[0].mxu0
    %v2495 = vpop.f32.mrb[0].mxu0
    %v2496 = vadd.f32 0.0, %v2495
    %v2497 = vpop.f32.mrb[0].mxu0
    %2498 = vmatprep.mubr.bf16.mxu0 0
    %2499 = vmatmul.mubr.bf16.gmra.mrb[0].mxu0 %v2442
    %v2500 = vpop.f32.mrb[0].mxu0
    %v2501 = vadd.f32 0.0, %v2500
    %v2502 = vpop.f32.mrb[0].mxu0
    %v2503 = vpop.f32.mrb[0].mxu0
    %v2504 = vadd.f32 0.0, %v2503
    %v2505 = vpop.f32.mrb[0].mxu0
    %2506 = vmatprep.mubr.bf16.mxu0 0
    %2507 = vmatmul.mubr.bf16.gmra.mrb[0].mxu0 %v2445
    %v2508 = vpop.f32.mrb[0].mxu0
    %v2509 = vadd.f32 0.0, %v2508
    %v2510 = vpop.f32.mrb[0].mxu0
    %v2511 = vpop.f32.mrb[0].mxu0
    %v2512 = vadd.f32 0.0, %v2511
    %v2513 = vpop.f32.mrb[0].mxu0
    %2514 = vmatprep.mubr.bf16.mxu0 0
    %2515 = vmatmul.mubr.bf16.gmra.mrb[0].mxu0 %v2448
    %v2516 = vpop.f32.mrb[0].mxu0
    %v2517 = vadd.f32 0.0, %v2516
    %v2518 = vpop.f32.mrb[0].mxu0
    %v2519 = vpop.f32.mrb[0].mxu0
    %v2520 = vpop.f32.mrb[0].mxu0
    %2521 = vdwg.mxu0
    %v2522 = vadd.f32 %v2275, %v2485
    %v2523 = vadd.f32 %v2276, %v2488
    %v2524 = vadd.f32 %v2277, %v2493
    %v2525 = vadd.f32 %v2278, %v2496
    %v2526 = vadd.f32 %v2279, %v2501
    %v2527 = vadd.f32 %v2280, %v2504
    %v2528 = vadd.f32 %v2281, %v2509
    %v2529 = vadd.f32 %v2282, %v2512
    %v2530 = vadd.f32 %v2283, %v2517
    %s2531 = scalar_lea.vmem %s0, 360
    %v2532 = vld [vmem:[%s2531] sm:$0xf]
    %v2533 = vld [vmem:[%s2531 + $0x4] sm:$0xf]
    %v2534 = vld [vmem:[%s2531 + $0x8] sm:$0xf]
    %v2535 = vld [vmem:[%s2531 + $0xc] sm:$0xf]
    %v2536 = vld [vmem:[%s2531 + $0x10] sm:$0xf]
    %v2537 = vld [vmem:[%s2531 + $0x14] sm:$0xf]
    %v2538 = vld [vmem:[%s2531 + $0x18] sm:$0xf]
    %v2539 = vld [vmem:[%s2531 + $0x1c] sm:$0xf]
    %v2540 = vld [vmem:[%s2531 + $0x20] sm:$0xf]
    %v2550 = vunpack.c.l.b16 %v2532
    %v2551 = vunpack.c.l.b16 %v2533
    %v2552 = vunpack.c.l.b16 %v2534
    %v2553 = vunpack.c.l.b16 %v2535
    %v2554 = vunpack.c.l.b16 %v2536
    %v2555 = vunpack.c.l.b16 %v2537
    %v2556 = vunpack.c.l.b16 %v2538
    %v2557 = vunpack.c.l.b16 %v2539
    %v2558 = vunpack.c.l.b16 %v2540
    %v2559 = vpack.c.b16 %v2551, %v2550
    %v2560 = vpack.c.b16 %v2553, %v2552
    %v2561 = vpack.c.b16 %v2555, %v2554
    %v2562 = vpack.c.b16 %v2557, %v2556
    %v2563 = vpack.c.b16 %v2558, %v2558
    %v2565 = vsel %vm111, %v2559, 0
    %v2568 = vsel %vm111, %v2560, 0
    %v2571 = vsel %vm111, %v2561, 0
    %v2574 = vsel %vm111, %v2562, 0
    %v2577 = vsel %vm111, %v2563, 0
    %2579 = vmatprep.subr.bf16.mxu0 0
    %2580 = vmatpush1.bf16.msra.mxu0 %v103
    %2581 = vmatprep.subr.bf16.mxu0 0
    %2582 = vmatpush1.bf16.msra.mxu0 %v104
    %2583 = vmatprep.subr.bf16.mxu0 0
    %2584 = vmatpush1.bf16.msra.mxu0 %v105
    %2585 = vmatprep.subr.bf16.mxu0 0
    %2586 = vmatpush1.bf16.msra.mxu0 %v106
    %2587 = vmatprep.subr.bf16.mxu0 0
    %2588 = vmatpush1.bf16.msra.mxu0 0
    %2589 = vmatprep.subr.bf16.mxu0 0
    %2590 = vmatpush1.bf16.msra.mxu0 0
    %2591 = vmatprep.subr.bf16.mxu0 0
    %2592 = vmatpush1.bf16.msra.mxu0 0
    %2593 = vmatprep.subr.bf16.mxu0 0
    %2594 = vmatpush1.bf16.msra.mxu0 0
    %2595 = vmatprep.subr.bf16.mxu0 0
    %2596 = vmatpush1.bf16.msra.mxu0 0
    %2597 = vmatprep.subr.bf16.mxu0 0
    %2598 = vmatpush1.bf16.msra.mxu0 0
    %2599 = vmatprep.subr.bf16.mxu0 0
    %2600 = vmatpush1.bf16.msra.mxu0 0
    %2601 = vmatprep.subr.bf16.mxu0 0
    %2602 = vmatpush1.bf16.msra.mxu0 0
    %2603 = vmatprep.subr.bf16.mxu0 0
    %2604 = vmatpush1.bf16.msra.mxu0 0
    %2605 = vmatprep.subr.bf16.mxu0 0
    %2606 = vmatpush1.bf16.msra.mxu0 0
    %2607 = vmatprep.subr.bf16.mxu0 0
    %2608 = vmatpush1.bf16.msra.mxu0 0
    %2609 = vmatprep.subr.bf16.mxu0 0
    %2610 = vmatpush1.bf16.msra.mxu0 0
    %2611 = vmatprep.mubr.bf16.mxu0 0
    %2612 = vmatmul.mubr.bf16.gmra.mrb[0].mxu0 %v2565
    %v2613 = vpop.f32.mrb[0].mxu0
    %v2614 = vadd.f32 %v62, %v2613
    %v2615 = vpop.f32.mrb[0].mxu0
    %v2616 = vpop.f32.mrb[0].mxu0
    %v2617 = vadd.f32 %v62, %v2616
    %v2618 = vpop.f32.mrb[0].mxu0
    %2619 = vmatprep.mubr.bf16.mxu0 0
    %2620 = vmatmul.mubr.bf16.gmra.mrb[0].mxu0 %v2568
    %v2621 = vpop.f32.mrb[0].mxu0
    %v2622 = vadd.f32 %v62, %v2621
    %v2623 = vpop.f32.mrb[0].mxu0
    %v2624 = vpop.f32.mrb[0].mxu0
    %v2625 = vadd.f32 %v62, %v2624
    %v2626 = vpop.f32.mrb[0].mxu0
    %2627 = vmatprep.mubr.bf16.mxu0 0
    %2628 = vmatmul.mubr.bf16.gmra.mrb[0].mxu0 %v2571
    %v2629 = vpop.f32.mrb[0].mxu0
    %v2630 = vadd.f32 %v62, %v2629
    %v2631 = vpop.f32.mrb[0].mxu0
    %v2632 = vpop.f32.mrb[0].mxu0
    %v2633 = vadd.f32 %v62, %v2632
    %v2634 = vpop.f32.mrb[0].mxu0
    %2635 = vmatprep.mubr.bf16.mxu0 0
    %2636 = vmatmul.mubr.bf16.gmra.mrb[0].mxu0 %v2574
    %v2637 = vpop.f32.mrb[0].mxu0
    %v2638 = vadd.f32 %v62, %v2637
    %v2639 = vpop.f32.mrb[0].mxu0
    %v2640 = vpop.f32.mrb[0].mxu0
    %v2641 = vadd.f32 %v62, %v2640
    %v2642 = vpop.f32.mrb[0].mxu0
    %2643 = vmatprep.mubr.bf16.mxu0 0
    %2644 = vmatmul.mubr.bf16.gmra.mrb[0].mxu0 %v2577
    %v2645 = vpop.f32.mrb[0].mxu0
    %v2646 = vadd.f32 %v62, %v2645
    %v2647 = vpop.f32.mrb[0].mxu0
    %v2648 = vpop.f32.mrb[0].mxu0
    %v2649 = vpop.f32.mrb[0].mxu0
    %2650 = vdwg.mxu0
    %v2651 = vmax.f32 %v2614, 0.0
    %v2652 = vmax.f32 %v2617, 0.0
    %v2653 = vmax.f32 %v2622, 0.0
    %v2654 = vmax.f32 %v2625, 0.0
    %v2655 = vmax.f32 %v2630, 0.0
    %v2656 = vmax.f32 %v2633, 0.0
    %v2657 = vmax.f32 %v2638, 0.0
    %v2658 = vmax.f32 %v2641, 0.0
    %v2659 = vmax.f32 %v2646, 0.0
    %v2660 = vpack.c.bf16 %v2652, %v2651
    %v2661 = vpack.c.bf16 %v2654, %v2653
    %v2662 = vpack.c.bf16 %v2656, %v2655
    %v2663 = vpack.c.bf16 %v2658, %v2657
    %v2664 = vpack.c.bf16 %v2659, %v2659
    %s2665 = scalar_lea.vmem %s3, 160
    %v2666 = vld [vmem:[%s2665] sm:$0xf]
    %v2667 = vld [vmem:[%s2665 + $0x4] sm:$0xf]
    %v2668 = vld [vmem:[%s2665 + $0x8] sm:$0xf]
    %v2669 = vld [vmem:[%s2665 + $0xc] sm:$0xf]
    %v2674 = vunpack.c.l.b16 %v2666
    %v2675 = vunpack.c.l.b16 %v2667
    %v2676 = vunpack.c.l.b16 %v2668
    %v2677 = vunpack.c.l.b16 %v2669
    %v2678 = vpack.c.b16 %v2675, %v2674
    %v2679 = vpack.c.b16 %v2677, %v2676
    %v2683 = vsel %vm368, %v2660, 0
    %v2686 = vsel %vm368, %v2661, 0
    %v2689 = vsel %vm368, %v2662, 0
    %v2692 = vsel %vm368, %v2663, 0
    %v2695 = vsel %vm368, %v2664, 0
    %2697 = vmatprep.subr.bf16.mxu0 0
    %2698 = vmatpush1.bf16.msra.mxu0 %v2678
    %2699 = vmatprep.subr.bf16.mxu0 0
    %2700 = vmatpush1.bf16.msra.mxu0 %v2679
    %2701 = vmatprep.subr.bf16.mxu0 0
    %2702 = vmatpush1.bf16.msra.mxu0 0
    %2703 = vmatprep.subr.bf16.mxu0 0
    %2704 = vmatpush1.bf16.msra.mxu0 0
    %2705 = vmatprep.subr.bf16.mxu0 0
    %2706 = vmatpush1.bf16.msra.mxu0 0
    %2707 = vmatprep.subr.bf16.mxu0 0
    %2708 = vmatpush1.bf16.msra.mxu0 0
    %2709 = vmatprep.subr.bf16.mxu0 0
    %2710 = vmatpush1.bf16.msra.mxu0 0
    %2711 = vmatprep.subr.bf16.mxu0 0
    %2712 = vmatpush1.bf16.msra.mxu0 0
    %2713 = vmatprep.subr.bf16.mxu0 0
    %2714 = vmatpush1.bf16.msra.mxu0 0
    %2715 = vmatprep.subr.bf16.mxu0 0
    %2716 = vmatpush1.bf16.msra.mxu0 0
    %2717 = vmatprep.subr.bf16.mxu0 0
    %2718 = vmatpush1.bf16.msra.mxu0 0
    %2719 = vmatprep.subr.bf16.mxu0 0
    %2720 = vmatpush1.bf16.msra.mxu0 0
    %2721 = vmatprep.subr.bf16.mxu0 0
    %2722 = vmatpush1.bf16.msra.mxu0 0
    %2723 = vmatprep.subr.bf16.mxu0 0
    %2724 = vmatpush1.bf16.msra.mxu0 0
    %2725 = vmatprep.subr.bf16.mxu0 0
    %2726 = vmatpush1.bf16.msra.mxu0 0
    %2727 = vmatprep.subr.bf16.mxu0 0
    %2728 = vmatpush1.bf16.msra.mxu0 0
    %2729 = vmatprep.mubr.bf16.mxu0 0
    %2730 = vmatmul.mubr.bf16.gmra.mrb[0].mxu0 %v2683
    %v2731 = vpop.f32.mrb[0].mxu0
    %v2732 = vadd.f32 0.0, %v2731
    %v2733 = vpop.f32.mrb[0].mxu0
    %v2734 = vpop.f32.mrb[0].mxu0
    %v2735 = vadd.f32 0.0, %v2734
    %v2736 = vpop.f32.mrb[0].mxu0
    %2737 = vmatprep.mubr.bf16.mxu0 0
    %2738 = vmatmul.mubr.bf16.gmra.mrb[0].mxu0 %v2686
    %v2739 = vpop.f32.mrb[0].mxu0
    %v2740 = vadd.f32 0.0, %v2739
    %v2741 = vpop.f32.mrb[0].mxu0
    %v2742 = vpop.f32.mrb[0].mxu0
    %v2743 = vadd.f32 0.0, %v2742
    %v2744 = vpop.f32.mrb[0].mxu0
    %2745 = vmatprep.mubr.bf16.mxu0 0
    %2746 = vmatmul.mubr.bf16.gmra.mrb[0].mxu0 %v2689
    %v2747 = vpop.f32.mrb[0].mxu0
    %v2748 = vadd.f32 0.0, %v2747
    %v2749 = vpop.f32.mrb[0].mxu0
    %v2750 = vpop.f32.mrb[0].mxu0
    %v2751 = vadd.f32 0.0, %v2750
    %v2752 = vpop.f32.mrb[0].mxu0
    %2753 = vmatprep.mubr.bf16.mxu0 0
    %2754 = vmatmul.mubr.bf16.gmra.mrb[0].mxu0 %v2692
    %v2755 = vpop.f32.mrb[0].mxu0
    %v2756 = vadd.f32 0.0, %v2755
    %v2757 = vpop.f32.mrb[0].mxu0
    %v2758 = vpop.f32.mrb[0].mxu0
    %v2759 = vadd.f32 0.0, %v2758
    %v2760 = vpop.f32.mrb[0].mxu0
    %2761 = vmatprep.mubr.bf16.mxu0 0
    %2762 = vmatmul.mubr.bf16.gmra.mrb[0].mxu0 %v2695
    %v2763 = vpop.f32.mrb[0].mxu0
    %v2764 = vadd.f32 0.0, %v2763
    %v2765 = vpop.f32.mrb[0].mxu0
    %v2766 = vpop.f32.mrb[0].mxu0
    %v2767 = vpop.f32.mrb[0].mxu0
    %2768 = vdwg.mxu0
    %v2769 = vadd.f32 %v2522, %v2732
    %v2770 = vadd.f32 %v2523, %v2735
    %v2771 = vadd.f32 %v2524, %v2740
    %v2772 = vadd.f32 %v2525, %v2743
    %v2773 = vadd.f32 %v2526, %v2748
    %v2774 = vadd.f32 %v2527, %v2751
    %v2775 = vadd.f32 %v2528, %v2756
    %v2776 = vadd.f32 %v2529, %v2759
    %v2777 = vadd.f32 %v2530, %v2764
    %s2778 = scalar_lea.vmem %s0, 396
    %v2779 = vld [vmem:[%s2778] sm:$0xf]
    %v2780 = vld [vmem:[%s2778 + $0x4] sm:$0xf]
    %v2781 = vld [vmem:[%s2778 + $0x8] sm:$0xf]
    %v2782 = vld [vmem:[%s2778 + $0xc] sm:$0xf]
    %v2783 = vld [vmem:[%s2778 + $0x10] sm:$0xf]
    %v2784 = vld [vmem:[%s2778 + $0x14] sm:$0xf]
    %v2785 = vld [vmem:[%s2778 + $0x18] sm:$0xf]
    %v2786 = vld [vmem:[%s2778 + $0x1c] sm:$0xf]
    %v2787 = vld [vmem:[%s2778 + $0x20] sm:$0xf]
    %v2797 = vunpack.c.l.b16 %v2779
    %v2798 = vunpack.c.l.b16 %v2780
    %v2799 = vunpack.c.l.b16 %v2781
    %v2800 = vunpack.c.l.b16 %v2782
    %v2801 = vunpack.c.l.b16 %v2783
    %v2802 = vunpack.c.l.b16 %v2784
    %v2803 = vunpack.c.l.b16 %v2785
    %v2804 = vunpack.c.l.b16 %v2786
    %v2805 = vunpack.c.l.b16 %v2787
    %v2806 = vpack.c.b16 %v2798, %v2797
    %v2807 = vpack.c.b16 %v2800, %v2799
    %v2808 = vpack.c.b16 %v2802, %v2801
    %v2809 = vpack.c.b16 %v2804, %v2803
    %v2810 = vpack.c.b16 %v2805, %v2805
    %v2812 = vsel %vm111, %v2806, 0
    %v2815 = vsel %vm111, %v2807, 0
    %v2818 = vsel %vm111, %v2808, 0
    %v2821 = vsel %vm111, %v2809, 0
    %v2824 = vsel %vm111, %v2810, 0
    %2826 = vmatprep.subr.bf16.mxu0 0
    %2827 = vmatpush1.bf16.msra.mxu0 %v103
    %2828 = vmatprep.subr.bf16.mxu0 0
    %2829 = vmatpush1.bf16.msra.mxu0 %v104
    %2830 = vmatprep.subr.bf16.mxu0 0
    %2831 = vmatpush1.bf16.msra.mxu0 %v105
    %2832 = vmatprep.subr.bf16.mxu0 0
    %2833 = vmatpush1.bf16.msra.mxu0 %v106
    %2834 = vmatprep.subr.bf16.mxu0 0
    %2835 = vmatpush1.bf16.msra.mxu0 0
    %2836 = vmatprep.subr.bf16.mxu0 0
    %2837 = vmatpush1.bf16.msra.mxu0 0
    %2838 = vmatprep.subr.bf16.mxu0 0
    %2839 = vmatpush1.bf16.msra.mxu0 0
    %2840 = vmatprep.subr.bf16.mxu0 0
    %2841 = vmatpush1.bf16.msra.mxu0 0
    %2842 = vmatprep.subr.bf16.mxu0 0
    %2843 = vmatpush1.bf16.msra.mxu0 0
    %2844 = vmatprep.subr.bf16.mxu0 0
    %2845 = vmatpush1.bf16.msra.mxu0 0
    %2846 = vmatprep.subr.bf16.mxu0 0
    %2847 = vmatpush1.bf16.msra.mxu0 0
    %2848 = vmatprep.subr.bf16.mxu0 0
    %2849 = vmatpush1.bf16.msra.mxu0 0
    %2850 = vmatprep.subr.bf16.mxu0 0
    %2851 = vmatpush1.bf16.msra.mxu0 0
    %2852 = vmatprep.subr.bf16.mxu0 0
    %2853 = vmatpush1.bf16.msra.mxu0 0
    %2854 = vmatprep.subr.bf16.mxu0 0
    %2855 = vmatpush1.bf16.msra.mxu0 0
    %2856 = vmatprep.subr.bf16.mxu0 0
    %2857 = vmatpush1.bf16.msra.mxu0 0
    %2858 = vmatprep.mubr.bf16.mxu0 0
    %2859 = vmatmul.mubr.bf16.gmra.mrb[0].mxu0 %v2812
    %v2860 = vpop.f32.mrb[0].mxu0
    %v2861 = vadd.f32 %v62, %v2860
    %v2862 = vpop.f32.mrb[0].mxu0
    %v2863 = vpop.f32.mrb[0].mxu0
    %v2864 = vadd.f32 %v62, %v2863
    %v2865 = vpop.f32.mrb[0].mxu0
    %2866 = vmatprep.mubr.bf16.mxu0 0
    %2867 = vmatmul.mubr.bf16.gmra.mrb[0].mxu0 %v2815
    %v2868 = vpop.f32.mrb[0].mxu0
    %v2869 = vadd.f32 %v62, %v2868
    %v2870 = vpop.f32.mrb[0].mxu0
    %v2871 = vpop.f32.mrb[0].mxu0
    %v2872 = vadd.f32 %v62, %v2871
    %v2873 = vpop.f32.mrb[0].mxu0
    %2874 = vmatprep.mubr.bf16.mxu0 0
    %2875 = vmatmul.mubr.bf16.gmra.mrb[0].mxu0 %v2818
    %v2876 = vpop.f32.mrb[0].mxu0
    %v2877 = vadd.f32 %v62, %v2876
    %v2878 = vpop.f32.mrb[0].mxu0
    %v2879 = vpop.f32.mrb[0].mxu0
    %v2880 = vadd.f32 %v62, %v2879
    %v2881 = vpop.f32.mrb[0].mxu0
    %2882 = vmatprep.mubr.bf16.mxu0 0
    %2883 = vmatmul.mubr.bf16.gmra.mrb[0].mxu0 %v2821
    %v2884 = vpop.f32.mrb[0].mxu0
    %v2885 = vadd.f32 %v62, %v2884
    %v2886 = vpop.f32.mrb[0].mxu0
    %v2887 = vpop.f32.mrb[0].mxu0
    %v2888 = vadd.f32 %v62, %v2887
    %v2889 = vpop.f32.mrb[0].mxu0
    %2890 = vmatprep.mubr.bf16.mxu0 0
    %2891 = vmatmul.mubr.bf16.gmra.mrb[0].mxu0 %v2824
    %v2892 = vpop.f32.mrb[0].mxu0
    %v2893 = vadd.f32 %v62, %v2892
    %v2894 = vpop.f32.mrb[0].mxu0
    %v2895 = vpop.f32.mrb[0].mxu0
    %v2896 = vpop.f32.mrb[0].mxu0
    %2897 = vdwg.mxu0
    %v2898 = vmax.f32 %v2861, 0.0
    %v2899 = vmax.f32 %v2864, 0.0
    %v2900 = vmax.f32 %v2869, 0.0
    %v2901 = vmax.f32 %v2872, 0.0
    %v2902 = vmax.f32 %v2877, 0.0
    %v2903 = vmax.f32 %v2880, 0.0
    %v2904 = vmax.f32 %v2885, 0.0
    %v2905 = vmax.f32 %v2888, 0.0
    %v2906 = vmax.f32 %v2893, 0.0
    %v2907 = vpack.c.bf16 %v2899, %v2898
    %v2908 = vpack.c.bf16 %v2901, %v2900
    %v2909 = vpack.c.bf16 %v2903, %v2902
    %v2910 = vpack.c.bf16 %v2905, %v2904
    %v2911 = vpack.c.bf16 %v2906, %v2906
    %s2912 = scalar_lea.vmem %s3, 176
    %v2913 = vld [vmem:[%s2912] sm:$0xf]
    %v2914 = vld [vmem:[%s2912 + $0x4] sm:$0xf]
    %v2915 = vld [vmem:[%s2912 + $0x8] sm:$0xf]
    %v2916 = vld [vmem:[%s2912 + $0xc] sm:$0xf]
    %v2921 = vunpack.c.l.b16 %v2913
    %v2922 = vunpack.c.l.b16 %v2914
    %v2923 = vunpack.c.l.b16 %v2915
    %v2924 = vunpack.c.l.b16 %v2916
    %v2925 = vpack.c.b16 %v2922, %v2921
    %v2926 = vpack.c.b16 %v2924, %v2923
    %v2930 = vsel %vm368, %v2907, 0
    %v2933 = vsel %vm368, %v2908, 0
    %v2936 = vsel %vm368, %v2909, 0
    %v2939 = vsel %vm368, %v2910, 0
    %v2942 = vsel %vm368, %v2911, 0
    %2944 = vmatprep.subr.bf16.mxu0 0
    %2945 = vmatpush1.bf16.msra.mxu0 %v2925
    %2946 = vmatprep.subr.bf16.mxu0 0
    %2947 = vmatpush1.bf16.msra.mxu0 %v2926
    %2948 = vmatprep.subr.bf16.mxu0 0
    %2949 = vmatpush1.bf16.msra.mxu0 0
    %2950 = vmatprep.subr.bf16.mxu0 0
    %2951 = vmatpush1.bf16.msra.mxu0 0
    %2952 = vmatprep.subr.bf16.mxu0 0
    %2953 = vmatpush1.bf16.msra.mxu0 0
    %2954 = vmatprep.subr.bf16.mxu0 0
    %2955 = vmatpush1.bf16.msra.mxu0 0
    %2956 = vmatprep.subr.bf16.mxu0 0
    %2957 = vmatpush1.bf16.msra.mxu0 0
    %2958 = vmatprep.subr.bf16.mxu0 0
    %2959 = vmatpush1.bf16.msra.mxu0 0
    %2960 = vmatprep.subr.bf16.mxu0 0
    %2961 = vmatpush1.bf16.msra.mxu0 0
    %2962 = vmatprep.subr.bf16.mxu0 0
    %2963 = vmatpush1.bf16.msra.mxu0 0
    %2964 = vmatprep.subr.bf16.mxu0 0
    %2965 = vmatpush1.bf16.msra.mxu0 0
    %2966 = vmatprep.subr.bf16.mxu0 0
    %2967 = vmatpush1.bf16.msra.mxu0 0
    %2968 = vmatprep.subr.bf16.mxu0 0
    %2969 = vmatpush1.bf16.msra.mxu0 0
    %2970 = vmatprep.subr.bf16.mxu0 0
    %2971 = vmatpush1.bf16.msra.mxu0 0
    %2972 = vmatprep.subr.bf16.mxu0 0
    %2973 = vmatpush1.bf16.msra.mxu0 0
    %2974 = vmatprep.subr.bf16.mxu0 0
    %2975 = vmatpush1.bf16.msra.mxu0 0
    %2976 = vmatprep.mubr.bf16.mxu0 0
    %2977 = vmatmul.mubr.bf16.gmra.mrb[0].mxu0 %v2930
    %v2978 = vpop.f32.mrb[0].mxu0
    %v2979 = vadd.f32 0.0, %v2978
    %v2980 = vpop.f32.mrb[0].mxu0
    %v2981 = vpop.f32.mrb[0].mxu0
    %v2982 = vadd.f32 0.0, %v2981
    %v2983 = vpop.f32.mrb[0].mxu0
    %2984 = vmatprep.mubr.bf16.mxu0 0
    %2985 = vmatmul.mubr.bf16.gmra.mrb[0].mxu0 %v2933
    %v2986 = vpop.f32.mrb[0].mxu0
    %v2987 = vadd.f32 0.0, %v2986
    %v2988 = vpop.f32.mrb[0].mxu0
    %v2989 = vpop.f32.mrb[0].mxu0
    %v2990 = vadd.f32 0.0, %v2989
    %v2991 = vpop.f32.mrb[0].mxu0
    %2992 = vmatprep.mubr.bf16.mxu0 0
    %2993 = vmatmul.mubr.bf16.gmra.mrb[0].mxu0 %v2936
    %v2994 = vpop.f32.mrb[0].mxu0
    %v2995 = vadd.f32 0.0, %v2994
    %v2996 = vpop.f32.mrb[0].mxu0
    %v2997 = vpop.f32.mrb[0].mxu0
    %v2998 = vadd.f32 0.0, %v2997
    %v2999 = vpop.f32.mrb[0].mxu0
    %3000 = vmatprep.mubr.bf16.mxu0 0
    %3001 = vmatmul.mubr.bf16.gmra.mrb[0].mxu0 %v2939
    %v3002 = vpop.f32.mrb[0].mxu0
    %v3003 = vadd.f32 0.0, %v3002
    %v3004 = vpop.f32.mrb[0].mxu0
    %v3005 = vpop.f32.mrb[0].mxu0
    %v3006 = vadd.f32 0.0, %v3005
    %v3007 = vpop.f32.mrb[0].mxu0
    %3008 = vmatprep.mubr.bf16.mxu0 0
    %3009 = vmatmul.mubr.bf16.gmra.mrb[0].mxu0 %v2942
    %v3010 = vpop.f32.mrb[0].mxu0
    %v3011 = vadd.f32 0.0, %v3010
    %v3012 = vpop.f32.mrb[0].mxu0
    %v3013 = vpop.f32.mrb[0].mxu0
    %v3014 = vpop.f32.mrb[0].mxu0
    %3015 = vdwg.mxu0
    %v3016 = vadd.f32 %v2769, %v2979
    %v3017 = vadd.f32 %v2770, %v2982
    %v3018 = vadd.f32 %v2771, %v2987
    %v3019 = vadd.f32 %v2772, %v2990
    %v3020 = vadd.f32 %v2773, %v2995
    %v3021 = vadd.f32 %v2774, %v2998
    %v3022 = vadd.f32 %v2775, %v3003
    %v3023 = vadd.f32 %v2776, %v3006
    %v3024 = vadd.f32 %v2777, %v3011
    %s3025 = scalar_lea.vmem %s0, 432
    %v3026 = vld [vmem:[%s3025] sm:$0xf]
    %v3027 = vld [vmem:[%s3025 + $0x4] sm:$0xf]
    %v3028 = vld [vmem:[%s3025 + $0x8] sm:$0xf]
    %v3029 = vld [vmem:[%s3025 + $0xc] sm:$0xf]
    %v3030 = vld [vmem:[%s3025 + $0x10] sm:$0xf]
    %v3031 = vld [vmem:[%s3025 + $0x14] sm:$0xf]
    %v3032 = vld [vmem:[%s3025 + $0x18] sm:$0xf]
    %v3033 = vld [vmem:[%s3025 + $0x1c] sm:$0xf]
    %v3034 = vld [vmem:[%s3025 + $0x20] sm:$0xf]
    %v3044 = vunpack.c.l.b16 %v3026
    %v3045 = vunpack.c.l.b16 %v3027
    %v3046 = vunpack.c.l.b16 %v3028
    %v3047 = vunpack.c.l.b16 %v3029
    %v3048 = vunpack.c.l.b16 %v3030
    %v3049 = vunpack.c.l.b16 %v3031
    %v3050 = vunpack.c.l.b16 %v3032
    %v3051 = vunpack.c.l.b16 %v3033
    %v3052 = vunpack.c.l.b16 %v3034
    %v3053 = vpack.c.b16 %v3045, %v3044
    %v3054 = vpack.c.b16 %v3047, %v3046
    %v3055 = vpack.c.b16 %v3049, %v3048
    %v3056 = vpack.c.b16 %v3051, %v3050
    %v3057 = vpack.c.b16 %v3052, %v3052
    %v3059 = vsel %vm111, %v3053, 0
    %v3062 = vsel %vm111, %v3054, 0
    %v3065 = vsel %vm111, %v3055, 0
    %v3068 = vsel %vm111, %v3056, 0
    %v3071 = vsel %vm111, %v3057, 0
    %3073 = vmatprep.subr.bf16.mxu0 0
    %3074 = vmatpush1.bf16.msra.mxu0 %v103
    %3075 = vmatprep.subr.bf16.mxu0 0
    %3076 = vmatpush1.bf16.msra.mxu0 %v104
    %3077 = vmatprep.subr.bf16.mxu0 0
    %3078 = vmatpush1.bf16.msra.mxu0 %v105
    %3079 = vmatprep.subr.bf16.mxu0 0
    %3080 = vmatpush1.bf16.msra.mxu0 %v106
    %3081 = vmatprep.subr.bf16.mxu0 0
    %3082 = vmatpush1.bf16.msra.mxu0 0
    %3083 = vmatprep.subr.bf16.mxu0 0
    %3084 = vmatpush1.bf16.msra.mxu0 0
    %3085 = vmatprep.subr.bf16.mxu0 0
    %3086 = vmatpush1.bf16.msra.mxu0 0
    %3087 = vmatprep.subr.bf16.mxu0 0
    %3088 = vmatpush1.bf16.msra.mxu0 0
    %3089 = vmatprep.subr.bf16.mxu0 0
    %3090 = vmatpush1.bf16.msra.mxu0 0
    %3091 = vmatprep.subr.bf16.mxu0 0
    %3092 = vmatpush1.bf16.msra.mxu0 0
    %3093 = vmatprep.subr.bf16.mxu0 0
    %3094 = vmatpush1.bf16.msra.mxu0 0
    %3095 = vmatprep.subr.bf16.mxu0 0
    %3096 = vmatpush1.bf16.msra.mxu0 0
    %3097 = vmatprep.subr.bf16.mxu0 0
    %3098 = vmatpush1.bf16.msra.mxu0 0
    %3099 = vmatprep.subr.bf16.mxu0 0
    %3100 = vmatpush1.bf16.msra.mxu0 0
    %3101 = vmatprep.subr.bf16.mxu0 0
    %3102 = vmatpush1.bf16.msra.mxu0 0
    %3103 = vmatprep.subr.bf16.mxu0 0
    %3104 = vmatpush1.bf16.msra.mxu0 0
    %3105 = vmatprep.mubr.bf16.mxu0 0
    %3106 = vmatmul.mubr.bf16.gmra.mrb[0].mxu0 %v3059
    %v3107 = vpop.f32.mrb[0].mxu0
    %v3108 = vadd.f32 %v62, %v3107
    %v3109 = vpop.f32.mrb[0].mxu0
    %v3110 = vpop.f32.mrb[0].mxu0
    %v3111 = vadd.f32 %v62, %v3110
    %v3112 = vpop.f32.mrb[0].mxu0
    %3113 = vmatprep.mubr.bf16.mxu0 0
    %3114 = vmatmul.mubr.bf16.gmra.mrb[0].mxu0 %v3062
    %v3115 = vpop.f32.mrb[0].mxu0
    %v3116 = vadd.f32 %v62, %v3115
    %v3117 = vpop.f32.mrb[0].mxu0
    %v3118 = vpop.f32.mrb[0].mxu0
    %v3119 = vadd.f32 %v62, %v3118
    %v3120 = vpop.f32.mrb[0].mxu0
    %3121 = vmatprep.mubr.bf16.mxu0 0
    %3122 = vmatmul.mubr.bf16.gmra.mrb[0].mxu0 %v3065
    %v3123 = vpop.f32.mrb[0].mxu0
    %v3124 = vadd.f32 %v62, %v3123
    %v3125 = vpop.f32.mrb[0].mxu0
    %v3126 = vpop.f32.mrb[0].mxu0
    %v3127 = vadd.f32 %v62, %v3126
    %v3128 = vpop.f32.mrb[0].mxu0
    %3129 = vmatprep.mubr.bf16.mxu0 0
    %3130 = vmatmul.mubr.bf16.gmra.mrb[0].mxu0 %v3068
    %v3131 = vpop.f32.mrb[0].mxu0
    %v3132 = vadd.f32 %v62, %v3131
    %v3133 = vpop.f32.mrb[0].mxu0
    %v3134 = vpop.f32.mrb[0].mxu0
    %v3135 = vadd.f32 %v62, %v3134
    %v3136 = vpop.f32.mrb[0].mxu0
    %3137 = vmatprep.mubr.bf16.mxu0 0
    %3138 = vmatmul.mubr.bf16.gmra.mrb[0].mxu0 %v3071
    %v3139 = vpop.f32.mrb[0].mxu0
    %v3140 = vadd.f32 %v62, %v3139
    %v3141 = vpop.f32.mrb[0].mxu0
    %v3142 = vpop.f32.mrb[0].mxu0
    %v3143 = vpop.f32.mrb[0].mxu0
    %3144 = vdwg.mxu0
    %v3145 = vmax.f32 %v3108, 0.0
    %v3146 = vmax.f32 %v3111, 0.0
    %v3147 = vmax.f32 %v3116, 0.0
    %v3148 = vmax.f32 %v3119, 0.0
    %v3149 = vmax.f32 %v3124, 0.0
    %v3150 = vmax.f32 %v3127, 0.0
    %v3151 = vmax.f32 %v3132, 0.0
    %v3152 = vmax.f32 %v3135, 0.0
    %v3153 = vmax.f32 %v3140, 0.0
    %v3154 = vpack.c.bf16 %v3146, %v3145
    %v3155 = vpack.c.bf16 %v3148, %v3147
    %v3156 = vpack.c.bf16 %v3150, %v3149
    %v3157 = vpack.c.bf16 %v3152, %v3151
    %v3158 = vpack.c.bf16 %v3153, %v3153
    %s3159 = scalar_lea.vmem %s3, 192
    %v3160 = vld [vmem:[%s3159] sm:$0xf]
    %v3161 = vld [vmem:[%s3159 + $0x4] sm:$0xf]
    %v3162 = vld [vmem:[%s3159 + $0x8] sm:$0xf]
    %v3163 = vld [vmem:[%s3159 + $0xc] sm:$0xf]
    %v3168 = vunpack.c.l.b16 %v3160
    %v3169 = vunpack.c.l.b16 %v3161
    %v3170 = vunpack.c.l.b16 %v3162
    %v3171 = vunpack.c.l.b16 %v3163
    %v3172 = vpack.c.b16 %v3169, %v3168
    %v3173 = vpack.c.b16 %v3171, %v3170
    %v3177 = vsel %vm368, %v3154, 0
    %v3180 = vsel %vm368, %v3155, 0
    %v3183 = vsel %vm368, %v3156, 0
    %v3186 = vsel %vm368, %v3157, 0
    %v3189 = vsel %vm368, %v3158, 0
    %3191 = vmatprep.subr.bf16.mxu0 0
    %3192 = vmatpush1.bf16.msra.mxu0 %v3172
    %3193 = vmatprep.subr.bf16.mxu0 0
    %3194 = vmatpush1.bf16.msra.mxu0 %v3173
    %3195 = vmatprep.subr.bf16.mxu0 0
    %3196 = vmatpush1.bf16.msra.mxu0 0
    %3197 = vmatprep.subr.bf16.mxu0 0
    %3198 = vmatpush1.bf16.msra.mxu0 0
    %3199 = vmatprep.subr.bf16.mxu0 0
    %3200 = vmatpush1.bf16.msra.mxu0 0
    %3201 = vmatprep.subr.bf16.mxu0 0
    %3202 = vmatpush1.bf16.msra.mxu0 0
    %3203 = vmatprep.subr.bf16.mxu0 0
    %3204 = vmatpush1.bf16.msra.mxu0 0
    %3205 = vmatprep.subr.bf16.mxu0 0
    %3206 = vmatpush1.bf16.msra.mxu0 0
    %3207 = vmatprep.subr.bf16.mxu0 0
    %3208 = vmatpush1.bf16.msra.mxu0 0
    %3209 = vmatprep.subr.bf16.mxu0 0
    %3210 = vmatpush1.bf16.msra.mxu0 0
    %3211 = vmatprep.subr.bf16.mxu0 0
    %3212 = vmatpush1.bf16.msra.mxu0 0
    %3213 = vmatprep.subr.bf16.mxu0 0
    %3214 = vmatpush1.bf16.msra.mxu0 0
    %3215 = vmatprep.subr.bf16.mxu0 0
    %3216 = vmatpush1.bf16.msra.mxu0 0
    %3217 = vmatprep.subr.bf16.mxu0 0
    %3218 = vmatpush1.bf16.msra.mxu0 0
    %3219 = vmatprep.subr.bf16.mxu0 0
    %3220 = vmatpush1.bf16.msra.mxu0 0
    %3221 = vmatprep.subr.bf16.mxu0 0
    %3222 = vmatpush1.bf16.msra.mxu0 0
    %3223 = vmatprep.mubr.bf16.mxu0 0
    %3224 = vmatmul.mubr.bf16.gmra.mrb[0].mxu0 %v3177
    %v3225 = vpop.f32.mrb[0].mxu0
    %v3226 = vadd.f32 0.0, %v3225
    %v3227 = vpop.f32.mrb[0].mxu0
    %v3228 = vpop.f32.mrb[0].mxu0
    %v3229 = vadd.f32 0.0, %v3228
    %v3230 = vpop.f32.mrb[0].mxu0
    %3231 = vmatprep.mubr.bf16.mxu0 0
    %3232 = vmatmul.mubr.bf16.gmra.mrb[0].mxu0 %v3180
    %v3233 = vpop.f32.mrb[0].mxu0
    %v3234 = vadd.f32 0.0, %v3233
    %v3235 = vpop.f32.mrb[0].mxu0
    %v3236 = vpop.f32.mrb[0].mxu0
    %v3237 = vadd.f32 0.0, %v3236
    %v3238 = vpop.f32.mrb[0].mxu0
    %3239 = vmatprep.mubr.bf16.mxu0 0
    %3240 = vmatmul.mubr.bf16.gmra.mrb[0].mxu0 %v3183
    %v3241 = vpop.f32.mrb[0].mxu0
    %v3242 = vadd.f32 0.0, %v3241
    %v3243 = vpop.f32.mrb[0].mxu0
    %v3244 = vpop.f32.mrb[0].mxu0
    %v3245 = vadd.f32 0.0, %v3244
    %v3246 = vpop.f32.mrb[0].mxu0
    %3247 = vmatprep.mubr.bf16.mxu0 0
    %3248 = vmatmul.mubr.bf16.gmra.mrb[0].mxu0 %v3186
    %v3249 = vpop.f32.mrb[0].mxu0
    %v3250 = vadd.f32 0.0, %v3249
    %v3251 = vpop.f32.mrb[0].mxu0
    %v3252 = vpop.f32.mrb[0].mxu0
    %v3253 = vadd.f32 0.0, %v3252
    %v3254 = vpop.f32.mrb[0].mxu0
    %3255 = vmatprep.mubr.bf16.mxu0 0
    %3256 = vmatmul.mubr.bf16.gmra.mrb[0].mxu0 %v3189
    %v3257 = vpop.f32.mrb[0].mxu0
    %v3258 = vadd.f32 0.0, %v3257
    %v3259 = vpop.f32.mrb[0].mxu0
    %v3260 = vpop.f32.mrb[0].mxu0
    %v3261 = vpop.f32.mrb[0].mxu0
    %3262 = vdwg.mxu0
    %v3263 = vadd.f32 %v3016, %v3226
    %v3264 = vadd.f32 %v3017, %v3229
    %v3265 = vadd.f32 %v3018, %v3234
    %v3266 = vadd.f32 %v3019, %v3237
    %v3267 = vadd.f32 %v3020, %v3242
    %v3268 = vadd.f32 %v3021, %v3245
    %v3269 = vadd.f32 %v3022, %v3250
    %v3270 = vadd.f32 %v3023, %v3253
    %v3271 = vadd.f32 %v3024, %v3258
    %s3272 = scalar_lea.vmem %s0, 468
    %v3273 = vld [vmem:[%s3272] sm:$0xf]
    %v3274 = vld [vmem:[%s3272 + $0x4] sm:$0xf]
    %v3275 = vld [vmem:[%s3272 + $0x8] sm:$0xf]
    %v3276 = vld [vmem:[%s3272 + $0xc] sm:$0xf]
    %v3277 = vld [vmem:[%s3272 + $0x10] sm:$0xf]
    %v3278 = vld [vmem:[%s3272 + $0x14] sm:$0xf]
    %v3279 = vld [vmem:[%s3272 + $0x18] sm:$0xf]
    %v3280 = vld [vmem:[%s3272 + $0x1c] sm:$0xf]
    %v3281 = vld [vmem:[%s3272 + $0x20] sm:$0xf]
    %v3291 = vunpack.c.l.b16 %v3273
    %v3292 = vunpack.c.l.b16 %v3274
    %v3293 = vunpack.c.l.b16 %v3275
    %v3294 = vunpack.c.l.b16 %v3276
    %v3295 = vunpack.c.l.b16 %v3277
    %v3296 = vunpack.c.l.b16 %v3278
    %v3297 = vunpack.c.l.b16 %v3279
    %v3298 = vunpack.c.l.b16 %v3280
    %v3299 = vunpack.c.l.b16 %v3281
    %v3300 = vpack.c.b16 %v3292, %v3291
    %v3301 = vpack.c.b16 %v3294, %v3293
    %v3302 = vpack.c.b16 %v3296, %v3295
    %v3303 = vpack.c.b16 %v3298, %v3297
    %v3304 = vpack.c.b16 %v3299, %v3299
    %v3306 = vsel %vm111, %v3300, 0
    %v3309 = vsel %vm111, %v3301, 0
    %v3312 = vsel %vm111, %v3302, 0
    %v3315 = vsel %vm111, %v3303, 0
    %v3318 = vsel %vm111, %v3304, 0
    %3320 = vmatprep.subr.bf16.mxu0 0
    %3321 = vmatpush1.bf16.msra.mxu0 %v103
    %3322 = vmatprep.subr.bf16.mxu0 0
    %3323 = vmatpush1.bf16.msra.mxu0 %v104
    %3324 = vmatprep.subr.bf16.mxu0 0
    %3325 = vmatpush1.bf16.msra.mxu0 %v105
    %3326 = vmatprep.subr.bf16.mxu0 0
    %3327 = vmatpush1.bf16.msra.mxu0 %v106
    %3328 = vmatprep.subr.bf16.mxu0 0
    %3329 = vmatpush1.bf16.msra.mxu0 0
    %3330 = vmatprep.subr.bf16.mxu0 0
    %3331 = vmatpush1.bf16.msra.mxu0 0
    %3332 = vmatprep.subr.bf16.mxu0 0
    %3333 = vmatpush1.bf16.msra.mxu0 0
    %3334 = vmatprep.subr.bf16.mxu0 0
    %3335 = vmatpush1.bf16.msra.mxu0 0
    %3336 = vmatprep.subr.bf16.mxu0 0
    %3337 = vmatpush1.bf16.msra.mxu0 0
    %3338 = vmatprep.subr.bf16.mxu0 0
    %3339 = vmatpush1.bf16.msra.mxu0 0
    %3340 = vmatprep.subr.bf16.mxu0 0
    %3341 = vmatpush1.bf16.msra.mxu0 0
    %3342 = vmatprep.subr.bf16.mxu0 0
    %3343 = vmatpush1.bf16.msra.mxu0 0
    %3344 = vmatprep.subr.bf16.mxu0 0
    %3345 = vmatpush1.bf16.msra.mxu0 0
    %3346 = vmatprep.subr.bf16.mxu0 0
    %3347 = vmatpush1.bf16.msra.mxu0 0
    %3348 = vmatprep.subr.bf16.mxu0 0
    %3349 = vmatpush1.bf16.msra.mxu0 0
    %3350 = vmatprep.subr.bf16.mxu0 0
    %3351 = vmatpush1.bf16.msra.mxu0 0
    %3352 = vmatprep.mubr.bf16.mxu0 0
    %3353 = vmatmul.mubr.bf16.gmra.mrb[0].mxu0 %v3306
    %v3354 = vpop.f32.mrb[0].mxu0
    %v3355 = vadd.f32 %v62, %v3354
    %v3356 = vpop.f32.mrb[0].mxu0
    %v3357 = vpop.f32.mrb[0].mxu0
    %v3358 = vadd.f32 %v62, %v3357
    %v3359 = vpop.f32.mrb[0].mxu0
    %3360 = vmatprep.mubr.bf16.mxu0 0
    %3361 = vmatmul.mubr.bf16.gmra.mrb[0].mxu0 %v3309
    %v3362 = vpop.f32.mrb[0].mxu0
    %v3363 = vadd.f32 %v62, %v3362
    %v3364 = vpop.f32.mrb[0].mxu0
    %v3365 = vpop.f32.mrb[0].mxu0
    %v3366 = vadd.f32 %v62, %v3365
    %v3367 = vpop.f32.mrb[0].mxu0
    %3368 = vmatprep.mubr.bf16.mxu0 0
    %3369 = vmatmul.mubr.bf16.gmra.mrb[0].mxu0 %v3312
    %v3370 = vpop.f32.mrb[0].mxu0
    %v3371 = vadd.f32 %v62, %v3370
    %v3372 = vpop.f32.mrb[0].mxu0
    %v3373 = vpop.f32.mrb[0].mxu0
    %v3374 = vadd.f32 %v62, %v3373
    %v3375 = vpop.f32.mrb[0].mxu0
    %3376 = vmatprep.mubr.bf16.mxu0 0
    %3377 = vmatmul.mubr.bf16.gmra.mrb[0].mxu0 %v3315
    %v3378 = vpop.f32.mrb[0].mxu0
    %v3379 = vadd.f32 %v62, %v3378
    %v3380 = vpop.f32.mrb[0].mxu0
    %v3381 = vpop.f32.mrb[0].mxu0
    %v3382 = vadd.f32 %v62, %v3381
    %v3383 = vpop.f32.mrb[0].mxu0
    %3384 = vmatprep.mubr.bf16.mxu0 0
    %3385 = vmatmul.mubr.bf16.gmra.mrb[0].mxu0 %v3318
    %v3386 = vpop.f32.mrb[0].mxu0
    %v3387 = vadd.f32 %v62, %v3386
    %v3388 = vpop.f32.mrb[0].mxu0
    %v3389 = vpop.f32.mrb[0].mxu0
    %v3390 = vpop.f32.mrb[0].mxu0
    %3391 = vdwg.mxu0
    %v3392 = vmax.f32 %v3355, 0.0
    %v3393 = vmax.f32 %v3358, 0.0
    %v3394 = vmax.f32 %v3363, 0.0
    %v3395 = vmax.f32 %v3366, 0.0
    %v3396 = vmax.f32 %v3371, 0.0
    %v3397 = vmax.f32 %v3374, 0.0
    %v3398 = vmax.f32 %v3379, 0.0
    %v3399 = vmax.f32 %v3382, 0.0
    %v3400 = vmax.f32 %v3387, 0.0
    %v3401 = vpack.c.bf16 %v3393, %v3392
    %v3402 = vpack.c.bf16 %v3395, %v3394
    %v3403 = vpack.c.bf16 %v3397, %v3396
    %v3404 = vpack.c.bf16 %v3399, %v3398
    %v3405 = vpack.c.bf16 %v3400, %v3400
    %s3406 = scalar_lea.vmem %s3, 208
    %v3407 = vld [vmem:[%s3406] sm:$0xf]
    %v3408 = vld [vmem:[%s3406 + $0x4] sm:$0xf]
    %v3409 = vld [vmem:[%s3406 + $0x8] sm:$0xf]
    %v3410 = vld [vmem:[%s3406 + $0xc] sm:$0xf]
    %v3415 = vunpack.c.l.b16 %v3407
    %v3416 = vunpack.c.l.b16 %v3408
    %v3417 = vunpack.c.l.b16 %v3409
    %v3418 = vunpack.c.l.b16 %v3410
    %v3419 = vpack.c.b16 %v3416, %v3415
    %v3420 = vpack.c.b16 %v3418, %v3417
    %v3424 = vsel %vm368, %v3401, 0
    %v3427 = vsel %vm368, %v3402, 0
    %v3430 = vsel %vm368, %v3403, 0
    %v3433 = vsel %vm368, %v3404, 0
    %v3436 = vsel %vm368, %v3405, 0
    %3438 = vmatprep.subr.bf16.mxu0 0
    %3439 = vmatpush1.bf16.msra.mxu0 %v3419
    %3440 = vmatprep.subr.bf16.mxu0 0
    %3441 = vmatpush1.bf16.msra.mxu0 %v3420
    %3442 = vmatprep.subr.bf16.mxu0 0
    %3443 = vmatpush1.bf16.msra.mxu0 0
    %3444 = vmatprep.subr.bf16.mxu0 0
    %3445 = vmatpush1.bf16.msra.mxu0 0
    %3446 = vmatprep.subr.bf16.mxu0 0
    %3447 = vmatpush1.bf16.msra.mxu0 0
    %3448 = vmatprep.subr.bf16.mxu0 0
    %3449 = vmatpush1.bf16.msra.mxu0 0
    %3450 = vmatprep.subr.bf16.mxu0 0
    %3451 = vmatpush1.bf16.msra.mxu0 0
    %3452 = vmatprep.subr.bf16.mxu0 0
    %3453 = vmatpush1.bf16.msra.mxu0 0
    %3454 = vmatprep.subr.bf16.mxu0 0
    %3455 = vmatpush1.bf16.msra.mxu0 0
    %3456 = vmatprep.subr.bf16.mxu0 0
    %3457 = vmatpush1.bf16.msra.mxu0 0
    %3458 = vmatprep.subr.bf16.mxu0 0
    %3459 = vmatpush1.bf16.msra.mxu0 0
    %3460 = vmatprep.subr.bf16.mxu0 0
    %3461 = vmatpush1.bf16.msra.mxu0 0
    %3462 = vmatprep.subr.bf16.mxu0 0
    %3463 = vmatpush1.bf16.msra.mxu0 0
    %3464 = vmatprep.subr.bf16.mxu0 0
    %3465 = vmatpush1.bf16.msra.mxu0 0
    %3466 = vmatprep.subr.bf16.mxu0 0
    %3467 = vmatpush1.bf16.msra.mxu0 0
    %3468 = vmatprep.subr.bf16.mxu0 0
    %3469 = vmatpush1.bf16.msra.mxu0 0
    %3470 = vmatprep.mubr.bf16.mxu0 0
    %3471 = vmatmul.mubr.bf16.gmra.mrb[0].mxu0 %v3424
    %v3472 = vpop.f32.mrb[0].mxu0
    %v3473 = vadd.f32 0.0, %v3472
    %v3474 = vpop.f32.mrb[0].mxu0
    %v3475 = vpop.f32.mrb[0].mxu0
    %v3476 = vadd.f32 0.0, %v3475
    %v3477 = vpop.f32.mrb[0].mxu0
    %3478 = vmatprep.mubr.bf16.mxu0 0
    %3479 = vmatmul.mubr.bf16.gmra.mrb[0].mxu0 %v3427
    %v3480 = vpop.f32.mrb[0].mxu0
    %v3481 = vadd.f32 0.0, %v3480
    %v3482 = vpop.f32.mrb[0].mxu0
    %v3483 = vpop.f32.mrb[0].mxu0
    %v3484 = vadd.f32 0.0, %v3483
    %v3485 = vpop.f32.mrb[0].mxu0
    %3486 = vmatprep.mubr.bf16.mxu0 0
    %3487 = vmatmul.mubr.bf16.gmra.mrb[0].mxu0 %v3430
    %v3488 = vpop.f32.mrb[0].mxu0
    %v3489 = vadd.f32 0.0, %v3488
    %v3490 = vpop.f32.mrb[0].mxu0
    %v3491 = vpop.f32.mrb[0].mxu0
    %v3492 = vadd.f32 0.0, %v3491
    %v3493 = vpop.f32.mrb[0].mxu0
    %3494 = vmatprep.mubr.bf16.mxu0 0
    %3495 = vmatmul.mubr.bf16.gmra.mrb[0].mxu0 %v3433
    %v3496 = vpop.f32.mrb[0].mxu0
    %v3497 = vadd.f32 0.0, %v3496
    %v3498 = vpop.f32.mrb[0].mxu0
    %v3499 = vpop.f32.mrb[0].mxu0
    %v3500 = vadd.f32 0.0, %v3499
    %v3501 = vpop.f32.mrb[0].mxu0
    %3502 = vmatprep.mubr.bf16.mxu0 0
    %3503 = vmatmul.mubr.bf16.gmra.mrb[0].mxu0 %v3436
    %v3504 = vpop.f32.mrb[0].mxu0
    %v3505 = vadd.f32 0.0, %v3504
    %v3506 = vpop.f32.mrb[0].mxu0
    %v3507 = vpop.f32.mrb[0].mxu0
    %v3508 = vpop.f32.mrb[0].mxu0
    %3509 = vdwg.mxu0
    %v3510 = vadd.f32 %v3263, %v3473
    %v3511 = vadd.f32 %v3264, %v3476
    %v3512 = vadd.f32 %v3265, %v3481
    %v3513 = vadd.f32 %v3266, %v3484
    %v3514 = vadd.f32 %v3267, %v3489
    %v3515 = vadd.f32 %v3268, %v3492
    %v3516 = vadd.f32 %v3269, %v3497
    %v3517 = vadd.f32 %v3270, %v3500
    %v3518 = vadd.f32 %v3271, %v3505
    %s3519 = scalar_lea.vmem %s0, 504
    %v3520 = vld [vmem:[%s3519] sm:$0xf]
    %v3521 = vld [vmem:[%s3519 + $0x4] sm:$0xf]
    %v3522 = vld [vmem:[%s3519 + $0x8] sm:$0xf]
    %v3523 = vld [vmem:[%s3519 + $0xc] sm:$0xf]
    %v3524 = vld [vmem:[%s3519 + $0x10] sm:$0xf]
    %v3525 = vld [vmem:[%s3519 + $0x14] sm:$0xf]
    %v3526 = vld [vmem:[%s3519 + $0x18] sm:$0xf]
    %v3527 = vld [vmem:[%s3519 + $0x1c] sm:$0xf]
    %v3528 = vld [vmem:[%s3519 + $0x20] sm:$0xf]
    %v3538 = vunpack.c.l.b16 %v3520
    %v3539 = vunpack.c.l.b16 %v3521
    %v3540 = vunpack.c.l.b16 %v3522
    %v3541 = vunpack.c.l.b16 %v3523
    %v3542 = vunpack.c.l.b16 %v3524
    %v3543 = vunpack.c.l.b16 %v3525
    %v3544 = vunpack.c.l.b16 %v3526
    %v3545 = vunpack.c.l.b16 %v3527
    %v3546 = vunpack.c.l.b16 %v3528
    %v3547 = vpack.c.b16 %v3539, %v3538
    %v3548 = vpack.c.b16 %v3541, %v3540
    %v3549 = vpack.c.b16 %v3543, %v3542
    %v3550 = vpack.c.b16 %v3545, %v3544
    %v3551 = vpack.c.b16 %v3546, %v3546
    %v3553 = vsel %vm111, %v3547, 0
    %v3556 = vsel %vm111, %v3548, 0
    %v3559 = vsel %vm111, %v3549, 0
    %v3562 = vsel %vm111, %v3550, 0
    %v3565 = vsel %vm111, %v3551, 0
    %3567 = vmatprep.subr.bf16.mxu0 0
    %3568 = vmatpush1.bf16.msra.mxu0 %v103
    %3569 = vmatprep.subr.bf16.mxu0 0
    %3570 = vmatpush1.bf16.msra.mxu0 %v104
    %3571 = vmatprep.subr.bf16.mxu0 0
    %3572 = vmatpush1.bf16.msra.mxu0 %v105
    %3573 = vmatprep.subr.bf16.mxu0 0
    %3574 = vmatpush1.bf16.msra.mxu0 %v106
    %3575 = vmatprep.subr.bf16.mxu0 0
    %3576 = vmatpush1.bf16.msra.mxu0 0
    %3577 = vmatprep.subr.bf16.mxu0 0
    %3578 = vmatpush1.bf16.msra.mxu0 0
    %3579 = vmatprep.subr.bf16.mxu0 0
    %3580 = vmatpush1.bf16.msra.mxu0 0
    %3581 = vmatprep.subr.bf16.mxu0 0
    %3582 = vmatpush1.bf16.msra.mxu0 0
    %3583 = vmatprep.subr.bf16.mxu0 0
    %3584 = vmatpush1.bf16.msra.mxu0 0
    %3585 = vmatprep.subr.bf16.mxu0 0
    %3586 = vmatpush1.bf16.msra.mxu0 0
    %3587 = vmatprep.subr.bf16.mxu0 0
    %3588 = vmatpush1.bf16.msra.mxu0 0
    %3589 = vmatprep.subr.bf16.mxu0 0
    %3590 = vmatpush1.bf16.msra.mxu0 0
    %3591 = vmatprep.subr.bf16.mxu0 0
    %3592 = vmatpush1.bf16.msra.mxu0 0
    %3593 = vmatprep.subr.bf16.mxu0 0
    %3594 = vmatpush1.bf16.msra.mxu0 0
    %3595 = vmatprep.subr.bf16.mxu0 0
    %3596 = vmatpush1.bf16.msra.mxu0 0
    %3597 = vmatprep.subr.bf16.mxu0 0
    %3598 = vmatpush1.bf16.msra.mxu0 0
    %3599 = vmatprep.mubr.bf16.mxu0 0
    %3600 = vmatmul.mubr.bf16.gmra.mrb[0].mxu0 %v3553
    %v3601 = vpop.f32.mrb[0].mxu0
    %v3602 = vadd.f32 %v62, %v3601
    %v3603 = vpop.f32.mrb[0].mxu0
    %v3604 = vpop.f32.mrb[0].mxu0
    %v3605 = vadd.f32 %v62, %v3604
    %v3606 = vpop.f32.mrb[0].mxu0
    %3607 = vmatprep.mubr.bf16.mxu0 0
    %3608 = vmatmul.mubr.bf16.gmra.mrb[0].mxu0 %v3556
    %v3609 = vpop.f32.mrb[0].mxu0
    %v3610 = vadd.f32 %v62, %v3609
    %v3611 = vpop.f32.mrb[0].mxu0
    %v3612 = vpop.f32.mrb[0].mxu0
    %v3613 = vadd.f32 %v62, %v3612
    %v3614 = vpop.f32.mrb[0].mxu0
    %3615 = vmatprep.mubr.bf16.mxu0 0
    %3616 = vmatmul.mubr.bf16.gmra.mrb[0].mxu0 %v3559
    %v3617 = vpop.f32.mrb[0].mxu0
    %v3618 = vadd.f32 %v62, %v3617
    %v3619 = vpop.f32.mrb[0].mxu0
    %v3620 = vpop.f32.mrb[0].mxu0
    %v3621 = vadd.f32 %v62, %v3620
    %v3622 = vpop.f32.mrb[0].mxu0
    %3623 = vmatprep.mubr.bf16.mxu0 0
    %3624 = vmatmul.mubr.bf16.gmra.mrb[0].mxu0 %v3562
    %v3625 = vpop.f32.mrb[0].mxu0
    %v3626 = vadd.f32 %v62, %v3625
    %v3627 = vpop.f32.mrb[0].mxu0
    %v3628 = vpop.f32.mrb[0].mxu0
    %v3629 = vadd.f32 %v62, %v3628
    %v3630 = vpop.f32.mrb[0].mxu0
    %3631 = vmatprep.mubr.bf16.mxu0 0
    %3632 = vmatmul.mubr.bf16.gmra.mrb[0].mxu0 %v3565
    %v3633 = vpop.f32.mrb[0].mxu0
    %v3634 = vadd.f32 %v62, %v3633
    %v3635 = vpop.f32.mrb[0].mxu0
    %v3636 = vpop.f32.mrb[0].mxu0
    %v3637 = vpop.f32.mrb[0].mxu0
    %3638 = vdwg.mxu0
    %v3639 = vmax.f32 %v3602, 0.0
    %v3640 = vmax.f32 %v3605, 0.0
    %v3641 = vmax.f32 %v3610, 0.0
    %v3642 = vmax.f32 %v3613, 0.0
    %v3643 = vmax.f32 %v3618, 0.0
    %v3644 = vmax.f32 %v3621, 0.0
    %v3645 = vmax.f32 %v3626, 0.0
    %v3646 = vmax.f32 %v3629, 0.0
    %v3647 = vmax.f32 %v3634, 0.0
    %v3648 = vpack.c.bf16 %v3640, %v3639
    %v3649 = vpack.c.bf16 %v3642, %v3641
    %v3650 = vpack.c.bf16 %v3644, %v3643
    %v3651 = vpack.c.bf16 %v3646, %v3645
    %v3652 = vpack.c.bf16 %v3647, %v3647
    %s3653 = scalar_lea.vmem %s3, 224
    %v3654 = vld [vmem:[%s3653] sm:$0xf]
    %v3655 = vld [vmem:[%s3653 + $0x4] sm:$0xf]
    %v3656 = vld [vmem:[%s3653 + $0x8] sm:$0xf]
    %v3657 = vld [vmem:[%s3653 + $0xc] sm:$0xf]
    %v3662 = vunpack.c.l.b16 %v3654
    %v3663 = vunpack.c.l.b16 %v3655
    %v3664 = vunpack.c.l.b16 %v3656
    %v3665 = vunpack.c.l.b16 %v3657
    %v3666 = vpack.c.b16 %v3663, %v3662
    %v3667 = vpack.c.b16 %v3665, %v3664
    %v3671 = vsel %vm368, %v3648, 0
    %v3674 = vsel %vm368, %v3649, 0
    %v3677 = vsel %vm368, %v3650, 0
    %v3680 = vsel %vm368, %v3651, 0
    %v3683 = vsel %vm368, %v3652, 0
    %3685 = vmatprep.subr.bf16.mxu0 0
    %3686 = vmatpush1.bf16.msra.mxu0 %v3666
    %3687 = vmatprep.subr.bf16.mxu0 0
    %3688 = vmatpush1.bf16.msra.mxu0 %v3667
    %3689 = vmatprep.subr.bf16.mxu0 0
    %3690 = vmatpush1.bf16.msra.mxu0 0
    %3691 = vmatprep.subr.bf16.mxu0 0
    %3692 = vmatpush1.bf16.msra.mxu0 0
    %3693 = vmatprep.subr.bf16.mxu0 0
    %3694 = vmatpush1.bf16.msra.mxu0 0
    %3695 = vmatprep.subr.bf16.mxu0 0
    %3696 = vmatpush1.bf16.msra.mxu0 0
    %3697 = vmatprep.subr.bf16.mxu0 0
    %3698 = vmatpush1.bf16.msra.mxu0 0
    %3699 = vmatprep.subr.bf16.mxu0 0
    %3700 = vmatpush1.bf16.msra.mxu0 0
    %3701 = vmatprep.subr.bf16.mxu0 0
    %3702 = vmatpush1.bf16.msra.mxu0 0
    %3703 = vmatprep.subr.bf16.mxu0 0
    %3704 = vmatpush1.bf16.msra.mxu0 0
    %3705 = vmatprep.subr.bf16.mxu0 0
    %3706 = vmatpush1.bf16.msra.mxu0 0
    %3707 = vmatprep.subr.bf16.mxu0 0
    %3708 = vmatpush1.bf16.msra.mxu0 0
    %3709 = vmatprep.subr.bf16.mxu0 0
    %3710 = vmatpush1.bf16.msra.mxu0 0
    %3711 = vmatprep.subr.bf16.mxu0 0
    %3712 = vmatpush1.bf16.msra.mxu0 0
    %3713 = vmatprep.subr.bf16.mxu0 0
    %3714 = vmatpush1.bf16.msra.mxu0 0
    %3715 = vmatprep.subr.bf16.mxu0 0
    %3716 = vmatpush1.bf16.msra.mxu0 0
    %3717 = vmatprep.mubr.bf16.mxu0 0
    %3718 = vmatmul.mubr.bf16.gmra.mrb[0].mxu0 %v3671
    %v3719 = vpop.f32.mrb[0].mxu0
    %v3720 = vadd.f32 0.0, %v3719
    %v3721 = vpop.f32.mrb[0].mxu0
    %v3722 = vpop.f32.mrb[0].mxu0
    %v3723 = vadd.f32 0.0, %v3722
    %v3724 = vpop.f32.mrb[0].mxu0
    %3725 = vmatprep.mubr.bf16.mxu0 0
    %3726 = vmatmul.mubr.bf16.gmra.mrb[0].mxu0 %v3674
    %v3727 = vpop.f32.mrb[0].mxu0
    %v3728 = vadd.f32 0.0, %v3727
    %v3729 = vpop.f32.mrb[0].mxu0
    %v3730 = vpop.f32.mrb[0].mxu0
    %v3731 = vadd.f32 0.0, %v3730
    %v3732 = vpop.f32.mrb[0].mxu0
    %3733 = vmatprep.mubr.bf16.mxu0 0
    %3734 = vmatmul.mubr.bf16.gmra.mrb[0].mxu0 %v3677
    %v3735 = vpop.f32.mrb[0].mxu0
    %v3736 = vadd.f32 0.0, %v3735
    %v3737 = vpop.f32.mrb[0].mxu0
    %v3738 = vpop.f32.mrb[0].mxu0
    %v3739 = vadd.f32 0.0, %v3738
    %v3740 = vpop.f32.mrb[0].mxu0
    %3741 = vmatprep.mubr.bf16.mxu0 0
    %3742 = vmatmul.mubr.bf16.gmra.mrb[0].mxu0 %v3680
    %v3743 = vpop.f32.mrb[0].mxu0
    %v3744 = vadd.f32 0.0, %v3743
    %v3745 = vpop.f32.mrb[0].mxu0
    %v3746 = vpop.f32.mrb[0].mxu0
    %v3747 = vadd.f32 0.0, %v3746
    %v3748 = vpop.f32.mrb[0].mxu0
    %3749 = vmatprep.mubr.bf16.mxu0 0
    %3750 = vmatmul.mubr.bf16.gmra.mrb[0].mxu0 %v3683
    %v3751 = vpop.f32.mrb[0].mxu0
    %v3752 = vadd.f32 0.0, %v3751
    %v3753 = vpop.f32.mrb[0].mxu0
    %v3754 = vpop.f32.mrb[0].mxu0
    %v3755 = vpop.f32.mrb[0].mxu0
    %3756 = vdwg.mxu0
    %v3757 = vadd.f32 %v3510, %v3720
    %v3758 = vadd.f32 %v3511, %v3723
    %v3759 = vadd.f32 %v3512, %v3728
    %v3760 = vadd.f32 %v3513, %v3731
    %v3761 = vadd.f32 %v3514, %v3736
    %v3762 = vadd.f32 %v3515, %v3739
    %v3763 = vadd.f32 %v3516, %v3744
    %v3764 = vadd.f32 %v3517, %v3747
    %v3765 = vadd.f32 %v3518, %v3752
    %s3766 = scalar_lea.vmem %s0, 540
    %v3767 = vld [vmem:[%s3766] sm:$0xf]
    %v3768 = vld [vmem:[%s3766 + $0x4] sm:$0xf]
    %v3769 = vld [vmem:[%s3766 + $0x8] sm:$0xf]
    %v3770 = vld [vmem:[%s3766 + $0xc] sm:$0xf]
    %v3771 = vld [vmem:[%s3766 + $0x10] sm:$0xf]
    %v3772 = vld [vmem:[%s3766 + $0x14] sm:$0xf]
    %v3773 = vld [vmem:[%s3766 + $0x18] sm:$0xf]
    %v3774 = vld [vmem:[%s3766 + $0x1c] sm:$0xf]
    %v3775 = vld [vmem:[%s3766 + $0x20] sm:$0xf]
    %v3785 = vunpack.c.l.b16 %v3767
    %v3786 = vunpack.c.l.b16 %v3768
    %v3787 = vunpack.c.l.b16 %v3769
    %v3788 = vunpack.c.l.b16 %v3770
    %v3789 = vunpack.c.l.b16 %v3771
    %v3790 = vunpack.c.l.b16 %v3772
    %v3791 = vunpack.c.l.b16 %v3773
    %v3792 = vunpack.c.l.b16 %v3774
    %v3793 = vunpack.c.l.b16 %v3775
    %v3794 = vpack.c.b16 %v3786, %v3785
    %v3795 = vpack.c.b16 %v3788, %v3787
    %v3796 = vpack.c.b16 %v3790, %v3789
    %v3797 = vpack.c.b16 %v3792, %v3791
    %v3798 = vpack.c.b16 %v3793, %v3793
    %v3800 = vsel %vm111, %v3794, 0
    %v3803 = vsel %vm111, %v3795, 0
    %v3806 = vsel %vm111, %v3796, 0
    %v3809 = vsel %vm111, %v3797, 0
    %v3812 = vsel %vm111, %v3798, 0
    %3814 = vmatprep.subr.bf16.mxu0 0
    %3815 = vmatpush1.bf16.msra.mxu0 %v103
    %3816 = vmatprep.subr.bf16.mxu0 0
    %3817 = vmatpush1.bf16.msra.mxu0 %v104
    %3818 = vmatprep.subr.bf16.mxu0 0
    %3819 = vmatpush1.bf16.msra.mxu0 %v105
    %3820 = vmatprep.subr.bf16.mxu0 0
    %3821 = vmatpush1.bf16.msra.mxu0 %v106
    %3822 = vmatprep.subr.bf16.mxu0 0
    %3823 = vmatpush1.bf16.msra.mxu0 0
    %3824 = vmatprep.subr.bf16.mxu0 0
    %3825 = vmatpush1.bf16.msra.mxu0 0
    %3826 = vmatprep.subr.bf16.mxu0 0
    %3827 = vmatpush1.bf16.msra.mxu0 0
    %3828 = vmatprep.subr.bf16.mxu0 0
    %3829 = vmatpush1.bf16.msra.mxu0 0
    %3830 = vmatprep.subr.bf16.mxu0 0
    %3831 = vmatpush1.bf16.msra.mxu0 0
    %3832 = vmatprep.subr.bf16.mxu0 0
    %3833 = vmatpush1.bf16.msra.mxu0 0
    %3834 = vmatprep.subr.bf16.mxu0 0
    %3835 = vmatpush1.bf16.msra.mxu0 0
    %3836 = vmatprep.subr.bf16.mxu0 0
    %3837 = vmatpush1.bf16.msra.mxu0 0
    %3838 = vmatprep.subr.bf16.mxu0 0
    %3839 = vmatpush1.bf16.msra.mxu0 0
    %3840 = vmatprep.subr.bf16.mxu0 0
    %3841 = vmatpush1.bf16.msra.mxu0 0
    %3842 = vmatprep.subr.bf16.mxu0 0
    %3843 = vmatpush1.bf16.msra.mxu0 0
    %3844 = vmatprep.subr.bf16.mxu0 0
    %3845 = vmatpush1.bf16.msra.mxu0 0
    %3846 = vmatprep.mubr.bf16.mxu0 0
    %3847 = vmatmul.mubr.bf16.gmra.mrb[0].mxu0 %v3800
    %v3848 = vpop.f32.mrb[0].mxu0
    %v3849 = vadd.f32 %v62, %v3848
    %v3850 = vpop.f32.mrb[0].mxu0
    %v3851 = vpop.f32.mrb[0].mxu0
    %v3852 = vadd.f32 %v62, %v3851
    %v3853 = vpop.f32.mrb[0].mxu0
    %3854 = vmatprep.mubr.bf16.mxu0 0
    %3855 = vmatmul.mubr.bf16.gmra.mrb[0].mxu0 %v3803
    %v3856 = vpop.f32.mrb[0].mxu0
    %v3857 = vadd.f32 %v62, %v3856
    %v3858 = vpop.f32.mrb[0].mxu0
    %v3859 = vpop.f32.mrb[0].mxu0
    %v3860 = vadd.f32 %v62, %v3859
    %v3861 = vpop.f32.mrb[0].mxu0
    %3862 = vmatprep.mubr.bf16.mxu0 0
    %3863 = vmatmul.mubr.bf16.gmra.mrb[0].mxu0 %v3806
    %v3864 = vpop.f32.mrb[0].mxu0
    %v3865 = vadd.f32 %v62, %v3864
    %v3866 = vpop.f32.mrb[0].mxu0
    %v3867 = vpop.f32.mrb[0].mxu0
    %v3868 = vadd.f32 %v62, %v3867
    %v3869 = vpop.f32.mrb[0].mxu0
    %3870 = vmatprep.mubr.bf16.mxu0 0
    %3871 = vmatmul.mubr.bf16.gmra.mrb[0].mxu0 %v3809
    %v3872 = vpop.f32.mrb[0].mxu0
    %v3873 = vadd.f32 %v62, %v3872
    %v3874 = vpop.f32.mrb[0].mxu0
    %v3875 = vpop.f32.mrb[0].mxu0
    %v3876 = vadd.f32 %v62, %v3875
    %v3877 = vpop.f32.mrb[0].mxu0
    %3878 = vmatprep.mubr.bf16.mxu0 0
    %3879 = vmatmul.mubr.bf16.gmra.mrb[0].mxu0 %v3812
    %v3880 = vpop.f32.mrb[0].mxu0
    %v3881 = vadd.f32 %v62, %v3880
    %v3882 = vpop.f32.mrb[0].mxu0
    %v3883 = vpop.f32.mrb[0].mxu0
    %v3884 = vpop.f32.mrb[0].mxu0
    %3885 = vdwg.mxu0
    %v3886 = vmax.f32 %v3849, 0.0
    %v3887 = vmax.f32 %v3852, 0.0
    %v3888 = vmax.f32 %v3857, 0.0
    %v3889 = vmax.f32 %v3860, 0.0
    %v3890 = vmax.f32 %v3865, 0.0
    %v3891 = vmax.f32 %v3868, 0.0
    %v3892 = vmax.f32 %v3873, 0.0
    %v3893 = vmax.f32 %v3876, 0.0
    %v3894 = vmax.f32 %v3881, 0.0
    %v3895 = vpack.c.bf16 %v3887, %v3886
    %v3896 = vpack.c.bf16 %v3889, %v3888
    %v3897 = vpack.c.bf16 %v3891, %v3890
    %v3898 = vpack.c.bf16 %v3893, %v3892
    %v3899 = vpack.c.bf16 %v3894, %v3894
    %s3900 = scalar_lea.vmem %s3, 240
    %v3901 = vld [vmem:[%s3900] sm:$0xf]
    %v3902 = vld [vmem:[%s3900 + $0x4] sm:$0xf]
    %v3903 = vld [vmem:[%s3900 + $0x8] sm:$0xf]
    %v3904 = vld [vmem:[%s3900 + $0xc] sm:$0xf]
    %v3909 = vunpack.c.l.b16 %v3901
    %v3910 = vunpack.c.l.b16 %v3902
    %v3911 = vunpack.c.l.b16 %v3903
    %v3912 = vunpack.c.l.b16 %v3904
    %v3913 = vpack.c.b16 %v3910, %v3909
    %v3914 = vpack.c.b16 %v3912, %v3911
    %v3918 = vsel %vm368, %v3895, 0
    %v3921 = vsel %vm368, %v3896, 0
    %v3924 = vsel %vm368, %v3897, 0
    %v3927 = vsel %vm368, %v3898, 0
    %v3930 = vsel %vm368, %v3899, 0
    %3932 = vmatprep.subr.bf16.mxu0 0
    %3933 = vmatpush1.bf16.msra.mxu0 %v3913
    %3934 = vmatprep.subr.bf16.mxu0 0
    %3935 = vmatpush1.bf16.msra.mxu0 %v3914
    %3936 = vmatprep.subr.bf16.mxu0 0
    %3937 = vmatpush1.bf16.msra.mxu0 0
    %3938 = vmatprep.subr.bf16.mxu0 0
    %3939 = vmatpush1.bf16.msra.mxu0 0
    %3940 = vmatprep.subr.bf16.mxu0 0
    %3941 = vmatpush1.bf16.msra.mxu0 0
    %3942 = vmatprep.subr.bf16.mxu0 0
    %3943 = vmatpush1.bf16.msra.mxu0 0
    %3944 = vmatprep.subr.bf16.mxu0 0
    %3945 = vmatpush1.bf16.msra.mxu0 0
    %3946 = vmatprep.subr.bf16.mxu0 0
    %3947 = vmatpush1.bf16.msra.mxu0 0
    %3948 = vmatprep.subr.bf16.mxu0 0
    %3949 = vmatpush1.bf16.msra.mxu0 0
    %3950 = vmatprep.subr.bf16.mxu0 0
    %3951 = vmatpush1.bf16.msra.mxu0 0
    %3952 = vmatprep.subr.bf16.mxu0 0
    %3953 = vmatpush1.bf16.msra.mxu0 0
    %3954 = vmatprep.subr.bf16.mxu0 0
    %3955 = vmatpush1.bf16.msra.mxu0 0
    %3956 = vmatprep.subr.bf16.mxu0 0
    %3957 = vmatpush1.bf16.msra.mxu0 0
    %3958 = vmatprep.subr.bf16.mxu0 0
    %3959 = vmatpush1.bf16.msra.mxu0 0
    %3960 = vmatprep.subr.bf16.mxu0 0
    %3961 = vmatpush1.bf16.msra.mxu0 0
    %3962 = vmatprep.subr.bf16.mxu0 0
    %3963 = vmatpush1.bf16.msra.mxu0 0
    %3964 = vmatprep.mubr.bf16.mxu0 0
    %3965 = vmatmul.mubr.bf16.gmra.mrb[0].mxu0 %v3918
    %v3966 = vpop.f32.mrb[0].mxu0
    %v3967 = vadd.f32 0.0, %v3966
    %v3968 = vpop.f32.mrb[0].mxu0
    %v3969 = vpop.f32.mrb[0].mxu0
    %v3970 = vadd.f32 0.0, %v3969
    %v3971 = vpop.f32.mrb[0].mxu0
    %3972 = vmatprep.mubr.bf16.mxu0 0
    %3973 = vmatmul.mubr.bf16.gmra.mrb[0].mxu0 %v3921
    %v3974 = vpop.f32.mrb[0].mxu0
    %v3975 = vadd.f32 0.0, %v3974
    %v3976 = vpop.f32.mrb[0].mxu0
    %v3977 = vpop.f32.mrb[0].mxu0
    %v3978 = vadd.f32 0.0, %v3977
    %v3979 = vpop.f32.mrb[0].mxu0
    %3980 = vmatprep.mubr.bf16.mxu0 0
    %3981 = vmatmul.mubr.bf16.gmra.mrb[0].mxu0 %v3924
    %v3982 = vpop.f32.mrb[0].mxu0
    %v3983 = vadd.f32 0.0, %v3982
    %v3984 = vpop.f32.mrb[0].mxu0
    %v3985 = vpop.f32.mrb[0].mxu0
    %v3986 = vadd.f32 0.0, %v3985
    %v3987 = vpop.f32.mrb[0].mxu0
    %3988 = vmatprep.mubr.bf16.mxu0 0
    %3989 = vmatmul.mubr.bf16.gmra.mrb[0].mxu0 %v3927
    %v3990 = vpop.f32.mrb[0].mxu0
    %v3991 = vadd.f32 0.0, %v3990
    %v3992 = vpop.f32.mrb[0].mxu0
    %v3993 = vpop.f32.mrb[0].mxu0
    %v3994 = vadd.f32 0.0, %v3993
    %v3995 = vpop.f32.mrb[0].mxu0
    %3996 = vmatprep.mubr.bf16.mxu0 0
    %3997 = vmatmul.mubr.bf16.gmra.mrb[0].mxu0 %v3930
    %v3998 = vpop.f32.mrb[0].mxu0
    %v3999 = vadd.f32 0.0, %v3998
    %v4000 = vpop.f32.mrb[0].mxu0
    %v4001 = vpop.f32.mrb[0].mxu0
    %v4002 = vpop.f32.mrb[0].mxu0
    %4003 = vdwg.mxu0
    %v4004 = vadd.f32 %v3757, %v3967
    %v4005 = vadd.f32 %v3758, %v3970
    %v4006 = vadd.f32 %v3759, %v3975
    %v4007 = vadd.f32 %v3760, %v3978
    %v4008 = vadd.f32 %v3761, %v3983
    %v4009 = vadd.f32 %v3762, %v3986
    %v4010 = vadd.f32 %v3763, %v3991
    %v4011 = vadd.f32 %v3764, %v3994
    %v4012 = vadd.f32 %v3765, %v3999
    %v4013 = vld [vmem:[%s4] sm:$0x1]
    %v4015 = vlaneseq
    %v4016 = vshrl.u32 %v4015, 7
    %v4017 = vsub.s32 0, %v4016
    %v4018 = vrot.slane %v4013, %v4017
    %v4020 = vadd.f32 %v4004, %v4018
    %v4021 = vadd.f32 %v4005, %v4018
    %v4022 = vadd.f32 %v4006, %v4018
    %v4023 = vadd.f32 %v4007, %v4018
    %v4024 = vadd.f32 %v4008, %v4018
    %v4025 = vadd.f32 %v4009, %v4018
    %v4026 = vadd.f32 %v4010, %v4018
    %v4027 = vadd.f32 %v4011, %v4018
    %v4028 = vadd.f32 %v4012, %v4018
    %v4029 = vmax.f32 %v4020, 0.0
    %v4030 = vmax.f32 %v4021, 0.0
    %v4031 = vmax.f32 %v4022, 0.0
    %v4032 = vmax.f32 %v4023, 0.0
    %v4033 = vmax.f32 %v4024, 0.0
    %v4034 = vmax.f32 %v4025, 0.0
    %v4035 = vmax.f32 %v4026, 0.0
    %v4036 = vmax.f32 %v4027, 0.0
    %v4037 = vmax.f32 %v4028, 0.0
    %v4038 = vpack.c.bf16 %v4030, %v4029
    %v4039 = vpack.c.bf16 %v4032, %v4031
    %v4040 = vpack.c.bf16 %v4034, %v4033
    %v4041 = vpack.c.bf16 %v4036, %v4035
    %v4042 = vpack.c.bf16 %v4037, %v4037
    %vm4045 = vcmask 1045504
    %v4046 = vrot.slane %v4038, 2
    %v4047 = vrot.slane %v4039, 2
    %v4048 = vsel %vm4045, %v4046, %v4047
    %v4049 = vrot.slane %v4039, 4
    %v4051 = vrot.slane %v4040, 6
    %vm4052 = vcmask 1043456
    %v4055 = vsel %vm4052, %v4038, %v4048
    %v4058 = vsel %vm4052, %v4049, %v4051
    %v4059 = vld [vmem:[%s5] sm:$0xf]
    %v4060 = vld [vmem:[%s5 + $0x4] sm:$0xf]
    %v4061 = vld [vmem:[%s5 + $0x8] sm:$0xf]
    %v4062 = vld [vmem:[%s5 + $0xc] sm:$0xf]
    %v4063 = vld [vmem:[%s5 + $0x10] sm:$0xf]
    %v4064 = vld [vmem:[%s5 + $0x14] sm:$0xf]
    %v4065 = vld [vmem:[%s5 + $0x18] sm:$0xf]
    %v4066 = vld [vmem:[%s5 + $0x1c] sm:$0xf]
    %v4067 = vrot.slane %v4038, 1
    %vm4068 = vcmask 1044480
    %v4069 = vrot.slane %v4038, 3
    %v4070 = vrot.slane %v4039, 3
    %v4071 = vsel %vm4068, %v4069, %v4070
    %vm4072 = vcmask 1042432
    %v4073 = vrot.slane %v4039, 5
    %v4074 = vrot.slane %v4040, 5
    %v4075 = vsel %vm4072, %v4073, %v4074
    %v4076 = vrot.slane %v4040, 7
    %v4079 = vsel %vm4052, %v4067, %v4071
    %v4082 = vsel %vm4052, %v4075, %v4076
    %s4083 = scalar_lea.vmem %s5, 32
    %v4084 = vld [vmem:[%s4083] sm:$0xf]
    %v4085 = vld [vmem:[%s4083 + $0x4] sm:$0xf]
    %v4086 = vld [vmem:[%s4083 + $0x8] sm:$0xf]
    %v4087 = vld [vmem:[%s4083 + $0xc] sm:$0xf]
    %v4088 = vld [vmem:[%s4083 + $0x10] sm:$0xf]
    %v4089 = vld [vmem:[%s4083 + $0x14] sm:$0xf]
    %v4090 = vld [vmem:[%s4083 + $0x18] sm:$0xf]
    %v4091 = vld [vmem:[%s4083 + $0x1c] sm:$0xf]
    %v4100 = vunpack.c.l.b16 %v4084
    %v4101 = vunpack.c.l.b16 %v4085
    %v4102 = vunpack.c.l.b16 %v4086
    %v4103 = vunpack.c.l.b16 %v4087
    %v4104 = vunpack.c.l.b16 %v4088
    %v4105 = vunpack.c.l.b16 %v4089
    %v4106 = vunpack.c.l.b16 %v4090
    %v4107 = vunpack.c.l.b16 %v4091
    %v4108 = vpack.c.b16 %v4101, %v4100
    %v4109 = vpack.c.b16 %v4103, %v4102
    %v4110 = vpack.c.b16 %v4105, %v4104
    %v4111 = vpack.c.b16 %v4107, %v4106
    %v4116 = vsel %vm111, %v4079, 0
    %v4118 = vsel %vm111, %v4082, 0
    %4120 = vmatprep.subr.bf16.mxu0 0
    %4121 = vmatpush1.bf16.msra.mxu0 %v4108
    %4122 = vmatprep.subr.bf16.mxu0 0
    %4123 = vmatpush1.bf16.msra.mxu0 %v4109
    %4124 = vmatprep.subr.bf16.mxu0 0
    %4125 = vmatpush1.bf16.msra.mxu0 %v4110
    %4126 = vmatprep.subr.bf16.mxu0 0
    %4127 = vmatpush1.bf16.msra.mxu0 %v4111
    %4128 = vmatprep.subr.bf16.mxu0 0
    %4129 = vmatpush1.bf16.msra.mxu0 0
    %4130 = vmatprep.subr.bf16.mxu0 0
    %4131 = vmatpush1.bf16.msra.mxu0 0
    %4132 = vmatprep.subr.bf16.mxu0 0
    %4133 = vmatpush1.bf16.msra.mxu0 0
    %4134 = vmatprep.subr.bf16.mxu0 0
    %4135 = vmatpush1.bf16.msra.mxu0 0
    %4136 = vmatprep.subr.bf16.mxu0 0
    %4137 = vmatpush1.bf16.msra.mxu0 0
    %4138 = vmatprep.subr.bf16.mxu0 0
    %4139 = vmatpush1.bf16.msra.mxu0 0
    %4140 = vmatprep.subr.bf16.mxu0 0
    %4141 = vmatpush1.bf16.msra.mxu0 0
    %4142 = vmatprep.subr.bf16.mxu0 0
    %4143 = vmatpush1.bf16.msra.mxu0 0
    %4144 = vmatprep.subr.bf16.mxu0 0
    %4145 = vmatpush1.bf16.msra.mxu0 0
    %4146 = vmatprep.subr.bf16.mxu0 0
    %4147 = vmatpush1.bf16.msra.mxu0 0
    %4148 = vmatprep.subr.bf16.mxu0 0
    %4149 = vmatpush1.bf16.msra.mxu0 0
    %4150 = vmatprep.subr.bf16.mxu0 0
    %4151 = vmatpush1.bf16.msra.mxu0 0
    %4152 = vmatprep.mubr.bf16.mxu0 0
    %4153 = vmatmul.mubr.bf16.gmra.mrb[0].mxu0 %v4116
    %v4154 = vpop.f32.mrb[0].mxu0
    %v4155 = vadd.f32 0.0, %v4154
    %v4156 = vpop.f32.mrb[0].mxu0
    %v4157 = vpop.f32.mrb[0].mxu0
    %v4158 = vadd.f32 0.0, %v4157
    %v4159 = vpop.f32.mrb[0].mxu0
    %4160 = vmatprep.mubr.bf16.mxu0 0
    %4161 = vmatmul.mubr.bf16.gmra.mrb[0].mxu0 %v4118
    %v4162 = vpop.f32.mrb[0].mxu0
    %v4163 = vadd.f32 0.0, %v4162
    %v4164 = vpop.f32.mrb[0].mxu0
    %v4165 = vpop.f32.mrb[0].mxu0
    %v4166 = vadd.f32 0.0, %v4165
    %v4167 = vpop.f32.mrb[0].mxu0
    %4168 = vdwg.mxu0
    %v4177 = vunpack.c.l.b16 %v4059
    %v4178 = vunpack.c.l.b16 %v4060
    %v4179 = vunpack.c.l.b16 %v4061
    %v4180 = vunpack.c.l.b16 %v4062
    %v4181 = vunpack.c.l.b16 %v4063
    %v4182 = vunpack.c.l.b16 %v4064
    %v4183 = vunpack.c.l.b16 %v4065
    %v4184 = vunpack.c.l.b16 %v4066
    %v4185 = vpack.c.b16 %v4178, %v4177
    %v4186 = vpack.c.b16 %v4180, %v4179
    %v4187 = vpack.c.b16 %v4182, %v4181
    %v4188 = vpack.c.b16 %v4184, %v4183
    %v4193 = vsel %vm111, %v4055, 0
    %v4195 = vsel %vm111, %v4058, 0
    %4197 = vmatprep.subr.bf16.mxu0 0
    %4198 = vmatpush1.bf16.msra.mxu0 %v4185
    %4199 = vmatprep.subr.bf16.mxu0 0
    %4200 = vmatpush1.bf16.msra.mxu0 %v4186
    %4201 = vmatprep.subr.bf16.mxu0 0
    %4202 = vmatpush1.bf16.msra.mxu0 %v4187
    %4203 = vmatprep.subr.bf16.mxu0 0
    %4204 = vmatpush1.bf16.msra.mxu0 %v4188
    %4205 = vmatprep.subr.bf16.mxu0 0
    %4206 = vmatpush1.bf16.msra.mxu0 0
    %4207 = vmatprep.subr.bf16.mxu0 0
    %4208 = vmatpush1.bf16.msra.mxu0 0
    %4209 = vmatprep.subr.bf16.mxu0 0
    %4210 = vmatpush1.bf16.msra.mxu0 0
    %4211 = vmatprep.subr.bf16.mxu0 0
    %4212 = vmatpush1.bf16.msra.mxu0 0
    %4213 = vmatprep.subr.bf16.mxu0 0
    %4214 = vmatpush1.bf16.msra.mxu0 0
    %4215 = vmatprep.subr.bf16.mxu0 0
    %4216 = vmatpush1.bf16.msra.mxu0 0
    %4217 = vmatprep.subr.bf16.mxu0 0
    %4218 = vmatpush1.bf16.msra.mxu0 0
    %4219 = vmatprep.subr.bf16.mxu0 0
    %4220 = vmatpush1.bf16.msra.mxu0 0
    %4221 = vmatprep.subr.bf16.mxu0 0
    %4222 = vmatpush1.bf16.msra.mxu0 0
    %4223 = vmatprep.subr.bf16.mxu0 0
    %4224 = vmatpush1.bf16.msra.mxu0 0
    %4225 = vmatprep.subr.bf16.mxu0 0
    %4226 = vmatpush1.bf16.msra.mxu0 0
    %4227 = vmatprep.subr.bf16.mxu0 0
    %4228 = vmatpush1.bf16.msra.mxu0 0
    %4229 = vmatprep.mubr.bf16.mxu0 0
    %4230 = vmatmul.mubr.bf16.gmra.mrb[0].mxu0 %v4193
    %v4231 = vpop.f32.mrb[0].mxu0
    %v4232 = vadd.f32 %v4155, %v4231
    %v4233 = vpop.f32.mrb[0].mxu0
    %v4234 = vpop.f32.mrb[0].mxu0
    %v4235 = vadd.f32 %v4158, %v4234
    %v4236 = vpop.f32.mrb[0].mxu0
    %4237 = vmatprep.mubr.bf16.mxu0 0
    %4238 = vmatmul.mubr.bf16.gmra.mrb[0].mxu0 %v4195
    %v4239 = vpop.f32.mrb[0].mxu0
    %v4240 = vadd.f32 %v4163, %v4239
    %v4241 = vpop.f32.mrb[0].mxu0
    %v4242 = vpop.f32.mrb[0].mxu0
    %v4243 = vadd.f32 %v4166, %v4242
    %v4244 = vpop.f32.mrb[0].mxu0
    %4245 = vdwg.mxu0
    %vm4246 = vcmask 1041408
    %v4247 = vrot.slane %v4039, 6
    %v4248 = vsel %vm4246, %v4247, %v4051
    %v4250 = vsel %vm4052, %v4046, %v4049
    %v4253 = vsel %vm4052, %v4248, %v4040
    %s4254 = scalar_lea.vmem %s5, 64
    %v4255 = vld [vmem:[%s4254] sm:$0xf]
    %v4256 = vld [vmem:[%s4254 + $0x4] sm:$0xf]
    %v4257 = vld [vmem:[%s4254 + $0x8] sm:$0xf]
    %v4258 = vld [vmem:[%s4254 + $0xc] sm:$0xf]
    %v4259 = vld [vmem:[%s4254 + $0x10] sm:$0xf]
    %v4260 = vld [vmem:[%s4254 + $0x14] sm:$0xf]
    %v4261 = vld [vmem:[%s4254 + $0x18] sm:$0xf]
    %v4262 = vld [vmem:[%s4254 + $0x1c] sm:$0xf]
    %v4271 = vunpack.c.l.b16 %v4255
    %v4272 = vunpack.c.l.b16 %v4256
    %v4273 = vunpack.c.l.b16 %v4257
    %v4274 = vunpack.c.l.b16 %v4258
    %v4275 = vunpack.c.l.b16 %v4259
    %v4276 = vunpack.c.l.b16 %v4260
    %v4277 = vunpack.c.l.b16 %v4261
    %v4278 = vunpack.c.l.b16 %v4262
    %v4279 = vpack.c.b16 %v4272, %v4271
    %v4280 = vpack.c.b16 %v4274, %v4273
    %v4281 = vpack.c.b16 %v4276, %v4275
    %v4282 = vpack.c.b16 %v4278, %v4277
    %v4287 = vsel %vm111, %v4250, 0
    %v4289 = vsel %vm111, %v4253, 0
    %4291 = vmatprep.subr.bf16.mxu0 0
    %4292 = vmatpush1.bf16.msra.mxu0 %v4279
    %4293 = vmatprep.subr.bf16.mxu0 0
    %4294 = vmatpush1.bf16.msra.mxu0 %v4280
    %4295 = vmatprep.subr.bf16.mxu0 0
    %4296 = vmatpush1.bf16.msra.mxu0 %v4281
    %4297 = vmatprep.subr.bf16.mxu0 0
    %4298 = vmatpush1.bf16.msra.mxu0 %v4282
    %4299 = vmatprep.subr.bf16.mxu0 0
    %4300 = vmatpush1.bf16.msra.mxu0 0
    %4301 = vmatprep.subr.bf16.mxu0 0
    %4302 = vmatpush1.bf16.msra.mxu0 0
    %4303 = vmatprep.subr.bf16.mxu0 0
    %4304 = vmatpush1.bf16.msra.mxu0 0
    %4305 = vmatprep.subr.bf16.mxu0 0
    %4306 = vmatpush1.bf16.msra.mxu0 0
    %4307 = vmatprep.subr.bf16.mxu0 0
    %4308 = vmatpush1.bf16.msra.mxu0 0
    %4309 = vmatprep.subr.bf16.mxu0 0
    %4310 = vmatpush1.bf16.msra.mxu0 0
    %4311 = vmatprep.subr.bf16.mxu0 0
    %4312 = vmatpush1.bf16.msra.mxu0 0
    %4313 = vmatprep.subr.bf16.mxu0 0
    %4314 = vmatpush1.bf16.msra.mxu0 0
    %4315 = vmatprep.subr.bf16.mxu0 0
    %4316 = vmatpush1.bf16.msra.mxu0 0
    %4317 = vmatprep.subr.bf16.mxu0 0
    %4318 = vmatpush1.bf16.msra.mxu0 0
    %4319 = vmatprep.subr.bf16.mxu0 0
    %4320 = vmatpush1.bf16.msra.mxu0 0
    %4321 = vmatprep.subr.bf16.mxu0 0
    %4322 = vmatpush1.bf16.msra.mxu0 0
    %4323 = vmatprep.mubr.bf16.mxu0 0
    %4324 = vmatmul.mubr.bf16.gmra.mrb[0].mxu0 %v4287
    %v4325 = vpop.f32.mrb[0].mxu0
    %v4326 = vadd.f32 0.0, %v4325
    %v4327 = vpop.f32.mrb[0].mxu0
    %v4328 = vpop.f32.mrb[0].mxu0
    %v4329 = vadd.f32 0.0, %v4328
    %v4330 = vpop.f32.mrb[0].mxu0
    %4331 = vmatprep.mubr.bf16.mxu0 0
    %4332 = vmatmul.mubr.bf16.gmra.mrb[0].mxu0 %v4289
    %v4333 = vpop.f32.mrb[0].mxu0
    %v4334 = vadd.f32 0.0, %v4333
    %v4335 = vpop.f32.mrb[0].mxu0
    %v4336 = vpop.f32.mrb[0].mxu0
    %v4337 = vadd.f32 0.0, %v4336
    %v4338 = vpop.f32.mrb[0].mxu0
    %4339 = vdwg.mxu0
    %v4340 = vadd.f32 %v4232, %v4326
    %v4341 = vadd.f32 %v4235, %v4329
    %v4342 = vadd.f32 %v4240, %v4334
    %v4343 = vadd.f32 %v4243, %v4337
    %v4344 = vrot.slane %v4038, 6
    %v4345 = vsel %vm4246, %v4344, %v4247
    %v4346 = vrot.slane %v4040, 2
    %v4348 = vrot.slane %v4041, 4
    %v4351 = vsel %vm4052, %v4345, %v4039
    %v4354 = vsel %vm4052, %v4346, %v4348
    %s4355 = scalar_lea.vmem %s5, 96
    %v4356 = vld [vmem:[%s4355] sm:$0xf]
    %v4357 = vld [vmem:[%s4355 + $0x4] sm:$0xf]
    %v4358 = vld [vmem:[%s4355 + $0x8] sm:$0xf]
    %v4359 = vld [vmem:[%s4355 + $0xc] sm:$0xf]
    %v4360 = vld [vmem:[%s4355 + $0x10] sm:$0xf]
    %v4361 = vld [vmem:[%s4355 + $0x14] sm:$0xf]
    %v4362 = vld [vmem:[%s4355 + $0x18] sm:$0xf]
    %v4363 = vld [vmem:[%s4355 + $0x1c] sm:$0xf]
    %v4372 = vunpack.c.l.b16 %v4356
    %v4373 = vunpack.c.l.b16 %v4357
    %v4374 = vunpack.c.l.b16 %v4358
    %v4375 = vunpack.c.l.b16 %v4359
    %v4376 = vunpack.c.l.b16 %v4360
    %v4377 = vunpack.c.l.b16 %v4361
    %v4378 = vunpack.c.l.b16 %v4362
    %v4379 = vunpack.c.l.b16 %v4363
    %v4380 = vpack.c.b16 %v4373, %v4372
    %v4381 = vpack.c.b16 %v4375, %v4374
    %v4382 = vpack.c.b16 %v4377, %v4376
    %v4383 = vpack.c.b16 %v4379, %v4378
    %v4388 = vsel %vm111, %v4351, 0
    %v4390 = vsel %vm111, %v4354, 0
    %4392 = vmatprep.subr.bf16.mxu0 0
    %4393 = vmatpush1.bf16.msra.mxu0 %v4380
    %4394 = vmatprep.subr.bf16.mxu0 0
    %4395 = vmatpush1.bf16.msra.mxu0 %v4381
    %4396 = vmatprep.subr.bf16.mxu0 0
    %4397 = vmatpush1.bf16.msra.mxu0 %v4382
    %4398 = vmatprep.subr.bf16.mxu0 0
    %4399 = vmatpush1.bf16.msra.mxu0 %v4383
    %4400 = vmatprep.subr.bf16.mxu0 0
    %4401 = vmatpush1.bf16.msra.mxu0 0
    %4402 = vmatprep.subr.bf16.mxu0 0
    %4403 = vmatpush1.bf16.msra.mxu0 0
    %4404 = vmatprep.subr.bf16.mxu0 0
    %4405 = vmatpush1.bf16.msra.mxu0 0
    %4406 = vmatprep.subr.bf16.mxu0 0
    %4407 = vmatpush1.bf16.msra.mxu0 0
    %4408 = vmatprep.subr.bf16.mxu0 0
    %4409 = vmatpush1.bf16.msra.mxu0 0
    %4410 = vmatprep.subr.bf16.mxu0 0
    %4411 = vmatpush1.bf16.msra.mxu0 0
    %4412 = vmatprep.subr.bf16.mxu0 0
    %4413 = vmatpush1.bf16.msra.mxu0 0
    %4414 = vmatprep.subr.bf16.mxu0 0
    %4415 = vmatpush1.bf16.msra.mxu0 0
    %4416 = vmatprep.subr.bf16.mxu0 0
    %4417 = vmatpush1.bf16.msra.mxu0 0
    %4418 = vmatprep.subr.bf16.mxu0 0
    %4419 = vmatpush1.bf16.msra.mxu0 0
    %4420 = vmatprep.subr.bf16.mxu0 0
    %4421 = vmatpush1.bf16.msra.mxu0 0
    %4422 = vmatprep.subr.bf16.mxu0 0
    %4423 = vmatpush1.bf16.msra.mxu0 0
    %4424 = vmatprep.mubr.bf16.mxu0 0
    %4425 = vmatmul.mubr.bf16.gmra.mrb[0].mxu0 %v4388
    %v4426 = vpop.f32.mrb[0].mxu0
    %v4427 = vadd.f32 0.0, %v4426
    %v4428 = vpop.f32.mrb[0].mxu0
    %v4429 = vpop.f32.mrb[0].mxu0
    %v4430 = vadd.f32 0.0, %v4429
    %v4431 = vpop.f32.mrb[0].mxu0
    %4432 = vmatprep.mubr.bf16.mxu0 0
    %4433 = vmatmul.mubr.bf16.gmra.mrb[0].mxu0 %v4390
    %v4434 = vpop.f32.mrb[0].mxu0
    %v4435 = vadd.f32 0.0, %v4434
    %v4436 = vpop.f32.mrb[0].mxu0
    %v4437 = vpop.f32.mrb[0].mxu0
    %v4438 = vadd.f32 0.0, %v4437
    %v4439 = vpop.f32.mrb[0].mxu0
    %4440 = vdwg.mxu0
    %v4441 = vadd.f32 %v4340, %v4427
    %v4442 = vadd.f32 %v4341, %v4430
    %v4443 = vadd.f32 %v4342, %v4435
    %v4444 = vadd.f32 %v4343, %v4438
    %vm4445 = vcmask 1040384
    %v4446 = vrot.slane %v4038, 7
    %v4447 = vrot.slane %v4039, 7
    %v4448 = vsel %vm4445, %v4446, %v4447
    %vm4449 = vcmask 1046528
    %v4450 = vrot.slane %v4039, 1
    %v4451 = vrot.slane %v4040, 1
    %v4452 = vsel %vm4449, %v4450, %v4451
    %v4453 = vrot.slane %v4040, 3
    %v4454 = vrot.slane %v4041, 5
    %v4457 = vsel %vm4052, %v4448, %v4452
    %v4460 = vsel %vm4052, %v4453, %v4454
    %s4461 = scalar_lea.vmem %s5, 128
    %v4462 = vld [vmem:[%s4461] sm:$0xf]
    %v4463 = vld [vmem:[%s4461 + $0x4] sm:$0xf]
    %v4464 = vld [vmem:[%s4461 + $0x8] sm:$0xf]
    %v4465 = vld [vmem:[%s4461 + $0xc] sm:$0xf]
    %v4466 = vld [vmem:[%s4461 + $0x10] sm:$0xf]
    %v4467 = vld [vmem:[%s4461 + $0x14] sm:$0xf]
    %v4468 = vld [vmem:[%s4461 + $0x18] sm:$0xf]
    %v4469 = vld [vmem:[%s4461 + $0x1c] sm:$0xf]
    %v4478 = vunpack.c.l.b16 %v4462
    %v4479 = vunpack.c.l.b16 %v4463
    %v4480 = vunpack.c.l.b16 %v4464
    %v4481 = vunpack.c.l.b16 %v4465
    %v4482 = vunpack.c.l.b16 %v4466
    %v4483 = vunpack.c.l.b16 %v4467
    %v4484 = vunpack.c.l.b16 %v4468
    %v4485 = vunpack.c.l.b16 %v4469
    %v4486 = vpack.c.b16 %v4479, %v4478
    %v4487 = vpack.c.b16 %v4481, %v4480
    %v4488 = vpack.c.b16 %v4483, %v4482
    %v4489 = vpack.c.b16 %v4485, %v4484
    %v4494 = vsel %vm111, %v4457, 0
    %v4496 = vsel %vm111, %v4460, 0
    %4498 = vmatprep.subr.bf16.mxu0 0
    %4499 = vmatpush1.bf16.msra.mxu0 %v4486
    %4500 = vmatprep.subr.bf16.mxu0 0
    %4501 = vmatpush1.bf16.msra.mxu0 %v4487
    %4502 = vmatprep.subr.bf16.mxu0 0
    %4503 = vmatpush1.bf16.msra.mxu0 %v4488
    %4504 = vmatprep.subr.bf16.mxu0 0
    %4505 = vmatpush1.bf16.msra.mxu0 %v4489
    %4506 = vmatprep.subr.bf16.mxu0 0
    %4507 = vmatpush1.bf16.msra.mxu0 0
    %4508 = vmatprep.subr.bf16.mxu0 0
    %4509 = vmatpush1.bf16.msra.mxu0 0
    %4510 = vmatprep.subr.bf16.mxu0 0
    %4511 = vmatpush1.bf16.msra.mxu0 0
    %4512 = vmatprep.subr.bf16.mxu0 0
    %4513 = vmatpush1.bf16.msra.mxu0 0
    %4514 = vmatprep.subr.bf16.mxu0 0
    %4515 = vmatpush1.bf16.msra.mxu0 0
    %4516 = vmatprep.subr.bf16.mxu0 0
    %4517 = vmatpush1.bf16.msra.mxu0 0
    %4518 = vmatprep.subr.bf16.mxu0 0
    %4519 = vmatpush1.bf16.msra.mxu0 0
    %4520 = vmatprep.subr.bf16.mxu0 0
    %4521 = vmatpush1.bf16.msra.mxu0 0
    %4522 = vmatprep.subr.bf16.mxu0 0
    %4523 = vmatpush1.bf16.msra.mxu0 0
    %4524 = vmatprep.subr.bf16.mxu0 0
    %4525 = vmatpush1.bf16.msra.mxu0 0
    %4526 = vmatprep.subr.bf16.mxu0 0
    %4527 = vmatpush1.bf16.msra.mxu0 0
    %4528 = vmatprep.subr.bf16.mxu0 0
    %4529 = vmatpush1.bf16.msra.mxu0 0
    %4530 = vmatprep.mubr.bf16.mxu0 0
    %4531 = vmatmul.mubr.bf16.gmra.mrb[0].mxu0 %v4494
    %v4532 = vpop.f32.mrb[0].mxu0
    %v4533 = vadd.f32 0.0, %v4532
    %v4534 = vpop.f32.mrb[0].mxu0
    %v4535 = vpop.f32.mrb[0].mxu0
    %v4536 = vadd.f32 0.0, %v4535
    %v4537 = vpop.f32.mrb[0].mxu0
    %4538 = vmatprep.mubr.bf16.mxu0 0
    %4539 = vmatmul.mubr.bf16.gmra.mrb[0].mxu0 %v4496
    %v4540 = vpop.f32.mrb[0].mxu0
    %v4541 = vadd.f32 0.0, %v4540
    %v4542 = vpop.f32.mrb[0].mxu0
    %v4543 = vpop.f32.mrb[0].mxu0
    %v4544 = vadd.f32 0.0, %v4543
    %v4545 = vpop.f32.mrb[0].mxu0
    %4546 = vdwg.mxu0
    %v4547 = vadd.f32 %v4441, %v4533
    %v4548 = vadd.f32 %v4442, %v4536
    %v4549 = vadd.f32 %v4443, %v4541
    %v4550 = vadd.f32 %v4444, %v4544
    %v4551 = vsel %vm4045, %v4047, %v4346
    %v4552 = vrot.slane %v4040, 4
    %v4553 = vrot.slane %v4041, 6
    %v4555 = vsel %vm4052, %v4039, %v4551
    %v4558 = vsel %vm4052, %v4552, %v4553
    %s4559 = scalar_lea.vmem %s5, 160
    %v4560 = vld [vmem:[%s4559] sm:$0xf]
    %v4561 = vld [vmem:[%s4559 + $0x4] sm:$0xf]
    %v4562 = vld [vmem:[%s4559 + $0x8] sm:$0xf]
    %v4563 = vld [vmem:[%s4559 + $0xc] sm:$0xf]
    %v4564 = vld [vmem:[%s4559 + $0x10] sm:$0xf]
    %v4565 = vld [vmem:[%s4559 + $0x14] sm:$0xf]
    %v4566 = vld [vmem:[%s4559 + $0x18] sm:$0xf]
    %v4567 = vld [vmem:[%s4559 + $0x1c] sm:$0xf]
    %v4576 = vunpack.c.l.b16 %v4560
    %v4577 = vunpack.c.l.b16 %v4561
    %v4578 = vunpack.c.l.b16 %v4562
    %v4579 = vunpack.c.l.b16 %v4563
    %v4580 = vunpack.c.l.b16 %v4564
    %v4581 = vunpack.c.l.b16 %v4565
    %v4582 = vunpack.c.l.b16 %v4566
    %v4583 = vunpack.c.l.b16 %v4567
    %v4584 = vpack.c.b16 %v4577, %v4576
    %v4585 = vpack.c.b16 %v4579, %v4578
    %v4586 = vpack.c.b16 %v4581, %v4580
    %v4587 = vpack.c.b16 %v4583, %v4582
    %v4592 = vsel %vm111, %v4555, 0
    %v4594 = vsel %vm111, %v4558, 0
    %4596 = vmatprep.subr.bf16.mxu0 0
    %4597 = vmatpush1.bf16.msra.mxu0 %v4584
    %4598 = vmatprep.subr.bf16.mxu0 0
    %4599 = vmatpush1.bf16.msra.mxu0 %v4585
    %4600 = vmatprep.subr.bf16.mxu0 0
    %4601 = vmatpush1.bf16.msra.mxu0 %v4586
    %4602 = vmatprep.subr.bf16.mxu0 0
    %4603 = vmatpush1.bf16.msra.mxu0 %v4587
    %4604 = vmatprep.subr.bf16.mxu0 0
    %4605 = vmatpush1.bf16.msra.mxu0 0
    %4606 = vmatprep.subr.bf16.mxu0 0
    %4607 = vmatpush1.bf16.msra.mxu0 0
    %4608 = vmatprep.subr.bf16.mxu0 0
    %4609 = vmatpush1.bf16.msra.mxu0 0
    %4610 = vmatprep.subr.bf16.mxu0 0
    %4611 = vmatpush1.bf16.msra.mxu0 0
    %4612 = vmatprep.subr.bf16.mxu0 0
    %4613 = vmatpush1.bf16.msra.mxu0 0
    %4614 = vmatprep.subr.bf16.mxu0 0
    %4615 = vmatpush1.bf16.msra.mxu0 0
    %4616 = vmatprep.subr.bf16.mxu0 0
    %4617 = vmatpush1.bf16.msra.mxu0 0
    %4618 = vmatprep.subr.bf16.mxu0 0
    %4619 = vmatpush1.bf16.msra.mxu0 0
    %4620 = vmatprep.subr.bf16.mxu0 0
    %4621 = vmatpush1.bf16.msra.mxu0 0
    %4622 = vmatprep.subr.bf16.mxu0 0
    %4623 = vmatpush1.bf16.msra.mxu0 0
    %4624 = vmatprep.subr.bf16.mxu0 0
    %4625 = vmatpush1.bf16.msra.mxu0 0
    %4626 = vmatprep.subr.bf16.mxu0 0
    %4627 = vmatpush1.bf16.msra.mxu0 0
    %4628 = vmatprep.mubr.bf16.mxu0 0
    %4629 = vmatmul.mubr.bf16.gmra.mrb[0].mxu0 %v4592
    %v4630 = vpop.f32.mrb[0].mxu0
    %v4631 = vadd.f32 0.0, %v4630
    %v4632 = vpop.f32.mrb[0].mxu0
    %v4633 = vpop.f32.mrb[0].mxu0
    %v4634 = vadd.f32 0.0, %v4633
    %v4635 = vpop.f32.mrb[0].mxu0
    %4636 = vmatprep.mubr.bf16.mxu0 0
    %4637 = vmatmul.mubr.bf16.gmra.mrb[0].mxu0 %v4594
    %v4638 = vpop.f32.mrb[0].mxu0
    %v4639 = vadd.f32 0.0, %v4638
    %v4640 = vpop.f32.mrb[0].mxu0
    %v4641 = vpop.f32.mrb[0].mxu0
    %v4642 = vadd.f32 0.0, %v4641
    %v4643 = vpop.f32.mrb[0].mxu0
    %4644 = vdwg.mxu0
    %v4645 = vadd.f32 %v4547, %v4631
    %v4646 = vadd.f32 %v4548, %v4634
    %v4647 = vadd.f32 %v4549, %v4639
    %v4648 = vadd.f32 %v4550, %v4642
    %v4650 = vrot.slane %v4041, 2
    %v4651 = vrot.slane %v4042, 2
    %v4652 = vsel %vm4045, %v4650, %v4651
    %v4655 = vsel %vm4052, %v4041, %v4652
    %s4656 = scalar_lea.vmem %s5, 192
    %v4657 = vld [vmem:[%s4656] sm:$0xf]
    %v4658 = vld [vmem:[%s4656 + $0x4] sm:$0xf]
    %v4659 = vld [vmem:[%s4656 + $0x8] sm:$0xf]
    %v4660 = vld [vmem:[%s4656 + $0xc] sm:$0xf]
    %v4661 = vld [vmem:[%s4656 + $0x10] sm:$0xf]
    %v4662 = vld [vmem:[%s4656 + $0x14] sm:$0xf]
    %v4663 = vld [vmem:[%s4656 + $0x18] sm:$0xf]
    %v4664 = vld [vmem:[%s4656 + $0x1c] sm:$0xf]
    %v4673 = vunpack.c.l.b16 %v4657
    %v4674 = vunpack.c.l.b16 %v4658
    %v4675 = vunpack.c.l.b16 %v4659
    %v4676 = vunpack.c.l.b16 %v4660
    %v4677 = vunpack.c.l.b16 %v4661
    %v4678 = vunpack.c.l.b16 %v4662
    %v4679 = vunpack.c.l.b16 %v4663
    %v4680 = vunpack.c.l.b16 %v4664
    %v4681 = vpack.c.b16 %v4674, %v4673
    %v4682 = vpack.c.b16 %v4676, %v4675
    %v4683 = vpack.c.b16 %v4678, %v4677
    %v4684 = vpack.c.b16 %v4680, %v4679
    %v4689 = vsel %vm111, %v4655, 0
    %4691 = vmatprep.subr.bf16.mxu0 0
    %4692 = vmatpush1.bf16.msra.mxu0 %v4681
    %4693 = vmatprep.subr.bf16.mxu0 0
    %4694 = vmatpush1.bf16.msra.mxu0 %v4682
    %4695 = vmatprep.subr.bf16.mxu0 0
    %4696 = vmatpush1.bf16.msra.mxu0 %v4683
    %4697 = vmatprep.subr.bf16.mxu0 0
    %4698 = vmatpush1.bf16.msra.mxu0 %v4684
    %4699 = vmatprep.subr.bf16.mxu0 0
    %4700 = vmatpush1.bf16.msra.mxu0 0
    %4701 = vmatprep.subr.bf16.mxu0 0
    %4702 = vmatpush1.bf16.msra.mxu0 0
    %4703 = vmatprep.subr.bf16.mxu0 0
    %4704 = vmatpush1.bf16.msra.mxu0 0
    %4705 = vmatprep.subr.bf16.mxu0 0
    %4706 = vmatpush1.bf16.msra.mxu0 0
    %4707 = vmatprep.subr.bf16.mxu0 0
    %4708 = vmatpush1.bf16.msra.mxu0 0
    %4709 = vmatprep.subr.bf16.mxu0 0
    %4710 = vmatpush1.bf16.msra.mxu0 0
    %4711 = vmatprep.subr.bf16.mxu0 0
    %4712 = vmatpush1.bf16.msra.mxu0 0
    %4713 = vmatprep.subr.bf16.mxu0 0
    %4714 = vmatpush1.bf16.msra.mxu0 0
    %4715 = vmatprep.subr.bf16.mxu0 0
    %4716 = vmatpush1.bf16.msra.mxu0 0
    %4717 = vmatprep.subr.bf16.mxu0 0
    %4718 = vmatpush1.bf16.msra.mxu0 0
    %4719 = vmatprep.subr.bf16.mxu0 0
    %4720 = vmatpush1.bf16.msra.mxu0 0
    %4721 = vmatprep.subr.bf16.mxu0 0
    %4722 = vmatpush1.bf16.msra.mxu0 0
    %4723 = vmatprep.mubr.bf16.mxu0 0
    %4724 = vmatmul.mubr.bf16.gmra.mrb[0].mxu0 %v4195
    %v4725 = vpop.f32.mrb[0].mxu0
    %v4726 = vadd.f32 0.0, %v4725
    %v4727 = vpop.f32.mrb[0].mxu0
    %v4728 = vpop.f32.mrb[0].mxu0
    %v4729 = vadd.f32 0.0, %v4728
    %v4730 = vpop.f32.mrb[0].mxu0
    %4731 = vmatprep.mubr.bf16.mxu0 0
    %4732 = vmatmul.mubr.bf16.gmra.mrb[0].mxu0 %v4689
    %v4733 = vpop.f32.mrb[0].mxu0
    %v4734 = vadd.f32 0.0, %v4733
    %v4735 = vpop.f32.mrb[0].mxu0
    %v4736 = vpop.f32.mrb[0].mxu0
    %v4737 = vadd.f32 0.0, %v4736
    %v4738 = vpop.f32.mrb[0].mxu0
    %4739 = vdwg.mxu0
    %v4740 = vadd.f32 %v4645, %v4726
    %v4741 = vadd.f32 %v4646, %v4729
    %v4742 = vadd.f32 %v4647, %v4734
    %v4743 = vadd.f32 %v4648, %v4737
    %v4744 = vrot.slane %v4041, 1
    %v4745 = vrot.slane %v4041, 3
    %v4746 = vrot.slane %v4042, 3
    %v4747 = vsel %vm4068, %v4745, %v4746
    %v4750 = vsel %vm4052, %v4744, %v4747
    %s4751 = scalar_lea.vmem %s5, 224
    %v4752 = vld [vmem:[%s4751] sm:$0xf]
    %v4753 = vld [vmem:[%s4751 + $0x4] sm:$0xf]
    %v4754 = vld [vmem:[%s4751 + $0x8] sm:$0xf]
    %v4755 = vld [vmem:[%s4751 + $0xc] sm:$0xf]
    %v4756 = vld [vmem:[%s4751 + $0x10] sm:$0xf]
    %v4757 = vld [vmem:[%s4751 + $0x14] sm:$0xf]
    %v4758 = vld [vmem:[%s4751 + $0x18] sm:$0xf]
    %v4759 = vld [vmem:[%s4751 + $0x1c] sm:$0xf]
    %v4768 = vunpack.c.l.b16 %v4752
    %v4769 = vunpack.c.l.b16 %v4753
    %v4770 = vunpack.c.l.b16 %v4754
    %v4771 = vunpack.c.l.b16 %v4755
    %v4772 = vunpack.c.l.b16 %v4756
    %v4773 = vunpack.c.l.b16 %v4757
    %v4774 = vunpack.c.l.b16 %v4758
    %v4775 = vunpack.c.l.b16 %v4759
    %v4776 = vpack.c.b16 %v4769, %v4768
    %v4777 = vpack.c.b16 %v4771, %v4770
    %v4778 = vpack.c.b16 %v4773, %v4772
    %v4779 = vpack.c.b16 %v4775, %v4774
    %v4784 = vsel %vm111, %v4750, 0
    %4786 = vmatprep.subr.bf16.mxu0 0
    %4787 = vmatpush1.bf16.msra.mxu0 %v4776
    %4788 = vmatprep.subr.bf16.mxu0 0
    %4789 = vmatpush1.bf16.msra.mxu0 %v4777
    %4790 = vmatprep.subr.bf16.mxu0 0
    %4791 = vmatpush1.bf16.msra.mxu0 %v4778
    %4792 = vmatprep.subr.bf16.mxu0 0
    %4793 = vmatpush1.bf16.msra.mxu0 %v4779
    %4794 = vmatprep.subr.bf16.mxu0 0
    %4795 = vmatpush1.bf16.msra.mxu0 0
    %4796 = vmatprep.subr.bf16.mxu0 0
    %4797 = vmatpush1.bf16.msra.mxu0 0
    %4798 = vmatprep.subr.bf16.mxu0 0
    %4799 = vmatpush1.bf16.msra.mxu0 0
    %4800 = vmatprep.subr.bf16.mxu0 0
    %4801 = vmatpush1.bf16.msra.mxu0 0
    %4802 = vmatprep.subr.bf16.mxu0 0
    %4803 = vmatpush1.bf16.msra.mxu0 0
    %4804 = vmatprep.subr.bf16.mxu0 0
    %4805 = vmatpush1.bf16.msra.mxu0 0
    %4806 = vmatprep.subr.bf16.mxu0 0
    %4807 = vmatpush1.bf16.msra.mxu0 0
    %4808 = vmatprep.subr.bf16.mxu0 0
    %4809 = vmatpush1.bf16.msra.mxu0 0
    %4810 = vmatprep.subr.bf16.mxu0 0
    %4811 = vmatpush1.bf16.msra.mxu0 0
    %4812 = vmatprep.subr.bf16.mxu0 0
    %4813 = vmatpush1.bf16.msra.mxu0 0
    %4814 = vmatprep.subr.bf16.mxu0 0
    %4815 = vmatpush1.bf16.msra.mxu0 0
    %4816 = vmatprep.subr.bf16.mxu0 0
    %4817 = vmatpush1.bf16.msra.mxu0 0
    %4818 = vmatprep.mubr.bf16.mxu0 0
    %4819 = vmatmul.mubr.bf16.gmra.mrb[0].mxu0 %v4118
    %v4820 = vpop.f32.mrb[0].mxu0
    %v4821 = vadd.f32 0.0, %v4820
    %v4822 = vpop.f32.mrb[0].mxu0
    %v4823 = vpop.f32.mrb[0].mxu0
    %v4824 = vadd.f32 0.0, %v4823
    %v4825 = vpop.f32.mrb[0].mxu0
    %4826 = vmatprep.mubr.bf16.mxu0 0
    %4827 = vmatmul.mubr.bf16.gmra.mrb[0].mxu0 %v4784
    %v4828 = vpop.f32.mrb[0].mxu0
    %v4829 = vadd.f32 0.0, %v4828
    %v4830 = vpop.f32.mrb[0].mxu0
    %v4831 = vpop.f32.mrb[0].mxu0
    %v4832 = vadd.f32 0.0, %v4831
    %v4833 = vpop.f32.mrb[0].mxu0
    %4834 = vdwg.mxu0
    %v4835 = vadd.f32 %v4740, %v4821
    %v4836 = vadd.f32 %v4741, %v4824
    %v4837 = vadd.f32 %v4742, %v4829
    %v4838 = vadd.f32 %v4743, %v4832
    %v4839 = vrot.slane %v4042, 4
    %v4842 = vsel %vm4052, %v4650, %v4839
    %s4843 = scalar_lea.vmem %s5, 256
    %v4844 = vld [vmem:[%s4843] sm:$0xf]
    %v4845 = vld [vmem:[%s4843 + $0x4] sm:$0xf]
    %v4846 = vld [vmem:[%s4843 + $0x8] sm:$0xf]
    %v4847 = vld [vmem:[%s4843 + $0xc] sm:$0xf]
    %v4848 = vld [vmem:[%s4843 + $0x10] sm:$0xf]
    %v4849 = vld [vmem:[%s4843 + $0x14] sm:$0xf]
    %v4850 = vld [vmem:[%s4843 + $0x18] sm:$0xf]
    %v4851 = vld [vmem:[%s4843 + $0x1c] sm:$0xf]
    %v4860 = vunpack.c.l.b16 %v4844
    %v4861 = vunpack.c.l.b16 %v4845
    %v4862 = vunpack.c.l.b16 %v4846
    %v4863 = vunpack.c.l.b16 %v4847
    %v4864 = vunpack.c.l.b16 %v4848
    %v4865 = vunpack.c.l.b16 %v4849
    %v4866 = vunpack.c.l.b16 %v4850
    %v4867 = vunpack.c.l.b16 %v4851
    %v4868 = vpack.c.b16 %v4861, %v4860
    %v4869 = vpack.c.b16 %v4863, %v4862
    %v4870 = vpack.c.b16 %v4865, %v4864
    %v4871 = vpack.c.b16 %v4867, %v4866
    %v4876 = vsel %vm111, %v4842, 0
    %4878 = vmatprep.subr.bf16.mxu0 0
    %4879 = vmatpush1.bf16.msra.mxu0 %v4868
    %4880 = vmatprep.subr.bf16.mxu0 0
    %4881 = vmatpush1.bf16.msra.mxu0 %v4869
    %4882 = vmatprep.subr.bf16.mxu0 0
    %4883 = vmatpush1.bf16.msra.mxu0 %v4870
    %4884 = vmatprep.subr.bf16.mxu0 0
    %4885 = vmatpush1.bf16.msra.mxu0 %v4871
    %4886 = vmatprep.subr.bf16.mxu0 0
    %4887 = vmatpush1.bf16.msra.mxu0 0
    %4888 = vmatprep.subr.bf16.mxu0 0
    %4889 = vmatpush1.bf16.msra.mxu0 0
    %4890 = vmatprep.subr.bf16.mxu0 0
    %4891 = vmatpush1.bf16.msra.mxu0 0
    %4892 = vmatprep.subr.bf16.mxu0 0
    %4893 = vmatpush1.bf16.msra.mxu0 0
    %4894 = vmatprep.subr.bf16.mxu0 0
    %4895 = vmatpush1.bf16.msra.mxu0 0
    %4896 = vmatprep.subr.bf16.mxu0 0
    %4897 = vmatpush1.bf16.msra.mxu0 0
    %4898 = vmatprep.subr.bf16.mxu0 0
    %4899 = vmatpush1.bf16.msra.mxu0 0
    %4900 = vmatprep.subr.bf16.mxu0 0
    %4901 = vmatpush1.bf16.msra.mxu0 0
    %4902 = vmatprep.subr.bf16.mxu0 0
    %4903 = vmatpush1.bf16.msra.mxu0 0
    %4904 = vmatprep.subr.bf16.mxu0 0
    %4905 = vmatpush1.bf16.msra.mxu0 0
    %4906 = vmatprep.subr.bf16.mxu0 0
    %4907 = vmatpush1.bf16.msra.mxu0 0
    %4908 = vmatprep.subr.bf16.mxu0 0
    %4909 = vmatpush1.bf16.msra.mxu0 0
    %4910 = vmatprep.mubr.bf16.mxu0 0
    %4911 = vmatmul.mubr.bf16.gmra.mrb[0].mxu0 %v4289
    %v4912 = vpop.f32.mrb[0].mxu0
    %v4913 = vadd.f32 0.0, %v4912
    %v4914 = vpop.f32.mrb[0].mxu0
    %v4915 = vpop.f32.mrb[0].mxu0
    %v4916 = vadd.f32 0.0, %v4915
    %v4917 = vpop.f32.mrb[0].mxu0
    %4918 = vmatprep.mubr.bf16.mxu0 0
    %4919 = vmatmul.mubr.bf16.gmra.mrb[0].mxu0 %v4876
    %v4920 = vpop.f32.mrb[0].mxu0
    %v4921 = vadd.f32 0.0, %v4920
    %v4922 = vpop.f32.mrb[0].mxu0
    %v4923 = vpop.f32.mrb[0].mxu0
    %v4924 = vadd.f32 0.0, %v4923
    %v4925 = vpop.f32.mrb[0].mxu0
    %4926 = vdwg.mxu0
    %v4927 = vadd.f32 %v4835, %v4913
    %v4928 = vadd.f32 %v4836, %v4916
    %v4929 = vadd.f32 %v4837, %v4921
    %v4930 = vadd.f32 %v4838, %v4924
    %v4931 = vld [vmem:[%s6] sm:$0x1]
    %v4933 = vlaneseq
    %v4934 = vshrl.u32 %v4933, 7
    %v4935 = vsub.s32 0, %v4934
    %v4936 = vrot.slane %v4931, %v4935
    %v4938 = vadd.f32 %v4927, %v4936
    %v4939 = vadd.f32 %v4928, %v4936
    %v4940 = vadd.f32 %v4929, %v4936
    %v4941 = vadd.f32 %v4930, %v4936
    %v4942 = vmax.f32 %v4938, 0.0
    %v4943 = vmax.f32 %v4939, 0.0
    %v4944 = vmax.f32 %v4940, 0.0
    %v4945 = vmax.f32 %v4941, 0.0
    %v4946 = vpack.c.bf16 %v4943, %v4942
    %v4947 = vpack.c.bf16 %v4945, %v4944
    %v4948 = vld [vmem:[%s7] sm:$0xff]
    %v4949 = vld [vmem:[%s7 + $0x8] sm:$0xff]
    %v4950 = vld [vmem:[%s7 + $0x10] sm:$0xff]
    %v4951 = vld [vmem:[%s7 + $0x18] sm:$0xff]
    %v4952 = vld [vmem:[%s7 + $0x20] sm:$0xff]
    %v4953 = vld [vmem:[%s7 + $0x28] sm:$0xff]
    %v4954 = vld [vmem:[%s7 + $0x30] sm:$0xff]
    %v4955 = vld [vmem:[%s7 + $0x38] sm:$0xff]
    %v4956 = vld [vmem:[%s7 + $0x40] sm:$0xff]
    %v4957 = vld [vmem:[%s7 + $0x48] sm:$0xff]
    %v4958 = vld [vmem:[%s7 + $0x50] sm:$0xff]
    %v4959 = vld [vmem:[%s7 + $0x58] sm:$0xff]
    %v4960 = vld [vmem:[%s7 + $0x60] sm:$0xff]
    %v4961 = vld [vmem:[%s7 + $0x68] sm:$0xff]
    %v4962 = vld [vmem:[%s7 + $0x70] sm:$0xff]
    %v4963 = vld [vmem:[%s7 + $0x78] sm:$0xff]
    %s4964 = scalar_lea.vmem %s7, 128
    %v4965 = vld [vmem:[%s4964] sm:$0xff]
    %v4966 = vld [vmem:[%s4964 + $0x8] sm:$0xff]
    %v4967 = vld [vmem:[%s4964 + $0x10] sm:$0xff]
    %v4968 = vld [vmem:[%s4964 + $0x18] sm:$0xff]
    %v4969 = vld [vmem:[%s4964 + $0x20] sm:$0xff]
    %v4970 = vld [vmem:[%s4964 + $0x28] sm:$0xff]
    %v4971 = vld [vmem:[%s4964 + $0x30] sm:$0xff]
    %v4972 = vld [vmem:[%s4964 + $0x38] sm:$0xff]
    %v4973 = vld [vmem:[%s4964 + $0x40] sm:$0xff]
    %v4974 = vld [vmem:[%s4964 + $0x48] sm:$0xff]
    %v4975 = vld [vmem:[%s4964 + $0x50] sm:$0xff]
    %v4976 = vld [vmem:[%s4964 + $0x58] sm:$0xff]
    %v4977 = vld [vmem:[%s4964 + $0x60] sm:$0xff]
    %v4978 = vld [vmem:[%s4964 + $0x68] sm:$0xff]
    %v4979 = vld [vmem:[%s4964 + $0x70] sm:$0xff]
    %v4980 = vld [vmem:[%s4964 + $0x78] sm:$0xff]
    %v4982 = vrot.slane %v4946, 1
    %v4999 = vunpack.c.l.b16 %v4965
    %v5000 = vunpack.c.h.b16 %v4965
    %v5001 = vunpack.c.l.b16 %v4966
    %v5002 = vunpack.c.h.b16 %v4966
    %v5003 = vunpack.c.l.b16 %v4967
    %v5004 = vunpack.c.h.b16 %v4967
    %v5005 = vunpack.c.l.b16 %v4968
    %v5006 = vunpack.c.h.b16 %v4968
    %v5007 = vunpack.c.l.b16 %v4969
    %v5008 = vunpack.c.h.b16 %v4969
    %v5009 = vunpack.c.l.b16 %v4970
    %v5010 = vunpack.c.h.b16 %v4970
    %v5011 = vunpack.c.l.b16 %v4971
    %v5012 = vunpack.c.h.b16 %v4971
    %v5013 = vunpack.c.l.b16 %v4972
    %v5014 = vunpack.c.h.b16 %v4972
    %v5015 = vunpack.c.l.b16 %v4973
    %v5016 = vunpack.c.h.b16 %v4973
    %v5017 = vunpack.c.l.b16 %v4974
    %v5018 = vunpack.c.h.b16 %v4974
    %v5019 = vunpack.c.l.b16 %v4975
    %v5020 = vunpack.c.h.b16 %v4975
    %v5021 = vunpack.c.l.b16 %v4976
    %v5022 = vunpack.c.h.b16 %v4976
    %v5023 = vunpack.c.l.b16 %v4977
    %v5024 = vunpack.c.h.b16 %v4977
    %v5025 = vunpack.c.l.b16 %v4978
    %v5026 = vunpack.c.h.b16 %v4978
    %v5027 = vunpack.c.l.b16 %v4979
    %v5028 = vunpack.c.h.b16 %v4979
    %v5029 = vunpack.c.l.b16 %v4980
    %v5030 = vunpack.c.h.b16 %v4980
    %v5031 = vpack.c.b16 %v5003, %v4999
    %v5032 = vpack.c.b16 %v5004, %v5000
    %v5033 = vpack.c.b16 %v5005, %v5001
    %v5034 = vpack.c.b16 %v5006, %v5002
    %v5035 = vpack.c.b16 %v5011, %v5007
    %v5036 = vpack.c.b16 %v5012, %v5008
    %v5037 = vpack.c.b16 %v5013, %v5009
    %v5038 = vpack.c.b16 %v5014, %v5010
    %v5039 = vpack.c.b16 %v5019, %v5015
    %v5040 = vpack.c.b16 %v5020, %v5016
    %v5041 = vpack.c.b16 %v5021, %v5017
    %v5042 = vpack.c.b16 %v5022, %v5018
    %v5043 = vpack.c.b16 %v5027, %v5023
    %v5044 = vpack.c.b16 %v5028, %v5024
    %v5045 = vpack.c.b16 %v5029, %v5025
    %v5046 = vpack.c.b16 %v5030, %v5026
    %v5064 = vsel %vm111, %v4982, 0
    %5066 = vmatprep.subr.bf16.mxu0 %v5032
    %5067 = vmatpush1.bf16.msra.mxu0 %v5031
    %5068 = vmatprep.subr.bf16.mxu0 %v5036
    %5069 = vmatpush1.bf16.msra.mxu0 %v5035
    %5070 = vmatprep.subr.bf16.mxu0 %v5040
    %5071 = vmatpush1.bf16.msra.mxu0 %v5039
    %5072 = vmatprep.subr.bf16.mxu0 %v5044
    %5073 = vmatpush1.bf16.msra.mxu0 %v5043
    %5074 = vmatprep.subr.bf16.mxu0 0
    %5075 = vmatpush1.bf16.msra.mxu0 0
    %5076 = vmatprep.subr.bf16.mxu0 0
    %5077 = vmatpush1.bf16.msra.mxu0 0
    %5078 = vmatprep.subr.bf16.mxu0 0
    %5079 = vmatpush1.bf16.msra.mxu0 0
    %5080 = vmatprep.subr.bf16.mxu0 0
    %5081 = vmatpush1.bf16.msra.mxu0 0
    %5082 = vmatprep.subr.bf16.mxu0 0
    %5083 = vmatpush1.bf16.msra.mxu0 0
    %5084 = vmatprep.subr.bf16.mxu0 0
    %5085 = vmatpush1.bf16.msra.mxu0 0
    %5086 = vmatprep.subr.bf16.mxu0 0
    %5087 = vmatpush1.bf16.msra.mxu0 0
    %5088 = vmatprep.subr.bf16.mxu0 0
    %5089 = vmatpush1.bf16.msra.mxu0 0
    %5090 = vmatprep.subr.bf16.mxu0 0
    %5091 = vmatpush1.bf16.msra.mxu0 0
    %5092 = vmatprep.subr.bf16.mxu0 0
    %5093 = vmatpush1.bf16.msra.mxu0 0
    %5094 = vmatprep.subr.bf16.mxu0 0
    %5095 = vmatpush1.bf16.msra.mxu0 0
    %5096 = vmatprep.subr.bf16.mxu0 0
    %5097 = vmatpush1.bf16.msra.mxu0 0
    %5098 = vmatprep.mubr.bf16.mxu0 0
    %5099 = vmatmul.mubr.bf16.gmra.mrb[0].mxu0 %v5064
    %v5100 = vpop.f32.mrb[0].mxu0
    %v5101 = vadd.f32 0.0, %v5100
    %v5102 = vpop.f32.mrb[0].mxu0
    %v5103 = vadd.f32 0.0, %v5102
    %v5104 = vpop.f32.mrb[0].mxu0
    %v5105 = vpop.f32.mrb[0].mxu0
    %5106 = vdwg.mxu0
    %5107 = vmatprep.subr.bf16.mxu0 %v5034
    %5108 = vmatpush1.bf16.msra.mxu0 %v5033
    %5109 = vmatprep.subr.bf16.mxu0 %v5038
    %5110 = vmatpush1.bf16.msra.mxu0 %v5037
    %5111 = vmatprep.subr.bf16.mxu0 %v5042
    %5112 = vmatpush1.bf16.msra.mxu0 %v5041
    %5113 = vmatprep.subr.bf16.mxu0 %v5046
    %5114 = vmatpush1.bf16.msra.mxu0 %v5045
    %5115 = vmatprep.subr.bf16.mxu0 0
    %5116 = vmatpush1.bf16.msra.mxu0 0
    %5117 = vmatprep.subr.bf16.mxu0 0
    %5118 = vmatpush1.bf16.msra.mxu0 0
    %5119 = vmatprep.subr.bf16.mxu0 0
    %5120 = vmatpush1.bf16.msra.mxu0 0
    %5121 = vmatprep.subr.bf16.mxu0 0
    %5122 = vmatpush1.bf16.msra.mxu0 0
    %5123 = vmatprep.subr.bf16.mxu0 0
    %5124 = vmatpush1.bf16.msra.mxu0 0
    %5125 = vmatprep.subr.bf16.mxu0 0
    %5126 = vmatpush1.bf16.msra.mxu0 0
    %5127 = vmatprep.subr.bf16.mxu0 0
    %5128 = vmatpush1.bf16.msra.mxu0 0
    %5129 = vmatprep.subr.bf16.mxu0 0
    %5130 = vmatpush1.bf16.msra.mxu0 0
    %5131 = vmatprep.subr.bf16.mxu0 0
    %5132 = vmatpush1.bf16.msra.mxu0 0
    %5133 = vmatprep.subr.bf16.mxu0 0
    %5134 = vmatpush1.bf16.msra.mxu0 0
    %5135 = vmatprep.subr.bf16.mxu0 0
    %5136 = vmatpush1.bf16.msra.mxu0 0
    %5137 = vmatprep.subr.bf16.mxu0 0
    %5138 = vmatpush1.bf16.msra.mxu0 0
    %5139 = vmatprep.mubr.bf16.mxu0 0
    %5140 = vmatmul.mubr.bf16.gmra.mrb[0].mxu0 %v5064
    %v5141 = vpop.f32.mrb[0].mxu0
    %v5142 = vadd.f32 0.0, %v5141
    %v5143 = vpop.f32.mrb[0].mxu0
    %v5144 = vadd.f32 0.0, %v5143
    %v5145 = vpop.f32.mrb[0].mxu0
    %v5146 = vpop.f32.mrb[0].mxu0
    %5147 = vdwg.mxu0
    %v5164 = vunpack.c.l.b16 %v4948
    %v5165 = vunpack.c.h.b16 %v4948
    %v5166 = vunpack.c.l.b16 %v4949
    %v5167 = vunpack.c.h.b16 %v4949
    %v5168 = vunpack.c.l.b16 %v4950
    %v5169 = vunpack.c.h.b16 %v4950
    %v5170 = vunpack.c.l.b16 %v4951
    %v5171 = vunpack.c.h.b16 %v4951
    %v5172 = vunpack.c.l.b16 %v4952
    %v5173 = vunpack.c.h.b16 %v4952
    %v5174 = vunpack.c.l.b16 %v4953
    %v5175 = vunpack.c.h.b16 %v4953
    %v5176 = vunpack.c.l.b16 %v4954
    %v5177 = vunpack.c.h.b16 %v4954
    %v5178 = vunpack.c.l.b16 %v4955
    %v5179 = vunpack.c.h.b16 %v4955
    %v5180 = vunpack.c.l.b16 %v4956
    %v5181 = vunpack.c.h.b16 %v4956
    %v5182 = vunpack.c.l.b16 %v4957
    %v5183 = vunpack.c.h.b16 %v4957
    %v5184 = vunpack.c.l.b16 %v4958
    %v5185 = vunpack.c.h.b16 %v4958
    %v5186 = vunpack.c.l.b16 %v4959
    %v5187 = vunpack.c.h.b16 %v4959
    %v5188 = vunpack.c.l.b16 %v4960
    %v5189 = vunpack.c.h.b16 %v4960
    %v5190 = vunpack.c.l.b16 %v4961
    %v5191 = vunpack.c.h.b16 %v4961
    %v5192 = vunpack.c.l.b16 %v4962
    %v5193 = vunpack.c.h.b16 %v4962
    %v5194 = vunpack.c.l.b16 %v4963
    %v5195 = vunpack.c.h.b16 %v4963
    %v5196 = vpack.c.b16 %v5168, %v5164
    %v5197 = vpack.c.b16 %v5169, %v5165
    %v5198 = vpack.c.b16 %v5170, %v5166
    %v5199 = vpack.c.b16 %v5171, %v5167
    %v5200 = vpack.c.b16 %v5176, %v5172
    %v5201 = vpack.c.b16 %v5177, %v5173
    %v5202 = vpack.c.b16 %v5178, %v5174
    %v5203 = vpack.c.b16 %v5179, %v5175
    %v5204 = vpack.c.b16 %v5184, %v5180
    %v5205 = vpack.c.b16 %v5185, %v5181
    %v5206 = vpack.c.b16 %v5186, %v5182
    %v5207 = vpack.c.b16 %v5187, %v5183
    %v5208 = vpack.c.b16 %v5192, %v5188
    %v5209 = vpack.c.b16 %v5193, %v5189
    %v5210 = vpack.c.b16 %v5194, %v5190
    %v5211 = vpack.c.b16 %v5195, %v5191
    %v5229 = vsel %vm111, %v4946, 0
    %5231 = vmatprep.subr.bf16.mxu0 %v5197
    %5232 = vmatpush1.bf16.msra.mxu0 %v5196
    %5233 = vmatprep.subr.bf16.mxu0 %v5201
    %5234 = vmatpush1.bf16.msra.mxu0 %v5200
    %5235 = vmatprep.subr.bf16.mxu0 %v5205
    %5236 = vmatpush1.bf16.msra.mxu0 %v5204
    %5237 = vmatprep.subr.bf16.mxu0 %v5209
    %5238 = vmatpush1.bf16.msra.mxu0 %v5208
    %5239 = vmatprep.subr.bf16.mxu0 0
    %5240 = vmatpush1.bf16.msra.mxu0 0
    %5241 = vmatprep.subr.bf16.mxu0 0
    %5242 = vmatpush1.bf16.msra.mxu0 0
    %5243 = vmatprep.subr.bf16.mxu0 0
    %5244 = vmatpush1.bf16.msra.mxu0 0
    %5245 = vmatprep.subr.bf16.mxu0 0
    %5246 = vmatpush1.bf16.msra.mxu0 0
    %5247 = vmatprep.subr.bf16.mxu0 0
    %5248 = vmatpush1.bf16.msra.mxu0 0
    %5249 = vmatprep.subr.bf16.mxu0 0
    %5250 = vmatpush1.bf16.msra.mxu0 0
    %5251 = vmatprep.subr.bf16.mxu0 0
    %5252 = vmatpush1.bf16.msra.mxu0 0
    %5253 = vmatprep.subr.bf16.mxu0 0
    %5254 = vmatpush1.bf16.msra.mxu0 0
    %5255 = vmatprep.subr.bf16.mxu0 0
    %5256 = vmatpush1.bf16.msra.mxu0 0
    %5257 = vmatprep.subr.bf16.mxu0 0
    %5258 = vmatpush1.bf16.msra.mxu0 0
    %5259 = vmatprep.subr.bf16.mxu0 0
    %5260 = vmatpush1.bf16.msra.mxu0 0
    %5261 = vmatprep.subr.bf16.mxu0 0
    %5262 = vmatpush1.bf16.msra.mxu0 0
    %5263 = vmatprep.mubr.bf16.mxu0 0
    %5264 = vmatmul.mubr.bf16.gmra.mrb[0].mxu0 %v5229
    %v5265 = vpop.f32.mrb[0].mxu0
    %v5266 = vadd.f32 %v5101, %v5265
    %v5267 = vpop.f32.mrb[0].mxu0
    %v5268 = vadd.f32 %v5103, %v5267
    %v5269 = vpop.f32.mrb[0].mxu0
    %v5270 = vpop.f32.mrb[0].mxu0
    %5271 = vdwg.mxu0
    %5272 = vmatprep.subr.bf16.mxu0 %v5199
    %5273 = vmatpush1.bf16.msra.mxu0 %v5198
    %5274 = vmatprep.subr.bf16.mxu0 %v5203
    %5275 = vmatpush1.bf16.msra.mxu0 %v5202
    %5276 = vmatprep.subr.bf16.mxu0 %v5207
    %5277 = vmatpush1.bf16.msra.mxu0 %v5206
    %5278 = vmatprep.subr.bf16.mxu0 %v5211
    %5279 = vmatpush1.bf16.msra.mxu0 %v5210
    %5280 = vmatprep.subr.bf16.mxu0 0
    %5281 = vmatpush1.bf16.msra.mxu0 0
    %5282 = vmatprep.subr.bf16.mxu0 0
    %5283 = vmatpush1.bf16.msra.mxu0 0
    %5284 = vmatprep.subr.bf16.mxu0 0
    %5285 = vmatpush1.bf16.msra.mxu0 0
    %5286 = vmatprep.subr.bf16.mxu0 0
    %5287 = vmatpush1.bf16.msra.mxu0 0
    %5288 = vmatprep.subr.bf16.mxu0 0
    %5289 = vmatpush1.bf16.msra.mxu0 0
    %5290 = vmatprep.subr.bf16.mxu0 0
    %5291 = vmatpush1.bf16.msra.mxu0 0
    %5292 = vmatprep.subr.bf16.mxu0 0
    %5293 = vmatpush1.bf16.msra.mxu0 0
    %5294 = vmatprep.subr.bf16.mxu0 0
    %5295 = vmatpush1.bf16.msra.mxu0 0
    %5296 = vmatprep.subr.bf16.mxu0 0
    %5297 = vmatpush1.bf16.msra.mxu0 0
    %5298 = vmatprep.subr.bf16.mxu0 0
    %5299 = vmatpush1.bf16.msra.mxu0 0
    %5300 = vmatprep.subr.bf16.mxu0 0
    %5301 = vmatpush1.bf16.msra.mxu0 0
    %5302 = vmatprep.subr.bf16.mxu0 0
    %5303 = vmatpush1.bf16.msra.mxu0 0
    %5304 = vmatprep.mubr.bf16.mxu0 0
    %5305 = vmatmul.mubr.bf16.gmra.mrb[0].mxu0 %v5229
    %v5306 = vpop.f32.mrb[0].mxu0
    %v5307 = vadd.f32 %v5142, %v5306
    %v5308 = vpop.f32.mrb[0].mxu0
    %v5309 = vadd.f32 %v5144, %v5308
    %v5310 = vpop.f32.mrb[0].mxu0
    %v5311 = vpop.f32.mrb[0].mxu0
    %5312 = vdwg.mxu0
    %s5313 = scalar_lea.vmem %s7, 256
    %v5314 = vld [vmem:[%s5313] sm:$0xff]
    %v5315 = vld [vmem:[%s5313 + $0x8] sm:$0xff]
    %v5316 = vld [vmem:[%s5313 + $0x10] sm:$0xff]
    %v5317 = vld [vmem:[%s5313 + $0x18] sm:$0xff]
    %v5318 = vld [vmem:[%s5313 + $0x20] sm:$0xff]
    %v5319 = vld [vmem:[%s5313 + $0x28] sm:$0xff]
    %v5320 = vld [vmem:[%s5313 + $0x30] sm:$0xff]
    %v5321 = vld [vmem:[%s5313 + $0x38] sm:$0xff]
    %v5322 = vld [vmem:[%s5313 + $0x40] sm:$0xff]
    %v5323 = vld [vmem:[%s5313 + $0x48] sm:$0xff]
    %v5324 = vld [vmem:[%s5313 + $0x50] sm:$0xff]
    %v5325 = vld [vmem:[%s5313 + $0x58] sm:$0xff]
    %v5326 = vld [vmem:[%s5313 + $0x60] sm:$0xff]
    %v5327 = vld [vmem:[%s5313 + $0x68] sm:$0xff]
    %v5328 = vld [vmem:[%s5313 + $0x70] sm:$0xff]
    %v5329 = vld [vmem:[%s5313 + $0x78] sm:$0xff]
    %v5330 = vrot.slane %v4946, 2
    %v5347 = vunpack.c.l.b16 %v5314
    %v5348 = vunpack.c.h.b16 %v5314
    %v5349 = vunpack.c.l.b16 %v5315
    %v5350 = vunpack.c.h.b16 %v5315
    %v5351 = vunpack.c.l.b16 %v5316
    %v5352 = vunpack.c.h.b16 %v5316
    %v5353 = vunpack.c.l.b16 %v5317
    %v5354 = vunpack.c.h.b16 %v5317
    %v5355 = vunpack.c.l.b16 %v5318
    %v5356 = vunpack.c.h.b16 %v5318
    %v5357 = vunpack.c.l.b16 %v5319
    %v5358 = vunpack.c.h.b16 %v5319
    %v5359 = vunpack.c.l.b16 %v5320
    %v5360 = vunpack.c.h.b16 %v5320
    %v5361 = vunpack.c.l.b16 %v5321
    %v5362 = vunpack.c.h.b16 %v5321
    %v5363 = vunpack.c.l.b16 %v5322
    %v5364 = vunpack.c.h.b16 %v5322
    %v5365 = vunpack.c.l.b16 %v5323
    %v5366 = vunpack.c.h.b16 %v5323
    %v5367 = vunpack.c.l.b16 %v5324
    %v5368 = vunpack.c.h.b16 %v5324
    %v5369 = vunpack.c.l.b16 %v5325
    %v5370 = vunpack.c.h.b16 %v5325
    %v5371 = vunpack.c.l.b16 %v5326
    %v5372 = vunpack.c.h.b16 %v5326
    %v5373 = vunpack.c.l.b16 %v5327
    %v5374 = vunpack.c.h.b16 %v5327
    %v5375 = vunpack.c.l.b16 %v5328
    %v5376 = vunpack.c.h.b16 %v5328
    %v5377 = vunpack.c.l.b16 %v5329
    %v5378 = vunpack.c.h.b16 %v5329
    %v5379 = vpack.c.b16 %v5351, %v5347
    %v5380 = vpack.c.b16 %v5352, %v5348
    %v5381 = vpack.c.b16 %v5353, %v5349
    %v5382 = vpack.c.b16 %v5354, %v5350
    %v5383 = vpack.c.b16 %v5359, %v5355
    %v5384 = vpack.c.b16 %v5360, %v5356
    %v5385 = vpack.c.b16 %v5361, %v5357
    %v5386 = vpack.c.b16 %v5362, %v5358
    %v5387 = vpack.c.b16 %v5367, %v5363
    %v5388 = vpack.c.b16 %v5368, %v5364
    %v5389 = vpack.c.b16 %v5369, %v5365
    %v5390 = vpack.c.b16 %v5370, %v5366
    %v5391 = vpack.c.b16 %v5375, %v5371
    %v5392 = vpack.c.b16 %v5376, %v5372
    %v5393 = vpack.c.b16 %v5377, %v5373
    %v5394 = vpack.c.b16 %v5378, %v5374
    %v5412 = vsel %vm111, %v5330, 0
    %5414 = vmatprep.subr.bf16.mxu0 %v5380
    %5415 = vmatpush1.bf16.msra.mxu0 %v5379
    %5416 = vmatprep.subr.bf16.mxu0 %v5384
    %5417 = vmatpush1.bf16.msra.mxu0 %v5383
    %5418 = vmatprep.subr.bf16.mxu0 %v5388
    %5419 = vmatpush1.bf16.msra.mxu0 %v5387
    %5420 = vmatprep.subr.bf16.mxu0 %v5392
    %5421 = vmatpush1.bf16.msra.mxu0 %v5391
    %5422 = vmatprep.subr.bf16.mxu0 0
    %5423 = vmatpush1.bf16.msra.mxu0 0
    %5424 = vmatprep.subr.bf16.mxu0 0
    %5425 = vmatpush1.bf16.msra.mxu0 0
    %5426 = vmatprep.subr.bf16.mxu0 0
    %5427 = vmatpush1.bf16.msra.mxu0 0
    %5428 = vmatprep.subr.bf16.mxu0 0
    %5429 = vmatpush1.bf16.msra.mxu0 0
    %5430 = vmatprep.subr.bf16.mxu0 0
    %5431 = vmatpush1.bf16.msra.mxu0 0
    %5432 = vmatprep.subr.bf16.mxu0 0
    %5433 = vmatpush1.bf16.msra.mxu0 0
    %5434 = vmatprep.subr.bf16.mxu0 0
    %5435 = vmatpush1.bf16.msra.mxu0 0
    %5436 = vmatprep.subr.bf16.mxu0 0
    %5437 = vmatpush1.bf16.msra.mxu0 0
    %5438 = vmatprep.subr.bf16.mxu0 0
    %5439 = vmatpush1.bf16.msra.mxu0 0
    %5440 = vmatprep.subr.bf16.mxu0 0
    %5441 = vmatpush1.bf16.msra.mxu0 0
    %5442 = vmatprep.subr.bf16.mxu0 0
    %5443 = vmatpush1.bf16.msra.mxu0 0
    %5444 = vmatprep.subr.bf16.mxu0 0
    %5445 = vmatpush1.bf16.msra.mxu0 0
    %5446 = vmatprep.mubr.bf16.mxu0 0
    %5447 = vmatmul.mubr.bf16.gmra.mrb[0].mxu0 %v5412
    %v5448 = vpop.f32.mrb[0].mxu0
    %v5449 = vadd.f32 0.0, %v5448
    %v5450 = vpop.f32.mrb[0].mxu0
    %v5451 = vadd.f32 0.0, %v5450
    %v5452 = vpop.f32.mrb[0].mxu0
    %v5453 = vpop.f32.mrb[0].mxu0
    %5454 = vdwg.mxu0
    %5455 = vmatprep.subr.bf16.mxu0 %v5382
    %5456 = vmatpush1.bf16.msra.mxu0 %v5381
    %5457 = vmatprep.subr.bf16.mxu0 %v5386
    %5458 = vmatpush1.bf16.msra.mxu0 %v5385
    %5459 = vmatprep.subr.bf16.mxu0 %v5390
    %5460 = vmatpush1.bf16.msra.mxu0 %v5389
    %5461 = vmatprep.subr.bf16.mxu0 %v5394
    %5462 = vmatpush1.bf16.msra.mxu0 %v5393
    %5463 = vmatprep.subr.bf16.mxu0 0
    %5464 = vmatpush1.bf16.msra.mxu0 0
    %5465 = vmatprep.subr.bf16.mxu0 0
    %5466 = vmatpush1.bf16.msra.mxu0 0
    %5467 = vmatprep.subr.bf16.mxu0 0
    %5468 = vmatpush1.bf16.msra.mxu0 0
    %5469 = vmatprep.subr.bf16.mxu0 0
    %5470 = vmatpush1.bf16.msra.mxu0 0
    %5471 = vmatprep.subr.bf16.mxu0 0
    %5472 = vmatpush1.bf16.msra.mxu0 0
    %5473 = vmatprep.subr.bf16.mxu0 0
    %5474 = vmatpush1.bf16.msra.mxu0 0
    %5475 = vmatprep.subr.bf16.mxu0 0
    %5476 = vmatpush1.bf16.msra.mxu0 0
    %5477 = vmatprep.subr.bf16.mxu0 0
    %5478 = vmatpush1.bf16.msra.mxu0 0
    %5479 = vmatprep.subr.bf16.mxu0 0
    %5480 = vmatpush1.bf16.msra.mxu0 0
    %5481 = vmatprep.subr.bf16.mxu0 0
    %5482 = vmatpush1.bf16.msra.mxu0 0
    %5483 = vmatprep.subr.bf16.mxu0 0
    %5484 = vmatpush1.bf16.msra.mxu0 0
    %5485 = vmatprep.subr.bf16.mxu0 0
    %5486 = vmatpush1.bf16.msra.mxu0 0
    %5487 = vmatprep.mubr.bf16.mxu0 0
    %5488 = vmatmul.mubr.bf16.gmra.mrb[0].mxu0 %v5412
    %v5489 = vpop.f32.mrb[0].mxu0
    %v5490 = vadd.f32 0.0, %v5489
    %v5491 = vpop.f32.mrb[0].mxu0
    %v5492 = vadd.f32 0.0, %v5491
    %v5493 = vpop.f32.mrb[0].mxu0
    %v5494 = vpop.f32.mrb[0].mxu0
    %5495 = vdwg.mxu0
    %v5496 = vadd.f32 %v5266, %v5449
    %v5497 = vadd.f32 %v5268, %v5451
    %v5498 = vadd.f32 %v5307, %v5490
    %v5499 = vadd.f32 %v5309, %v5492
    %s5500 = scalar_lea.vmem %s7, 384
    %v5501 = vld [vmem:[%s5500] sm:$0xff]
    %v5502 = vld [vmem:[%s5500 + $0x8] sm:$0xff]
    %v5503 = vld [vmem:[%s5500 + $0x10] sm:$0xff]
    %v5504 = vld [vmem:[%s5500 + $0x18] sm:$0xff]
    %v5505 = vld [vmem:[%s5500 + $0x20] sm:$0xff]
    %v5506 = vld [vmem:[%s5500 + $0x28] sm:$0xff]
    %v5507 = vld [vmem:[%s5500 + $0x30] sm:$0xff]
    %v5508 = vld [vmem:[%s5500 + $0x38] sm:$0xff]
    %v5509 = vld [vmem:[%s5500 + $0x40] sm:$0xff]
    %v5510 = vld [vmem:[%s5500 + $0x48] sm:$0xff]
    %v5511 = vld [vmem:[%s5500 + $0x50] sm:$0xff]
    %v5512 = vld [vmem:[%s5500 + $0x58] sm:$0xff]
    %v5513 = vld [vmem:[%s5500 + $0x60] sm:$0xff]
    %v5514 = vld [vmem:[%s5500 + $0x68] sm:$0xff]
    %v5515 = vld [vmem:[%s5500 + $0x70] sm:$0xff]
    %v5516 = vld [vmem:[%s5500 + $0x78] sm:$0xff]
    %v5517 = vrot.slane %v4946, 3
    %v5534 = vunpack.c.l.b16 %v5501
    %v5535 = vunpack.c.h.b16 %v5501
    %v5536 = vunpack.c.l.b16 %v5502
    %v5537 = vunpack.c.h.b16 %v5502
    %v5538 = vunpack.c.l.b16 %v5503
    %v5539 = vunpack.c.h.b16 %v5503
    %v5540 = vunpack.c.l.b16 %v5504
    %v5541 = vunpack.c.h.b16 %v5504
    %v5542 = vunpack.c.l.b16 %v5505
    %v5543 = vunpack.c.h.b16 %v5505
    %v5544 = vunpack.c.l.b16 %v5506
    %v5545 = vunpack.c.h.b16 %v5506
    %v5546 = vunpack.c.l.b16 %v5507
    %v5547 = vunpack.c.h.b16 %v5507
    %v5548 = vunpack.c.l.b16 %v5508
    %v5549 = vunpack.c.h.b16 %v5508
    %v5550 = vunpack.c.l.b16 %v5509
    %v5551 = vunpack.c.h.b16 %v5509
    %v5552 = vunpack.c.l.b16 %v5510
    %v5553 = vunpack.c.h.b16 %v5510
    %v5554 = vunpack.c.l.b16 %v5511
    %v5555 = vunpack.c.h.b16 %v5511
    %v5556 = vunpack.c.l.b16 %v5512
    %v5557 = vunpack.c.h.b16 %v5512
    %v5558 = vunpack.c.l.b16 %v5513
    %v5559 = vunpack.c.h.b16 %v5513
    %v5560 = vunpack.c.l.b16 %v5514
    %v5561 = vunpack.c.h.b16 %v5514
    %v5562 = vunpack.c.l.b16 %v5515
    %v5563 = vunpack.c.h.b16 %v5515
    %v5564 = vunpack.c.l.b16 %v5516
    %v5565 = vunpack.c.h.b16 %v5516
    %v5566 = vpack.c.b16 %v5538, %v5534
    %v5567 = vpack.c.b16 %v5539, %v5535
    %v5568 = vpack.c.b16 %v5540, %v5536
    %v5569 = vpack.c.b16 %v5541, %v5537
    %v5570 = vpack.c.b16 %v5546, %v5542
    %v5571 = vpack.c.b16 %v5547, %v5543
    %v5572 = vpack.c.b16 %v5548, %v5544
    %v5573 = vpack.c.b16 %v5549, %v5545
    %v5574 = vpack.c.b16 %v5554, %v5550
    %v5575 = vpack.c.b16 %v5555, %v5551
    %v5576 = vpack.c.b16 %v5556, %v5552
    %v5577 = vpack.c.b16 %v5557, %v5553
    %v5578 = vpack.c.b16 %v5562, %v5558
    %v5579 = vpack.c.b16 %v5563, %v5559
    %v5580 = vpack.c.b16 %v5564, %v5560
    %v5581 = vpack.c.b16 %v5565, %v5561
    %v5599 = vsel %vm111, %v5517, 0
    %5601 = vmatprep.subr.bf16.mxu0 %v5567
    %5602 = vmatpush1.bf16.msra.mxu0 %v5566
    %5603 = vmatprep.subr.bf16.mxu0 %v5571
    %5604 = vmatpush1.bf16.msra.mxu0 %v5570
    %5605 = vmatprep.subr.bf16.mxu0 %v5575
    %5606 = vmatpush1.bf16.msra.mxu0 %v5574
    %5607 = vmatprep.subr.bf16.mxu0 %v5579
    %5608 = vmatpush1.bf16.msra.mxu0 %v5578
    %5609 = vmatprep.subr.bf16.mxu0 0
    %5610 = vmatpush1.bf16.msra.mxu0 0
    %5611 = vmatprep.subr.bf16.mxu0 0
    %5612 = vmatpush1.bf16.msra.mxu0 0
    %5613 = vmatprep.subr.bf16.mxu0 0
    %5614 = vmatpush1.bf16.msra.mxu0 0
    %5615 = vmatprep.subr.bf16.mxu0 0
    %5616 = vmatpush1.bf16.msra.mxu0 0
    %5617 = vmatprep.subr.bf16.mxu0 0
    %5618 = vmatpush1.bf16.msra.mxu0 0
    %5619 = vmatprep.subr.bf16.mxu0 0
    %5620 = vmatpush1.bf16.msra.mxu0 0
    %5621 = vmatprep.subr.bf16.mxu0 0
    %5622 = vmatpush1.bf16.msra.mxu0 0
    %5623 = vmatprep.subr.bf16.mxu0 0
    %5624 = vmatpush1.bf16.msra.mxu0 0
    %5625 = vmatprep.subr.bf16.mxu0 0
    %5626 = vmatpush1.bf16.msra.mxu0 0
    %5627 = vmatprep.subr.bf16.mxu0 0
    %5628 = vmatpush1.bf16.msra.mxu0 0
    %5629 = vmatprep.subr.bf16.mxu0 0
    %5630 = vmatpush1.bf16.msra.mxu0 0
    %5631 = vmatprep.subr.bf16.mxu0 0
    %5632 = vmatpush1.bf16.msra.mxu0 0
    %5633 = vmatprep.mubr.bf16.mxu0 0
    %5634 = vmatmul.mubr.bf16.gmra.mrb[0].mxu0 %v5599
    %v5635 = vpop.f32.mrb[0].mxu0
    %v5636 = vadd.f32 0.0, %v5635
    %v5637 = vpop.f32.mrb[0].mxu0
    %v5638 = vadd.f32 0.0, %v5637
    %v5639 = vpop.f32.mrb[0].mxu0
    %v5640 = vpop.f32.mrb[0].mxu0
    %5641 = vdwg.mxu0
    %5642 = vmatprep.subr.bf16.mxu0 %v5569
    %5643 = vmatpush1.bf16.msra.mxu0 %v5568
    %5644 = vmatprep.subr.bf16.mxu0 %v5573
    %5645 = vmatpush1.bf16.msra.mxu0 %v5572
    %5646 = vmatprep.subr.bf16.mxu0 %v5577
    %5647 = vmatpush1.bf16.msra.mxu0 %v5576
    %5648 = vmatprep.subr.bf16.mxu0 %v5581
    %5649 = vmatpush1.bf16.msra.mxu0 %v5580
    %5650 = vmatprep.subr.bf16.mxu0 0
    %5651 = vmatpush1.bf16.msra.mxu0 0
    %5652 = vmatprep.subr.bf16.mxu0 0
    %5653 = vmatpush1.bf16.msra.mxu0 0
    %5654 = vmatprep.subr.bf16.mxu0 0
    %5655 = vmatpush1.bf16.msra.mxu0 0
    %5656 = vmatprep.subr.bf16.mxu0 0
    %5657 = vmatpush1.bf16.msra.mxu0 0
    %5658 = vmatprep.subr.bf16.mxu0 0
    %5659 = vmatpush1.bf16.msra.mxu0 0
    %5660 = vmatprep.subr.bf16.mxu0 0
    %5661 = vmatpush1.bf16.msra.mxu0 0
    %5662 = vmatprep.subr.bf16.mxu0 0
    %5663 = vmatpush1.bf16.msra.mxu0 0
    %5664 = vmatprep.subr.bf16.mxu0 0
    %5665 = vmatpush1.bf16.msra.mxu0 0
    %5666 = vmatprep.subr.bf16.mxu0 0
    %5667 = vmatpush1.bf16.msra.mxu0 0
    %5668 = vmatprep.subr.bf16.mxu0 0
    %5669 = vmatpush1.bf16.msra.mxu0 0
    %5670 = vmatprep.subr.bf16.mxu0 0
    %5671 = vmatpush1.bf16.msra.mxu0 0
    %5672 = vmatprep.subr.bf16.mxu0 0
    %5673 = vmatpush1.bf16.msra.mxu0 0
    %5674 = vmatprep.mubr.bf16.mxu0 0
    %5675 = vmatmul.mubr.bf16.gmra.mrb[0].mxu0 %v5599
    %v5676 = vpop.f32.mrb[0].mxu0
    %v5677 = vadd.f32 0.0, %v5676
    %v5678 = vpop.f32.mrb[0].mxu0
    %v5679 = vadd.f32 0.0, %v5678
    %v5680 = vpop.f32.mrb[0].mxu0
    %v5681 = vpop.f32.mrb[0].mxu0
    %5682 = vdwg.mxu0
    %v5683 = vadd.f32 %v5496, %v5636
    %v5684 = vadd.f32 %v5497, %v5638
    %v5685 = vadd.f32 %v5498, %v5677
    %v5686 = vadd.f32 %v5499, %v5679
    %s5687 = scalar_lea.vmem %s7, 512
    %v5688 = vld [vmem:[%s5687] sm:$0xff]
    %v5689 = vld [vmem:[%s5687 + $0x8] sm:$0xff]
    %v5690 = vld [vmem:[%s5687 + $0x10] sm:$0xff]
    %v5691 = vld [vmem:[%s5687 + $0x18] sm:$0xff]
    %v5692 = vld [vmem:[%s5687 + $0x20] sm:$0xff]
    %v5693 = vld [vmem:[%s5687 + $0x28] sm:$0xff]
    %v5694 = vld [vmem:[%s5687 + $0x30] sm:$0xff]
    %v5695 = vld [vmem:[%s5687 + $0x38] sm:$0xff]
    %v5696 = vld [vmem:[%s5687 + $0x40] sm:$0xff]
    %v5697 = vld [vmem:[%s5687 + $0x48] sm:$0xff]
    %v5698 = vld [vmem:[%s5687 + $0x50] sm:$0xff]
    %v5699 = vld [vmem:[%s5687 + $0x58] sm:$0xff]
    %v5700 = vld [vmem:[%s5687 + $0x60] sm:$0xff]
    %v5701 = vld [vmem:[%s5687 + $0x68] sm:$0xff]
    %v5702 = vld [vmem:[%s5687 + $0x70] sm:$0xff]
    %v5703 = vld [vmem:[%s5687 + $0x78] sm:$0xff]
    %v5704 = vrot.slane %v4946, 4
    %v5721 = vunpack.c.l.b16 %v5688
    %v5722 = vunpack.c.h.b16 %v5688
    %v5723 = vunpack.c.l.b16 %v5689
    %v5724 = vunpack.c.h.b16 %v5689
    %v5725 = vunpack.c.l.b16 %v5690
    %v5726 = vunpack.c.h.b16 %v5690
    %v5727 = vunpack.c.l.b16 %v5691
    %v5728 = vunpack.c.h.b16 %v5691
    %v5729 = vunpack.c.l.b16 %v5692
    %v5730 = vunpack.c.h.b16 %v5692
    %v5731 = vunpack.c.l.b16 %v5693
    %v5732 = vunpack.c.h.b16 %v5693
    %v5733 = vunpack.c.l.b16 %v5694
    %v5734 = vunpack.c.h.b16 %v5694
    %v5735 = vunpack.c.l.b16 %v5695
    %v5736 = vunpack.c.h.b16 %v5695
    %v5737 = vunpack.c.l.b16 %v5696
    %v5738 = vunpack.c.h.b16 %v5696
    %v5739 = vunpack.c.l.b16 %v5697
    %v5740 = vunpack.c.h.b16 %v5697
    %v5741 = vunpack.c.l.b16 %v5698
    %v5742 = vunpack.c.h.b16 %v5698
    %v5743 = vunpack.c.l.b16 %v5699
    %v5744 = vunpack.c.h.b16 %v5699
    %v5745 = vunpack.c.l.b16 %v5700
    %v5746 = vunpack.c.h.b16 %v5700
    %v5747 = vunpack.c.l.b16 %v5701
    %v5748 = vunpack.c.h.b16 %v5701
    %v5749 = vunpack.c.l.b16 %v5702
    %v5750 = vunpack.c.h.b16 %v5702
    %v5751 = vunpack.c.l.b16 %v5703
    %v5752 = vunpack.c.h.b16 %v5703
    %v5753 = vpack.c.b16 %v5725, %v5721
    %v5754 = vpack.c.b16 %v5726, %v5722
    %v5755 = vpack.c.b16 %v5727, %v5723
    %v5756 = vpack.c.b16 %v5728, %v5724
    %v5757 = vpack.c.b16 %v5733, %v5729
    %v5758 = vpack.c.b16 %v5734, %v5730
    %v5759 = vpack.c.b16 %v5735, %v5731
    %v5760 = vpack.c.b16 %v5736, %v5732
    %v5761 = vpack.c.b16 %v5741, %v5737
    %v5762 = vpack.c.b16 %v5742, %v5738
    %v5763 = vpack.c.b16 %v5743, %v5739
    %v5764 = vpack.c.b16 %v5744, %v5740
    %v5765 = vpack.c.b16 %v5749, %v5745
    %v5766 = vpack.c.b16 %v5750, %v5746
    %v5767 = vpack.c.b16 %v5751, %v5747
    %v5768 = vpack.c.b16 %v5752, %v5748
    %v5786 = vsel %vm111, %v5704, 0
    %5788 = vmatprep.subr.bf16.mxu0 %v5754
    %5789 = vmatpush1.bf16.msra.mxu0 %v5753
    %5790 = vmatprep.subr.bf16.mxu0 %v5758
    %5791 = vmatpush1.bf16.msra.mxu0 %v5757
    %5792 = vmatprep.subr.bf16.mxu0 %v5762
    %5793 = vmatpush1.bf16.msra.mxu0 %v5761
    %5794 = vmatprep.subr.bf16.mxu0 %v5766
    %5795 = vmatpush1.bf16.msra.mxu0 %v5765
    %5796 = vmatprep.subr.bf16.mxu0 0
    %5797 = vmatpush1.bf16.msra.mxu0 0
    %5798 = vmatprep.subr.bf16.mxu0 0
    %5799 = vmatpush1.bf16.msra.mxu0 0
    %5800 = vmatprep.subr.bf16.mxu0 0
    %5801 = vmatpush1.bf16.msra.mxu0 0
    %5802 = vmatprep.subr.bf16.mxu0 0
    %5803 = vmatpush1.bf16.msra.mxu0 0
    %5804 = vmatprep.subr.bf16.mxu0 0
    %5805 = vmatpush1.bf16.msra.mxu0 0
    %5806 = vmatprep.subr.bf16.mxu0 0
    %5807 = vmatpush1.bf16.msra.mxu0 0
    %5808 = vmatprep.subr.bf16.mxu0 0
    %5809 = vmatpush1.bf16.msra.mxu0 0
    %5810 = vmatprep.subr.bf16.mxu0 0
    %5811 = vmatpush1.bf16.msra.mxu0 0
    %5812 = vmatprep.subr.bf16.mxu0 0
    %5813 = vmatpush1.bf16.msra.mxu0 0
    %5814 = vmatprep.subr.bf16.mxu0 0
    %5815 = vmatpush1.bf16.msra.mxu0 0
    %5816 = vmatprep.subr.bf16.mxu0 0
    %5817 = vmatpush1.bf16.msra.mxu0 0
    %5818 = vmatprep.subr.bf16.mxu0 0
    %5819 = vmatpush1.bf16.msra.mxu0 0
    %5820 = vmatprep.mubr.bf16.mxu0 0
    %5821 = vmatmul.mubr.bf16.gmra.mrb[0].mxu0 %v5786
    %v5822 = vpop.f32.mrb[0].mxu0
    %v5823 = vadd.f32 0.0, %v5822
    %v5824 = vpop.f32.mrb[0].mxu0
    %v5825 = vadd.f32 0.0, %v5824
    %v5826 = vpop.f32.mrb[0].mxu0
    %v5827 = vpop.f32.mrb[0].mxu0
    %5828 = vdwg.mxu0
    %5829 = vmatprep.subr.bf16.mxu0 %v5756
    %5830 = vmatpush1.bf16.msra.mxu0 %v5755
    %5831 = vmatprep.subr.bf16.mxu0 %v5760
    %5832 = vmatpush1.bf16.msra.mxu0 %v5759
    %5833 = vmatprep.subr.bf16.mxu0 %v5764
    %5834 = vmatpush1.bf16.msra.mxu0 %v5763
    %5835 = vmatprep.subr.bf16.mxu0 %v5768
    %5836 = vmatpush1.bf16.msra.mxu0 %v5767
    %5837 = vmatprep.subr.bf16.mxu0 0
    %5838 = vmatpush1.bf16.msra.mxu0 0
    %5839 = vmatprep.subr.bf16.mxu0 0
    %5840 = vmatpush1.bf16.msra.mxu0 0
    %5841 = vmatprep.subr.bf16.mxu0 0
    %5842 = vmatpush1.bf16.msra.mxu0 0
    %5843 = vmatprep.subr.bf16.mxu0 0
    %5844 = vmatpush1.bf16.msra.mxu0 0
    %5845 = vmatprep.subr.bf16.mxu0 0
    %5846 = vmatpush1.bf16.msra.mxu0 0
    %5847 = vmatprep.subr.bf16.mxu0 0
    %5848 = vmatpush1.bf16.msra.mxu0 0
    %5849 = vmatprep.subr.bf16.mxu0 0
    %5850 = vmatpush1.bf16.msra.mxu0 0
    %5851 = vmatprep.subr.bf16.mxu0 0
    %5852 = vmatpush1.bf16.msra.mxu0 0
    %5853 = vmatprep.subr.bf16.mxu0 0
    %5854 = vmatpush1.bf16.msra.mxu0 0
    %5855 = vmatprep.subr.bf16.mxu0 0
    %5856 = vmatpush1.bf16.msra.mxu0 0
    %5857 = vmatprep.subr.bf16.mxu0 0
    %5858 = vmatpush1.bf16.msra.mxu0 0
    %5859 = vmatprep.subr.bf16.mxu0 0
    %5860 = vmatpush1.bf16.msra.mxu0 0
    %5861 = vmatprep.mubr.bf16.mxu0 0
    %5862 = vmatmul.mubr.bf16.gmra.mrb[0].mxu0 %v5786
    %v5863 = vpop.f32.mrb[0].mxu0
    %v5864 = vadd.f32 0.0, %v5863
    %v5865 = vpop.f32.mrb[0].mxu0
    %v5866 = vadd.f32 0.0, %v5865
    %v5867 = vpop.f32.mrb[0].mxu0
    %v5868 = vpop.f32.mrb[0].mxu0
    %5869 = vdwg.mxu0
    %v5870 = vadd.f32 %v5683, %v5823
    %v5871 = vadd.f32 %v5684, %v5825
    %v5872 = vadd.f32 %v5685, %v5864
    %v5873 = vadd.f32 %v5686, %v5866
    %s5874 = scalar_lea.vmem %s7, 640
    %v5875 = vld [vmem:[%s5874] sm:$0xff]
    %v5876 = vld [vmem:[%s5874 + $0x8] sm:$0xff]
    %v5877 = vld [vmem:[%s5874 + $0x10] sm:$0xff]
    %v5878 = vld [vmem:[%s5874 + $0x18] sm:$0xff]
    %v5879 = vld [vmem:[%s5874 + $0x20] sm:$0xff]
    %v5880 = vld [vmem:[%s5874 + $0x28] sm:$0xff]
    %v5881 = vld [vmem:[%s5874 + $0x30] sm:$0xff]
    %v5882 = vld [vmem:[%s5874 + $0x38] sm:$0xff]
    %v5883 = vld [vmem:[%s5874 + $0x40] sm:$0xff]
    %v5884 = vld [vmem:[%s5874 + $0x48] sm:$0xff]
    %v5885 = vld [vmem:[%s5874 + $0x50] sm:$0xff]
    %v5886 = vld [vmem:[%s5874 + $0x58] sm:$0xff]
    %v5887 = vld [vmem:[%s5874 + $0x60] sm:$0xff]
    %v5888 = vld [vmem:[%s5874 + $0x68] sm:$0xff]
    %v5889 = vld [vmem:[%s5874 + $0x70] sm:$0xff]
    %v5890 = vld [vmem:[%s5874 + $0x78] sm:$0xff]
    %v5891 = vrot.slane %v4946, 5
    %v5908 = vunpack.c.l.b16 %v5875
    %v5909 = vunpack.c.h.b16 %v5875
    %v5910 = vunpack.c.l.b16 %v5876
    %v5911 = vunpack.c.h.b16 %v5876
    %v5912 = vunpack.c.l.b16 %v5877
    %v5913 = vunpack.c.h.b16 %v5877
    %v5914 = vunpack.c.l.b16 %v5878
    %v5915 = vunpack.c.h.b16 %v5878
    %v5916 = vunpack.c.l.b16 %v5879
    %v5917 = vunpack.c.h.b16 %v5879
    %v5918 = vunpack.c.l.b16 %v5880
    %v5919 = vunpack.c.h.b16 %v5880
    %v5920 = vunpack.c.l.b16 %v5881
    %v5921 = vunpack.c.h.b16 %v5881
    %v5922 = vunpack.c.l.b16 %v5882
    %v5923 = vunpack.c.h.b16 %v5882
    %v5924 = vunpack.c.l.b16 %v5883
    %v5925 = vunpack.c.h.b16 %v5883
    %v5926 = vunpack.c.l.b16 %v5884
    %v5927 = vunpack.c.h.b16 %v5884
    %v5928 = vunpack.c.l.b16 %v5885
    %v5929 = vunpack.c.h.b16 %v5885
    %v5930 = vunpack.c.l.b16 %v5886
    %v5931 = vunpack.c.h.b16 %v5886
    %v5932 = vunpack.c.l.b16 %v5887
    %v5933 = vunpack.c.h.b16 %v5887
    %v5934 = vunpack.c.l.b16 %v5888
    %v5935 = vunpack.c.h.b16 %v5888
    %v5936 = vunpack.c.l.b16 %v5889
    %v5937 = vunpack.c.h.b16 %v5889
    %v5938 = vunpack.c.l.b16 %v5890
    %v5939 = vunpack.c.h.b16 %v5890
    %v5940 = vpack.c.b16 %v5912, %v5908
    %v5941 = vpack.c.b16 %v5913, %v5909
    %v5942 = vpack.c.b16 %v5914, %v5910
    %v5943 = vpack.c.b16 %v5915, %v5911
    %v5944 = vpack.c.b16 %v5920, %v5916
    %v5945 = vpack.c.b16 %v5921, %v5917
    %v5946 = vpack.c.b16 %v5922, %v5918
    %v5947 = vpack.c.b16 %v5923, %v5919
    %v5948 = vpack.c.b16 %v5928, %v5924
    %v5949 = vpack.c.b16 %v5929, %v5925
    %v5950 = vpack.c.b16 %v5930, %v5926
    %v5951 = vpack.c.b16 %v5931, %v5927
    %v5952 = vpack.c.b16 %v5936, %v5932
    %v5953 = vpack.c.b16 %v5937, %v5933
    %v5954 = vpack.c.b16 %v5938, %v5934
    %v5955 = vpack.c.b16 %v5939, %v5935
    %v5973 = vsel %vm111, %v5891, 0
    %5975 = vmatprep.subr.bf16.mxu0 %v5941
    %5976 = vmatpush1.bf16.msra.mxu0 %v5940
    %5977 = vmatprep.subr.bf16.mxu0 %v5945
    %5978 = vmatpush1.bf16.msra.mxu0 %v5944
    %5979 = vmatprep.subr.bf16.mxu0 %v5949
    %5980 = vmatpush1.bf16.msra.mxu0 %v5948
    %5981 = vmatprep.subr.bf16.mxu0 %v5953
    %5982 = vmatpush1.bf16.msra.mxu0 %v5952
    %5983 = vmatprep.subr.bf16.mxu0 0
    %5984 = vmatpush1.bf16.msra.mxu0 0
    %5985 = vmatprep.subr.bf16.mxu0 0
    %5986 = vmatpush1.bf16.msra.mxu0 0
    %5987 = vmatprep.subr.bf16.mxu0 0
    %5988 = vmatpush1.bf16.msra.mxu0 0
    %5989 = vmatprep.subr.bf16.mxu0 0
    %5990 = vmatpush1.bf16.msra.mxu0 0
    %5991 = vmatprep.subr.bf16.mxu0 0
    %5992 = vmatpush1.bf16.msra.mxu0 0
    %5993 = vmatprep.subr.bf16.mxu0 0
    %5994 = vmatpush1.bf16.msra.mxu0 0
    %5995 = vmatprep.subr.bf16.mxu0 0
    %5996 = vmatpush1.bf16.msra.mxu0 0
    %5997 = vmatprep.subr.bf16.mxu0 0
    %5998 = vmatpush1.bf16.msra.mxu0 0
    %5999 = vmatprep.subr.bf16.mxu0 0
    %6000 = vmatpush1.bf16.msra.mxu0 0
    %6001 = vmatprep.subr.bf16.mxu0 0
    %6002 = vmatpush1.bf16.msra.mxu0 0
    %6003 = vmatprep.subr.bf16.mxu0 0
    %6004 = vmatpush1.bf16.msra.mxu0 0
    %6005 = vmatprep.subr.bf16.mxu0 0
    %6006 = vmatpush1.bf16.msra.mxu0 0
    %6007 = vmatprep.mubr.bf16.mxu0 0
    %6008 = vmatmul.mubr.bf16.gmra.mrb[0].mxu0 %v5973
    %v6009 = vpop.f32.mrb[0].mxu0
    %v6010 = vadd.f32 0.0, %v6009
    %v6011 = vpop.f32.mrb[0].mxu0
    %v6012 = vadd.f32 0.0, %v6011
    %v6013 = vpop.f32.mrb[0].mxu0
    %v6014 = vpop.f32.mrb[0].mxu0
    %6015 = vdwg.mxu0
    %6016 = vmatprep.subr.bf16.mxu0 %v5943
    %6017 = vmatpush1.bf16.msra.mxu0 %v5942
    %6018 = vmatprep.subr.bf16.mxu0 %v5947
    %6019 = vmatpush1.bf16.msra.mxu0 %v5946
    %6020 = vmatprep.subr.bf16.mxu0 %v5951
    %6021 = vmatpush1.bf16.msra.mxu0 %v5950
    %6022 = vmatprep.subr.bf16.mxu0 %v5955
    %6023 = vmatpush1.bf16.msra.mxu0 %v5954
    %6024 = vmatprep.subr.bf16.mxu0 0
    %6025 = vmatpush1.bf16.msra.mxu0 0
    %6026 = vmatprep.subr.bf16.mxu0 0
    %6027 = vmatpush1.bf16.msra.mxu0 0
    %6028 = vmatprep.subr.bf16.mxu0 0
    %6029 = vmatpush1.bf16.msra.mxu0 0
    %6030 = vmatprep.subr.bf16.mxu0 0
    %6031 = vmatpush1.bf16.msra.mxu0 0
    %6032 = vmatprep.subr.bf16.mxu0 0
    %6033 = vmatpush1.bf16.msra.mxu0 0
    %6034 = vmatprep.subr.bf16.mxu0 0
    %6035 = vmatpush1.bf16.msra.mxu0 0
    %6036 = vmatprep.subr.bf16.mxu0 0
    %6037 = vmatpush1.bf16.msra.mxu0 0
    %6038 = vmatprep.subr.bf16.mxu0 0
    %6039 = vmatpush1.bf16.msra.mxu0 0
    %6040 = vmatprep.subr.bf16.mxu0 0
    %6041 = vmatpush1.bf16.msra.mxu0 0
    %6042 = vmatprep.subr.bf16.mxu0 0
    %6043 = vmatpush1.bf16.msra.mxu0 0
    %6044 = vmatprep.subr.bf16.mxu0 0
    %6045 = vmatpush1.bf16.msra.mxu0 0
    %6046 = vmatprep.subr.bf16.mxu0 0
    %6047 = vmatpush1.bf16.msra.mxu0 0
    %6048 = vmatprep.mubr.bf16.mxu0 0
    %6049 = vmatmul.mubr.bf16.gmra.mrb[0].mxu0 %v5973
    %v6050 = vpop.f32.mrb[0].mxu0
    %v6051 = vadd.f32 0.0, %v6050
    %v6052 = vpop.f32.mrb[0].mxu0
    %v6053 = vadd.f32 0.0, %v6052
    %v6054 = vpop.f32.mrb[0].mxu0
    %v6055 = vpop.f32.mrb[0].mxu0
    %6056 = vdwg.mxu0
    %v6057 = vadd.f32 %v5870, %v6010
    %v6058 = vadd.f32 %v5871, %v6012
    %v6059 = vadd.f32 %v5872, %v6051
    %v6060 = vadd.f32 %v5873, %v6053
    %s6061 = scalar_lea.vmem %s7, 768
    %v6062 = vld [vmem:[%s6061] sm:$0xff]
    %v6063 = vld [vmem:[%s6061 + $0x8] sm:$0xff]
    %v6064 = vld [vmem:[%s6061 + $0x10] sm:$0xff]
    %v6065 = vld [vmem:[%s6061 + $0x18] sm:$0xff]
    %v6066 = vld [vmem:[%s6061 + $0x20] sm:$0xff]
    %v6067 = vld [vmem:[%s6061 + $0x28] sm:$0xff]
    %v6068 = vld [vmem:[%s6061 + $0x30] sm:$0xff]
    %v6069 = vld [vmem:[%s6061 + $0x38] sm:$0xff]
    %v6070 = vld [vmem:[%s6061 + $0x40] sm:$0xff]
    %v6071 = vld [vmem:[%s6061 + $0x48] sm:$0xff]
    %v6072 = vld [vmem:[%s6061 + $0x50] sm:$0xff]
    %v6073 = vld [vmem:[%s6061 + $0x58] sm:$0xff]
    %v6074 = vld [vmem:[%s6061 + $0x60] sm:$0xff]
    %v6075 = vld [vmem:[%s6061 + $0x68] sm:$0xff]
    %v6076 = vld [vmem:[%s6061 + $0x70] sm:$0xff]
    %v6077 = vld [vmem:[%s6061 + $0x78] sm:$0xff]
    %v6078 = vrot.slane %v4946, 6
    %v6095 = vunpack.c.l.b16 %v6062
    %v6096 = vunpack.c.h.b16 %v6062
    %v6097 = vunpack.c.l.b16 %v6063
    %v6098 = vunpack.c.h.b16 %v6063
    %v6099 = vunpack.c.l.b16 %v6064
    %v6100 = vunpack.c.h.b16 %v6064
    %v6101 = vunpack.c.l.b16 %v6065
    %v6102 = vunpack.c.h.b16 %v6065
    %v6103 = vunpack.c.l.b16 %v6066
    %v6104 = vunpack.c.h.b16 %v6066
    %v6105 = vunpack.c.l.b16 %v6067
    %v6106 = vunpack.c.h.b16 %v6067
    %v6107 = vunpack.c.l.b16 %v6068
    %v6108 = vunpack.c.h.b16 %v6068
    %v6109 = vunpack.c.l.b16 %v6069
    %v6110 = vunpack.c.h.b16 %v6069
    %v6111 = vunpack.c.l.b16 %v6070
    %v6112 = vunpack.c.h.b16 %v6070
    %v6113 = vunpack.c.l.b16 %v6071
    %v6114 = vunpack.c.h.b16 %v6071
    %v6115 = vunpack.c.l.b16 %v6072
    %v6116 = vunpack.c.h.b16 %v6072
    %v6117 = vunpack.c.l.b16 %v6073
    %v6118 = vunpack.c.h.b16 %v6073
    %v6119 = vunpack.c.l.b16 %v6074
    %v6120 = vunpack.c.h.b16 %v6074
    %v6121 = vunpack.c.l.b16 %v6075
    %v6122 = vunpack.c.h.b16 %v6075
    %v6123 = vunpack.c.l.b16 %v6076
    %v6124 = vunpack.c.h.b16 %v6076
    %v6125 = vunpack.c.l.b16 %v6077
    %v6126 = vunpack.c.h.b16 %v6077
    %v6127 = vpack.c.b16 %v6099, %v6095
    %v6128 = vpack.c.b16 %v6100, %v6096
    %v6129 = vpack.c.b16 %v6101, %v6097
    %v6130 = vpack.c.b16 %v6102, %v6098
    %v6131 = vpack.c.b16 %v6107, %v6103
    %v6132 = vpack.c.b16 %v6108, %v6104
    %v6133 = vpack.c.b16 %v6109, %v6105
    %v6134 = vpack.c.b16 %v6110, %v6106
    %v6135 = vpack.c.b16 %v6115, %v6111
    %v6136 = vpack.c.b16 %v6116, %v6112
    %v6137 = vpack.c.b16 %v6117, %v6113
    %v6138 = vpack.c.b16 %v6118, %v6114
    %v6139 = vpack.c.b16 %v6123, %v6119
    %v6140 = vpack.c.b16 %v6124, %v6120
    %v6141 = vpack.c.b16 %v6125, %v6121
    %v6142 = vpack.c.b16 %v6126, %v6122
    %v6160 = vsel %vm111, %v6078, 0
    %6162 = vmatprep.subr.bf16.mxu0 %v6128
    %6163 = vmatpush1.bf16.msra.mxu0 %v6127
    %6164 = vmatprep.subr.bf16.mxu0 %v6132
    %6165 = vmatpush1.bf16.msra.mxu0 %v6131
    %6166 = vmatprep.subr.bf16.mxu0 %v6136
    %6167 = vmatpush1.bf16.msra.mxu0 %v6135
    %6168 = vmatprep.subr.bf16.mxu0 %v6140
    %6169 = vmatpush1.bf16.msra.mxu0 %v6139
    %6170 = vmatprep.subr.bf16.mxu0 0
    %6171 = vmatpush1.bf16.msra.mxu0 0
    %6172 = vmatprep.subr.bf16.mxu0 0
    %6173 = vmatpush1.bf16.msra.mxu0 0
    %6174 = vmatprep.subr.bf16.mxu0 0
    %6175 = vmatpush1.bf16.msra.mxu0 0
    %6176 = vmatprep.subr.bf16.mxu0 0
    %6177 = vmatpush1.bf16.msra.mxu0 0
    %6178 = vmatprep.subr.bf16.mxu0 0
    %6179 = vmatpush1.bf16.msra.mxu0 0
    %6180 = vmatprep.subr.bf16.mxu0 0
    %6181 = vmatpush1.bf16.msra.mxu0 0
    %6182 = vmatprep.subr.bf16.mxu0 0
    %6183 = vmatpush1.bf16.msra.mxu0 0
    %6184 = vmatprep.subr.bf16.mxu0 0
    %6185 = vmatpush1.bf16.msra.mxu0 0
    %6186 = vmatprep.subr.bf16.mxu0 0
    %6187 = vmatpush1.bf16.msra.mxu0 0
    %6188 = vmatprep.subr.bf16.mxu0 0
    %6189 = vmatpush1.bf16.msra.mxu0 0
    %6190 = vmatprep.subr.bf16.mxu0 0
    %6191 = vmatpush1.bf16.msra.mxu0 0
    %6192 = vmatprep.subr.bf16.mxu0 0
    %6193 = vmatpush1.bf16.msra.mxu0 0
    %6194 = vmatprep.mubr.bf16.mxu0 0
    %6195 = vmatmul.mubr.bf16.gmra.mrb[0].mxu0 %v6160
    %v6196 = vpop.f32.mrb[0].mxu0
    %v6197 = vadd.f32 0.0, %v6196
    %v6198 = vpop.f32.mrb[0].mxu0
    %v6199 = vadd.f32 0.0, %v6198
    %v6200 = vpop.f32.mrb[0].mxu0
    %v6201 = vpop.f32.mrb[0].mxu0
    %6202 = vdwg.mxu0
    %6203 = vmatprep.subr.bf16.mxu0 %v6130
    %6204 = vmatpush1.bf16.msra.mxu0 %v6129
    %6205 = vmatprep.subr.bf16.mxu0 %v6134
    %6206 = vmatpush1.bf16.msra.mxu0 %v6133
    %6207 = vmatprep.subr.bf16.mxu0 %v6138
    %6208 = vmatpush1.bf16.msra.mxu0 %v6137
    %6209 = vmatprep.subr.bf16.mxu0 %v6142
    %6210 = vmatpush1.bf16.msra.mxu0 %v6141
    %6211 = vmatprep.subr.bf16.mxu0 0
    %6212 = vmatpush1.bf16.msra.mxu0 0
    %6213 = vmatprep.subr.bf16.mxu0 0
    %6214 = vmatpush1.bf16.msra.mxu0 0
    %6215 = vmatprep.subr.bf16.mxu0 0
    %6216 = vmatpush1.bf16.msra.mxu0 0
    %6217 = vmatprep.subr.bf16.mxu0 0
    %6218 = vmatpush1.bf16.msra.mxu0 0
    %6219 = vmatprep.subr.bf16.mxu0 0
    %6220 = vmatpush1.bf16.msra.mxu0 0
    %6221 = vmatprep.subr.bf16.mxu0 0
    %6222 = vmatpush1.bf16.msra.mxu0 0
    %6223 = vmatprep.subr.bf16.mxu0 0
    %6224 = vmatpush1.bf16.msra.mxu0 0
    %6225 = vmatprep.subr.bf16.mxu0 0
    %6226 = vmatpush1.bf16.msra.mxu0 0
    %6227 = vmatprep.subr.bf16.mxu0 0
    %6228 = vmatpush1.bf16.msra.mxu0 0
    %6229 = vmatprep.subr.bf16.mxu0 0
    %6230 = vmatpush1.bf16.msra.mxu0 0
    %6231 = vmatprep.subr.bf16.mxu0 0
    %6232 = vmatpush1.bf16.msra.mxu0 0
    %6233 = vmatprep.subr.bf16.mxu0 0
    %6234 = vmatpush1.bf16.msra.mxu0 0
    %6235 = vmatprep.mubr.bf16.mxu0 0
    %6236 = vmatmul.mubr.bf16.gmra.mrb[0].mxu0 %v6160
    %v6237 = vpop.f32.mrb[0].mxu0
    %v6238 = vadd.f32 0.0, %v6237
    %v6239 = vpop.f32.mrb[0].mxu0
    %v6240 = vadd.f32 0.0, %v6239
    %v6241 = vpop.f32.mrb[0].mxu0
    %v6242 = vpop.f32.mrb[0].mxu0
    %6243 = vdwg.mxu0
    %v6244 = vadd.f32 %v6057, %v6197
    %v6245 = vadd.f32 %v6058, %v6199
    %v6246 = vadd.f32 %v6059, %v6238
    %v6247 = vadd.f32 %v6060, %v6240
    %s6248 = scalar_lea.vmem %s7, 896
    %v6249 = vld [vmem:[%s6248] sm:$0xff]
    %v6250 = vld [vmem:[%s6248 + $0x8] sm:$0xff]
    %v6251 = vld [vmem:[%s6248 + $0x10] sm:$0xff]
    %v6252 = vld [vmem:[%s6248 + $0x18] sm:$0xff]
    %v6253 = vld [vmem:[%s6248 + $0x20] sm:$0xff]
    %v6254 = vld [vmem:[%s6248 + $0x28] sm:$0xff]
    %v6255 = vld [vmem:[%s6248 + $0x30] sm:$0xff]
    %v6256 = vld [vmem:[%s6248 + $0x38] sm:$0xff]
    %v6257 = vld [vmem:[%s6248 + $0x40] sm:$0xff]
    %v6258 = vld [vmem:[%s6248 + $0x48] sm:$0xff]
    %v6259 = vld [vmem:[%s6248 + $0x50] sm:$0xff]
    %v6260 = vld [vmem:[%s6248 + $0x58] sm:$0xff]
    %v6261 = vld [vmem:[%s6248 + $0x60] sm:$0xff]
    %v6262 = vld [vmem:[%s6248 + $0x68] sm:$0xff]
    %v6263 = vld [vmem:[%s6248 + $0x70] sm:$0xff]
    %v6264 = vld [vmem:[%s6248 + $0x78] sm:$0xff]
    %v6265 = vrot.slane %v4946, 7
    %v6282 = vunpack.c.l.b16 %v6249
    %v6283 = vunpack.c.h.b16 %v6249
    %v6284 = vunpack.c.l.b16 %v6250
    %v6285 = vunpack.c.h.b16 %v6250
    %v6286 = vunpack.c.l.b16 %v6251
    %v6287 = vunpack.c.h.b16 %v6251
    %v6288 = vunpack.c.l.b16 %v6252
    %v6289 = vunpack.c.h.b16 %v6252
    %v6290 = vunpack.c.l.b16 %v6253
    %v6291 = vunpack.c.h.b16 %v6253
    %v6292 = vunpack.c.l.b16 %v6254
    %v6293 = vunpack.c.h.b16 %v6254
    %v6294 = vunpack.c.l.b16 %v6255
    %v6295 = vunpack.c.h.b16 %v6255
    %v6296 = vunpack.c.l.b16 %v6256
    %v6297 = vunpack.c.h.b16 %v6256
    %v6298 = vunpack.c.l.b16 %v6257
    %v6299 = vunpack.c.h.b16 %v6257
    %v6300 = vunpack.c.l.b16 %v6258
    %v6301 = vunpack.c.h.b16 %v6258
    %v6302 = vunpack.c.l.b16 %v6259
    %v6303 = vunpack.c.h.b16 %v6259
    %v6304 = vunpack.c.l.b16 %v6260
    %v6305 = vunpack.c.h.b16 %v6260
    %v6306 = vunpack.c.l.b16 %v6261
    %v6307 = vunpack.c.h.b16 %v6261
    %v6308 = vunpack.c.l.b16 %v6262
    %v6309 = vunpack.c.h.b16 %v6262
    %v6310 = vunpack.c.l.b16 %v6263
    %v6311 = vunpack.c.h.b16 %v6263
    %v6312 = vunpack.c.l.b16 %v6264
    %v6313 = vunpack.c.h.b16 %v6264
    %v6314 = vpack.c.b16 %v6286, %v6282
    %v6315 = vpack.c.b16 %v6287, %v6283
    %v6316 = vpack.c.b16 %v6288, %v6284
    %v6317 = vpack.c.b16 %v6289, %v6285
    %v6318 = vpack.c.b16 %v6294, %v6290
    %v6319 = vpack.c.b16 %v6295, %v6291
    %v6320 = vpack.c.b16 %v6296, %v6292
    %v6321 = vpack.c.b16 %v6297, %v6293
    %v6322 = vpack.c.b16 %v6302, %v6298
    %v6323 = vpack.c.b16 %v6303, %v6299
    %v6324 = vpack.c.b16 %v6304, %v6300
    %v6325 = vpack.c.b16 %v6305, %v6301
    %v6326 = vpack.c.b16 %v6310, %v6306
    %v6327 = vpack.c.b16 %v6311, %v6307
    %v6328 = vpack.c.b16 %v6312, %v6308
    %v6329 = vpack.c.b16 %v6313, %v6309
    %v6347 = vsel %vm111, %v6265, 0
    %6349 = vmatprep.subr.bf16.mxu0 %v6315
    %6350 = vmatpush1.bf16.msra.mxu0 %v6314
    %6351 = vmatprep.subr.bf16.mxu0 %v6319
    %6352 = vmatpush1.bf16.msra.mxu0 %v6318
    %6353 = vmatprep.subr.bf16.mxu0 %v6323
    %6354 = vmatpush1.bf16.msra.mxu0 %v6322
    %6355 = vmatprep.subr.bf16.mxu0 %v6327
    %6356 = vmatpush1.bf16.msra.mxu0 %v6326
    %6357 = vmatprep.subr.bf16.mxu0 0
    %6358 = vmatpush1.bf16.msra.mxu0 0
    %6359 = vmatprep.subr.bf16.mxu0 0
    %6360 = vmatpush1.bf16.msra.mxu0 0
    %6361 = vmatprep.subr.bf16.mxu0 0
    %6362 = vmatpush1.bf16.msra.mxu0 0
    %6363 = vmatprep.subr.bf16.mxu0 0
    %6364 = vmatpush1.bf16.msra.mxu0 0
    %6365 = vmatprep.subr.bf16.mxu0 0
    %6366 = vmatpush1.bf16.msra.mxu0 0
    %6367 = vmatprep.subr.bf16.mxu0 0
    %6368 = vmatpush1.bf16.msra.mxu0 0
    %6369 = vmatprep.subr.bf16.mxu0 0
    %6370 = vmatpush1.bf16.msra.mxu0 0
    %6371 = vmatprep.subr.bf16.mxu0 0
    %6372 = vmatpush1.bf16.msra.mxu0 0
    %6373 = vmatprep.subr.bf16.mxu0 0
    %6374 = vmatpush1.bf16.msra.mxu0 0
    %6375 = vmatprep.subr.bf16.mxu0 0
    %6376 = vmatpush1.bf16.msra.mxu0 0
    %6377 = vmatprep.subr.bf16.mxu0 0
    %6378 = vmatpush1.bf16.msra.mxu0 0
    %6379 = vmatprep.subr.bf16.mxu0 0
    %6380 = vmatpush1.bf16.msra.mxu0 0
    %6381 = vmatprep.mubr.bf16.mxu0 0
    %6382 = vmatmul.mubr.bf16.gmra.mrb[0].mxu0 %v6347
    %v6383 = vpop.f32.mrb[0].mxu0
    %v6384 = vadd.f32 0.0, %v6383
    %v6385 = vpop.f32.mrb[0].mxu0
    %v6386 = vadd.f32 0.0, %v6385
    %v6387 = vpop.f32.mrb[0].mxu0
    %v6388 = vpop.f32.mrb[0].mxu0
    %6389 = vdwg.mxu0
    %6390 = vmatprep.subr.bf16.mxu0 %v6317
    %6391 = vmatpush1.bf16.msra.mxu0 %v6316
    %6392 = vmatprep.subr.bf16.mxu0 %v6321
    %6393 = vmatpush1.bf16.msra.mxu0 %v6320
    %6394 = vmatprep.subr.bf16.mxu0 %v6325
    %6395 = vmatpush1.bf16.msra.mxu0 %v6324
    %6396 = vmatprep.subr.bf16.mxu0 %v6329
    %6397 = vmatpush1.bf16.msra.mxu0 %v6328
    %6398 = vmatprep.subr.bf16.mxu0 0
    %6399 = vmatpush1.bf16.msra.mxu0 0
    %6400 = vmatprep.subr.bf16.mxu0 0
    %6401 = vmatpush1.bf16.msra.mxu0 0
    %6402 = vmatprep.subr.bf16.mxu0 0
    %6403 = vmatpush1.bf16.msra.mxu0 0
    %6404 = vmatprep.subr.bf16.mxu0 0
    %6405 = vmatpush1.bf16.msra.mxu0 0
    %6406 = vmatprep.subr.bf16.mxu0 0
    %6407 = vmatpush1.bf16.msra.mxu0 0
    %6408 = vmatprep.subr.bf16.mxu0 0
    %6409 = vmatpush1.bf16.msra.mxu0 0
    %6410 = vmatprep.subr.bf16.mxu0 0
    %6411 = vmatpush1.bf16.msra.mxu0 0
    %6412 = vmatprep.subr.bf16.mxu0 0
    %6413 = vmatpush1.bf16.msra.mxu0 0
    %6414 = vmatprep.subr.bf16.mxu0 0
    %6415 = vmatpush1.bf16.msra.mxu0 0
    %6416 = vmatprep.subr.bf16.mxu0 0
    %6417 = vmatpush1.bf16.msra.mxu0 0
    %6418 = vmatprep.subr.bf16.mxu0 0
    %6419 = vmatpush1.bf16.msra.mxu0 0
    %6420 = vmatprep.subr.bf16.mxu0 0
    %6421 = vmatpush1.bf16.msra.mxu0 0
    %6422 = vmatprep.mubr.bf16.mxu0 0
    %6423 = vmatmul.mubr.bf16.gmra.mrb[0].mxu0 %v6347
    %v6424 = vpop.f32.mrb[0].mxu0
    %v6425 = vadd.f32 0.0, %v6424
    %v6426 = vpop.f32.mrb[0].mxu0
    %v6427 = vadd.f32 0.0, %v6426
    %v6428 = vpop.f32.mrb[0].mxu0
    %v6429 = vpop.f32.mrb[0].mxu0
    %6430 = vdwg.mxu0
    %v6431 = vadd.f32 %v6244, %v6384
    %v6432 = vadd.f32 %v6245, %v6386
    %v6433 = vadd.f32 %v6246, %v6425
    %v6434 = vadd.f32 %v6247, %v6427
    %s6435 = scalar_lea.vmem %s7, 1024
    %v6436 = vld [vmem:[%s6435] sm:$0xff]
    %v6437 = vld [vmem:[%s6435 + $0x8] sm:$0xff]
    %v6438 = vld [vmem:[%s6435 + $0x10] sm:$0xff]
    %v6439 = vld [vmem:[%s6435 + $0x18] sm:$0xff]
    %v6440 = vld [vmem:[%s6435 + $0x20] sm:$0xff]
    %v6441 = vld [vmem:[%s6435 + $0x28] sm:$0xff]
    %v6442 = vld [vmem:[%s6435 + $0x30] sm:$0xff]
    %v6443 = vld [vmem:[%s6435 + $0x38] sm:$0xff]
    %v6444 = vld [vmem:[%s6435 + $0x40] sm:$0xff]
    %v6445 = vld [vmem:[%s6435 + $0x48] sm:$0xff]
    %v6446 = vld [vmem:[%s6435 + $0x50] sm:$0xff]
    %v6447 = vld [vmem:[%s6435 + $0x58] sm:$0xff]
    %v6448 = vld [vmem:[%s6435 + $0x60] sm:$0xff]
    %v6449 = vld [vmem:[%s6435 + $0x68] sm:$0xff]
    %v6450 = vld [vmem:[%s6435 + $0x70] sm:$0xff]
    %v6451 = vld [vmem:[%s6435 + $0x78] sm:$0xff]
    %v6468 = vunpack.c.l.b16 %v6436
    %v6469 = vunpack.c.h.b16 %v6436
    %v6470 = vunpack.c.l.b16 %v6437
    %v6471 = vunpack.c.h.b16 %v6437
    %v6472 = vunpack.c.l.b16 %v6438
    %v6473 = vunpack.c.h.b16 %v6438
    %v6474 = vunpack.c.l.b16 %v6439
    %v6475 = vunpack.c.h.b16 %v6439
    %v6476 = vunpack.c.l.b16 %v6440
    %v6477 = vunpack.c.h.b16 %v6440
    %v6478 = vunpack.c.l.b16 %v6441
    %v6479 = vunpack.c.h.b16 %v6441
    %v6480 = vunpack.c.l.b16 %v6442
    %v6481 = vunpack.c.h.b16 %v6442
    %v6482 = vunpack.c.l.b16 %v6443
    %v6483 = vunpack.c.h.b16 %v6443
    %v6484 = vunpack.c.l.b16 %v6444
    %v6485 = vunpack.c.h.b16 %v6444
    %v6486 = vunpack.c.l.b16 %v6445
    %v6487 = vunpack.c.h.b16 %v6445
    %v6488 = vunpack.c.l.b16 %v6446
    %v6489 = vunpack.c.h.b16 %v6446
    %v6490 = vunpack.c.l.b16 %v6447
    %v6491 = vunpack.c.h.b16 %v6447
    %v6492 = vunpack.c.l.b16 %v6448
    %v6493 = vunpack.c.h.b16 %v6448
    %v6494 = vunpack.c.l.b16 %v6449
    %v6495 = vunpack.c.h.b16 %v6449
    %v6496 = vunpack.c.l.b16 %v6450
    %v6497 = vunpack.c.h.b16 %v6450
    %v6498 = vunpack.c.l.b16 %v6451
    %v6499 = vunpack.c.h.b16 %v6451
    %v6500 = vpack.c.b16 %v6472, %v6468
    %v6501 = vpack.c.b16 %v6473, %v6469
    %v6502 = vpack.c.b16 %v6474, %v6470
    %v6503 = vpack.c.b16 %v6475, %v6471
    %v6504 = vpack.c.b16 %v6480, %v6476
    %v6505 = vpack.c.b16 %v6481, %v6477
    %v6506 = vpack.c.b16 %v6482, %v6478
    %v6507 = vpack.c.b16 %v6483, %v6479
    %v6508 = vpack.c.b16 %v6488, %v6484
    %v6509 = vpack.c.b16 %v6489, %v6485
    %v6510 = vpack.c.b16 %v6490, %v6486
    %v6511 = vpack.c.b16 %v6491, %v6487
    %v6512 = vpack.c.b16 %v6496, %v6492
    %v6513 = vpack.c.b16 %v6497, %v6493
    %v6514 = vpack.c.b16 %v6498, %v6494
    %v6515 = vpack.c.b16 %v6499, %v6495
    %v6533 = vsel %vm111, %v4947, 0
    %6535 = vmatprep.subr.bf16.mxu0 %v6501
    %6536 = vmatpush1.bf16.msra.mxu0 %v6500
    %6537 = vmatprep.subr.bf16.mxu0 %v6505
    %6538 = vmatpush1.bf16.msra.mxu0 %v6504
    %6539 = vmatprep.subr.bf16.mxu0 %v6509
    %6540 = vmatpush1.bf16.msra.mxu0 %v6508
    %6541 = vmatprep.subr.bf16.mxu0 %v6513
    %6542 = vmatpush1.bf16.msra.mxu0 %v6512
    %6543 = vmatprep.subr.bf16.mxu0 0
    %6544 = vmatpush1.bf16.msra.mxu0 0
    %6545 = vmatprep.subr.bf16.mxu0 0
    %6546 = vmatpush1.bf16.msra.mxu0 0
    %6547 = vmatprep.subr.bf16.mxu0 0
    %6548 = vmatpush1.bf16.msra.mxu0 0
    %6549 = vmatprep.subr.bf16.mxu0 0
    %6550 = vmatpush1.bf16.msra.mxu0 0
    %6551 = vmatprep.subr.bf16.mxu0 0
    %6552 = vmatpush1.bf16.msra.mxu0 0
    %6553 = vmatprep.subr.bf16.mxu0 0
    %6554 = vmatpush1.bf16.msra.mxu0 0
    %6555 = vmatprep.subr.bf16.mxu0 0
    %6556 = vmatpush1.bf16.msra.mxu0 0
    %6557 = vmatprep.subr.bf16.mxu0 0
    %6558 = vmatpush1.bf16.msra.mxu0 0
    %6559 = vmatprep.subr.bf16.mxu0 0
    %6560 = vmatpush1.bf16.msra.mxu0 0
    %6561 = vmatprep.subr.bf16.mxu0 0
    %6562 = vmatpush1.bf16.msra.mxu0 0
    %6563 = vmatprep.subr.bf16.mxu0 0
    %6564 = vmatpush1.bf16.msra.mxu0 0
    %6565 = vmatprep.subr.bf16.mxu0 0
    %6566 = vmatpush1.bf16.msra.mxu0 0
    %6567 = vmatprep.mubr.bf16.mxu0 0
    %6568 = vmatmul.mubr.bf16.gmra.mrb[0].mxu0 %v6533
    %v6569 = vpop.f32.mrb[0].mxu0
    %v6570 = vadd.f32 0.0, %v6569
    %v6571 = vpop.f32.mrb[0].mxu0
    %v6572 = vadd.f32 0.0, %v6571
    %v6573 = vpop.f32.mrb[0].mxu0
    %v6574 = vpop.f32.mrb[0].mxu0
    %6575 = vdwg.mxu0
    %6576 = vmatprep.subr.bf16.mxu0 %v6503
    %6577 = vmatpush1.bf16.msra.mxu0 %v6502
    %6578 = vmatprep.subr.bf16.mxu0 %v6507
    %6579 = vmatpush1.bf16.msra.mxu0 %v6506
    %6580 = vmatprep.subr.bf16.mxu0 %v6511
    %6581 = vmatpush1.bf16.msra.mxu0 %v6510
    %6582 = vmatprep.subr.bf16.mxu0 %v6515
    %6583 = vmatpush1.bf16.msra.mxu0 %v6514
    %6584 = vmatprep.subr.bf16.mxu0 0
    %6585 = vmatpush1.bf16.msra.mxu0 0
    %6586 = vmatprep.subr.bf16.mxu0 0
    %6587 = vmatpush1.bf16.msra.mxu0 0
    %6588 = vmatprep.subr.bf16.mxu0 0
    %6589 = vmatpush1.bf16.msra.mxu0 0
    %6590 = vmatprep.subr.bf16.mxu0 0
    %6591 = vmatpush1.bf16.msra.mxu0 0
    %6592 = vmatprep.subr.bf16.mxu0 0
    %6593 = vmatpush1.bf16.msra.mxu0 0
    %6594 = vmatprep.subr.bf16.mxu0 0
    %6595 = vmatpush1.bf16.msra.mxu0 0
    %6596 = vmatprep.subr.bf16.mxu0 0
    %6597 = vmatpush1.bf16.msra.mxu0 0
    %6598 = vmatprep.subr.bf16.mxu0 0
    %6599 = vmatpush1.bf16.msra.mxu0 0
    %6600 = vmatprep.subr.bf16.mxu0 0
    %6601 = vmatpush1.bf16.msra.mxu0 0
    %6602 = vmatprep.subr.bf16.mxu0 0
    %6603 = vmatpush1.bf16.msra.mxu0 0
    %6604 = vmatprep.subr.bf16.mxu0 0
    %6605 = vmatpush1.bf16.msra.mxu0 0
    %6606 = vmatprep.subr.bf16.mxu0 0
    %6607 = vmatpush1.bf16.msra.mxu0 0
    %6608 = vmatprep.mubr.bf16.mxu0 0
    %6609 = vmatmul.mubr.bf16.gmra.mrb[0].mxu0 %v6533
    %v6610 = vpop.f32.mrb[0].mxu0
    %v6611 = vadd.f32 0.0, %v6610
    %v6612 = vpop.f32.mrb[0].mxu0
    %v6613 = vadd.f32 0.0, %v6612
    %v6614 = vpop.f32.mrb[0].mxu0
    %v6615 = vpop.f32.mrb[0].mxu0
    %6616 = vdwg.mxu0
    %v6617 = vadd.f32 %v6431, %v6570
    %v6618 = vadd.f32 %v6432, %v6572
    %v6619 = vadd.f32 %v6433, %v6611
    %v6620 = vadd.f32 %v6434, %v6613
    %s6621 = scalar_lea.vmem %s7, 1152
    %v6622 = vld [vmem:[%s6621] sm:$0xff]
    %v6623 = vld [vmem:[%s6621 + $0x8] sm:$0xff]
    %v6624 = vld [vmem:[%s6621 + $0x10] sm:$0xff]
    %v6625 = vld [vmem:[%s6621 + $0x18] sm:$0xff]
    %v6626 = vld [vmem:[%s6621 + $0x20] sm:$0xff]
    %v6627 = vld [vmem:[%s6621 + $0x28] sm:$0xff]
    %v6628 = vld [vmem:[%s6621 + $0x30] sm:$0xff]
    %v6629 = vld [vmem:[%s6621 + $0x38] sm:$0xff]
    %v6630 = vld [vmem:[%s6621 + $0x40] sm:$0xff]
    %v6631 = vld [vmem:[%s6621 + $0x48] sm:$0xff]
    %v6632 = vld [vmem:[%s6621 + $0x50] sm:$0xff]
    %v6633 = vld [vmem:[%s6621 + $0x58] sm:$0xff]
    %v6634 = vld [vmem:[%s6621 + $0x60] sm:$0xff]
    %v6635 = vld [vmem:[%s6621 + $0x68] sm:$0xff]
    %v6636 = vld [vmem:[%s6621 + $0x70] sm:$0xff]
    %v6637 = vld [vmem:[%s6621 + $0x78] sm:$0xff]
    %v6639 = vrot.slane %v4947, 1
    %v6656 = vunpack.c.l.b16 %v6622
    %v6657 = vunpack.c.h.b16 %v6622
    %v6658 = vunpack.c.l.b16 %v6623
    %v6659 = vunpack.c.h.b16 %v6623
    %v6660 = vunpack.c.l.b16 %v6624
    %v6661 = vunpack.c.h.b16 %v6624
    %v6662 = vunpack.c.l.b16 %v6625
    %v6663 = vunpack.c.h.b16 %v6625
    %v6664 = vunpack.c.l.b16 %v6626
    %v6665 = vunpack.c.h.b16 %v6626
    %v6666 = vunpack.c.l.b16 %v6627
    %v6667 = vunpack.c.h.b16 %v6627
    %v6668 = vunpack.c.l.b16 %v6628
    %v6669 = vunpack.c.h.b16 %v6628
    %v6670 = vunpack.c.l.b16 %v6629
    %v6671 = vunpack.c.h.b16 %v6629
    %v6672 = vunpack.c.l.b16 %v6630
    %v6673 = vunpack.c.h.b16 %v6630
    %v6674 = vunpack.c.l.b16 %v6631
    %v6675 = vunpack.c.h.b16 %v6631
    %v6676 = vunpack.c.l.b16 %v6632
    %v6677 = vunpack.c.h.b16 %v6632
    %v6678 = vunpack.c.l.b16 %v6633
    %v6679 = vunpack.c.h.b16 %v6633
    %v6680 = vunpack.c.l.b16 %v6634
    %v6681 = vunpack.c.h.b16 %v6634
    %v6682 = vunpack.c.l.b16 %v6635
    %v6683 = vunpack.c.h.b16 %v6635
    %v6684 = vunpack.c.l.b16 %v6636
    %v6685 = vunpack.c.h.b16 %v6636
    %v6686 = vunpack.c.l.b16 %v6637
    %v6687 = vunpack.c.h.b16 %v6637
    %v6688 = vpack.c.b16 %v6660, %v6656
    %v6689 = vpack.c.b16 %v6661, %v6657
    %v6690 = vpack.c.b16 %v6662, %v6658
    %v6691 = vpack.c.b16 %v6663, %v6659
    %v6692 = vpack.c.b16 %v6668, %v6664
    %v6693 = vpack.c.b16 %v6669, %v6665
    %v6694 = vpack.c.b16 %v6670, %v6666
    %v6695 = vpack.c.b16 %v6671, %v6667
    %v6696 = vpack.c.b16 %v6676, %v6672
    %v6697 = vpack.c.b16 %v6677, %v6673
    %v6698 = vpack.c.b16 %v6678, %v6674
    %v6699 = vpack.c.b16 %v6679, %v6675
    %v6700 = vpack.c.b16 %v6684, %v6680
    %v6701 = vpack.c.b16 %v6685, %v6681
    %v6702 = vpack.c.b16 %v6686, %v6682
    %v6703 = vpack.c.b16 %v6687, %v6683
    %v6721 = vsel %vm111, %v6639, 0
    %6723 = vmatprep.subr.bf16.mxu0 %v6689
    %6724 = vmatpush1.bf16.msra.mxu0 %v6688
    %6725 = vmatprep.subr.bf16.mxu0 %v6693
    %6726 = vmatpush1.bf16.msra.mxu0 %v6692
    %6727 = vmatprep.subr.bf16.mxu0 %v6697
    %6728 = vmatpush1.bf16.msra.mxu0 %v6696
    %6729 = vmatprep.subr.bf16.mxu0 %v6701
    %6730 = vmatpush1.bf16.msra.mxu0 %v6700
    %6731 = vmatprep.subr.bf16.mxu0 0
    %6732 = vmatpush1.bf16.msra.mxu0 0
    %6733 = vmatprep.subr.bf16.mxu0 0
    %6734 = vmatpush1.bf16.msra.mxu0 0
    %6735 = vmatprep.subr.bf16.mxu0 0
    %6736 = vmatpush1.bf16.msra.mxu0 0
    %6737 = vmatprep.subr.bf16.mxu0 0
    %6738 = vmatpush1.bf16.msra.mxu0 0
    %6739 = vmatprep.subr.bf16.mxu0 0
    %6740 = vmatpush1.bf16.msra.mxu0 0
    %6741 = vmatprep.subr.bf16.mxu0 0
    %6742 = vmatpush1.bf16.msra.mxu0 0
    %6743 = vmatprep.subr.bf16.mxu0 0
    %6744 = vmatpush1.bf16.msra.mxu0 0
    %6745 = vmatprep.subr.bf16.mxu0 0
    %6746 = vmatpush1.bf16.msra.mxu0 0
    %6747 = vmatprep.subr.bf16.mxu0 0
    %6748 = vmatpush1.bf16.msra.mxu0 0
    %6749 = vmatprep.subr.bf16.mxu0 0
    %6750 = vmatpush1.bf16.msra.mxu0 0
    %6751 = vmatprep.subr.bf16.mxu0 0
    %6752 = vmatpush1.bf16.msra.mxu0 0
    %6753 = vmatprep.subr.bf16.mxu0 0
    %6754 = vmatpush1.bf16.msra.mxu0 0
    %6755 = vmatprep.mubr.bf16.mxu0 0
    %6756 = vmatmul.mubr.bf16.gmra.mrb[0].mxu0 %v6721
    %v6757 = vpop.f32.mrb[0].mxu0
    %v6758 = vadd.f32 0.0, %v6757
    %v6759 = vpop.f32.mrb[0].mxu0
    %v6760 = vadd.f32 0.0, %v6759
    %v6761 = vpop.f32.mrb[0].mxu0
    %v6762 = vpop.f32.mrb[0].mxu0
    %6763 = vdwg.mxu0
    %6764 = vmatprep.subr.bf16.mxu0 %v6691
    %6765 = vmatpush1.bf16.msra.mxu0 %v6690
    %6766 = vmatprep.subr.bf16.mxu0 %v6695
    %6767 = vmatpush1.bf16.msra.mxu0 %v6694
    %6768 = vmatprep.subr.bf16.mxu0 %v6699
    %6769 = vmatpush1.bf16.msra.mxu0 %v6698
    %6770 = vmatprep.subr.bf16.mxu0 %v6703
    %6771 = vmatpush1.bf16.msra.mxu0 %v6702
    %6772 = vmatprep.subr.bf16.mxu0 0
    %6773 = vmatpush1.bf16.msra.mxu0 0
    %6774 = vmatprep.subr.bf16.mxu0 0
    %6775 = vmatpush1.bf16.msra.mxu0 0
    %6776 = vmatprep.subr.bf16.mxu0 0
    %6777 = vmatpush1.bf16.msra.mxu0 0
    %6778 = vmatprep.subr.bf16.mxu0 0
    %6779 = vmatpush1.bf16.msra.mxu0 0
    %6780 = vmatprep.subr.bf16.mxu0 0
    %6781 = vmatpush1.bf16.msra.mxu0 0
    %6782 = vmatprep.subr.bf16.mxu0 0
    %6783 = vmatpush1.bf16.msra.mxu0 0
    %6784 = vmatprep.subr.bf16.mxu0 0
    %6785 = vmatpush1.bf16.msra.mxu0 0
    %6786 = vmatprep.subr.bf16.mxu0 0
    %6787 = vmatpush1.bf16.msra.mxu0 0
    %6788 = vmatprep.subr.bf16.mxu0 0
    %6789 = vmatpush1.bf16.msra.mxu0 0
    %6790 = vmatprep.subr.bf16.mxu0 0
    %6791 = vmatpush1.bf16.msra.mxu0 0
    %6792 = vmatprep.subr.bf16.mxu0 0
    %6793 = vmatpush1.bf16.msra.mxu0 0
    %6794 = vmatprep.subr.bf16.mxu0 0
    %6795 = vmatpush1.bf16.msra.mxu0 0
    %6796 = vmatprep.mubr.bf16.mxu0 0
    %6797 = vmatmul.mubr.bf16.gmra.mrb[0].mxu0 %v6721
    %v6798 = vpop.f32.mrb[0].mxu0
    %v6799 = vadd.f32 0.0, %v6798
    %v6800 = vpop.f32.mrb[0].mxu0
    %v6801 = vadd.f32 0.0, %v6800
    %v6802 = vpop.f32.mrb[0].mxu0
    %v6803 = vpop.f32.mrb[0].mxu0
    %6804 = vdwg.mxu0
    %v6805 = vadd.f32 %v6617, %v6758
    %v6806 = vadd.f32 %v6618, %v6760
    %v6807 = vadd.f32 %v6619, %v6799
    %v6808 = vadd.f32 %v6620, %v6801
    %s6809 = scalar_lea.vmem %s7, 1280
    %v6810 = vld [vmem:[%s6809] sm:$0xff]
    %v6811 = vld [vmem:[%s6809 + $0x8] sm:$0xff]
    %v6812 = vld [vmem:[%s6809 + $0x10] sm:$0xff]
    %v6813 = vld [vmem:[%s6809 + $0x18] sm:$0xff]
    %v6814 = vld [vmem:[%s6809 + $0x20] sm:$0xff]
    %v6815 = vld [vmem:[%s6809 + $0x28] sm:$0xff]
    %v6816 = vld [vmem:[%s6809 + $0x30] sm:$0xff]
    %v6817 = vld [vmem:[%s6809 + $0x38] sm:$0xff]
    %v6818 = vld [vmem:[%s6809 + $0x40] sm:$0xff]
    %v6819 = vld [vmem:[%s6809 + $0x48] sm:$0xff]
    %v6820 = vld [vmem:[%s6809 + $0x50] sm:$0xff]
    %v6821 = vld [vmem:[%s6809 + $0x58] sm:$0xff]
    %v6822 = vld [vmem:[%s6809 + $0x60] sm:$0xff]
    %v6823 = vld [vmem:[%s6809 + $0x68] sm:$0xff]
    %v6824 = vld [vmem:[%s6809 + $0x70] sm:$0xff]
    %v6825 = vld [vmem:[%s6809 + $0x78] sm:$0xff]
    %v6826 = vrot.slane %v4947, 2
    %v6843 = vunpack.c.l.b16 %v6810
    %v6844 = vunpack.c.h.b16 %v6810
    %v6845 = vunpack.c.l.b16 %v6811
    %v6846 = vunpack.c.h.b16 %v6811
    %v6847 = vunpack.c.l.b16 %v6812
    %v6848 = vunpack.c.h.b16 %v6812
    %v6849 = vunpack.c.l.b16 %v6813
    %v6850 = vunpack.c.h.b16 %v6813
    %v6851 = vunpack.c.l.b16 %v6814
    %v6852 = vunpack.c.h.b16 %v6814
    %v6853 = vunpack.c.l.b16 %v6815
    %v6854 = vunpack.c.h.b16 %v6815
    %v6855 = vunpack.c.l.b16 %v6816
    %v6856 = vunpack.c.h.b16 %v6816
    %v6857 = vunpack.c.l.b16 %v6817
    %v6858 = vunpack.c.h.b16 %v6817
    %v6859 = vunpack.c.l.b16 %v6818
    %v6860 = vunpack.c.h.b16 %v6818
    %v6861 = vunpack.c.l.b16 %v6819
    %v6862 = vunpack.c.h.b16 %v6819
    %v6863 = vunpack.c.l.b16 %v6820
    %v6864 = vunpack.c.h.b16 %v6820
    %v6865 = vunpack.c.l.b16 %v6821
    %v6866 = vunpack.c.h.b16 %v6821
    %v6867 = vunpack.c.l.b16 %v6822
    %v6868 = vunpack.c.h.b16 %v6822
    %v6869 = vunpack.c.l.b16 %v6823
    %v6870 = vunpack.c.h.b16 %v6823
    %v6871 = vunpack.c.l.b16 %v6824
    %v6872 = vunpack.c.h.b16 %v6824
    %v6873 = vunpack.c.l.b16 %v6825
    %v6874 = vunpack.c.h.b16 %v6825
    %v6875 = vpack.c.b16 %v6847, %v6843
    %v6876 = vpack.c.b16 %v6848, %v6844
    %v6877 = vpack.c.b16 %v6849, %v6845
    %v6878 = vpack.c.b16 %v6850, %v6846
    %v6879 = vpack.c.b16 %v6855, %v6851
    %v6880 = vpack.c.b16 %v6856, %v6852
    %v6881 = vpack.c.b16 %v6857, %v6853
    %v6882 = vpack.c.b16 %v6858, %v6854
    %v6883 = vpack.c.b16 %v6863, %v6859
    %v6884 = vpack.c.b16 %v6864, %v6860
    %v6885 = vpack.c.b16 %v6865, %v6861
    %v6886 = vpack.c.b16 %v6866, %v6862
    %v6887 = vpack.c.b16 %v6871, %v6867
    %v6888 = vpack.c.b16 %v6872, %v6868
    %v6889 = vpack.c.b16 %v6873, %v6869
    %v6890 = vpack.c.b16 %v6874, %v6870
    %v6908 = vsel %vm111, %v6826, 0
    %6910 = vmatprep.subr.bf16.mxu0 %v6876
    %6911 = vmatpush1.bf16.msra.mxu0 %v6875
    %6912 = vmatprep.subr.bf16.mxu0 %v6880
    %6913 = vmatpush1.bf16.msra.mxu0 %v6879
    %6914 = vmatprep.subr.bf16.mxu0 %v6884
    %6915 = vmatpush1.bf16.msra.mxu0 %v6883
    %6916 = vmatprep.subr.bf16.mxu0 %v6888
    %6917 = vmatpush1.bf16.msra.mxu0 %v6887
    %6918 = vmatprep.subr.bf16.mxu0 0
    %6919 = vmatpush1.bf16.msra.mxu0 0
    %6920 = vmatprep.subr.bf16.mxu0 0
    %6921 = vmatpush1.bf16.msra.mxu0 0
    %6922 = vmatprep.subr.bf16.mxu0 0
    %6923 = vmatpush1.bf16.msra.mxu0 0
    %6924 = vmatprep.subr.bf16.mxu0 0
    %6925 = vmatpush1.bf16.msra.mxu0 0
    %6926 = vmatprep.subr.bf16.mxu0 0
    %6927 = vmatpush1.bf16.msra.mxu0 0
    %6928 = vmatprep.subr.bf16.mxu0 0
    %6929 = vmatpush1.bf16.msra.mxu0 0
    %6930 = vmatprep.subr.bf16.mxu0 0
    %6931 = vmatpush1.bf16.msra.mxu0 0
    %6932 = vmatprep.subr.bf16.mxu0 0
    %6933 = vmatpush1.bf16.msra.mxu0 0
    %6934 = vmatprep.subr.bf16.mxu0 0
    %6935 = vmatpush1.bf16.msra.mxu0 0
    %6936 = vmatprep.subr.bf16.mxu0 0
    %6937 = vmatpush1.bf16.msra.mxu0 0
    %6938 = vmatprep.subr.bf16.mxu0 0
    %6939 = vmatpush1.bf16.msra.mxu0 0
    %6940 = vmatprep.subr.bf16.mxu0 0
    %6941 = vmatpush1.bf16.msra.mxu0 0
    %6942 = vmatprep.mubr.bf16.mxu0 0
    %6943 = vmatmul.mubr.bf16.gmra.mrb[0].mxu0 %v6908
    %v6944 = vpop.f32.mrb[0].mxu0
    %v6945 = vadd.f32 0.0, %v6944
    %v6946 = vpop.f32.mrb[0].mxu0
    %v6947 = vadd.f32 0.0, %v6946
    %v6948 = vpop.f32.mrb[0].mxu0
    %v6949 = vpop.f32.mrb[0].mxu0
    %6950 = vdwg.mxu0
    %6951 = vmatprep.subr.bf16.mxu0 %v6878
    %6952 = vmatpush1.bf16.msra.mxu0 %v6877
    %6953 = vmatprep.subr.bf16.mxu0 %v6882
    %6954 = vmatpush1.bf16.msra.mxu0 %v6881
    %6955 = vmatprep.subr.bf16.mxu0 %v6886
    %6956 = vmatpush1.bf16.msra.mxu0 %v6885
    %6957 = vmatprep.subr.bf16.mxu0 %v6890
    %6958 = vmatpush1.bf16.msra.mxu0 %v6889
    %6959 = vmatprep.subr.bf16.mxu0 0
    %6960 = vmatpush1.bf16.msra.mxu0 0
    %6961 = vmatprep.subr.bf16.mxu0 0
    %6962 = vmatpush1.bf16.msra.mxu0 0
    %6963 = vmatprep.subr.bf16.mxu0 0
    %6964 = vmatpush1.bf16.msra.mxu0 0
    %6965 = vmatprep.subr.bf16.mxu0 0
    %6966 = vmatpush1.bf16.msra.mxu0 0
    %6967 = vmatprep.subr.bf16.mxu0 0
    %6968 = vmatpush1.bf16.msra.mxu0 0
    %6969 = vmatprep.subr.bf16.mxu0 0
    %6970 = vmatpush1.bf16.msra.mxu0 0
    %6971 = vmatprep.subr.bf16.mxu0 0
    %6972 = vmatpush1.bf16.msra.mxu0 0
    %6973 = vmatprep.subr.bf16.mxu0 0
    %6974 = vmatpush1.bf16.msra.mxu0 0
    %6975 = vmatprep.subr.bf16.mxu0 0
    %6976 = vmatpush1.bf16.msra.mxu0 0
    %6977 = vmatprep.subr.bf16.mxu0 0
    %6978 = vmatpush1.bf16.msra.mxu0 0
    %6979 = vmatprep.subr.bf16.mxu0 0
    %6980 = vmatpush1.bf16.msra.mxu0 0
    %6981 = vmatprep.subr.bf16.mxu0 0
    %6982 = vmatpush1.bf16.msra.mxu0 0
    %6983 = vmatprep.mubr.bf16.mxu0 0
    %6984 = vmatmul.mubr.bf16.gmra.mrb[0].mxu0 %v6908
    %v6985 = vpop.f32.mrb[0].mxu0
    %v6986 = vadd.f32 0.0, %v6985
    %v6987 = vpop.f32.mrb[0].mxu0
    %v6988 = vadd.f32 0.0, %v6987
    %v6989 = vpop.f32.mrb[0].mxu0
    %v6990 = vpop.f32.mrb[0].mxu0
    %6991 = vdwg.mxu0
    %v6992 = vadd.f32 %v6805, %v6945
    %v6993 = vadd.f32 %v6806, %v6947
    %v6994 = vadd.f32 %v6807, %v6986
    %v6995 = vadd.f32 %v6808, %v6988
    %s6996 = scalar_lea.vmem %s7, 1408
    %v6997 = vld [vmem:[%s6996] sm:$0xff]
    %v6998 = vld [vmem:[%s6996 + $0x8] sm:$0xff]
    %v6999 = vld [vmem:[%s6996 + $0x10] sm:$0xff]
    %v7000 = vld [vmem:[%s6996 + $0x18] sm:$0xff]
    %v7001 = vld [vmem:[%s6996 + $0x20] sm:$0xff]
    %v7002 = vld [vmem:[%s6996 + $0x28] sm:$0xff]
    %v7003 = vld [vmem:[%s6996 + $0x30] sm:$0xff]
    %v7004 = vld [vmem:[%s6996 + $0x38] sm:$0xff]
    %v7005 = vld [vmem:[%s6996 + $0x40] sm:$0xff]
    %v7006 = vld [vmem:[%s6996 + $0x48] sm:$0xff]
    %v7007 = vld [vmem:[%s6996 + $0x50] sm:$0xff]
    %v7008 = vld [vmem:[%s6996 + $0x58] sm:$0xff]
    %v7009 = vld [vmem:[%s6996 + $0x60] sm:$0xff]
    %v7010 = vld [vmem:[%s6996 + $0x68] sm:$0xff]
    %v7011 = vld [vmem:[%s6996 + $0x70] sm:$0xff]
    %v7012 = vld [vmem:[%s6996 + $0x78] sm:$0xff]
    %v7013 = vrot.slane %v4947, 3
    %v7030 = vunpack.c.l.b16 %v6997
    %v7031 = vunpack.c.h.b16 %v6997
    %v7032 = vunpack.c.l.b16 %v6998
    %v7033 = vunpack.c.h.b16 %v6998
    %v7034 = vunpack.c.l.b16 %v6999
    %v7035 = vunpack.c.h.b16 %v6999
    %v7036 = vunpack.c.l.b16 %v7000
    %v7037 = vunpack.c.h.b16 %v7000
    %v7038 = vunpack.c.l.b16 %v7001
    %v7039 = vunpack.c.h.b16 %v7001
    %v7040 = vunpack.c.l.b16 %v7002
    %v7041 = vunpack.c.h.b16 %v7002
    %v7042 = vunpack.c.l.b16 %v7003
    %v7043 = vunpack.c.h.b16 %v7003
    %v7044 = vunpack.c.l.b16 %v7004
    %v7045 = vunpack.c.h.b16 %v7004
    %v7046 = vunpack.c.l.b16 %v7005
    %v7047 = vunpack.c.h.b16 %v7005
    %v7048 = vunpack.c.l.b16 %v7006
    %v7049 = vunpack.c.h.b16 %v7006
    %v7050 = vunpack.c.l.b16 %v7007
    %v7051 = vunpack.c.h.b16 %v7007
    %v7052 = vunpack.c.l.b16 %v7008
    %v7053 = vunpack.c.h.b16 %v7008
    %v7054 = vunpack.c.l.b16 %v7009
    %v7055 = vunpack.c.h.b16 %v7009
    %v7056 = vunpack.c.l.b16 %v7010
    %v7057 = vunpack.c.h.b16 %v7010
    %v7058 = vunpack.c.l.b16 %v7011
    %v7059 = vunpack.c.h.b16 %v7011
    %v7060 = vunpack.c.l.b16 %v7012
    %v7061 = vunpack.c.h.b16 %v7012
    %v7062 = vpack.c.b16 %v7034, %v7030
    %v7063 = vpack.c.b16 %v7035, %v7031
    %v7064 = vpack.c.b16 %v7036, %v7032
    %v7065 = vpack.c.b16 %v7037, %v7033
    %v7066 = vpack.c.b16 %v7042, %v7038
    %v7067 = vpack.c.b16 %v7043, %v7039
    %v7068 = vpack.c.b16 %v7044, %v7040
    %v7069 = vpack.c.b16 %v7045, %v7041
    %v7070 = vpack.c.b16 %v7050, %v7046
    %v7071 = vpack.c.b16 %v7051, %v7047
    %v7072 = vpack.c.b16 %v7052, %v7048
    %v7073 = vpack.c.b16 %v7053, %v7049
    %v7074 = vpack.c.b16 %v7058, %v7054
    %v7075 = vpack.c.b16 %v7059, %v7055
    %v7076 = vpack.c.b16 %v7060, %v7056
    %v7077 = vpack.c.b16 %v7061, %v7057
    %v7095 = vsel %vm111, %v7013, 0
    %7097 = vmatprep.subr.bf16.mxu0 %v7063
    %7098 = vmatpush1.bf16.msra.mxu0 %v7062
    %7099 = vmatprep.subr.bf16.mxu0 %v7067
    %7100 = vmatpush1.bf16.msra.mxu0 %v7066
    %7101 = vmatprep.subr.bf16.mxu0 %v7071
    %7102 = vmatpush1.bf16.msra.mxu0 %v7070
    %7103 = vmatprep.subr.bf16.mxu0 %v7075
    %7104 = vmatpush1.bf16.msra.mxu0 %v7074
    %7105 = vmatprep.subr.bf16.mxu0 0
    %7106 = vmatpush1.bf16.msra.mxu0 0
    %7107 = vmatprep.subr.bf16.mxu0 0
    %7108 = vmatpush1.bf16.msra.mxu0 0
    %7109 = vmatprep.subr.bf16.mxu0 0
    %7110 = vmatpush1.bf16.msra.mxu0 0
    %7111 = vmatprep.subr.bf16.mxu0 0
    %7112 = vmatpush1.bf16.msra.mxu0 0
    %7113 = vmatprep.subr.bf16.mxu0 0
    %7114 = vmatpush1.bf16.msra.mxu0 0
    %7115 = vmatprep.subr.bf16.mxu0 0
    %7116 = vmatpush1.bf16.msra.mxu0 0
    %7117 = vmatprep.subr.bf16.mxu0 0
    %7118 = vmatpush1.bf16.msra.mxu0 0
    %7119 = vmatprep.subr.bf16.mxu0 0
    %7120 = vmatpush1.bf16.msra.mxu0 0
    %7121 = vmatprep.subr.bf16.mxu0 0
    %7122 = vmatpush1.bf16.msra.mxu0 0
    %7123 = vmatprep.subr.bf16.mxu0 0
    %7124 = vmatpush1.bf16.msra.mxu0 0
    %7125 = vmatprep.subr.bf16.mxu0 0
    %7126 = vmatpush1.bf16.msra.mxu0 0
    %7127 = vmatprep.subr.bf16.mxu0 0
    %7128 = vmatpush1.bf16.msra.mxu0 0
    %7129 = vmatprep.mubr.bf16.mxu0 0
    %7130 = vmatmul.mubr.bf16.gmra.mrb[0].mxu0 %v7095
    %v7131 = vpop.f32.mrb[0].mxu0
    %v7132 = vadd.f32 0.0, %v7131
    %v7133 = vpop.f32.mrb[0].mxu0
    %v7134 = vadd.f32 0.0, %v7133
    %v7135 = vpop.f32.mrb[0].mxu0
    %v7136 = vpop.f32.mrb[0].mxu0
    %7137 = vdwg.mxu0
    %7138 = vmatprep.subr.bf16.mxu0 %v7065
    %7139 = vmatpush1.bf16.msra.mxu0 %v7064
    %7140 = vmatprep.subr.bf16.mxu0 %v7069
    %7141 = vmatpush1.bf16.msra.mxu0 %v7068
    %7142 = vmatprep.subr.bf16.mxu0 %v7073
    %7143 = vmatpush1.bf16.msra.mxu0 %v7072
    %7144 = vmatprep.subr.bf16.mxu0 %v7077
    %7145 = vmatpush1.bf16.msra.mxu0 %v7076
    %7146 = vmatprep.subr.bf16.mxu0 0
    %7147 = vmatpush1.bf16.msra.mxu0 0
    %7148 = vmatprep.subr.bf16.mxu0 0
    %7149 = vmatpush1.bf16.msra.mxu0 0
    %7150 = vmatprep.subr.bf16.mxu0 0
    %7151 = vmatpush1.bf16.msra.mxu0 0
    %7152 = vmatprep.subr.bf16.mxu0 0
    %7153 = vmatpush1.bf16.msra.mxu0 0
    %7154 = vmatprep.subr.bf16.mxu0 0
    %7155 = vmatpush1.bf16.msra.mxu0 0
    %7156 = vmatprep.subr.bf16.mxu0 0
    %7157 = vmatpush1.bf16.msra.mxu0 0
    %7158 = vmatprep.subr.bf16.mxu0 0
    %7159 = vmatpush1.bf16.msra.mxu0 0
    %7160 = vmatprep.subr.bf16.mxu0 0
    %7161 = vmatpush1.bf16.msra.mxu0 0
    %7162 = vmatprep.subr.bf16.mxu0 0
    %7163 = vmatpush1.bf16.msra.mxu0 0
    %7164 = vmatprep.subr.bf16.mxu0 0
    %7165 = vmatpush1.bf16.msra.mxu0 0
    %7166 = vmatprep.subr.bf16.mxu0 0
    %7167 = vmatpush1.bf16.msra.mxu0 0
    %7168 = vmatprep.subr.bf16.mxu0 0
    %7169 = vmatpush1.bf16.msra.mxu0 0
    %7170 = vmatprep.mubr.bf16.mxu0 0
    %7171 = vmatmul.mubr.bf16.gmra.mrb[0].mxu0 %v7095
    %v7172 = vpop.f32.mrb[0].mxu0
    %v7173 = vadd.f32 0.0, %v7172
    %v7174 = vpop.f32.mrb[0].mxu0
    %v7175 = vadd.f32 0.0, %v7174
    %v7176 = vpop.f32.mrb[0].mxu0
    %v7177 = vpop.f32.mrb[0].mxu0
    %7178 = vdwg.mxu0
    %v7179 = vadd.f32 %v6992, %v7132
    %v7180 = vadd.f32 %v6993, %v7134
    %v7181 = vadd.f32 %v6994, %v7173
    %v7182 = vadd.f32 %v6995, %v7175
    %s7183 = scalar_lea.vmem %s7, 1536
    %v7184 = vld [vmem:[%s7183] sm:$0xff]
    %v7185 = vld [vmem:[%s7183 + $0x8] sm:$0xff]
    %v7186 = vld [vmem:[%s7183 + $0x10] sm:$0xff]
    %v7187 = vld [vmem:[%s7183 + $0x18] sm:$0xff]
    %v7188 = vld [vmem:[%s7183 + $0x20] sm:$0xff]
    %v7189 = vld [vmem:[%s7183 + $0x28] sm:$0xff]
    %v7190 = vld [vmem:[%s7183 + $0x30] sm:$0xff]
    %v7191 = vld [vmem:[%s7183 + $0x38] sm:$0xff]
    %v7192 = vld [vmem:[%s7183 + $0x40] sm:$0xff]
    %v7193 = vld [vmem:[%s7183 + $0x48] sm:$0xff]
    %v7194 = vld [vmem:[%s7183 + $0x50] sm:$0xff]
    %v7195 = vld [vmem:[%s7183 + $0x58] sm:$0xff]
    %v7196 = vld [vmem:[%s7183 + $0x60] sm:$0xff]
    %v7197 = vld [vmem:[%s7183 + $0x68] sm:$0xff]
    %v7198 = vld [vmem:[%s7183 + $0x70] sm:$0xff]
    %v7199 = vld [vmem:[%s7183 + $0x78] sm:$0xff]
    %v7200 = vrot.slane %v4947, 4
    %v7217 = vunpack.c.l.b16 %v7184
    %v7218 = vunpack.c.h.b16 %v7184
    %v7219 = vunpack.c.l.b16 %v7185
    %v7220 = vunpack.c.h.b16 %v7185
    %v7221 = vunpack.c.l.b16 %v7186
    %v7222 = vunpack.c.h.b16 %v7186
    %v7223 = vunpack.c.l.b16 %v7187
    %v7224 = vunpack.c.h.b16 %v7187
    %v7225 = vunpack.c.l.b16 %v7188
    %v7226 = vunpack.c.h.b16 %v7188
    %v7227 = vunpack.c.l.b16 %v7189
    %v7228 = vunpack.c.h.b16 %v7189
    %v7229 = vunpack.c.l.b16 %v7190
    %v7230 = vunpack.c.h.b16 %v7190
    %v7231 = vunpack.c.l.b16 %v7191
    %v7232 = vunpack.c.h.b16 %v7191
    %v7233 = vunpack.c.l.b16 %v7192
    %v7234 = vunpack.c.h.b16 %v7192
    %v7235 = vunpack.c.l.b16 %v7193
    %v7236 = vunpack.c.h.b16 %v7193
    %v7237 = vunpack.c.l.b16 %v7194
    %v7238 = vunpack.c.h.b16 %v7194
    %v7239 = vunpack.c.l.b16 %v7195
    %v7240 = vunpack.c.h.b16 %v7195
    %v7241 = vunpack.c.l.b16 %v7196
    %v7242 = vunpack.c.h.b16 %v7196
    %v7243 = vunpack.c.l.b16 %v7197
    %v7244 = vunpack.c.h.b16 %v7197
    %v7245 = vunpack.c.l.b16 %v7198
    %v7246 = vunpack.c.h.b16 %v7198
    %v7247 = vunpack.c.l.b16 %v7199
    %v7248 = vunpack.c.h.b16 %v7199
    %v7249 = vpack.c.b16 %v7221, %v7217
    %v7250 = vpack.c.b16 %v7222, %v7218
    %v7251 = vpack.c.b16 %v7223, %v7219
    %v7252 = vpack.c.b16 %v7224, %v7220
    %v7253 = vpack.c.b16 %v7229, %v7225
    %v7254 = vpack.c.b16 %v7230, %v7226
    %v7255 = vpack.c.b16 %v7231, %v7227
    %v7256 = vpack.c.b16 %v7232, %v7228
    %v7257 = vpack.c.b16 %v7237, %v7233
    %v7258 = vpack.c.b16 %v7238, %v7234
    %v7259 = vpack.c.b16 %v7239, %v7235
    %v7260 = vpack.c.b16 %v7240, %v7236
    %v7261 = vpack.c.b16 %v7245, %v7241
    %v7262 = vpack.c.b16 %v7246, %v7242
    %v7263 = vpack.c.b16 %v7247, %v7243
    %v7264 = vpack.c.b16 %v7248, %v7244
    %v7282 = vsel %vm111, %v7200, 0
    %7284 = vmatprep.subr.bf16.mxu0 %v7250
    %7285 = vmatpush1.bf16.msra.mxu0 %v7249
    %7286 = vmatprep.subr.bf16.mxu0 %v7254
    %7287 = vmatpush1.bf16.msra.mxu0 %v7253
    %7288 = vmatprep.subr.bf16.mxu0 %v7258
    %7289 = vmatpush1.bf16.msra.mxu0 %v7257
    %7290 = vmatprep.subr.bf16.mxu0 %v7262
    %7291 = vmatpush1.bf16.msra.mxu0 %v7261
    %7292 = vmatprep.subr.bf16.mxu0 0
    %7293 = vmatpush1.bf16.msra.mxu0 0
    %7294 = vmatprep.subr.bf16.mxu0 0
    %7295 = vmatpush1.bf16.msra.mxu0 0
    %7296 = vmatprep.subr.bf16.mxu0 0
    %7297 = vmatpush1.bf16.msra.mxu0 0
    %7298 = vmatprep.subr.bf16.mxu0 0
    %7299 = vmatpush1.bf16.msra.mxu0 0
    %7300 = vmatprep.subr.bf16.mxu0 0
    %7301 = vmatpush1.bf16.msra.mxu0 0
    %7302 = vmatprep.subr.bf16.mxu0 0
    %7303 = vmatpush1.bf16.msra.mxu0 0
    %7304 = vmatprep.subr.bf16.mxu0 0
    %7305 = vmatpush1.bf16.msra.mxu0 0
    %7306 = vmatprep.subr.bf16.mxu0 0
    %7307 = vmatpush1.bf16.msra.mxu0 0
    %7308 = vmatprep.subr.bf16.mxu0 0
    %7309 = vmatpush1.bf16.msra.mxu0 0
    %7310 = vmatprep.subr.bf16.mxu0 0
    %7311 = vmatpush1.bf16.msra.mxu0 0
    %7312 = vmatprep.subr.bf16.mxu0 0
    %7313 = vmatpush1.bf16.msra.mxu0 0
    %7314 = vmatprep.subr.bf16.mxu0 0
    %7315 = vmatpush1.bf16.msra.mxu0 0
    %7316 = vmatprep.mubr.bf16.mxu0 0
    %7317 = vmatmul.mubr.bf16.gmra.mrb[0].mxu0 %v7282
    %v7318 = vpop.f32.mrb[0].mxu0
    %v7319 = vadd.f32 0.0, %v7318
    %v7320 = vpop.f32.mrb[0].mxu0
    %v7321 = vadd.f32 0.0, %v7320
    %v7322 = vpop.f32.mrb[0].mxu0
    %v7323 = vpop.f32.mrb[0].mxu0
    %7324 = vdwg.mxu0
    %7325 = vmatprep.subr.bf16.mxu0 %v7252
    %7326 = vmatpush1.bf16.msra.mxu0 %v7251
    %7327 = vmatprep.subr.bf16.mxu0 %v7256
    %7328 = vmatpush1.bf16.msra.mxu0 %v7255
    %7329 = vmatprep.subr.bf16.mxu0 %v7260
    %7330 = vmatpush1.bf16.msra.mxu0 %v7259
    %7331 = vmatprep.subr.bf16.mxu0 %v7264
    %7332 = vmatpush1.bf16.msra.mxu0 %v7263
    %7333 = vmatprep.subr.bf16.mxu0 0
    %7334 = vmatpush1.bf16.msra.mxu0 0
    %7335 = vmatprep.subr.bf16.mxu0 0
    %7336 = vmatpush1.bf16.msra.mxu0 0
    %7337 = vmatprep.subr.bf16.mxu0 0
    %7338 = vmatpush1.bf16.msra.mxu0 0
    %7339 = vmatprep.subr.bf16.mxu0 0
    %7340 = vmatpush1.bf16.msra.mxu0 0
    %7341 = vmatprep.subr.bf16.mxu0 0
    %7342 = vmatpush1.bf16.msra.mxu0 0
    %7343 = vmatprep.subr.bf16.mxu0 0
    %7344 = vmatpush1.bf16.msra.mxu0 0
    %7345 = vmatprep.subr.bf16.mxu0 0
    %7346 = vmatpush1.bf16.msra.mxu0 0
    %7347 = vmatprep.subr.bf16.mxu0 0
    %7348 = vmatpush1.bf16.msra.mxu0 0
    %7349 = vmatprep.subr.bf16.mxu0 0
    %7350 = vmatpush1.bf16.msra.mxu0 0
    %7351 = vmatprep.subr.bf16.mxu0 0
    %7352 = vmatpush1.bf16.msra.mxu0 0
    %7353 = vmatprep.subr.bf16.mxu0 0
    %7354 = vmatpush1.bf16.msra.mxu0 0
    %7355 = vmatprep.subr.bf16.mxu0 0
    %7356 = vmatpush1.bf16.msra.mxu0 0
    %7357 = vmatprep.mubr.bf16.mxu0 0
    %7358 = vmatmul.mubr.bf16.gmra.mrb[0].mxu0 %v7282
    %v7359 = vpop.f32.mrb[0].mxu0
    %v7360 = vadd.f32 0.0, %v7359
    %v7361 = vpop.f32.mrb[0].mxu0
    %v7362 = vadd.f32 0.0, %v7361
    %v7363 = vpop.f32.mrb[0].mxu0
    %v7364 = vpop.f32.mrb[0].mxu0
    %7365 = vdwg.mxu0
    %v7366 = vadd.f32 %v7179, %v7319
    %v7367 = vadd.f32 %v7180, %v7321
    %v7368 = vadd.f32 %v7181, %v7360
    %v7369 = vadd.f32 %v7182, %v7362
    %s7370 = scalar_lea.vmem %s7, 1664
    %v7371 = vld [vmem:[%s7370] sm:$0xff]
    %v7372 = vld [vmem:[%s7370 + $0x8] sm:$0xff]
    %v7373 = vld [vmem:[%s7370 + $0x10] sm:$0xff]
    %v7374 = vld [vmem:[%s7370 + $0x18] sm:$0xff]
    %v7375 = vld [vmem:[%s7370 + $0x20] sm:$0xff]
    %v7376 = vld [vmem:[%s7370 + $0x28] sm:$0xff]
    %v7377 = vld [vmem:[%s7370 + $0x30] sm:$0xff]
    %v7378 = vld [vmem:[%s7370 + $0x38] sm:$0xff]
    %v7379 = vld [vmem:[%s7370 + $0x40] sm:$0xff]
    %v7380 = vld [vmem:[%s7370 + $0x48] sm:$0xff]
    %v7381 = vld [vmem:[%s7370 + $0x50] sm:$0xff]
    %v7382 = vld [vmem:[%s7370 + $0x58] sm:$0xff]
    %v7383 = vld [vmem:[%s7370 + $0x60] sm:$0xff]
    %v7384 = vld [vmem:[%s7370 + $0x68] sm:$0xff]
    %v7385 = vld [vmem:[%s7370 + $0x70] sm:$0xff]
    %v7386 = vld [vmem:[%s7370 + $0x78] sm:$0xff]
    %v7387 = vrot.slane %v4947, 5
    %v7404 = vunpack.c.l.b16 %v7371
    %v7405 = vunpack.c.h.b16 %v7371
    %v7406 = vunpack.c.l.b16 %v7372
    %v7407 = vunpack.c.h.b16 %v7372
    %v7408 = vunpack.c.l.b16 %v7373
    %v7409 = vunpack.c.h.b16 %v7373
    %v7410 = vunpack.c.l.b16 %v7374
    %v7411 = vunpack.c.h.b16 %v7374
    %v7412 = vunpack.c.l.b16 %v7375
    %v7413 = vunpack.c.h.b16 %v7375
    %v7414 = vunpack.c.l.b16 %v7376
    %v7415 = vunpack.c.h.b16 %v7376
    %v7416 = vunpack.c.l.b16 %v7377
    %v7417 = vunpack.c.h.b16 %v7377
    %v7418 = vunpack.c.l.b16 %v7378
    %v7419 = vunpack.c.h.b16 %v7378
    %v7420 = vunpack.c.l.b16 %v7379
    %v7421 = vunpack.c.h.b16 %v7379
    %v7422 = vunpack.c.l.b16 %v7380
    %v7423 = vunpack.c.h.b16 %v7380
    %v7424 = vunpack.c.l.b16 %v7381
    %v7425 = vunpack.c.h.b16 %v7381
    %v7426 = vunpack.c.l.b16 %v7382
    %v7427 = vunpack.c.h.b16 %v7382
    %v7428 = vunpack.c.l.b16 %v7383
    %v7429 = vunpack.c.h.b16 %v7383
    %v7430 = vunpack.c.l.b16 %v7384
    %v7431 = vunpack.c.h.b16 %v7384
    %v7432 = vunpack.c.l.b16 %v7385
    %v7433 = vunpack.c.h.b16 %v7385
    %v7434 = vunpack.c.l.b16 %v7386
    %v7435 = vunpack.c.h.b16 %v7386
    %v7436 = vpack.c.b16 %v7408, %v7404
    %v7437 = vpack.c.b16 %v7409, %v7405
    %v7438 = vpack.c.b16 %v7410, %v7406
    %v7439 = vpack.c.b16 %v7411, %v7407
    %v7440 = vpack.c.b16 %v7416, %v7412
    %v7441 = vpack.c.b16 %v7417, %v7413
    %v7442 = vpack.c.b16 %v7418, %v7414
    %v7443 = vpack.c.b16 %v7419, %v7415
    %v7444 = vpack.c.b16 %v7424, %v7420
    %v7445 = vpack.c.b16 %v7425, %v7421
    %v7446 = vpack.c.b16 %v7426, %v7422
    %v7447 = vpack.c.b16 %v7427, %v7423
    %v7448 = vpack.c.b16 %v7432, %v7428
    %v7449 = vpack.c.b16 %v7433, %v7429
    %v7450 = vpack.c.b16 %v7434, %v7430
    %v7451 = vpack.c.b16 %v7435, %v7431
    %v7469 = vsel %vm111, %v7387, 0
    %7471 = vmatprep.subr.bf16.mxu0 %v7437
    %7472 = vmatpush1.bf16.msra.mxu0 %v7436
    %7473 = vmatprep.subr.bf16.mxu0 %v7441
    %7474 = vmatpush1.bf16.msra.mxu0 %v7440
    %7475 = vmatprep.subr.bf16.mxu0 %v7445
    %7476 = vmatpush1.bf16.msra.mxu0 %v7444
    %7477 = vmatprep.subr.bf16.mxu0 %v7449
    %7478 = vmatpush1.bf16.msra.mxu0 %v7448
    %7479 = vmatprep.subr.bf16.mxu0 0
    %7480 = vmatpush1.bf16.msra.mxu0 0
    %7481 = vmatprep.subr.bf16.mxu0 0
    %7482 = vmatpush1.bf16.msra.mxu0 0
    %7483 = vmatprep.subr.bf16.mxu0 0
    %7484 = vmatpush1.bf16.msra.mxu0 0
    %7485 = vmatprep.subr.bf16.mxu0 0
    %7486 = vmatpush1.bf16.msra.mxu0 0
    %7487 = vmatprep.subr.bf16.mxu0 0
    %7488 = vmatpush1.bf16.msra.mxu0 0
    %7489 = vmatprep.subr.bf16.mxu0 0
    %7490 = vmatpush1.bf16.msra.mxu0 0
    %7491 = vmatprep.subr.bf16.mxu0 0
    %7492 = vmatpush1.bf16.msra.mxu0 0
    %7493 = vmatprep.subr.bf16.mxu0 0
    %7494 = vmatpush1.bf16.msra.mxu0 0
    %7495 = vmatprep.subr.bf16.mxu0 0
    %7496 = vmatpush1.bf16.msra.mxu0 0
    %7497 = vmatprep.subr.bf16.mxu0 0
    %7498 = vmatpush1.bf16.msra.mxu0 0
    %7499 = vmatprep.subr.bf16.mxu0 0
    %7500 = vmatpush1.bf16.msra.mxu0 0
    %7501 = vmatprep.subr.bf16.mxu0 0
    %7502 = vmatpush1.bf16.msra.mxu0 0
    %7503 = vmatprep.mubr.bf16.mxu0 0
    %7504 = vmatmul.mubr.bf16.gmra.mrb[0].mxu0 %v7469
    %v7505 = vpop.f32.mrb[0].mxu0
    %v7506 = vadd.f32 0.0, %v7505
    %v7507 = vpop.f32.mrb[0].mxu0
    %v7508 = vadd.f32 0.0, %v7507
    %v7509 = vpop.f32.mrb[0].mxu0
    %v7510 = vpop.f32.mrb[0].mxu0
    %7511 = vdwg.mxu0
    %7512 = vmatprep.subr.bf16.mxu0 %v7439
    %7513 = vmatpush1.bf16.msra.mxu0 %v7438
    %7514 = vmatprep.subr.bf16.mxu0 %v7443
    %7515 = vmatpush1.bf16.msra.mxu0 %v7442
    %7516 = vmatprep.subr.bf16.mxu0 %v7447
    %7517 = vmatpush1.bf16.msra.mxu0 %v7446
    %7518 = vmatprep.subr.bf16.mxu0 %v7451
    %7519 = vmatpush1.bf16.msra.mxu0 %v7450
    %7520 = vmatprep.subr.bf16.mxu0 0
    %7521 = vmatpush1.bf16.msra.mxu0 0
    %7522 = vmatprep.subr.bf16.mxu0 0
    %7523 = vmatpush1.bf16.msra.mxu0 0
    %7524 = vmatprep.subr.bf16.mxu0 0
    %7525 = vmatpush1.bf16.msra.mxu0 0
    %7526 = vmatprep.subr.bf16.mxu0 0
    %7527 = vmatpush1.bf16.msra.mxu0 0
    %7528 = vmatprep.subr.bf16.mxu0 0
    %7529 = vmatpush1.bf16.msra.mxu0 0
    %7530 = vmatprep.subr.bf16.mxu0 0
    %7531 = vmatpush1.bf16.msra.mxu0 0
    %7532 = vmatprep.subr.bf16.mxu0 0
    %7533 = vmatpush1.bf16.msra.mxu0 0
    %7534 = vmatprep.subr.bf16.mxu0 0
    %7535 = vmatpush1.bf16.msra.mxu0 0
    %7536 = vmatprep.subr.bf16.mxu0 0
    %7537 = vmatpush1.bf16.msra.mxu0 0
    %7538 = vmatprep.subr.bf16.mxu0 0
    %7539 = vmatpush1.bf16.msra.mxu0 0
    %7540 = vmatprep.subr.bf16.mxu0 0
    %7541 = vmatpush1.bf16.msra.mxu0 0
    %7542 = vmatprep.subr.bf16.mxu0 0
    %7543 = vmatpush1.bf16.msra.mxu0 0
    %7544 = vmatprep.mubr.bf16.mxu0 0
    %7545 = vmatmul.mubr.bf16.gmra.mrb[0].mxu0 %v7469
    %v7546 = vpop.f32.mrb[0].mxu0
    %v7547 = vadd.f32 0.0, %v7546
    %v7548 = vpop.f32.mrb[0].mxu0
    %v7549 = vadd.f32 0.0, %v7548
    %v7550 = vpop.f32.mrb[0].mxu0
    %v7551 = vpop.f32.mrb[0].mxu0
    %7552 = vdwg.mxu0
    %v7553 = vadd.f32 %v7366, %v7506
    %v7554 = vadd.f32 %v7367, %v7508
    %v7555 = vadd.f32 %v7368, %v7547
    %v7556 = vadd.f32 %v7369, %v7549
    %s7557 = scalar_lea.vmem %s7, 1792
    %v7558 = vld [vmem:[%s7557] sm:$0xff]
    %v7559 = vld [vmem:[%s7557 + $0x8] sm:$0xff]
    %v7560 = vld [vmem:[%s7557 + $0x10] sm:$0xff]
    %v7561 = vld [vmem:[%s7557 + $0x18] sm:$0xff]
    %v7562 = vld [vmem:[%s7557 + $0x20] sm:$0xff]
    %v7563 = vld [vmem:[%s7557 + $0x28] sm:$0xff]
    %v7564 = vld [vmem:[%s7557 + $0x30] sm:$0xff]
    %v7565 = vld [vmem:[%s7557 + $0x38] sm:$0xff]
    %v7566 = vld [vmem:[%s7557 + $0x40] sm:$0xff]
    %v7567 = vld [vmem:[%s7557 + $0x48] sm:$0xff]
    %v7568 = vld [vmem:[%s7557 + $0x50] sm:$0xff]
    %v7569 = vld [vmem:[%s7557 + $0x58] sm:$0xff]
    %v7570 = vld [vmem:[%s7557 + $0x60] sm:$0xff]
    %v7571 = vld [vmem:[%s7557 + $0x68] sm:$0xff]
    %v7572 = vld [vmem:[%s7557 + $0x70] sm:$0xff]
    %v7573 = vld [vmem:[%s7557 + $0x78] sm:$0xff]
    %v7574 = vrot.slane %v4947, 6
    %v7591 = vunpack.c.l.b16 %v7558
    %v7592 = vunpack.c.h.b16 %v7558
    %v7593 = vunpack.c.l.b16 %v7559
    %v7594 = vunpack.c.h.b16 %v7559
    %v7595 = vunpack.c.l.b16 %v7560
    %v7596 = vunpack.c.h.b16 %v7560
    %v7597 = vunpack.c.l.b16 %v7561
    %v7598 = vunpack.c.h.b16 %v7561
    %v7599 = vunpack.c.l.b16 %v7562
    %v7600 = vunpack.c.h.b16 %v7562
    %v7601 = vunpack.c.l.b16 %v7563
    %v7602 = vunpack.c.h.b16 %v7563
    %v7603 = vunpack.c.l.b16 %v7564
    %v7604 = vunpack.c.h.b16 %v7564
    %v7605 = vunpack.c.l.b16 %v7565
    %v7606 = vunpack.c.h.b16 %v7565
    %v7607 = vunpack.c.l.b16 %v7566
    %v7608 = vunpack.c.h.b16 %v7566
    %v7609 = vunpack.c.l.b16 %v7567
    %v7610 = vunpack.c.h.b16 %v7567
    %v7611 = vunpack.c.l.b16 %v7568
    %v7612 = vunpack.c.h.b16 %v7568
    %v7613 = vunpack.c.l.b16 %v7569
    %v7614 = vunpack.c.h.b16 %v7569
    %v7615 = vunpack.c.l.b16 %v7570
    %v7616 = vunpack.c.h.b16 %v7570
    %v7617 = vunpack.c.l.b16 %v7571
    %v7618 = vunpack.c.h.b16 %v7571
    %v7619 = vunpack.c.l.b16 %v7572
    %v7620 = vunpack.c.h.b16 %v7572
    %v7621 = vunpack.c.l.b16 %v7573
    %v7622 = vunpack.c.h.b16 %v7573
    %v7623 = vpack.c.b16 %v7595, %v7591
    %v7624 = vpack.c.b16 %v7596, %v7592
    %v7625 = vpack.c.b16 %v7597, %v7593
    %v7626 = vpack.c.b16 %v7598, %v7594
    %v7627 = vpack.c.b16 %v7603, %v7599
    %v7628 = vpack.c.b16 %v7604, %v7600
    %v7629 = vpack.c.b16 %v7605, %v7601
    %v7630 = vpack.c.b16 %v7606, %v7602
    %v7631 = vpack.c.b16 %v7611, %v7607
    %v7632 = vpack.c.b16 %v7612, %v7608
    %v7633 = vpack.c.b16 %v7613, %v7609
    %v7634 = vpack.c.b16 %v7614, %v7610
    %v7635 = vpack.c.b16 %v7619, %v7615
    %v7636 = vpack.c.b16 %v7620, %v7616
    %v7637 = vpack.c.b16 %v7621, %v7617
    %v7638 = vpack.c.b16 %v7622, %v7618
    %v7656 = vsel %vm111, %v7574, 0
    %7658 = vmatprep.subr.bf16.mxu0 %v7624
    %7659 = vmatpush1.bf16.msra.mxu0 %v7623
    %7660 = vmatprep.subr.bf16.mxu0 %v7628
    %7661 = vmatpush1.bf16.msra.mxu0 %v7627
    %7662 = vmatprep.subr.bf16.mxu0 %v7632
    %7663 = vmatpush1.bf16.msra.mxu0 %v7631
    %7664 = vmatprep.subr.bf16.mxu0 %v7636
    %7665 = vmatpush1.bf16.msra.mxu0 %v7635
    %7666 = vmatprep.subr.bf16.mxu0 0
    %7667 = vmatpush1.bf16.msra.mxu0 0
    %7668 = vmatprep.subr.bf16.mxu0 0
    %7669 = vmatpush1.bf16.msra.mxu0 0
    %7670 = vmatprep.subr.bf16.mxu0 0
    %7671 = vmatpush1.bf16.msra.mxu0 0
    %7672 = vmatprep.subr.bf16.mxu0 0
    %7673 = vmatpush1.bf16.msra.mxu0 0
    %7674 = vmatprep.subr.bf16.mxu0 0
    %7675 = vmatpush1.bf16.msra.mxu0 0
    %7676 = vmatprep.subr.bf16.mxu0 0
    %7677 = vmatpush1.bf16.msra.mxu0 0
    %7678 = vmatprep.subr.bf16.mxu0 0
    %7679 = vmatpush1.bf16.msra.mxu0 0
    %7680 = vmatprep.subr.bf16.mxu0 0
    %7681 = vmatpush1.bf16.msra.mxu0 0
    %7682 = vmatprep.subr.bf16.mxu0 0
    %7683 = vmatpush1.bf16.msra.mxu0 0
    %7684 = vmatprep.subr.bf16.mxu0 0
    %7685 = vmatpush1.bf16.msra.mxu0 0
    %7686 = vmatprep.subr.bf16.mxu0 0
    %7687 = vmatpush1.bf16.msra.mxu0 0
    %7688 = vmatprep.subr.bf16.mxu0 0
    %7689 = vmatpush1.bf16.msra.mxu0 0
    %7690 = vmatprep.mubr.bf16.mxu0 0
    %7691 = vmatmul.mubr.bf16.gmra.mrb[0].mxu0 %v7656
    %v7692 = vpop.f32.mrb[0].mxu0
    %v7693 = vadd.f32 0.0, %v7692
    %v7694 = vpop.f32.mrb[0].mxu0
    %v7695 = vadd.f32 0.0, %v7694
    %v7696 = vpop.f32.mrb[0].mxu0
    %v7697 = vpop.f32.mrb[0].mxu0
    %7698 = vdwg.mxu0
    %7699 = vmatprep.subr.bf16.mxu0 %v7626
    %7700 = vmatpush1.bf16.msra.mxu0 %v7625
    %7701 = vmatprep.subr.bf16.mxu0 %v7630
    %7702 = vmatpush1.bf16.msra.mxu0 %v7629
    %7703 = vmatprep.subr.bf16.mxu0 %v7634
    %7704 = vmatpush1.bf16.msra.mxu0 %v7633
    %7705 = vmatprep.subr.bf16.mxu0 %v7638
    %7706 = vmatpush1.bf16.msra.mxu0 %v7637
    %7707 = vmatprep.subr.bf16.mxu0 0
    %7708 = vmatpush1.bf16.msra.mxu0 0
    %7709 = vmatprep.subr.bf16.mxu0 0
    %7710 = vmatpush1.bf16.msra.mxu0 0
    %7711 = vmatprep.subr.bf16.mxu0 0
    %7712 = vmatpush1.bf16.msra.mxu0 0
    %7713 = vmatprep.subr.bf16.mxu0 0
    %7714 = vmatpush1.bf16.msra.mxu0 0
    %7715 = vmatprep.subr.bf16.mxu0 0
    %7716 = vmatpush1.bf16.msra.mxu0 0
    %7717 = vmatprep.subr.bf16.mxu0 0
    %7718 = vmatpush1.bf16.msra.mxu0 0
    %7719 = vmatprep.subr.bf16.mxu0 0
    %7720 = vmatpush1.bf16.msra.mxu0 0
    %7721 = vmatprep.subr.bf16.mxu0 0
    %7722 = vmatpush1.bf16.msra.mxu0 0
    %7723 = vmatprep.subr.bf16.mxu0 0
    %7724 = vmatpush1.bf16.msra.mxu0 0
    %7725 = vmatprep.subr.bf16.mxu0 0
    %7726 = vmatpush1.bf16.msra.mxu0 0
    %7727 = vmatprep.subr.bf16.mxu0 0
    %7728 = vmatpush1.bf16.msra.mxu0 0
    %7729 = vmatprep.subr.bf16.mxu0 0
    %7730 = vmatpush1.bf16.msra.mxu0 0
    %7731 = vmatprep.mubr.bf16.mxu0 0
    %7732 = vmatmul.mubr.bf16.gmra.mrb[0].mxu0 %v7656
    %v7733 = vpop.f32.mrb[0].mxu0
    %v7734 = vadd.f32 0.0, %v7733
    %v7735 = vpop.f32.mrb[0].mxu0
    %v7736 = vadd.f32 0.0, %v7735
    %v7737 = vpop.f32.mrb[0].mxu0
    %v7738 = vpop.f32.mrb[0].mxu0
    %7739 = vdwg.mxu0
    %v7740 = vadd.f32 %v7553, %v7693
    %v7741 = vadd.f32 %v7554, %v7695
    %v7742 = vadd.f32 %v7555, %v7734
    %v7743 = vadd.f32 %v7556, %v7736
    %s7744 = scalar_lea.vmem %s7, 1920
    %v7745 = vld [vmem:[%s7744] sm:$0xff]
    %v7746 = vld [vmem:[%s7744 + $0x8] sm:$0xff]
    %v7747 = vld [vmem:[%s7744 + $0x10] sm:$0xff]
    %v7748 = vld [vmem:[%s7744 + $0x18] sm:$0xff]
    %v7749 = vld [vmem:[%s7744 + $0x20] sm:$0xff]
    %v7750 = vld [vmem:[%s7744 + $0x28] sm:$0xff]
    %v7751 = vld [vmem:[%s7744 + $0x30] sm:$0xff]
    %v7752 = vld [vmem:[%s7744 + $0x38] sm:$0xff]
    %v7753 = vld [vmem:[%s7744 + $0x40] sm:$0xff]
    %v7754 = vld [vmem:[%s7744 + $0x48] sm:$0xff]
    %v7755 = vld [vmem:[%s7744 + $0x50] sm:$0xff]
    %v7756 = vld [vmem:[%s7744 + $0x58] sm:$0xff]
    %v7757 = vld [vmem:[%s7744 + $0x60] sm:$0xff]
    %v7758 = vld [vmem:[%s7744 + $0x68] sm:$0xff]
    %v7759 = vld [vmem:[%s7744 + $0x70] sm:$0xff]
    %v7760 = vld [vmem:[%s7744 + $0x78] sm:$0xff]
    %v7761 = vrot.slane %v4947, 7
    %v7778 = vunpack.c.l.b16 %v7745
    %v7779 = vunpack.c.h.b16 %v7745
    %v7780 = vunpack.c.l.b16 %v7746
    %v7781 = vunpack.c.h.b16 %v7746
    %v7782 = vunpack.c.l.b16 %v7747
    %v7783 = vunpack.c.h.b16 %v7747
    %v7784 = vunpack.c.l.b16 %v7748
    %v7785 = vunpack.c.h.b16 %v7748
    %v7786 = vunpack.c.l.b16 %v7749
    %v7787 = vunpack.c.h.b16 %v7749
    %v7788 = vunpack.c.l.b16 %v7750
    %v7789 = vunpack.c.h.b16 %v7750
    %v7790 = vunpack.c.l.b16 %v7751
    %v7791 = vunpack.c.h.b16 %v7751
    %v7792 = vunpack.c.l.b16 %v7752
    %v7793 = vunpack.c.h.b16 %v7752
    %v7794 = vunpack.c.l.b16 %v7753
    %v7795 = vunpack.c.h.b16 %v7753
    %v7796 = vunpack.c.l.b16 %v7754
    %v7797 = vunpack.c.h.b16 %v7754
    %v7798 = vunpack.c.l.b16 %v7755
    %v7799 = vunpack.c.h.b16 %v7755
    %v7800 = vunpack.c.l.b16 %v7756
    %v7801 = vunpack.c.h.b16 %v7756
    %v7802 = vunpack.c.l.b16 %v7757
    %v7803 = vunpack.c.h.b16 %v7757
    %v7804 = vunpack.c.l.b16 %v7758
    %v7805 = vunpack.c.h.b16 %v7758
    %v7806 = vunpack.c.l.b16 %v7759
    %v7807 = vunpack.c.h.b16 %v7759
    %v7808 = vunpack.c.l.b16 %v7760
    %v7809 = vunpack.c.h.b16 %v7760
    %v7810 = vpack.c.b16 %v7782, %v7778
    %v7811 = vpack.c.b16 %v7783, %v7779
    %v7812 = vpack.c.b16 %v7784, %v7780
    %v7813 = vpack.c.b16 %v7785, %v7781
    %v7814 = vpack.c.b16 %v7790, %v7786
    %v7815 = vpack.c.b16 %v7791, %v7787
    %v7816 = vpack.c.b16 %v7792, %v7788
    %v7817 = vpack.c.b16 %v7793, %v7789
    %v7818 = vpack.c.b16 %v7798, %v7794
    %v7819 = vpack.c.b16 %v7799, %v7795
    %v7820 = vpack.c.b16 %v7800, %v7796
    %v7821 = vpack.c.b16 %v7801, %v7797
    %v7822 = vpack.c.b16 %v7806, %v7802
    %v7823 = vpack.c.b16 %v7807, %v7803
    %v7824 = vpack.c.b16 %v7808, %v7804
    %v7825 = vpack.c.b16 %v7809, %v7805
    %v7843 = vsel %vm111, %v7761, 0
    %7845 = vmatprep.subr.bf16.mxu0 %v7811
    %7846 = vmatpush1.bf16.msra.mxu0 %v7810
    %7847 = vmatprep.subr.bf16.mxu0 %v7815
    %7848 = vmatpush1.bf16.msra.mxu0 %v7814
    %7849 = vmatprep.subr.bf16.mxu0 %v7819
    %7850 = vmatpush1.bf16.msra.mxu0 %v7818
    %7851 = vmatprep.subr.bf16.mxu0 %v7823
    %7852 = vmatpush1.bf16.msra.mxu0 %v7822
    %7853 = vmatprep.subr.bf16.mxu0 0
    %7854 = vmatpush1.bf16.msra.mxu0 0
    %7855 = vmatprep.subr.bf16.mxu0 0
    %7856 = vmatpush1.bf16.msra.mxu0 0
    %7857 = vmatprep.subr.bf16.mxu0 0
    %7858 = vmatpush1.bf16.msra.mxu0 0
    %7859 = vmatprep.subr.bf16.mxu0 0
    %7860 = vmatpush1.bf16.msra.mxu0 0
    %7861 = vmatprep.subr.bf16.mxu0 0
    %7862 = vmatpush1.bf16.msra.mxu0 0
    %7863 = vmatprep.subr.bf16.mxu0 0
    %7864 = vmatpush1.bf16.msra.mxu0 0
    %7865 = vmatprep.subr.bf16.mxu0 0
    %7866 = vmatpush1.bf16.msra.mxu0 0
    %7867 = vmatprep.subr.bf16.mxu0 0
    %7868 = vmatpush1.bf16.msra.mxu0 0
    %7869 = vmatprep.subr.bf16.mxu0 0
    %7870 = vmatpush1.bf16.msra.mxu0 0
    %7871 = vmatprep.subr.bf16.mxu0 0
    %7872 = vmatpush1.bf16.msra.mxu0 0
    %7873 = vmatprep.subr.bf16.mxu0 0
    %7874 = vmatpush1.bf16.msra.mxu0 0
    %7875 = vmatprep.subr.bf16.mxu0 0
    %7876 = vmatpush1.bf16.msra.mxu0 0
    %7877 = vmatprep.mubr.bf16.mxu0 0
    %7878 = vmatmul.mubr.bf16.gmra.mrb[0].mxu0 %v7843
    %v7879 = vpop.f32.mrb[0].mxu0
    %v7880 = vadd.f32 0.0, %v7879
    %v7881 = vpop.f32.mrb[0].mxu0
    %v7882 = vadd.f32 0.0, %v7881
    %v7883 = vpop.f32.mrb[0].mxu0
    %v7884 = vpop.f32.mrb[0].mxu0
    %7885 = vdwg.mxu0
    %7886 = vmatprep.subr.bf16.mxu0 %v7813
    %7887 = vmatpush1.bf16.msra.mxu0 %v7812
    %7888 = vmatprep.subr.bf16.mxu0 %v7817
    %7889 = vmatpush1.bf16.msra.mxu0 %v7816
    %7890 = vmatprep.subr.bf16.mxu0 %v7821
    %7891 = vmatpush1.bf16.msra.mxu0 %v7820
    %7892 = vmatprep.subr.bf16.mxu0 %v7825
    %7893 = vmatpush1.bf16.msra.mxu0 %v7824
    %7894 = vmatprep.subr.bf16.mxu0 0
    %7895 = vmatpush1.bf16.msra.mxu0 0
    %7896 = vmatprep.subr.bf16.mxu0 0
    %7897 = vmatpush1.bf16.msra.mxu0 0
    %7898 = vmatprep.subr.bf16.mxu0 0
    %7899 = vmatpush1.bf16.msra.mxu0 0
    %7900 = vmatprep.subr.bf16.mxu0 0
    %7901 = vmatpush1.bf16.msra.mxu0 0
    %7902 = vmatprep.subr.bf16.mxu0 0
    %7903 = vmatpush1.bf16.msra.mxu0 0
    %7904 = vmatprep.subr.bf16.mxu0 0
    %7905 = vmatpush1.bf16.msra.mxu0 0
    %7906 = vmatprep.subr.bf16.mxu0 0
    %7907 = vmatpush1.bf16.msra.mxu0 0
    %7908 = vmatprep.subr.bf16.mxu0 0
    %7909 = vmatpush1.bf16.msra.mxu0 0
    %7910 = vmatprep.subr.bf16.mxu0 0
    %7911 = vmatpush1.bf16.msra.mxu0 0
    %7912 = vmatprep.subr.bf16.mxu0 0
    %7913 = vmatpush1.bf16.msra.mxu0 0
    %7914 = vmatprep.subr.bf16.mxu0 0
    %7915 = vmatpush1.bf16.msra.mxu0 0
    %7916 = vmatprep.subr.bf16.mxu0 0
    %7917 = vmatpush1.bf16.msra.mxu0 0
    %7918 = vmatprep.mubr.bf16.mxu0 0
    %7919 = vmatmul.mubr.bf16.gmra.mrb[0].mxu0 %v7843
    %v7920 = vpop.f32.mrb[0].mxu0
    %v7921 = vadd.f32 0.0, %v7920
    %v7922 = vpop.f32.mrb[0].mxu0
    %v7923 = vadd.f32 0.0, %v7922
    %v7924 = vpop.f32.mrb[0].mxu0
    %v7925 = vpop.f32.mrb[0].mxu0
    %7926 = vdwg.mxu0
    %v7927 = vadd.f32 %v7740, %v7880
    %v7928 = vadd.f32 %v7741, %v7882
    %v7929 = vadd.f32 %v7742, %v7921
    %v7930 = vadd.f32 %v7743, %v7923
    %v7931 = vld [vmem:[%s8] sm:$0xf]
    %v7933 = vlaneseq
    %v7934 = vshrl.u32 %v7933, 7
    %v7935 = vsub.s32 0, %v7934
    %v7936 = vrot.slane %v7931, %v7935
    %v7937 = vlaneseq
    %v7938 = vshrl.u32 %v7937, 7
    %v7939 = vsub.s32 1, %v7938
    %v7940 = vrot.slane %v7931, %v7939
    %v7941 = vlaneseq
    %v7942 = vshrl.u32 %v7941, 7
    %v7943 = vsub.s32 2, %v7942
    %v7944 = vrot.slane %v7931, %v7943
    %v7945 = vlaneseq
    %v7946 = vshrl.u32 %v7945, 7
    %v7947 = vsub.s32 3, %v7946
    %v7948 = vrot.slane %v7931, %v7947
    %v7953 = vadd.f32 %v7927, %v7936
    %v7954 = vadd.f32 %v7928, %v7940
    %v7955 = vadd.f32 %v7929, %v7944
    %v7956 = vadd.f32 %v7930, %v7948
    %v7957 = vmax.f32 %v7953, 0.0
    %v7958 = vmax.f32 %v7954, 0.0
    %v7959 = vmax.f32 %v7955, 0.0
    %v7960 = vmax.f32 %v7956, 0.0
    %v7961 = vpack.c.bf16 %v7957, %v7957
    %v7962 = vpack.c.bf16 %v7958, %v7958
    %v7963 = vpack.c.bf16 %v7959, %v7959
    %v7964 = vpack.c.bf16 %v7960, %v7960
    %v7965 = vld [vmem:[%s9] sm:$0xf]
    %v7966 = vld [vmem:[%s9 + $0x4] sm:$0xf]
    %v7967 = vld [vmem:[%s9 + $0x8] sm:$0xf]
    %v7968 = vld [vmem:[%s9 + $0xc] sm:$0xf]
    %v7969 = vld [vmem:[%s9 + $0x10] sm:$0xf]
    %v7970 = vld [vmem:[%s9 + $0x14] sm:$0xf]
    %v7971 = vld [vmem:[%s9 + $0x18] sm:$0xf]
    %v7972 = vld [vmem:[%s9 + $0x1c] sm:$0xf]
    %v7973 = vld [vmem:[%s9 + $0x20] sm:$0xf]
    %v7974 = vld [vmem:[%s9 + $0x24] sm:$0xf]
    %v7975 = vld [vmem:[%s9 + $0x28] sm:$0xf]
    %v7976 = vld [vmem:[%s9 + $0x2c] sm:$0xf]
    %v7977 = vld [vmem:[%s9 + $0x30] sm:$0xf]
    %v7978 = vld [vmem:[%s9 + $0x34] sm:$0xf]
    %v7979 = vld [vmem:[%s9 + $0x38] sm:$0xf]
    %v7980 = vld [vmem:[%s9 + $0x3c] sm:$0xf]
    %v7981 = vld [vmem:[%s9 + $0x40] sm:$0xf]
    %v7982 = vld [vmem:[%s9 + $0x44] sm:$0xf]
    %v7983 = vld [vmem:[%s9 + $0x48] sm:$0xf]
    %v7984 = vld [vmem:[%s9 + $0x4c] sm:$0xf]
    %v7985 = vld [vmem:[%s9 + $0x50] sm:$0xf]
    %v7986 = vld [vmem:[%s9 + $0x54] sm:$0xf]
    %v7987 = vld [vmem:[%s9 + $0x58] sm:$0xf]
    %v7988 = vld [vmem:[%s9 + $0x5c] sm:$0xf]
    %v7989 = vld [vmem:[%s9 + $0x60] sm:$0xf]
    %v7990 = vld [vmem:[%s9 + $0x64] sm:$0xf]
    %v7991 = vld [vmem:[%s9 + $0x68] sm:$0xf]
    %v7992 = vld [vmem:[%s9 + $0x6c] sm:$0xf]
    %v7993 = vld [vmem:[%s9 + $0x70] sm:$0xf]
    %v7994 = vld [vmem:[%s9 + $0x74] sm:$0xf]
    %v7995 = vld [vmem:[%s9 + $0x78] sm:$0xf]
    %v7996 = vld [vmem:[%s9 + $0x7c] sm:$0xf]
    %v7997 = vld [vmem:[%s9 + $0x80] sm:$0xf]
    %v7998 = vld [vmem:[%s9 + $0x84] sm:$0xf]
    %v7999 = vld [vmem:[%s9 + $0x88] sm:$0xf]
    %v8000 = vld [vmem:[%s9 + $0x8c] sm:$0xf]
    %v8001 = vld [vmem:[%s9 + $0x90] sm:$0xf]
    %v8002 = vld [vmem:[%s9 + $0x94] sm:$0xf]
    %v8003 = vld [vmem:[%s9 + $0x98] sm:$0xf]
    %v8004 = vld [vmem:[%s9 + $0x9c] sm:$0xf]
    %v8005 = vld [vmem:[%s9 + $0xa0] sm:$0xf]
    %v8006 = vld [vmem:[%s9 + $0xa4] sm:$0xf]
    %v8007 = vld [vmem:[%s9 + $0xa8] sm:$0xf]
    %v8008 = vld [vmem:[%s9 + $0xac] sm:$0xf]
    %v8009 = vld [vmem:[%s9 + $0xb0] sm:$0xf]
    %v8010 = vld [vmem:[%s9 + $0xb4] sm:$0xf]
    %v8011 = vld [vmem:[%s9 + $0xb8] sm:$0xf]
    %v8012 = vld [vmem:[%s9 + $0xbc] sm:$0xf]
    %v8013 = vld [vmem:[%s9 + $0xc0] sm:$0xf]
    %v8014 = vld [vmem:[%s9 + $0xc4] sm:$0xf]
    %v8015 = vld [vmem:[%s9 + $0xc8] sm:$0xf]
    %v8016 = vld [vmem:[%s9 + $0xcc] sm:$0xf]
    %v8017 = vld [vmem:[%s9 + $0xd0] sm:$0xf]
    %v8018 = vld [vmem:[%s9 + $0xd4] sm:$0xf]
    %v8019 = vld [vmem:[%s9 + $0xd8] sm:$0xf]
    %v8020 = vld [vmem:[%s9 + $0xdc] sm:$0xf]
    %v8021 = vld [vmem:[%s9 + $0xe0] sm:$0xf]
    %v8022 = vld [vmem:[%s9 + $0xe4] sm:$0xf]
    %v8023 = vld [vmem:[%s9 + $0xe8] sm:$0xf]
    %v8024 = vld [vmem:[%s9 + $0xec] sm:$0xf]
    %v8025 = vld [vmem:[%s9 + $0xf0] sm:$0xf]
    %v8026 = vld [vmem:[%s9 + $0xf4] sm:$0xf]
    %v8027 = vld [vmem:[%s9 + $0xf8] sm:$0xf]
    %v8028 = vld [vmem:[%s9 + $0xfc] sm:$0xf]
    %v8029 = vld [vmem:[%s10] sm:$0x1]
    %v8031 = vlaneseq
    %v8032 = vshrl.u32 %v8031, 7
    %v8033 = vsub.s32 0, %v8032
    %v8034 = vrot.slane %v8029, %v8033
    %v8100 = vunpack.c.l.b16 %v7965
    %v8101 = vunpack.c.l.b16 %v7966
    %v8102 = vunpack.c.l.b16 %v7967
    %v8103 = vunpack.c.l.b16 %v7968
    %v8104 = vunpack.c.l.b16 %v7969
    %v8105 = vunpack.c.l.b16 %v7970
    %v8106 = vunpack.c.l.b16 %v7971
    %v8107 = vunpack.c.l.b16 %v7972
    %v8108 = vunpack.c.l.b16 %v7973
    %v8109 = vunpack.c.l.b16 %v7974
    %v8110 = vunpack.c.l.b16 %v7975
    %v8111 = vunpack.c.l.b16 %v7976
    %v8112 = vunpack.c.l.b16 %v7977
    %v8113 = vunpack.c.l.b16 %v7978
    %v8114 = vunpack.c.l.b16 %v7979
    %v8115 = vunpack.c.l.b16 %v7980
    %v8116 = vunpack.c.l.b16 %v7981
    %v8117 = vunpack.c.l.b16 %v7982
    %v8118 = vunpack.c.l.b16 %v7983
    %v8119 = vunpack.c.l.b16 %v7984
    %v8120 = vunpack.c.l.b16 %v7985
    %v8121 = vunpack.c.l.b16 %v7986
    %v8122 = vunpack.c.l.b16 %v7987
    %v8123 = vunpack.c.l.b16 %v7988
    %v8124 = vunpack.c.l.b16 %v7989
    %v8125 = vunpack.c.l.b16 %v7990
    %v8126 = vunpack.c.l.b16 %v7991
    %v8127 = vunpack.c.l.b16 %v7992
    %v8128 = vunpack.c.l.b16 %v7993
    %v8129 = vunpack.c.l.b16 %v7994
    %v8130 = vunpack.c.l.b16 %v7995
    %v8131 = vunpack.c.l.b16 %v7996
    %v8132 = vunpack.c.l.b16 %v7997
    %v8133 = vunpack.c.l.b16 %v7998
    %v8134 = vunpack.c.l.b16 %v7999
    %v8135 = vunpack.c.l.b16 %v8000
    %v8136 = vunpack.c.l.b16 %v8001
    %v8137 = vunpack.c.l.b16 %v8002
    %v8138 = vunpack.c.l.b16 %v8003
    %v8139 = vunpack.c.l.b16 %v8004
    %v8140 = vunpack.c.l.b16 %v8005
    %v8141 = vunpack.c.l.b16 %v8006
    %v8142 = vunpack.c.l.b16 %v8007
    %v8143 = vunpack.c.l.b16 %v8008
    %v8144 = vunpack.c.l.b16 %v8009
    %v8145 = vunpack.c.l.b16 %v8010
    %v8146 = vunpack.c.l.b16 %v8011
    %v8147 = vunpack.c.l.b16 %v8012
    %v8148 = vunpack.c.l.b16 %v8013
    %v8149 = vunpack.c.l.b16 %v8014
    %v8150 = vunpack.c.l.b16 %v8015
    %v8151 = vunpack.c.l.b16 %v8016
    %v8152 = vunpack.c.l.b16 %v8017
    %v8153 = vunpack.c.l.b16 %v8018
    %v8154 = vunpack.c.l.b16 %v8019
    %v8155 = vunpack.c.l.b16 %v8020
    %v8156 = vunpack.c.l.b16 %v8021
    %v8157 = vunpack.c.l.b16 %v8022
    %v8158 = vunpack.c.l.b16 %v8023
    %v8159 = vunpack.c.l.b16 %v8024
    %v8160 = vunpack.c.l.b16 %v8025
    %v8161 = vunpack.c.l.b16 %v8026
    %v8162 = vunpack.c.l.b16 %v8027
    %v8163 = vunpack.c.l.b16 %v8028
    %v8164 = vpack.c.b16 %v8101, %v8100
    %v8165 = vpack.c.b16 %v8103, %v8102
    %v8166 = vpack.c.b16 %v8105, %v8104
    %v8167 = vpack.c.b16 %v8107, %v8106
    %v8168 = vpack.c.b16 %v8109, %v8108
    %v8169 = vpack.c.b16 %v8111, %v8110
    %v8170 = vpack.c.b16 %v8113, %v8112
    %v8171 = vpack.c.b16 %v8115, %v8114
    %v8172 = vpack.c.b16 %v8117, %v8116
    %v8173 = vpack.c.b16 %v8119, %v8118
    %v8174 = vpack.c.b16 %v8121, %v8120
    %v8175 = vpack.c.b16 %v8123, %v8122
    %v8176 = vpack.c.b16 %v8125, %v8124
    %v8177 = vpack.c.b16 %v8127, %v8126
    %v8178 = vpack.c.b16 %v8129, %v8128
    %v8179 = vpack.c.b16 %v8131, %v8130
    %v8180 = vpack.c.b16 %v8133, %v8132
    %v8181 = vpack.c.b16 %v8135, %v8134
    %v8182 = vpack.c.b16 %v8137, %v8136
    %v8183 = vpack.c.b16 %v8139, %v8138
    %v8184 = vpack.c.b16 %v8141, %v8140
    %v8185 = vpack.c.b16 %v8143, %v8142
    %v8186 = vpack.c.b16 %v8145, %v8144
    %v8187 = vpack.c.b16 %v8147, %v8146
    %v8188 = vpack.c.b16 %v8149, %v8148
    %v8189 = vpack.c.b16 %v8151, %v8150
    %v8190 = vpack.c.b16 %v8153, %v8152
    %v8191 = vpack.c.b16 %v8155, %v8154
    %v8192 = vpack.c.b16 %v8157, %v8156
    %v8193 = vpack.c.b16 %v8159, %v8158
    %v8194 = vpack.c.b16 %v8161, %v8160
    %v8195 = vpack.c.b16 %v8163, %v8162
    %8228 = vmatprep.subr.bf16.mxu0 0
    %8229 = vmatpush1.bf16.msra.mxu0 %v8164
    %8230 = vmatprep.subr.bf16.mxu0 0
    %8231 = vmatpush1.bf16.msra.mxu0 %v8165
    %8232 = vmatprep.subr.bf16.mxu0 0
    %8233 = vmatpush1.bf16.msra.mxu0 %v8166
    %8234 = vmatprep.subr.bf16.mxu0 0
    %8235 = vmatpush1.bf16.msra.mxu0 %v8167
    %8236 = vmatprep.subr.bf16.mxu0 0
    %8237 = vmatpush1.bf16.msra.mxu0 %v8168
    %8238 = vmatprep.subr.bf16.mxu0 0
    %8239 = vmatpush1.bf16.msra.mxu0 %v8169
    %8240 = vmatprep.subr.bf16.mxu0 0
    %8241 = vmatpush1.bf16.msra.mxu0 %v8170
    %8242 = vmatprep.subr.bf16.mxu0 0
    %8243 = vmatpush1.bf16.msra.mxu0 %v8171
    %8244 = vmatprep.subr.bf16.mxu0 0
    %8245 = vmatpush1.bf16.msra.mxu0 %v8172
    %8246 = vmatprep.subr.bf16.mxu0 0
    %8247 = vmatpush1.bf16.msra.mxu0 %v8173
    %8248 = vmatprep.subr.bf16.mxu0 0
    %8249 = vmatpush1.bf16.msra.mxu0 %v8174
    %8250 = vmatprep.subr.bf16.mxu0 0
    %8251 = vmatpush1.bf16.msra.mxu0 %v8175
    %8252 = vmatprep.subr.bf16.mxu0 0
    %8253 = vmatpush1.bf16.msra.mxu0 %v8176
    %8254 = vmatprep.subr.bf16.mxu0 0
    %8255 = vmatpush1.bf16.msra.mxu0 %v8177
    %8256 = vmatprep.subr.bf16.mxu0 0
    %8257 = vmatpush1.bf16.msra.mxu0 %v8178
    %8258 = vmatprep.subr.bf16.mxu0 0
    %8259 = vmatpush1.bf16.msra.mxu0 %v8179
    %8260 = vmatprep.mubr.bf16.mxu0 %v7962
    %8261 = vmatmul.mubr.bf16.gmra.mrb[0].mxu0 %v7961
    %v8262 = vpop.f32.mrb[0].mxu0
    %v8263 = vadd.f32 %v8034, %v8262
    %v8264 = vpop.f32.mrb[0].mxu0
    %v8265 = vpop.f32.mrb[0].mxu0
    %v8266 = vpop.f32.mrb[0].mxu0
    %8267 = vdwg.mxu0
    %8268 = vmatprep.subr.bf16.mxu0 0
    %8269 = vmatpush1.bf16.msra.mxu0 %v8180
    %8270 = vmatprep.subr.bf16.mxu0 0
    %8271 = vmatpush1.bf16.msra.mxu0 %v8181
    %8272 = vmatprep.subr.bf16.mxu0 0
    %8273 = vmatpush1.bf16.msra.mxu0 %v8182
    %8274 = vmatprep.subr.bf16.mxu0 0
    %8275 = vmatpush1.bf16.msra.mxu0 %v8183
    %8276 = vmatprep.subr.bf16.mxu0 0
    %8277 = vmatpush1.bf16.msra.mxu0 %v8184
    %8278 = vmatprep.subr.bf16.mxu0 0
    %8279 = vmatpush1.bf16.msra.mxu0 %v8185
    %8280 = vmatprep.subr.bf16.mxu0 0
    %8281 = vmatpush1.bf16.msra.mxu0 %v8186
    %8282 = vmatprep.subr.bf16.mxu0 0
    %8283 = vmatpush1.bf16.msra.mxu0 %v8187
    %8284 = vmatprep.subr.bf16.mxu0 0
    %8285 = vmatpush1.bf16.msra.mxu0 %v8188
    %8286 = vmatprep.subr.bf16.mxu0 0
    %8287 = vmatpush1.bf16.msra.mxu0 %v8189
    %8288 = vmatprep.subr.bf16.mxu0 0
    %8289 = vmatpush1.bf16.msra.mxu0 %v8190
    %8290 = vmatprep.subr.bf16.mxu0 0
    %8291 = vmatpush1.bf16.msra.mxu0 %v8191
    %8292 = vmatprep.subr.bf16.mxu0 0
    %8293 = vmatpush1.bf16.msra.mxu0 %v8192
    %8294 = vmatprep.subr.bf16.mxu0 0
    %8295 = vmatpush1.bf16.msra.mxu0 %v8193
    %8296 = vmatprep.subr.bf16.mxu0 0
    %8297 = vmatpush1.bf16.msra.mxu0 %v8194
    %8298 = vmatprep.subr.bf16.mxu0 0
    %8299 = vmatpush1.bf16.msra.mxu0 %v8195
    %8300 = vmatprep.mubr.bf16.mxu0 %v7964
    %8301 = vmatmul.mubr.bf16.gmra.mrb[0].mxu0 %v7963
    %v8302 = vpop.f32.mrb[0].mxu0
    %v8303 = vadd.f32 %v8263, %v8302
    %v8304 = vpop.f32.mrb[0].mxu0
    %v8305 = vpop.f32.mrb[0].mxu0
    %v8306 = vpop.f32.mrb[0].mxu0
    %8307 = vdwg.mxu0
    %8308 = vst [vmem:[#allocation2] sm:$0x3] %v8303
    // Predicated region
    $region46: #{dqn_forward.1} parent=1 // pred_check
      _
    $region47: #{dqn_forward.1} parent=1 // pred_check_branch
      %8310 = sbr.rel (0) target = $region49
    $region48: #{dqn_forward.1} parent=1 // pred_region
      %s8312 = ssub.s32 32, 32
      %8313 = vsyncadd [#allocation3], %s8312
      %s8315 = sshll.u32 [#allocation2], 4
      %s8316 = int_to_ptr.vmem [resolvable:$true] %s8315
      %8318 = dma.vmem_to_hbm [thread:$0]  %s8316, 32, %s11, [#allocation3]
    $region49: #{dqn_forward.1} parent=1 // pred_fallthru
      _
    // Predicated region
    $region50: #{dqn_forward.1} parent=1 // pred_check
      _
    $region51: #{dqn_forward.1} parent=1 // pred_check_branch
      %8320 = sbr.rel (0) target = $region53
    $region52: #{dqn_forward.1} parent=1 // pred_region
      %8321 = dma.done [#allocation3], 32
    $region53: #{dqn_forward.1} parent=1 // pred_fallthru
      _
    %8322 = vsyncpa [#allocation3], 1

</llo_original>
